<compile_context>
chip_gen: v6e
topology: v6e:2x2x1
jax: 0.10.0
libtpu: 0.0.40
codegen_flags: <defaults>
</compile_context>

<pallas_src>
import numpy as np
import jax
import jax.numpy as jnp
from jax.experimental import pallas as pl
from jax.experimental.pallas import tpu as pltpu


# -----------------------------------------------------------------------------
# Host-side helpers
# -----------------------------------------------------------------------------
def _bilinear_matrix(out_size, in_size):
    """[out_size, in_size] matrix reproducing
    torch.nn.Upsample(size=..., mode='bilinear', align_corners=False)."""
    m = np.zeros((out_size, in_size), dtype=np.float32)
    if in_size == 1:
        m[:, 0] = 1.0
        return m
    scale = in_size / out_size
    for i in range(out_size):
        src = max((i + 0.5) * scale - 0.5, 0.0)
        i0 = min(int(np.floor(src)), in_size - 1)
        lam = src - i0
        i1 = min(i0 + 1, in_size - 1)
        m[i, i0] += 1.0 - lam
        m[i, i1] += lam
    return m


def _tap_offsets_and_masks(D, H, W):
    """Flat-index shift offsets and boundary-validity masks for the 27 taps of
    a 3x3x3 / pad=1 conv applied on the flattened (d,h,w) spatial axis."""
    HW = H * W
    N = D * HW
    idx = np.arange(N)
    d = idx // HW
    h = (idx // W) % H
    w = idx % W
    offsets, masks = [], []
    for kd in (-1, 0, 1):
        for kh in (-1, 0, 1):
            for kw in (-1, 0, 1):
                offsets.append(kd * HW + kh * W + kw)
                valid = ((d + kd >= 0) & (d + kd < D) &
                         (h + kh >= 0) & (h + kh < H) &
                         (w + kw >= 0) & (w + kw < W))
                masks.append(valid.astype(np.float32))
    return offsets, np.stack(masks, axis=0)   # offsets: python ints, masks: [27, N]


def init_params(key, dim):
    """Deterministic synthetic parameters for the stereo_head.
    NOTE: BatchNorm3d is implemented in inference mode (gamma/beta + running
    stats folded into a per-channel scale/shift)."""
    ks = jax.random.split(key, 10)
    eps = 1e-5
    gamma = 1.0 + 0.1 * jax.random.normal(ks[0], (dim,), jnp.float32)
    beta = 0.1 * jax.random.normal(ks[1], (dim,), jnp.float32)
    running_mean = 0.1 * jax.random.normal(ks[2], (dim,), jnp.float32)
    running_var = 1.0 + 0.1 * jnp.abs(jax.random.normal(ks[3], (dim,), jnp.float32))
    scale = gamma / jnp.sqrt(running_var + eps)
    shift = beta - running_mean * scale
    # Conv3d weights stored as [kD, kH, kW, Cin, Cout] (channels-last kernel layout).
    w1 = 0.15 * jax.random.normal(ks[4], (3, 3, 3, dim, dim), jnp.float32)
    b1 = 0.05 * jax.random.normal(ks[5], (dim,), jnp.float32)
    w2 = 0.15 * jax.random.normal(ks[6], (3, 3, 3, dim, dim), jnp.float32)
    b2 = 0.05 * jax.random.normal(ks[7], (dim,), jnp.float32)
    w3 = 0.15 * jax.random.normal(ks[8], (dim,), jnp.float32)   # 1x1x1 conv, Cout=1
    b3 = 0.05 * jax.random.normal(ks[9], (1,), jnp.float32)
    return scale, shift, w1, b1, w2, b2, w3, b3


# -----------------------------------------------------------------------------
# Wrapper = HGHead.forward  (Pallas kernel defined inside: needs static shapes)
# -----------------------------------------------------------------------------
def hg_head_forward(x_ncdhw, params, image_size):
    """x_ncdhw: [B, C, D, H, W] (PyTorch layout). Returns (x_hg, y[B, D, OH, OW])."""
    # TODO(synk): Hourglass3D's definition is not provided in the reference
    # source, so self.hg is treated as an identity pass-through here.
    x_hg = x_ncdhw
    B, C, D, H, W = x_hg.shape
    OH, OW = image_size
    HW = H * W
    N = D * HW

    # channels-on-sublanes / flat-spatial-on-lanes view (pure reshape of NCDHW)
    x_flat = x_hg.reshape(B, C, N).astype(jnp.float32)

    scale, shift, w1, b1, w2, b2, w3, b3 = params
    # pre-flatten 3x3x3 weights to [Cout, 27*Cin], column order (kd, kh, kw, cin)
    w1m = jnp.transpose(w1, (4, 0, 1, 2, 3)).reshape(C, 27 * C)
    w2m = jnp.transpose(w2, (4, 0, 1, 2, 3)).reshape(C, 27 * C)

    tap_offsets, masks_np = _tap_offsets_and_masks(D, H, W)
    masks = jnp.asarray(masks_np)                        # [27, N] float32

    lh = jnp.asarray(_bilinear_matrix(OH, H))            # [OH, H]
    lwt = jnp.asarray(_bilinear_matrix(OW, W).T)         # [W, OW]

    # flat zero-halo (covers the largest tap shift), lane-aligned
    max_off = HW + W + 1
    PADF = ((max_off + 127) // 128) * 128
    NPAD = N + 2 * PADF

    def kernel(x_ref, scale_ref, shift_ref, w1m_ref, b1_ref, w2m_ref, b2_ref,
               w3_ref, b3_ref, masks_ref, lh_ref, lwt_ref, y_ref,
               apad_ref, patch_ref, ylw_ref):
        # Zero only the halo (redone every grid step so it is correct under
        # megacore "parallel" sharding of the batch axis); the interior is
        # always fully overwritten before it is read.
        halo = jnp.zeros((C, PADF), jnp.float32)
        apad_ref[:, :PADF] = halo
        apad_ref[:, PADF + N:] = halo

        # ---- BatchNorm3d (inference, folded) + ReLU ------------------------
        a = jnp.maximum(x_ref[0] * scale_ref[...] + shift_ref[...], 0.0)  # [C, N]

        # ---- 3x3x3 Conv3d, pad=1: ONE im2col matmul (K = 27*C) -------------
        def conv3x3x3_relu(a_in, wm_ref, b_ref):
            apad_ref[:, PADF:PADF + N] = a_in
            for t, off in enumerate(tap_offsets):               # static unroll (27)
                s = PADF + off
                shifted = apad_ref[:, s:s + N]                  # [C, N] shifted view
                patch_ref[t * C:(t + 1) * C, :] = shifted * masks_ref[t:t + 1, :]
            # NOTE: operands kept in f32 (a bf16 cast is a further MXU win but
            # would consume most of the 2e-3 validation budget).
            o = jnp.dot(wm_ref[...], patch_ref[...],
                        preferred_element_type=jnp.float32)     # [C, N]
            return jnp.maximum(o + b_ref[...], 0.0)

        a1 = conv3x3x3_relu(a, w1m_ref, b1_ref)
        a2 = conv3x3x3_relu(a1, w2m_ref, b2_ref)

        # ---- 1x1x1 Conv3d  C -> 1  (+ bias), channel squeeze ---------------
        y_low = jnp.dot(w3_ref[...], a2,
                        preferred_element_type=jnp.float32) + b3_ref[...]  # [1, N]

        # ---- bilinear upsample (align_corners=False), separable ------------
        # Relayout flat y_low -> [D*H, W] via a tiny scratch (contiguous chunk
        # stores; avoids a minor-dim value reshape).  D*H is small here; at
        # production sizes this relayout would ride on the D-tiled grid.
        for dh in range(D * H):
            ylw_ref[dh, :] = y_low[0, dh * W:(dh + 1) * W]
        t1 = jnp.dot(ylw_ref[...], lwt_ref[...],
                     preferred_element_type=jnp.float32)         # [D*H, OW]
        t1 = t1.reshape(D, H, OW)
        lhb = jnp.broadcast_to(lh_ref[...], (D, OH, H))
        y_up = jnp.einsum('doh,dhw->dow', lhb, t1,
                          preferred_element_type=jnp.float32)    # [D, OH, OW]
        # Output block is a full contiguous slab per batch element; at
        # production sizes OW >= 128 so the stores are lane-dense too.
        y_ref[0] = y_up

    def const(shape):
        nd = len(shape)
        return pl.BlockSpec(shape, lambda b, _nd=nd: (0,) * _nd)

    # NOTE: for production D/H/W the grid should additionally tile over D with
    # a 1-voxel halo (and both v7x TensorCores); at this size B-only is enough.
    y = pl.pallas_call(
        kernel,
        out_shape=jax.ShapeDtypeStruct((B, D, OH, OW), jnp.float32),
        grid=(B,),
        in_specs=[
            pl.BlockSpec((1, C, N), lambda b: (b, 0, 0)),   # x, flat spatial on lanes
            const((C, 1)),                                  # bn scale
            const((C, 1)),                                  # bn shift
            const((C, 27 * C)),                             # w1 (pre-flattened)
            const((C, 1)),                                  # b1
            const((C, 27 * C)),                             # w2 (pre-flattened)
            const((C, 1)),                                  # b2
            const((1, C)),                                  # w3 (1x1x1)
            const((1, 1)),                                  # b3
            const((27, N)),                                 # tap validity masks
            const((OH, H)),                                 # Lh
            const((W, OW)),                                 # Lw^T
        ],
        out_specs=pl.BlockSpec((1, D, OH, OW), lambda b: (b, 0, 0, 0)),
        scratch_shapes=[
            pltpu.VMEM((C, NPAD), jnp.float32),             # flat zero-haloed act
            pltpu.VMEM((27 * C, N), jnp.float32),           # im2col patch
            pltpu.VMEM((D * H, W), jnp.float32),            # y_low relayout
        ],
        compiler_params=pltpu.CompilerParams(
            dimension_semantics=("parallel",),
            vmem_limit_bytes=32 * 1024 * 1024,
        ),
    )(x_flat, scale.reshape(C, 1), shift.reshape(C, 1),
      w1m, b1.reshape(C, 1), w2m, b2.reshape(C, 1),
      w3.reshape(1, C), b3.reshape(1, 1),
      masks, lh, lwt)

    return x_hg, y


# -----------------------------------------------------------------------------
# Pure-JAX reference (correctness check)
# -----------------------------------------------------------------------------
def _reference(x_ncdhw, params, image_size):
    scale, shift, w1, b1, w2, b2, w3, b3 = params
    x = jnp.transpose(x_ncdhw, (0, 2, 3, 4, 1)).astype(jnp.float32)   # NDHWC
    B, D, H, W, C = x.shape
    OH, OW = image_size

    def conv3(a, w, bias):
        o = jax.lax.conv_general_dilated(
            a, w, (1, 1, 1), 'SAME',
            dimension_numbers=('NDHWC', 'DHWIO', 'NDHWC'))
        return o + bias

    a = jnp.maximum(x * scale + shift, 0.0)
    a = jnp.maximum(conv3(a, w1, b1), 0.0)
    a = jnp.maximum(conv3(a, w2, b2), 0.0)
    y_low = jnp.einsum('bdhwc,c->bdhw', a, w3) + b3[0]
    lh = jnp.asarray(_bilinear_matrix(OH, H))
    lw = jnp.asarray(_bilinear_matrix(OW, W))
    y = jnp.einsum('oh,bdhw->bdow', lh, y_low)
    y = jnp.einsum('pw,bdow->bdop', lw, y)
    return y


if __name__ == "__main__":
    key = jax.random.PRNGKey(0)
    kx, kp = jax.random.split(key)

    B, C, D, H, W = 2, 4, 8, 8, 8         # [b c d h w], dim=4
    image_size = (16, 16)                 # (oh, ow)

    x = jax.random.normal(kx, (B, C, D, H, W), jnp.float32)   # PyTorch NCDHW
    params = init_params(kp, C)

    x_hg, y = hg_head_forward(x, params, image_size)
    jax.block_until_ready((x_hg, y))

    assert x_hg.shape == (B, C, D, H, W)
    assert y.shape == (B, D) + image_size

    y_ref = _reference(x, params, image_size)
    err = float(jnp.max(jnp.abs(y - y_ref)))
    assert err < 2e-3, f"mismatch vs reference: {err}"

    print("KERNEL_OK")
</pallas_src>

<mosaic_0001>
module attributes {stable_mosaic.version = 11 : i64} {
  func.func @kernel(%arg0: i32, %arg1: memref<1x4x512xf32, #tpu.memory_space<vmem>>, %arg2: memref<4x1xf32, #tpu.memory_space<vmem>>, %arg3: memref<4x1xf32, #tpu.memory_space<vmem>>, %arg4: memref<4x108xf32, #tpu.memory_space<vmem>>, %arg5: memref<4x1xf32, #tpu.memory_space<vmem>>, %arg6: memref<4x108xf32, #tpu.memory_space<vmem>>, %arg7: memref<4x1xf32, #tpu.memory_space<vmem>>, %arg8: memref<1x4xf32, #tpu.memory_space<vmem>>, %arg9: memref<1x1xf32, #tpu.memory_space<vmem>>, %arg10: memref<27x512xf32, #tpu.memory_space<vmem>>, %arg11: memref<16x8xf32, #tpu.memory_space<vmem>>, %arg12: memref<8x16xf32, #tpu.memory_space<vmem>>, %arg13: memref<1x8x16x16xf32, #tpu.memory_space<vmem>>, %arg14: memref<4x768xf32, #tpu.memory_space<vmem>>, %arg15: memref<108x512xf32, #tpu.memory_space<vmem>>, %arg16: memref<64x8xf32, #tpu.memory_space<vmem>>) attributes {dimension_semantics = [#tpu.dimension_semantics<parallel>], iteration_bounds = array<i64: 2>, scalar_prefetch = 0 : i64, scratch_operands = 3 : i64, tpu.core_type = #tpu.core_type<tc>, window_params = [{transform_indices = @transform_0, window_bounds = array<i64: 1, 4, 512>}, {pipeline_mode = #tpu.pipeline_mode<synchronous>, transform_indices = @transform_1, window_bounds = array<i64: 4, 1>}, {pipeline_mode = #tpu.pipeline_mode<synchronous>, transform_indices = @transform_2, window_bounds = array<i64: 4, 1>}, {pipeline_mode = #tpu.pipeline_mode<synchronous>, transform_indices = @transform_3, window_bounds = array<i64: 4, 108>}, {pipeline_mode = #tpu.pipeline_mode<synchronous>, transform_indices = @transform_4, window_bounds = array<i64: 4, 1>}, {pipeline_mode = #tpu.pipeline_mode<synchronous>, transform_indices = @transform_5, window_bounds = array<i64: 4, 108>}, {pipeline_mode = #tpu.pipeline_mode<synchronous>, transform_indices = @transform_6, window_bounds = array<i64: 4, 1>}, {pipeline_mode = #tpu.pipeline_mode<synchronous>, transform_indices = @transform_7, window_bounds = array<i64: 1, 4>}, {pipeline_mode = #tpu.pipeline_mode<synchronous>, transform_indices = @transform_8, window_bounds = array<i64: 1, 1>}, {pipeline_mode = #tpu.pipeline_mode<synchronous>, transform_indices = @transform_9, window_bounds = array<i64: 27, 512>}, {pipeline_mode = #tpu.pipeline_mode<synchronous>, transform_indices = @transform_10, window_bounds = array<i64: 16, 8>}, {pipeline_mode = #tpu.pipeline_mode<synchronous>, transform_indices = @transform_11, window_bounds = array<i64: 8, 16>}, {transform_indices = @transform_12, window_bounds = array<i64: 1, 8, 16, 16>}]} {
    %cst = arith.constant 0.000000e+00 : f32
    %0 = vector.broadcast %cst : f32 to vector<4x128xf32>
    %c0 = arith.constant 0 : index
    %c0_0 = arith.constant 0 : index
    %1 = vector.load %arg14[%c0, %c0_0] : memref<4x768xf32, #tpu.memory_space<vmem>>, vector<4x128xf32>
    tpu.vector_store %arg14[%c0, %c0_0], %0 {strides = array<i32>} : memref<4x768xf32, #tpu.memory_space<vmem>>, vector<4x128xf32>,
    %c0_1 = arith.constant 0 : index
    %c640 = arith.constant 640 : index
    %2 = vector.load %arg14[%c0_1, %c640] : memref<4x768xf32, #tpu.memory_space<vmem>>, vector<4x128xf32>
    tpu.vector_store %arg14[%c0_1, %c640], %0 {strides = array<i32>} : memref<4x768xf32, #tpu.memory_space<vmem>>, vector<4x128xf32>,
    %c0_2 = arith.constant 0 : index
    %c0_3 = arith.constant 0 : index
    %c0_4 = arith.constant 0 : index
    %3 = vector.load %arg1[%c0_2, %c0_3, %c0_4] : memref<1x4x512xf32, #tpu.memory_space<vmem>>, vector<1x4x512xf32>
    %4 = vector.shape_cast %3 : vector<1x4x512xf32> to vector<4x512xf32>
    %c0_5 = arith.constant 0 : index
    %c0_6 = arith.constant 0 : index
    %5 = vector.load %arg2[%c0_5, %c0_6] : memref<4x1xf32, #tpu.memory_space<vmem>>, vector<4x1xf32>
    %6 = vector.broadcast %5 : vector<4x1xf32> to vector<4x512xf32>
    %7 = arith.mulf %4, %6 : vector<4x512xf32>
    %c0_7 = arith.constant 0 : index
    %c0_8 = arith.constant 0 : index
    %8 = vector.load %arg3[%c0_7, %c0_8] : memref<4x1xf32, #tpu.memory_space<vmem>>, vector<4x1xf32>
    %9 = vector.broadcast %8 : vector<4x1xf32> to vector<4x512xf32>
    %10 = arith.addf %7, %9 : vector<4x512xf32>
    %cst_9 = arith.constant 0.000000e+00 : f32
    %11 = vector.broadcast %cst_9 : f32 to vector<4x512xf32>
    %12 = arith.maximumf %10, %11 : vector<4x512xf32>
    %c0_10 = arith.constant 0 : index
    %c128 = arith.constant 128 : index
    %13 = vector.load %arg14[%c0_10, %c128] : memref<4x768xf32, #tpu.memory_space<vmem>>, vector<4x512xf32>
    tpu.vector_store %arg14[%c0_10, %c128], %12 {strides = array<i32>} : memref<4x768xf32, #tpu.memory_space<vmem>>, vector<4x512xf32>,
    %c0_11 = arith.constant 0 : index
    %c55 = arith.constant 55 : index
    %14 = vector.load %arg14[%c0_11, %c55] : memref<4x768xf32, #tpu.memory_space<vmem>>, vector<4x512xf32>
    %c0_12 = arith.constant 0 : index
    %c0_13 = arith.constant 0 : index
    %15 = vector.load %arg10[%c0_12, %c0_13] : memref<27x512xf32, #tpu.memory_space<vmem>>, vector<1x512xf32>
    %16 = vector.broadcast %15 : vector<1x512xf32> to vector<4x512xf32>
    %17 = arith.mulf %14, %16 : vector<4x512xf32>
    %c0_14 = arith.constant 0 : index
    %c0_15 = arith.constant 0 : index
    %18 = vector.load %arg15[%c0_14, %c0_15] : memref<108x512xf32, #tpu.memory_space<vmem>>, vector<4x512xf32>
    tpu.vector_store %arg15[%c0_14, %c0_15], %17 {strides = array<i32>} : memref<108x512xf32, #tpu.memory_space<vmem>>, vector<4x512xf32>,
    %c0_16 = arith.constant 0 : index
    %c56 = arith.constant 56 : index
    %19 = vector.load %arg14[%c0_16, %c56] : memref<4x768xf32, #tpu.memory_space<vmem>>, vector<4x512xf32>
    %c1 = arith.constant 1 : index
    %c0_17 = arith.constant 0 : index
    %20 = vector.load %arg10[%c1, %c0_17] : memref<27x512xf32, #tpu.memory_space<vmem>>, vector<1x512xf32>
    %21 = vector.broadcast %20 : vector<1x512xf32> to vector<4x512xf32>
    %22 = arith.mulf %19, %21 : vector<4x512xf32>
    %c4 = arith.constant 4 : index
    %c0_18 = arith.constant 0 : index
    %23 = vector.load %arg15[%c4, %c0_18] : memref<108x512xf32, #tpu.memory_space<vmem>>, vector<4x512xf32>
    tpu.vector_store %arg15[%c4, %c0_18], %22 {strides = array<i32>} : memref<108x512xf32, #tpu.memory_space<vmem>>, vector<4x512xf32>,
    %c0_19 = arith.constant 0 : index
    %c57 = arith.constant 57 : index
    %24 = vector.load %arg14[%c0_19, %c57] : memref<4x768xf32, #tpu.memory_space<vmem>>, vector<4x512xf32>
    %c2 = arith.constant 2 : index
    %c0_20 = arith.constant 0 : index
    %25 = vector.load %arg10[%c2, %c0_20] : memref<27x512xf32, #tpu.memory_space<vmem>>, vector<1x512xf32>
    %26 = vector.broadcast %25 : vector<1x512xf32> to vector<4x512xf32>
    %27 = arith.mulf %24, %26 : vector<4x512xf32>
    %c8 = arith.constant 8 : index
    %c0_21 = arith.constant 0 : index
    %28 = vector.load %arg15[%c8, %c0_21] : memref<108x512xf32, #tpu.memory_space<vmem>>, vector<4x512xf32>
    tpu.vector_store %arg15[%c8, %c0_21], %27 {strides = array<i32>} : memref<108x512xf32, #tpu.memory_space<vmem>>, vector<4x512xf32>,
    %c0_22 = arith.constant 0 : index
    %c63 = arith.constant 63 : index
    %29 = vector.load %arg14[%c0_22, %c63] : memref<4x768xf32, #tpu.memory_space<vmem>>, vector<4x512xf32>
    %c3 = arith.constant 3 : index
    %c0_23 = arith.constant 0 : index
    %30 = vector.load %arg10[%c3, %c0_23] : memref<27x512xf32, #tpu.memory_space<vmem>>, vector<1x512xf32>
    %31 = vector.broadcast %30 : vector<1x512xf32> to vector<4x512xf32>
    %32 = arith.mulf %29, %31 : vector<4x512xf32>
    %c12 = arith.constant 12 : index
    %c0_24 = arith.constant 0 : index
    %33 = vector.load %arg15[%c12, %c0_24] : memref<108x512xf32, #tpu.memory_space<vmem>>, vector<4x512xf32>
    tpu.vector_store %arg15[%c12, %c0_24], %32 {strides = array<i32>} : memref<108x512xf32, #tpu.memory_space<vmem>>, vector<4x512xf32>,
    %c0_25 = arith.constant 0 : index
    %c64 = arith.constant 64 : index
    %34 = vector.load %arg14[%c0_25, %c64] : memref<4x768xf32, #tpu.memory_space<vmem>>, vector<4x512xf32>
    %c4_26 = arith.constant 4 : index
    %c0_27 = arith.constant 0 : index
    %35 = vector.load %arg10[%c4_26, %c0_27] : memref<27x512xf32, #tpu.memory_space<vmem>>, vector<1x512xf32>
    %36 = vector.broadcast %35 : vector<1x512xf32> to vector<4x512xf32>
    %37 = arith.mulf %34, %36 : vector<4x512xf32>
    %c16 = arith.constant 16 : index
    %c0_28 = arith.constant 0 : index
    %38 = vector.load %arg15[%c16, %c0_28] : memref<108x512xf32, #tpu.memory_space<vmem>>, vector<4x512xf32>
    tpu.vector_store %arg15[%c16, %c0_28], %37 {strides = array<i32>} : memref<108x512xf32, #tpu.memory_space<vmem>>, vector<4x512xf32>,
    %c0_29 = arith.constant 0 : index
    %c65 = arith.constant 65 : index
    %39 = vector.load %arg14[%c0_29, %c65] : memref<4x768xf32, #tpu.memory_space<vmem>>, vector<4x512xf32>
    %c5 = arith.constant 5 : index
    %c0_30 = arith.constant 0 : index
    %40 = vector.load %arg10[%c5, %c0_30] : memref<27x512xf32, #tpu.memory_space<vmem>>, vector<1x512xf32>
    %41 = vector.broadcast %40 : vector<1x512xf32> to vector<4x512xf32>
    %42 = arith.mulf %39, %41 : vector<4x512xf32>
    %c20 = arith.constant 20 : index
    %c0_31 = arith.constant 0 : index
    %43 = vector.load %arg15[%c20, %c0_31] : memref<108x512xf32, #tpu.memory_space<vmem>>, vector<4x512xf32>
    tpu.vector_store %arg15[%c20, %c0_31], %42 {strides = array<i32>} : memref<108x512xf32, #tpu.memory_space<vmem>>, vector<4x512xf32>,
    %c0_32 = arith.constant 0 : index
    %c71 = arith.constant 71 : index
    %44 = vector.load %arg14[%c0_32, %c71] : memref<4x768xf32, #tpu.memory_space<vmem>>, vector<4x512xf32>
    %c6 = arith.constant 6 : index
    %c0_33 = arith.constant 0 : index
    %45 = vector.load %arg10[%c6, %c0_33] : memref<27x512xf32, #tpu.memory_space<vmem>>, vector<1x512xf32>
    %46 = vector.broadcast %45 : vector<1x512xf32> to vector<4x512xf32>
    %47 = arith.mulf %44, %46 : vector<4x512xf32>
    %c24 = arith.constant 24 : index
    %c0_34 = arith.constant 0 : index
    %48 = vector.load %arg15[%c24, %c0_34] : memref<108x512xf32, #tpu.memory_space<vmem>>, vector<4x512xf32>
    tpu.vector_store %arg15[%c24, %c0_34], %47 {strides = array<i32>} : memref<108x512xf32, #tpu.memory_space<vmem>>, vector<4x512xf32>,
    %c0_35 = arith.constant 0 : index
    %c72 = arith.constant 72 : index
    %49 = vector.load %arg14[%c0_35, %c72] : memref<4x768xf32, #tpu.memory_space<vmem>>, vector<4x512xf32>
    %c7 = arith.constant 7 : index
    %c0_36 = arith.constant 0 : index
    %50 = vector.load %arg10[%c7, %c0_36] : memref<27x512xf32, #tpu.memory_space<vmem>>, vector<1x512xf32>
    %51 = vector.broadcast %50 : vector<1x512xf32> to vector<4x512xf32>
    %52 = arith.mulf %49, %51 : vector<4x512xf32>
    %c28 = arith.constant 28 : index
    %c0_37 = arith.constant 0 : index
    %53 = vector.load %arg15[%c28, %c0_37] : memref<108x512xf32, #tpu.memory_space<vmem>>, vector<4x512xf32>
    tpu.vector_store %arg15[%c28, %c0_37], %52 {strides = array<i32>} : memref<108x512xf32, #tpu.memory_space<vmem>>, vector<4x512xf32>,
    %c0_38 = arith.constant 0 : index
    %c73 = arith.constant 73 : index
    %54 = vector.load %arg14[%c0_38, %c73] : memref<4x768xf32, #tpu.memory_space<vmem>>, vector<4x512xf32>
    %c8_39 = arith.constant 8 : index
    %c0_40 = arith.constant 0 : index
    %55 = vector.load %arg10[%c8_39, %c0_40] : memref<27x512xf32, #tpu.memory_space<vmem>>, vector<1x512xf32>
    %56 = vector.broadcast %55 : vector<1x512xf32> to vector<4x512xf32>
    %57 = arith.mulf %54, %56 : vector<4x512xf32>
    %c32 = arith.constant 32 : index
    %c0_41 = arith.constant 0 : index
    %58 = vector.load %arg15[%c32, %c0_41] : memref<108x512xf32, #tpu.memory_space<vmem>>, vector<4x512xf32>
    tpu.vector_store %arg15[%c32, %c0_41], %57 {strides = array<i32>} : memref<108x512xf32, #tpu.memory_space<vmem>>, vector<4x512xf32>,
    %c0_42 = arith.constant 0 : index
    %c119 = arith.constant 119 : index
    %59 = vector.load %arg14[%c0_42, %c119] : memref<4x768xf32, #tpu.memory_space<vmem>>, vector<4x512xf32>
    %c9 = arith.constant 9 : index
    %c0_43 = arith.constant 0 : index
    %60 = vector.load %arg10[%c9, %c0_43] : memref<27x512xf32, #tpu.memory_space<vmem>>, vector<1x512xf32>
    %61 = vector.broadcast %60 : vector<1x512xf32> to vector<4x512xf32>
    %62 = arith.mulf %59, %61 : vector<4x512xf32>
    %c36 = arith.constant 36 : index
    %c0_44 = arith.constant 0 : index
    %63 = vector.load %arg15[%c36, %c0_44] : memref<108x512xf32, #tpu.memory_space<vmem>>, vector<4x512xf32>
    tpu.vector_store %arg15[%c36, %c0_44], %62 {strides = array<i32>} : memref<108x512xf32, #tpu.memory_space<vmem>>, vector<4x512xf32>,
    %c0_45 = arith.constant 0 : index
    %c120 = arith.constant 120 : index
    %64 = vector.load %arg14[%c0_45, %c120] : memref<4x768xf32, #tpu.memory_space<vmem>>, vector<4x512xf32>
    %c10 = arith.constant 10 : index
    %c0_46 = arith.constant 0 : index
    %65 = vector.load %arg10[%c10, %c0_46] : memref<27x512xf32, #tpu.memory_space<vmem>>, vector<1x512xf32>
    %66 = vector.broadcast %65 : vector<1x512xf32> to vector<4x512xf32>
    %67 = arith.mulf %64, %66 : vector<4x512xf32>
    %c40 = arith.constant 40 : index
    %c0_47 = arith.constant 0 : index
    %68 = vector.load %arg15[%c40, %c0_47] : memref<108x512xf32, #tpu.memory_space<vmem>>, vector<4x512xf32>
    tpu.vector_store %arg15[%c40, %c0_47], %67 {strides = array<i32>} : memref<108x512xf32, #tpu.memory_space<vmem>>, vector<4x512xf32>,
    %c0_48 = arith.constant 0 : index
    %c121 = arith.constant 121 : index
    %69 = vector.load %arg14[%c0_48, %c121] : memref<4x768xf32, #tpu.memory_space<vmem>>, vector<4x512xf32>
    %c11 = arith.constant 11 : index
    %c0_49 = arith.constant 0 : index
    %70 = vector.load %arg10[%c11, %c0_49] : memref<27x512xf32, #tpu.memory_space<vmem>>, vector<1x512xf32>
    %71 = vector.broadcast %70 : vector<1x512xf32> to vector<4x512xf32>
    %72 = arith.mulf %69, %71 : vector<4x512xf32>
    %c44 = arith.constant 44 : index
    %c0_50 = arith.constant 0 : index
    %73 = vector.load %arg15[%c44, %c0_50] : memref<108x512xf32, #tpu.memory_space<vmem>>, vector<4x512xf32>
    tpu.vector_store %arg15[%c44, %c0_50], %72 {strides = array<i32>} : memref<108x512xf32, #tpu.memory_space<vmem>>, vector<4x512xf32>,
    %c0_51 = arith.constant 0 : index
    %c127 = arith.constant 127 : index
    %74 = vector.load %arg14[%c0_51, %c127] : memref<4x768xf32, #tpu.memory_space<vmem>>, vector<4x512xf32>
    %c12_52 = arith.constant 12 : index
    %c0_53 = arith.constant 0 : index
    %75 = vector.load %arg10[%c12_52, %c0_53] : memref<27x512xf32, #tpu.memory_space<vmem>>, vector<1x512xf32>
    %76 = vector.broadcast %75 : vector<1x512xf32> to vector<4x512xf32>
    %77 = arith.mulf %74, %76 : vector<4x512xf32>
    %c48 = arith.constant 48 : index
    %c0_54 = arith.constant 0 : index
    %78 = vector.load %arg15[%c48, %c0_54] : memref<108x512xf32, #tpu.memory_space<vmem>>, vector<4x512xf32>
    tpu.vector_store %arg15[%c48, %c0_54], %77 {strides = array<i32>} : memref<108x512xf32, #tpu.memory_space<vmem>>, vector<4x512xf32>,
    %c0_55 = arith.constant 0 : index
    %c128_56 = arith.constant 128 : index
    %79 = vector.load %arg14[%c0_55, %c128_56] : memref<4x768xf32, #tpu.memory_space<vmem>>, vector<4x512xf32>
    %c13 = arith.constant 13 : index
    %c0_57 = arith.constant 0 : index
    %80 = vector.load %arg10[%c13, %c0_57] : memref<27x512xf32, #tpu.memory_space<vmem>>, vector<1x512xf32>
    %81 = vector.broadcast %80 : vector<1x512xf32> to vector<4x512xf32>
    %82 = arith.mulf %79, %81 : vector<4x512xf32>
    %c52 = arith.constant 52 : index
    %c0_58 = arith.constant 0 : index
    %83 = vector.load %arg15[%c52, %c0_58] : memref<108x512xf32, #tpu.memory_space<vmem>>, vector<4x512xf32>
    tpu.vector_store %arg15[%c52, %c0_58], %82 {strides = array<i32>} : memref<108x512xf32, #tpu.memory_space<vmem>>, vector<4x512xf32>,
    %c0_59 = arith.constant 0 : index
    %c129 = arith.constant 129 : index
    %84 = vector.load %arg14[%c0_59, %c129] : memref<4x768xf32, #tpu.memory_space<vmem>>, vector<4x512xf32>
    %c14 = arith.constant 14 : index
    %c0_60 = arith.constant 0 : index
    %85 = vector.load %arg10[%c14, %c0_60] : memref<27x512xf32, #tpu.memory_space<vmem>>, vector<1x512xf32>
    %86 = vector.broadcast %85 : vector<1x512xf32> to vector<4x512xf32>
    %87 = arith.mulf %84, %86 : vector<4x512xf32>
    %c56_61 = arith.constant 56 : index
    %c0_62 = arith.constant 0 : index
    %88 = vector.load %arg15[%c56_61, %c0_62] : memref<108x512xf32, #tpu.memory_space<vmem>>, vector<4x512xf32>
    tpu.vector_store %arg15[%c56_61, %c0_62], %87 {strides = array<i32>} : memref<108x512xf32, #tpu.memory_space<vmem>>, vector<4x512xf32>,
    %c0_63 = arith.constant 0 : index
    %c135 = arith.constant 135 : index
    %89 = vector.load %arg14[%c0_63, %c135] : memref<4x768xf32, #tpu.memory_space<vmem>>, vector<4x512xf32>
    %c15 = arith.constant 15 : index
    %c0_64 = arith.constant 0 : index
    %90 = vector.load %arg10[%c15, %c0_64] : memref<27x512xf32, #tpu.memory_space<vmem>>, vector<1x512xf32>
    %91 = vector.broadcast %90 : vector<1x512xf32> to vector<4x512xf32>
    %92 = arith.mulf %89, %91 : vector<4x512xf32>
    %c60 = arith.constant 60 : index
    %c0_65 = arith.constant 0 : index
    %93 = vector.load %arg15[%c60, %c0_65] : memref<108x512xf32, #tpu.memory_space<vmem>>, vector<4x512xf32>
    tpu.vector_store %arg15[%c60, %c0_65], %92 {strides = array<i32>} : memref<108x512xf32, #tpu.memory_space<vmem>>, vector<4x512xf32>,
    %c0_66 = arith.constant 0 : index
    %c136 = arith.constant 136 : index
    %94 = vector.load %arg14[%c0_66, %c136] : memref<4x768xf32, #tpu.memory_space<vmem>>, vector<4x512xf32>
    %c16_67 = arith.constant 16 : index
    %c0_68 = arith.constant 0 : index
    %95 = vector.load %arg10[%c16_67, %c0_68] : memref<27x512xf32, #tpu.memory_space<vmem>>, vector<1x512xf32>
    %96 = vector.broadcast %95 : vector<1x512xf32> to vector<4x512xf32>
    %97 = arith.mulf %94, %96 : vector<4x512xf32>
    %c64_69 = arith.constant 64 : index
    %c0_70 = arith.constant 0 : index
    %98 = vector.load %arg15[%c64_69, %c0_70] : memref<108x512xf32, #tpu.memory_space<vmem>>, vector<4x512xf32>
    tpu.vector_store %arg15[%c64_69, %c0_70], %97 {strides = array<i32>} : memref<108x512xf32, #tpu.memory_space<vmem>>, vector<4x512xf32>,
    %c0_71 = arith.constant 0 : index
    %c137 = arith.constant 137 : index
    %99 = vector.load %arg14[%c0_71, %c137] : memref<4x768xf32, #tpu.memory_space<vmem>>, vector<4x512xf32>
    %c17 = arith.constant 17 : index
    %c0_72 = arith.constant 0 : index
    %100 = vector.load %arg10[%c17, %c0_72] : memref<27x512xf32, #tpu.memory_space<vmem>>, vector<1x512xf32>
    %101 = vector.broadcast %100 : vector<1x512xf32> to vector<4x512xf32>
    %102 = arith.mulf %99, %101 : vector<4x512xf32>
    %c68 = arith.constant 68 : index
    %c0_73 = arith.constant 0 : index
    %103 = vector.load %arg15[%c68, %c0_73] : memref<108x512xf32, #tpu.memory_space<vmem>>, vector<4x512xf32>
    tpu.vector_store %arg15[%c68, %c0_73], %102 {strides = array<i32>} : memref<108x512xf32, #tpu.memory_space<vmem>>, vector<4x512xf32>,
    %c0_74 = arith.constant 0 : index
    %c183 = arith.constant 183 : index
    %104 = vector.load %arg14[%c0_74, %c183] : memref<4x768xf32, #tpu.memory_space<vmem>>, vector<4x512xf32>
    %c18 = arith.constant 18 : index
    %c0_75 = arith.constant 0 : index
    %105 = vector.load %arg10[%c18, %c0_75] : memref<27x512xf32, #tpu.memory_space<vmem>>, vector<1x512xf32>
    %106 = vector.broadcast %105 : vector<1x512xf32> to vector<4x512xf32>
    %107 = arith.mulf %104, %106 : vector<4x512xf32>
    %c72_76 = arith.constant 72 : index
    %c0_77 = arith.constant 0 : index
    %108 = vector.load %arg15[%c72_76, %c0_77] : memref<108x512xf32, #tpu.memory_space<vmem>>, vector<4x512xf32>
    tpu.vector_store %arg15[%c72_76, %c0_77], %107 {strides = array<i32>} : memref<108x512xf32, #tpu.memory_space<vmem>>, vector<4x512xf32>,
    %c0_78 = arith.constant 0 : index
    %c184 = arith.constant 184 : index
    %109 = vector.load %arg14[%c0_78, %c184] : memref<4x768xf32, #tpu.memory_space<vmem>>, vector<4x512xf32>
    %c19 = arith.constant 19 : index
    %c0_79 = arith.constant 0 : index
    %110 = vector.load %arg10[%c19, %c0_79] : memref<27x512xf32, #tpu.memory_space<vmem>>, vector<1x512xf32>
    %111 = vector.broadcast %110 : vector<1x512xf32> to vector<4x512xf32>
    %112 = arith.mulf %109, %111 : vector<4x512xf32>
    %c76 = arith.constant 76 : index
    %c0_80 = arith.constant 0 : index
    %113 = vector.load %arg15[%c76, %c0_80] : memref<108x512xf32, #tpu.memory_space<vmem>>, vector<4x512xf32>
    tpu.vector_store %arg15[%c76, %c0_80], %112 {strides = array<i32>} : memref<108x512xf32, #tpu.memory_space<vmem>>, vector<4x512xf32>,
    %c0_81 = arith.constant 0 : index
    %c185 = arith.constant 185 : index
    %114 = vector.load %arg14[%c0_81, %c185] : memref<4x768xf32, #tpu.memory_space<vmem>>, vector<4x512xf32>
    %c20_82 = arith.constant 20 : index
    %c0_83 = arith.constant 0 : index
    %115 = vector.load %arg10[%c20_82, %c0_83] : memref<27x512xf32, #tpu.memory_space<vmem>>, vector<1x512xf32>
    %116 = vector.broadcast %115 : vector<1x512xf32> to vector<4x512xf32>
    %117 = arith.mulf %114, %116 : vector<4x512xf32>
    %c80 = arith.constant 80 : index
    %c0_84 = arith.constant 0 : index
    %118 = vector.load %arg15[%c80, %c0_84] : memref<108x512xf32, #tpu.memory_space<vmem>>, vector<4x512xf32>
    tpu.vector_store %arg15[%c80, %c0_84], %117 {strides = array<i32>} : memref<108x512xf32, #tpu.memory_space<vmem>>, vector<4x512xf32>,
    %c0_85 = arith.constant 0 : index
    %c191 = arith.constant 191 : index
    %119 = vector.load %arg14[%c0_85, %c191] : memref<4x768xf32, #tpu.memory_space<vmem>>, vector<4x512xf32>
    %c21 = arith.constant 21 : index
    %c0_86 = arith.constant 0 : index
    %120 = vector.load %arg10[%c21, %c0_86] : memref<27x512xf32, #tpu.memory_space<vmem>>, vector<1x512xf32>
    %121 = vector.broadcast %120 : vector<1x512xf32> to vector<4x512xf32>
    %122 = arith.mulf %119, %121 : vector<4x512xf32>
    %c84 = arith.constant 84 : index
    %c0_87 = arith.constant 0 : index
    %123 = vector.load %arg15[%c84, %c0_87] : memref<108x512xf32, #tpu.memory_space<vmem>>, vector<4x512xf32>
    tpu.vector_store %arg15[%c84, %c0_87], %122 {strides = array<i32>} : memref<108x512xf32, #tpu.memory_space<vmem>>, vector<4x512xf32>,
    %c0_88 = arith.constant 0 : index
    %c192 = arith.constant 192 : index
    %124 = vector.load %arg14[%c0_88, %c192] : memref<4x768xf32, #tpu.memory_space<vmem>>, vector<4x512xf32>
    %c22 = arith.constant 22 : index
    %c0_89 = arith.constant 0 : index
    %125 = vector.load %arg10[%c22, %c0_89] : memref<27x512xf32, #tpu.memory_space<vmem>>, vector<1x512xf32>
    %126 = vector.broadcast %125 : vector<1x512xf32> to vector<4x512xf32>
    %127 = arith.mulf %124, %126 : vector<4x512xf32>
    %c88 = arith.constant 88 : index
    %c0_90 = arith.constant 0 : index
    %128 = vector.load %arg15[%c88, %c0_90] : memref<108x512xf32, #tpu.memory_space<vmem>>, vector<4x512xf32>
    tpu.vector_store %arg15[%c88, %c0_90], %127 {strides = array<i32>} : memref<108x512xf32, #tpu.memory_space<vmem>>, vector<4x512xf32>,
    %c0_91 = arith.constant 0 : index
    %c193 = arith.constant 193 : index
    %129 = vector.load %arg14[%c0_91, %c193] : memref<4x768xf32, #tpu.memory_space<vmem>>, vector<4x512xf32>
    %c23 = arith.constant 23 : index
    %c0_92 = arith.constant 0 : index
    %130 = vector.load %arg10[%c23, %c0_92] : memref<27x512xf32, #tpu.memory_space<vmem>>, vector<1x512xf32>
    %131 = vector.broadcast %130 : vector<1x512xf32> to vector<4x512xf32>
    %132 = arith.mulf %129, %131 : vector<4x512xf32>
    %c92 = arith.constant 92 : index
    %c0_93 = arith.constant 0 : index
    %133 = vector.load %arg15[%c92, %c0_93] : memref<108x512xf32, #tpu.memory_space<vmem>>, vector<4x512xf32>
    tpu.vector_store %arg15[%c92, %c0_93], %132 {strides = array<i32>} : memref<108x512xf32, #tpu.memory_space<vmem>>, vector<4x512xf32>,
    %c0_94 = arith.constant 0 : index
    %c199 = arith.constant 199 : index
    %134 = vector.load %arg14[%c0_94, %c199] : memref<4x768xf32, #tpu.memory_space<vmem>>, vector<4x512xf32>
    %c24_95 = arith.constant 24 : index
    %c0_96 = arith.constant 0 : index
    %135 = vector.load %arg10[%c24_95, %c0_96] : memref<27x512xf32, #tpu.memory_space<vmem>>, vector<1x512xf32>
    %136 = vector.broadcast %135 : vector<1x512xf32> to vector<4x512xf32>
    %137 = arith.mulf %134, %136 : vector<4x512xf32>
    %c96 = arith.constant 96 : index
    %c0_97 = arith.constant 0 : index
    %138 = vector.load %arg15[%c96, %c0_97] : memref<108x512xf32, #tpu.memory_space<vmem>>, vector<4x512xf32>
    tpu.vector_store %arg15[%c96, %c0_97], %137 {strides = array<i32>} : memref<108x512xf32, #tpu.memory_space<vmem>>, vector<4x512xf32>,
    %c0_98 = arith.constant 0 : index
    %c200 = arith.constant 200 : index
    %139 = vector.load %arg14[%c0_98, %c200] : memref<4x768xf32, #tpu.memory_space<vmem>>, vector<4x512xf32>
    %c25 = arith.constant 25 : index
    %c0_99 = arith.constant 0 : index
    %140 = vector.load %arg10[%c25, %c0_99] : memref<27x512xf32, #tpu.memory_space<vmem>>, vector<1x512xf32>
    %141 = vector.broadcast %140 : vector<1x512xf32> to vector<4x512xf32>
    %142 = arith.mulf %139, %141 : vector<4x512xf32>
    %c100 = arith.constant 100 : index
    %c0_100 = arith.constant 0 : index
    %143 = vector.load %arg15[%c100, %c0_100] : memref<108x512xf32, #tpu.memory_space<vmem>>, vector<4x512xf32>
    tpu.vector_store %arg15[%c100, %c0_100], %142 {strides = array<i32>} : memref<108x512xf32, #tpu.memory_space<vmem>>, vector<4x512xf32>,
    %c0_101 = arith.constant 0 : index
    %c201 = arith.constant 201 : index
    %144 = vector.load %arg14[%c0_101, %c201] : memref<4x768xf32, #tpu.memory_space<vmem>>, vector<4x512xf32>
    %c26 = arith.constant 26 : index
    %c0_102 = arith.constant 0 : index
    %145 = vector.load %arg10[%c26, %c0_102] : memref<27x512xf32, #tpu.memory_space<vmem>>, vector<1x512xf32>
    %146 = vector.broadcast %145 : vector<1x512xf32> to vector<4x512xf32>
    %147 = arith.mulf %144, %146 : vector<4x512xf32>
    %c104 = arith.constant 104 : index
    %c0_103 = arith.constant 0 : index
    %148 = vector.load %arg15[%c104, %c0_103] : memref<108x512xf32, #tpu.memory_space<vmem>>, vector<4x512xf32>
    tpu.vector_store %arg15[%c104, %c0_103], %147 {strides = array<i32>} : memref<108x512xf32, #tpu.memory_space<vmem>>, vector<4x512xf32>,
    %c0_104 = arith.constant 0 : index
    %c0_105 = arith.constant 0 : index
    %149 = vector.load %arg4[%c0_104, %c0_105] : memref<4x108xf32, #tpu.memory_space<vmem>>, vector<4x108xf32>
    %c0_106 = arith.constant 0 : index
    %c0_107 = arith.constant 0 : index
    %150 = vector.load %arg15[%c0_106, %c0_107] : memref<108x512xf32, #tpu.memory_space<vmem>>, vector<108x512xf32>
    %cst_108 = arith.constant dense<0.000000e+00> : vector<4x512xf32>
    %151 = tpu.matmul %149, %150, %cst_108 {dimension_numbers = #tpu.dot_dimension_numbers<[1], [0], [0], [1], [0, 0, 1, 1], [], []>} : vector<4x108xf32>, vector<108x512xf32>, vector<4x512xf32> -> vector<4x512xf32>
    %c0_109 = arith.constant 0 : index
    %c0_110 = arith.constant 0 : index
    %152 = vector.load %arg5[%c0_109, %c0_110] : memref<4x1xf32, #tpu.memory_space<vmem>>, vector<4x1xf32>
    %153 = vector.broadcast %152 : vector<4x1xf32> to vector<4x512xf32>
    %154 = arith.addf %151, %153 : vector<4x512xf32>
    %cst_111 = arith.constant 0.000000e+00 : f32
    %155 = vector.broadcast %cst_111 : f32 to vector<4x512xf32>
    %156 = arith.maximumf %154, %155 : vector<4x512xf32>
    %c0_112 = arith.constant 0 : index
    %c128_113 = arith.constant 128 : index
    %157 = vector.load %arg14[%c0_112, %c128_113] : memref<4x768xf32, #tpu.memory_space<vmem>>, vector<4x512xf32>
    tpu.vector_store %arg14[%c0_112, %c128_113], %156 {strides = array<i32>} : memref<4x768xf32, #tpu.memory_space<vmem>>, vector<4x512xf32>,
    %c0_114 = arith.constant 0 : index
    %c55_115 = arith.constant 55 : index
    %158 = vector.load %arg14[%c0_114, %c55_115] : memref<4x768xf32, #tpu.memory_space<vmem>>, vector<4x512xf32>
    %c0_116 = arith.constant 0 : index
    %c0_117 = arith.constant 0 : index
    %159 = vector.load %arg10[%c0_116, %c0_117] : memref<27x512xf32, #tpu.memory_space<vmem>>, vector<1x512xf32>
    %160 = vector.broadcast %159 : vector<1x512xf32> to vector<4x512xf32>
    %161 = arith.mulf %158, %160 : vector<4x512xf32>
    %c0_118 = arith.constant 0 : index
    %c0_119 = arith.constant 0 : index
    %162 = vector.load %arg15[%c0_118, %c0_119] : memref<108x512xf32, #tpu.memory_space<vmem>>, vector<4x512xf32>
    tpu.vector_store %arg15[%c0_118, %c0_119], %161 {strides = array<i32>} : memref<108x512xf32, #tpu.memory_space<vmem>>, vector<4x512xf32>,
    %c0_120 = arith.constant 0 : index
    %c56_121 = arith.constant 56 : index
    %163 = vector.load %arg14[%c0_120, %c56_121] : memref<4x768xf32, #tpu.memory_space<vmem>>, vector<4x512xf32>
    %c1_122 = arith.constant 1 : index
    %c0_123 = arith.constant 0 : index
    %164 = vector.load %arg10[%c1_122, %c0_123] : memref<27x512xf32, #tpu.memory_space<vmem>>, vector<1x512xf32>
    %165 = vector.broadcast %164 : vector<1x512xf32> to vector<4x512xf32>
    %166 = arith.mulf %163, %165 : vector<4x512xf32>
    %c4_124 = arith.constant 4 : index
    %c0_125 = arith.constant 0 : index
    %167 = vector.load %arg15[%c4_124, %c0_125] : memref<108x512xf32, #tpu.memory_space<vmem>>, vector<4x512xf32>
    tpu.vector_store %arg15[%c4_124, %c0_125], %166 {strides = array<i32>} : memref<108x512xf32, #tpu.memory_space<vmem>>, vector<4x512xf32>,
    %c0_126 = arith.constant 0 : index
    %c57_127 = arith.constant 57 : index
    %168 = vector.load %arg14[%c0_126, %c57_127] : memref<4x768xf32, #tpu.memory_space<vmem>>, vector<4x512xf32>
    %c2_128 = arith.constant 2 : index
    %c0_129 = arith.constant 0 : index
    %169 = vector.load %arg10[%c2_128, %c0_129] : memref<27x512xf32, #tpu.memory_space<vmem>>, vector<1x512xf32>
    %170 = vector.broadcast %169 : vector<1x512xf32> to vector<4x512xf32>
    %171 = arith.mulf %168, %170 : vector<4x512xf32>
    %c8_130 = arith.constant 8 : index
    %c0_131 = arith.constant 0 : index
    %172 = vector.load %arg15[%c8_130, %c0_131] : memref<108x512xf32, #tpu.memory_space<vmem>>, vector<4x512xf32>
    tpu.vector_store %arg15[%c8_130, %c0_131], %171 {strides = array<i32>} : memref<108x512xf32, #tpu.memory_space<vmem>>, vector<4x512xf32>,
    %c0_132 = arith.constant 0 : index
    %c63_133 = arith.constant 63 : index
    %173 = vector.load %arg14[%c0_132, %c63_133] : memref<4x768xf32, #tpu.memory_space<vmem>>, vector<4x512xf32>
    %c3_134 = arith.constant 3 : index
    %c0_135 = arith.constant 0 : index
    %174 = vector.load %arg10[%c3_134, %c0_135] : memref<27x512xf32, #tpu.memory_space<vmem>>, vector<1x512xf32>
    %175 = vector.broadcast %174 : vector<1x512xf32> to vector<4x512xf32>
    %176 = arith.mulf %173, %175 : vector<4x512xf32>
    %c12_136 = arith.constant 12 : index
    %c0_137 = arith.constant 0 : index
    %177 = vector.load %arg15[%c12_136, %c0_137] : memref<108x512xf32, #tpu.memory_space<vmem>>, vector<4x512xf32>
    tpu.vector_store %arg15[%c12_136, %c0_137], %176 {strides = array<i32>} : memref<108x512xf32, #tpu.memory_space<vmem>>, vector<4x512xf32>,
    %c0_138 = arith.constant 0 : index
    %c64_139 = arith.constant 64 : index
    %178 = vector.load %arg14[%c0_138, %c64_139] : memref<4x768xf32, #tpu.memory_space<vmem>>, vector<4x512xf32>
    %c4_140 = arith.constant 4 : index
    %c0_141 = arith.constant 0 : index
    %179 = vector.load %arg10[%c4_140, %c0_141] : memref<27x512xf32, #tpu.memory_space<vmem>>, vector<1x512xf32>
    %180 = vector.broadcast %179 : vector<1x512xf32> to vector<4x512xf32>
    %181 = arith.mulf %178, %180 : vector<4x512xf32>
    %c16_142 = arith.constant 16 : index
    %c0_143 = arith.constant 0 : index
    %182 = vector.load %arg15[%c16_142, %c0_143] : memref<108x512xf32, #tpu.memory_space<vmem>>, vector<4x512xf32>
    tpu.vector_store %arg15[%c16_142, %c0_143], %181 {strides = array<i32>} : memref<108x512xf32, #tpu.memory_space<vmem>>, vector<4x512xf32>,
    %c0_144 = arith.constant 0 : index
    %c65_145 = arith.constant 65 : index
    %183 = vector.load %arg14[%c0_144, %c65_145] : memref<4x768xf32, #tpu.memory_space<vmem>>, vector<4x512xf32>
    %c5_146 = arith.constant 5 : index
    %c0_147 = arith.constant 0 : index
    %184 = vector.load %arg10[%c5_146, %c0_147] : memref<27x512xf32, #tpu.memory_space<vmem>>, vector<1x512xf32>
    %185 = vector.broadcast %184 : vector<1x512xf32> to vector<4x512xf32>
    %186 = arith.mulf %183, %185 : vector<4x512xf32>
    %c20_148 = arith.constant 20 : index
    %c0_149 = arith.constant 0 : index
    %187 = vector.load %arg15[%c20_148, %c0_149] : memref<108x512xf32, #tpu.memory_space<vmem>>, vector<4x512xf32>
    tpu.vector_store %arg15[%c20_148, %c0_149], %186 {strides = array<i32>} : memref<108x512xf32, #tpu.memory_space<vmem>>, vector<4x512xf32>,
    %c0_150 = arith.constant 0 : index
    %c71_151 = arith.constant 71 : index
    %188 = vector.load %arg14[%c0_150, %c71_151] : memref<4x768xf32, #tpu.memory_space<vmem>>, vector<4x512xf32>
    %c6_152 = arith.constant 6 : index
    %c0_153 = arith.constant 0 : index
    %189 = vector.load %arg10[%c6_152, %c0_153] : memref<27x512xf32, #tpu.memory_space<vmem>>, vector<1x512xf32>
    %190 = vector.broadcast %189 : vector<1x512xf32> to vector<4x512xf32>
    %191 = arith.mulf %188, %190 : vector<4x512xf32>
    %c24_154 = arith.constant 24 : index
    %c0_155 = arith.constant 0 : index
    %192 = vector.load %arg15[%c24_154, %c0_155] : memref<108x512xf32, #tpu.memory_space<vmem>>, vector<4x512xf32>
    tpu.vector_store %arg15[%c24_154, %c0_155], %191 {strides = array<i32>} : memref<108x512xf32, #tpu.memory_space<vmem>>, vector<4x512xf32>,
    %c0_156 = arith.constant 0 : index
    %c72_157 = arith.constant 72 : index
    %193 = vector.load %arg14[%c0_156, %c72_157] : memref<4x768xf32, #tpu.memory_space<vmem>>, vector<4x512xf32>
    %c7_158 = arith.constant 7 : index
    %c0_159 = arith.constant 0 : index
    %194 = vector.load %arg10[%c7_158, %c0_159] : memref<27x512xf32, #tpu.memory_space<vmem>>, vector<1x512xf32>
    %195 = vector.broadcast %194 : vector<1x512xf32> to vector<4x512xf32>
    %196 = arith.mulf %193, %195 : vector<4x512xf32>
    %c28_160 = arith.constant 28 : index
    %c0_161 = arith.constant 0 : index
    %197 = vector.load %arg15[%c28_160, %c0_161] : memref<108x512xf32, #tpu.memory_space<vmem>>, vector<4x512xf32>
    tpu.vector_store %arg15[%c28_160, %c0_161], %196 {strides = array<i32>} : memref<108x512xf32, #tpu.memory_space<vmem>>, vector<4x512xf32>,
    %c0_162 = arith.constant 0 : index
    %c73_163 = arith.constant 73 : index
    %198 = vector.load %arg14[%c0_162, %c73_163] : memref<4x768xf32, #tpu.memory_space<vmem>>, vector<4x512xf32>
    %c8_164 = arith.constant 8 : index
    %c0_165 = arith.constant 0 : index
    %199 = vector.load %arg10[%c8_164, %c0_165] : memref<27x512xf32, #tpu.memory_space<vmem>>, vector<1x512xf32>
    %200 = vector.broadcast %199 : vector<1x512xf32> to vector<4x512xf32>
    %201 = arith.mulf %198, %200 : vector<4x512xf32>
    %c32_166 = arith.constant 32 : index
    %c0_167 = arith.constant 0 : index
    %202 = vector.load %arg15[%c32_166, %c0_167] : memref<108x512xf32, #tpu.memory_space<vmem>>, vector<4x512xf32>
    tpu.vector_store %arg15[%c32_166, %c0_167], %201 {strides = array<i32>} : memref<108x512xf32, #tpu.memory_space<vmem>>, vector<4x512xf32>,
    %c0_168 = arith.constant 0 : index
    %c119_169 = arith.constant 119 : index
    %203 = vector.load %arg14[%c0_168, %c119_169] : memref<4x768xf32, #tpu.memory_space<vmem>>, vector<4x512xf32>
    %c9_170 = arith.constant 9 : index
    %c0_171 = arith.constant 0 : index
    %204 = vector.load %arg10[%c9_170, %c0_171] : memref<27x512xf32, #tpu.memory_space<vmem>>, vector<1x512xf32>
    %205 = vector.broadcast %204 : vector<1x512xf32> to vector<4x512xf32>
    %206 = arith.mulf %203, %205 : vector<4x512xf32>
    %c36_172 = arith.constant 36 : index
    %c0_173 = arith.constant 0 : index
    %207 = vector.load %arg15[%c36_172, %c0_173] : memref<108x512xf32, #tpu.memory_space<vmem>>, vector<4x512xf32>
    tpu.vector_store %arg15[%c36_172, %c0_173], %206 {strides = array<i32>} : memref<108x512xf32, #tpu.memory_space<vmem>>, vector<4x512xf32>,
    %c0_174 = arith.constant 0 : index
    %c120_175 = arith.constant 120 : index
    %208 = vector.load %arg14[%c0_174, %c120_175] : memref<4x768xf32, #tpu.memory_space<vmem>>, vector<4x512xf32>
    %c10_176 = arith.constant 10 : index
    %c0_177 = arith.constant 0 : index
    %209 = vector.load %arg10[%c10_176, %c0_177] : memref<27x512xf32, #tpu.memory_space<vmem>>, vector<1x512xf32>
    %210 = vector.broadcast %209 : vector<1x512xf32> to vector<4x512xf32>
    %211 = arith.mulf %208, %210 : vector<4x512xf32>
    %c40_178 = arith.constant 40 : index
    %c0_179 = arith.constant 0 : index
    %212 = vector.load %arg15[%c40_178, %c0_179] : memref<108x512xf32, #tpu.memory_space<vmem>>, vector<4x512xf32>
    tpu.vector_store %arg15[%c40_178, %c0_179], %211 {strides = array<i32>} : memref<108x512xf32, #tpu.memory_space<vmem>>, vector<4x512xf32>,
    %c0_180 = arith.constant 0 : index
    %c121_181 = arith.constant 121 : index
    %213 = vector.load %arg14[%c0_180, %c121_181] : memref<4x768xf32, #tpu.memory_space<vmem>>, vector<4x512xf32>
    %c11_182 = arith.constant 11 : index
    %c0_183 = arith.constant 0 : index
    %214 = vector.load %arg10[%c11_182, %c0_183] : memref<27x512xf32, #tpu.memory_space<vmem>>, vector<1x512xf32>
    %215 = vector.broadcast %214 : vector<1x512xf32> to vector<4x512xf32>
    %216 = arith.mulf %213, %215 : vector<4x512xf32>
    %c44_184 = arith.constant 44 : index
    %c0_185 = arith.constant 0 : index
    %217 = vector.load %arg15[%c44_184, %c0_185] : memref<108x512xf32, #tpu.memory_space<vmem>>, vector<4x512xf32>
    tpu.vector_store %arg15[%c44_184, %c0_185], %216 {strides = array<i32>} : memref<108x512xf32, #tpu.memory_space<vmem>>, vector<4x512xf32>,
    %c0_186 = arith.constant 0 : index
    %c127_187 = arith.constant 127 : index
    %218 = vector.load %arg14[%c0_186, %c127_187] : memref<4x768xf32, #tpu.memory_space<vmem>>, vector<4x512xf32>
    %c12_188 = arith.constant 12 : index
    %c0_189 = arith.constant 0 : index
    %219 = vector.load %arg10[%c12_188, %c0_189] : memref<27x512xf32, #tpu.memory_space<vmem>>, vector<1x512xf32>
    %220 = vector.broadcast %219 : vector<1x512xf32> to vector<4x512xf32>
    %221 = arith.mulf %218, %220 : vector<4x512xf32>
    %c48_190 = arith.constant 48 : index
    %c0_191 = arith.constant 0 : index
    %222 = vector.load %arg15[%c48_190, %c0_191] : memref<108x512xf32, #tpu.memory_space<vmem>>, vector<4x512xf32>
    tpu.vector_store %arg15[%c48_190, %c0_191], %221 {strides = array<i32>} : memref<108x512xf32, #tpu.memory_space<vmem>>, vector<4x512xf32>,
    %c0_192 = arith.constant 0 : index
    %c128_193 = arith.constant 128 : index
    %223 = vector.load %arg14[%c0_192, %c128_193] : memref<4x768xf32, #tpu.memory_space<vmem>>, vector<4x512xf32>
    %c13_194 = arith.constant 13 : index
    %c0_195 = arith.constant 0 : index
    %224 = vector.load %arg10[%c13_194, %c0_195] : memref<27x512xf32, #tpu.memory_space<vmem>>, vector<1x512xf32>
    %225 = vector.broadcast %224 : vector<1x512xf32> to vector<4x512xf32>
    %226 = arith.mulf %223, %225 : vector<4x512xf32>
    %c52_196 = arith.constant 52 : index
    %c0_197 = arith.constant 0 : index
    %227 = vector.load %arg15[%c52_196, %c0_197] : memref<108x512xf32, #tpu.memory_space<vmem>>, vector<4x512xf32>
    tpu.vector_store %arg15[%c52_196, %c0_197], %226 {strides = array<i32>} : memref<108x512xf32, #tpu.memory_space<vmem>>, vector<4x512xf32>,
    %c0_198 = arith.constant 0 : index
    %c129_199 = arith.constant 129 : index
    %228 = vector.load %arg14[%c0_198, %c129_199] : memref<4x768xf32, #tpu.memory_space<vmem>>, vector<4x512xf32>
    %c14_200 = arith.constant 14 : index
    %c0_201 = arith.constant 0 : index
    %229 = vector.load %arg10[%c14_200, %c0_201] : memref<27x512xf32, #tpu.memory_space<vmem>>, vector<1x512xf32>
    %230 = vector.broadcast %229 : vector<1x512xf32> to vector<4x512xf32>
    %231 = arith.mulf %228, %230 : vector<4x512xf32>
    %c56_202 = arith.constant 56 : index
    %c0_203 = arith.constant 0 : index
    %232 = vector.load %arg15[%c56_202, %c0_203] : memref<108x512xf32, #tpu.memory_space<vmem>>, vector<4x512xf32>
    tpu.vector_store %arg15[%c56_202, %c0_203], %231 {strides = array<i32>} : memref<108x512xf32, #tpu.memory_space<vmem>>, vector<4x512xf32>,
    %c0_204 = arith.constant 0 : index
    %c135_205 = arith.constant 135 : index
    %233 = vector.load %arg14[%c0_204, %c135_205] : memref<4x768xf32, #tpu.memory_space<vmem>>, vector<4x512xf32>
    %c15_206 = arith.constant 15 : index
    %c0_207 = arith.constant 0 : index
    %234 = vector.load %arg10[%c15_206, %c0_207] : memref<27x512xf32, #tpu.memory_space<vmem>>, vector<1x512xf32>
    %235 = vector.broadcast %234 : vector<1x512xf32> to vector<4x512xf32>
    %236 = arith.mulf %233, %235 : vector<4x512xf32>
    %c60_208 = arith.constant 60 : index
    %c0_209 = arith.constant 0 : index
    %237 = vector.load %arg15[%c60_208, %c0_209] : memref<108x512xf32, #tpu.memory_space<vmem>>, vector<4x512xf32>
    tpu.vector_store %arg15[%c60_208, %c0_209], %236 {strides = array<i32>} : memref<108x512xf32, #tpu.memory_space<vmem>>, vector<4x512xf32>,
    %c0_210 = arith.constant 0 : index
    %c136_211 = arith.constant 136 : index
    %238 = vector.load %arg14[%c0_210, %c136_211] : memref<4x768xf32, #tpu.memory_space<vmem>>, vector<4x512xf32>
    %c16_212 = arith.constant 16 : index
    %c0_213 = arith.constant 0 : index
    %239 = vector.load %arg10[%c16_212, %c0_213] : memref<27x512xf32, #tpu.memory_space<vmem>>, vector<1x512xf32>
    %240 = vector.broadcast %239 : vector<1x512xf32> to vector<4x512xf32>
    %241 = arith.mulf %238, %240 : vector<4x512xf32>
    %c64_214 = arith.constant 64 : index
    %c0_215 = arith.constant 0 : index
    %242 = vector.load %arg15[%c64_214, %c0_215] : memref<108x512xf32, #tpu.memory_space<vmem>>, vector<4x512xf32>
    tpu.vector_store %arg15[%c64_214, %c0_215], %241 {strides = array<i32>} : memref<108x512xf32, #tpu.memory_space<vmem>>, vector<4x512xf32>,
    %c0_216 = arith.constant 0 : index
    %c137_217 = arith.constant 137 : index
    %243 = vector.load %arg14[%c0_216, %c137_217] : memref<4x768xf32, #tpu.memory_space<vmem>>, vector<4x512xf32>
    %c17_218 = arith.constant 17 : index
    %c0_219 = arith.constant 0 : index
    %244 = vector.load %arg10[%c17_218, %c0_219] : memref<27x512xf32, #tpu.memory_space<vmem>>, vector<1x512xf32>
    %245 = vector.broadcast %244 : vector<1x512xf32> to vector<4x512xf32>
    %246 = arith.mulf %243, %245 : vector<4x512xf32>
    %c68_220 = arith.constant 68 : index
    %c0_221 = arith.constant 0 : index
    %247 = vector.load %arg15[%c68_220, %c0_221] : memref<108x512xf32, #tpu.memory_space<vmem>>, vector<4x512xf32>
    tpu.vector_store %arg15[%c68_220, %c0_221], %246 {strides = array<i32>} : memref<108x512xf32, #tpu.memory_space<vmem>>, vector<4x512xf32>,
    %c0_222 = arith.constant 0 : index
    %c183_223 = arith.constant 183 : index
    %248 = vector.load %arg14[%c0_222, %c183_223] : memref<4x768xf32, #tpu.memory_space<vmem>>, vector<4x512xf32>
    %c18_224 = arith.constant 18 : index
    %c0_225 = arith.constant 0 : index
    %249 = vector.load %arg10[%c18_224, %c0_225] : memref<27x512xf32, #tpu.memory_space<vmem>>, vector<1x512xf32>
    %250 = vector.broadcast %249 : vector<1x512xf32> to vector<4x512xf32>
    %251 = arith.mulf %248, %250 : vector<4x512xf32>
    %c72_226 = arith.constant 72 : index
    %c0_227 = arith.constant 0 : index
    %252 = vector.load %arg15[%c72_226, %c0_227] : memref<108x512xf32, #tpu.memory_space<vmem>>, vector<4x512xf32>
    tpu.vector_store %arg15[%c72_226, %c0_227], %251 {strides = array<i32>} : memref<108x512xf32, #tpu.memory_space<vmem>>, vector<4x512xf32>,
    %c0_228 = arith.constant 0 : index
    %c184_229 = arith.constant 184 : index
    %253 = vector.load %arg14[%c0_228, %c184_229] : memref<4x768xf32, #tpu.memory_space<vmem>>, vector<4x512xf32>
    %c19_230 = arith.constant 19 : index
    %c0_231 = arith.constant 0 : index
    %254 = vector.load %arg10[%c19_230, %c0_231] : memref<27x512xf32, #tpu.memory_space<vmem>>, vector<1x512xf32>
    %255 = vector.broadcast %254 : vector<1x512xf32> to vector<4x512xf32>
    %256 = arith.mulf %253, %255 : vector<4x512xf32>
    %c76_232 = arith.constant 76 : index
    %c0_233 = arith.constant 0 : index
    %257 = vector.load %arg15[%c76_232, %c0_233] : memref<108x512xf32, #tpu.memory_space<vmem>>, vector<4x512xf32>
    tpu.vector_store %arg15[%c76_232, %c0_233], %256 {strides = array<i32>} : memref<108x512xf32, #tpu.memory_space<vmem>>, vector<4x512xf32>,
    %c0_234 = arith.constant 0 : index
    %c185_235 = arith.constant 185 : index
    %258 = vector.load %arg14[%c0_234, %c185_235] : memref<4x768xf32, #tpu.memory_space<vmem>>, vector<4x512xf32>
    %c20_236 = arith.constant 20 : index
    %c0_237 = arith.constant 0 : index
    %259 = vector.load %arg10[%c20_236, %c0_237] : memref<27x512xf32, #tpu.memory_space<vmem>>, vector<1x512xf32>
    %260 = vector.broadcast %259 : vector<1x512xf32> to vector<4x512xf32>
    %261 = arith.mulf %258, %260 : vector<4x512xf32>
    %c80_238 = arith.constant 80 : index
    %c0_239 = arith.constant 0 : index
    %262 = vector.load %arg15[%c80_238, %c0_239] : memref<108x512xf32, #tpu.memory_space<vmem>>, vector<4x512xf32>
    tpu.vector_store %arg15[%c80_238, %c0_239], %261 {strides = array<i32>} : memref<108x512xf32, #tpu.memory_space<vmem>>, vector<4x512xf32>,
    %c0_240 = arith.constant 0 : index
    %c191_241 = arith.constant 191 : index
    %263 = vector.load %arg14[%c0_240, %c191_241] : memref<4x768xf32, #tpu.memory_space<vmem>>, vector<4x512xf32>
    %c21_242 = arith.constant 21 : index
    %c0_243 = arith.constant 0 : index
    %264 = vector.load %arg10[%c21_242, %c0_243] : memref<27x512xf32, #tpu.memory_space<vmem>>, vector<1x512xf32>
    %265 = vector.broadcast %264 : vector<1x512xf32> to vector<4x512xf32>
    %266 = arith.mulf %263, %265 : vector<4x512xf32>
    %c84_244 = arith.constant 84 : index
    %c0_245 = arith.constant 0 : index
    %267 = vector.load %arg15[%c84_244, %c0_245] : memref<108x512xf32, #tpu.memory_space<vmem>>, vector<4x512xf32>
    tpu.vector_store %arg15[%c84_244, %c0_245], %266 {strides = array<i32>} : memref<108x512xf32, #tpu.memory_space<vmem>>, vector<4x512xf32>,
    %c0_246 = arith.constant 0 : index
    %c192_247 = arith.constant 192 : index
    %268 = vector.load %arg14[%c0_246, %c192_247] : memref<4x768xf32, #tpu.memory_space<vmem>>, vector<4x512xf32>
    %c22_248 = arith.constant 22 : index
    %c0_249 = arith.constant 0 : index
    %269 = vector.load %arg10[%c22_248, %c0_249] : memref<27x512xf32, #tpu.memory_space<vmem>>, vector<1x512xf32>
    %270 = vector.broadcast %269 : vector<1x512xf32> to vector<4x512xf32>
    %271 = arith.mulf %268, %270 : vector<4x512xf32>
    %c88_250 = arith.constant 88 : index
    %c0_251 = arith.constant 0 : index
    %272 = vector.load %arg15[%c88_250, %c0_251] : memref<108x512xf32, #tpu.memory_space<vmem>>, vector<4x512xf32>
    tpu.vector_store %arg15[%c88_250, %c0_251], %271 {strides = array<i32>} : memref<108x512xf32, #tpu.memory_space<vmem>>, vector<4x512xf32>,
    %c0_252 = arith.constant 0 : index
    %c193_253 = arith.constant 193 : index
    %273 = vector.load %arg14[%c0_252, %c193_253] : memref<4x768xf32, #tpu.memory_space<vmem>>, vector<4x512xf32>
    %c23_254 = arith.constant 23 : index
    %c0_255 = arith.constant 0 : index
    %274 = vector.load %arg10[%c23_254, %c0_255] : memref<27x512xf32, #tpu.memory_space<vmem>>, vector<1x512xf32>
    %275 = vector.broadcast %274 : vector<1x512xf32> to vector<4x512xf32>
    %276 = arith.mulf %273, %275 : vector<4x512xf32>
    %c92_256 = arith.constant 92 : index
    %c0_257 = arith.constant 0 : index
    %277 = vector.load %arg15[%c92_256, %c0_257] : memref<108x512xf32, #tpu.memory_space<vmem>>, vector<4x512xf32>
    tpu.vector_store %arg15[%c92_256, %c0_257], %276 {strides = array<i32>} : memref<108x512xf32, #tpu.memory_space<vmem>>, vector<4x512xf32>,
    %c0_258 = arith.constant 0 : index
    %c199_259 = arith.constant 199 : index
    %278 = vector.load %arg14[%c0_258, %c199_259] : memref<4x768xf32, #tpu.memory_space<vmem>>, vector<4x512xf32>
    %c24_260 = arith.constant 24 : index
    %c0_261 = arith.constant 0 : index
    %279 = vector.load %arg10[%c24_260, %c0_261] : memref<27x512xf32, #tpu.memory_space<vmem>>, vector<1x512xf32>
    %280 = vector.broadcast %279 : vector<1x512xf32> to vector<4x512xf32>
    %281 = arith.mulf %278, %280 : vector<4x512xf32>
    %c96_262 = arith.constant 96 : index
    %c0_263 = arith.constant 0 : index
    %282 = vector.load %arg15[%c96_262, %c0_263] : memref<108x512xf32, #tpu.memory_space<vmem>>, vector<4x512xf32>
    tpu.vector_store %arg15[%c96_262, %c0_263], %281 {strides = array<i32>} : memref<108x512xf32, #tpu.memory_space<vmem>>, vector<4x512xf32>,
    %c0_264 = arith.constant 0 : index
    %c200_265 = arith.constant 200 : index
    %283 = vector.load %arg14[%c0_264, %c200_265] : memref<4x768xf32, #tpu.memory_space<vmem>>, vector<4x512xf32>
    %c25_266 = arith.constant 25 : index
    %c0_267 = arith.constant 0 : index
    %284 = vector.load %arg10[%c25_266, %c0_267] : memref<27x512xf32, #tpu.memory_space<vmem>>, vector<1x512xf32>
    %285 = vector.broadcast %284 : vector<1x512xf32> to vector<4x512xf32>
    %286 = arith.mulf %283, %285 : vector<4x512xf32>
    %c100_268 = arith.constant 100 : index
    %c0_269 = arith.constant 0 : index
    %287 = vector.load %arg15[%c100_268, %c0_269] : memref<108x512xf32, #tpu.memory_space<vmem>>, vector<4x512xf32>
    tpu.vector_store %arg15[%c100_268, %c0_269], %286 {strides = array<i32>} : memref<108x512xf32, #tpu.memory_space<vmem>>, vector<4x512xf32>,
    %c0_270 = arith.constant 0 : index
    %c201_271 = arith.constant 201 : index
    %288 = vector.load %arg14[%c0_270, %c201_271] : memref<4x768xf32, #tpu.memory_space<vmem>>, vector<4x512xf32>
    %c26_272 = arith.constant 26 : index
    %c0_273 = arith.constant 0 : index
    %289 = vector.load %arg10[%c26_272, %c0_273] : memref<27x512xf32, #tpu.memory_space<vmem>>, vector<1x512xf32>
    %290 = vector.broadcast %289 : vector<1x512xf32> to vector<4x512xf32>
    %291 = arith.mulf %288, %290 : vector<4x512xf32>
    %c104_274 = arith.constant 104 : index
    %c0_275 = arith.constant 0 : index
    %292 = vector.load %arg15[%c104_274, %c0_275] : memref<108x512xf32, #tpu.memory_space<vmem>>, vector<4x512xf32>
    tpu.vector_store %arg15[%c104_274, %c0_275], %291 {strides = array<i32>} : memref<108x512xf32, #tpu.memory_space<vmem>>, vector<4x512xf32>,
    %c0_276 = arith.constant 0 : index
    %c0_277 = arith.constant 0 : index
    %293 = vector.load %arg6[%c0_276, %c0_277] : memref<4x108xf32, #tpu.memory_space<vmem>>, vector<4x108xf32>
    %c0_278 = arith.constant 0 : index
    %c0_279 = arith.constant 0 : index
    %294 = vector.load %arg15[%c0_278, %c0_279] : memref<108x512xf32, #tpu.memory_space<vmem>>, vector<108x512xf32>
    %cst_280 = arith.constant dense<0.000000e+00> : vector<4x512xf32>
    %295 = tpu.matmul %293, %294, %cst_280 {dimension_numbers = #tpu.dot_dimension_numbers<[1], [0], [0], [1], [0, 0, 1, 1], [], []>} : vector<4x108xf32>, vector<108x512xf32>, vector<4x512xf32> -> vector<4x512xf32>
    %c0_281 = arith.constant 0 : index
    %c0_282 = arith.constant 0 : index
    %296 = vector.load %arg7[%c0_281, %c0_282] : memref<4x1xf32, #tpu.memory_space<vmem>>, vector<4x1xf32>
    %297 = vector.broadcast %296 : vector<4x1xf32> to vector<4x512xf32>
    %298 = arith.addf %295, %297 : vector<4x512xf32>
    %cst_283 = arith.constant 0.000000e+00 : f32
    %299 = vector.broadcast %cst_283 : f32 to vector<4x512xf32>
    %300 = arith.maximumf %298, %299 : vector<4x512xf32>
    %c0_284 = arith.constant 0 : index
    %c0_285 = arith.constant 0 : index
    %301 = vector.load %arg8[%c0_284, %c0_285] : memref<1x4xf32, #tpu.memory_space<vmem>>, vector<1x4xf32>
    %cst_286 = arith.constant dense<0.000000e+00> : vector<1x512xf32>
    %302 = tpu.matmul %301, %300, %cst_286 {dimension_numbers = #tpu.dot_dimension_numbers<[1], [0], [0], [1], [0, 0, 1, 1], [], []>} : vector<1x4xf32>, vector<4x512xf32>, vector<1x512xf32> -> vector<1x512xf32>
    %c0_287 = arith.constant 0 : index
    %c0_288 = arith.constant 0 : index
    %303 = vector.load %arg9[%c0_287, %c0_288] : memref<1x1xf32, #tpu.memory_space<vmem>>, vector<1x1xf32>
    %304 = vector.broadcast %303 : vector<1x1xf32> to vector<1x512xf32>
    %305 = arith.addf %302, %304 : vector<1x512xf32>
    %306 = vector.extract_strided_slice %305 {offsets = [0, 0], sizes = [1, 8], strides = [1, 1]} : vector<1x512xf32> to vector<1x8xf32>
    %307 = vector.shape_cast %306 : vector<1x8xf32> to vector<8xf32>
    %c0_289 = arith.constant 0 : index
    %c0_290 = arith.constant 0 : index
    %308 = vector.load %arg16[%c0_289, %c0_290] : memref<64x8xf32, #tpu.memory_space<vmem>>, vector<1x8xf32>
    %309 = vector.shape_cast %308 : vector<1x8xf32> to vector<8xf32>
    %310 = vector.shape_cast %307 : vector<8xf32> to vector<1x8xf32>
    tpu.vector_store %arg16[%c0_289, %c0_290], %310 {strides = array<i32>} : memref<64x8xf32, #tpu.memory_space<vmem>>, vector<1x8xf32>,
    %311 = vector.extract_strided_slice %305 {offsets = [0, 8], sizes = [1, 8], strides = [1, 1]} : vector<1x512xf32> to vector<1x8xf32>
    %312 = vector.shape_cast %311 : vector<1x8xf32> to vector<8xf32>
    %c1_291 = arith.constant 1 : index
    %c0_292 = arith.constant 0 : index
    %313 = vector.load %arg16[%c1_291, %c0_292] : memref<64x8xf32, #tpu.memory_space<vmem>>, vector<1x8xf32>
    %314 = vector.shape_cast %313 : vector<1x8xf32> to vector<8xf32>
    %315 = vector.shape_cast %312 : vector<8xf32> to vector<1x8xf32>
    tpu.vector_store %arg16[%c1_291, %c0_292], %315 {strides = array<i32>} : memref<64x8xf32, #tpu.memory_space<vmem>>, vector<1x8xf32>,
    %316 = vector.extract_strided_slice %305 {offsets = [0, 16], sizes = [1, 8], strides = [1, 1]} : vector<1x512xf32> to vector<1x8xf32>
    %317 = vector.shape_cast %316 : vector<1x8xf32> to vector<8xf32>
    %c2_293 = arith.constant 2 : index
    %c0_294 = arith.constant 0 : index
    %318 = vector.load %arg16[%c2_293, %c0_294] : memref<64x8xf32, #tpu.memory_space<vmem>>, vector<1x8xf32>
    %319 = vector.shape_cast %318 : vector<1x8xf32> to vector<8xf32>
    %320 = vector.shape_cast %317 : vector<8xf32> to vector<1x8xf32>
    tpu.vector_store %arg16[%c2_293, %c0_294], %320 {strides = array<i32>} : memref<64x8xf32, #tpu.memory_space<vmem>>, vector<1x8xf32>,
    %321 = vector.extract_strided_slice %305 {offsets = [0, 24], sizes = [1, 8], strides = [1, 1]} : vector<1x512xf32> to vector<1x8xf32>
    %322 = vector.shape_cast %321 : vector<1x8xf32> to vector<8xf32>
    %c3_295 = arith.constant 3 : index
    %c0_296 = arith.constant 0 : index
    %323 = vector.load %arg16[%c3_295, %c0_296] : memref<64x8xf32, #tpu.memory_space<vmem>>, vector<1x8xf32>
    %324 = vector.shape_cast %323 : vector<1x8xf32> to vector<8xf32>
    %325 = vector.shape_cast %322 : vector<8xf32> to vector<1x8xf32>
    tpu.vector_store %arg16[%c3_295, %c0_296], %325 {strides = array<i32>} : memref<64x8xf32, #tpu.memory_space<vmem>>, vector<1x8xf32>,
    %326 = vector.extract_strided_slice %305 {offsets = [0, 32], sizes = [1, 8], strides = [1, 1]} : vector<1x512xf32> to vector<1x8xf32>
    %327 = vector.shape_cast %326 : vector<1x8xf32> to vector<8xf32>
    %c4_297 = arith.constant 4 : index
    %c0_298 = arith.constant 0 : index
    %328 = vector.load %arg16[%c4_297, %c0_298] : memref<64x8xf32, #tpu.memory_space<vmem>>, vector<1x8xf32>
    %329 = vector.shape_cast %328 : vector<1x8xf32> to vector<8xf32>
    %330 = vector.shape_cast %327 : vector<8xf32> to vector<1x8xf32>
    tpu.vector_store %arg16[%c4_297, %c0_298], %330 {strides = array<i32>} : memref<64x8xf32, #tpu.memory_space<vmem>>, vector<1x8xf32>,
    %331 = vector.extract_strided_slice %305 {offsets = [0, 40], sizes = [1, 8], strides = [1, 1]} : vector<1x512xf32> to vector<1x8xf32>
    %332 = vector.shape_cast %331 : vector<1x8xf32> to vector<8xf32>
    %c5_299 = arith.constant 5 : index
    %c0_300 = arith.constant 0 : index
    %333 = vector.load %arg16[%c5_299, %c0_300] : memref<64x8xf32, #tpu.memory_space<vmem>>, vector<1x8xf32>
    %334 = vector.shape_cast %333 : vector<1x8xf32> to vector<8xf32>
    %335 = vector.shape_cast %332 : vector<8xf32> to vector<1x8xf32>
    tpu.vector_store %arg16[%c5_299, %c0_300], %335 {strides = array<i32>} : memref<64x8xf32, #tpu.memory_space<vmem>>, vector<1x8xf32>,
    %336 = vector.extract_strided_slice %305 {offsets = [0, 48], sizes = [1, 8], strides = [1, 1]} : vector<1x512xf32> to vector<1x8xf32>
    %337 = vector.shape_cast %336 : vector<1x8xf32> to vector<8xf32>
    %c6_301 = arith.constant 6 : index
    %c0_302 = arith.constant 0 : index
    %338 = vector.load %arg16[%c6_301, %c0_302] : memref<64x8xf32, #tpu.memory_space<vmem>>, vector<1x8xf32>
    %339 = vector.shape_cast %338 : vector<1x8xf32> to vector<8xf32>
    %340 = vector.shape_cast %337 : vector<8xf32> to vector<1x8xf32>
    tpu.vector_store %arg16[%c6_301, %c0_302], %340 {strides = array<i32>} : memref<64x8xf32, #tpu.memory_space<vmem>>, vector<1x8xf32>,
    %341 = vector.extract_strided_slice %305 {offsets = [0, 56], sizes = [1, 8], strides = [1, 1]} : vector<1x512xf32> to vector<1x8xf32>
    %342 = vector.shape_cast %341 : vector<1x8xf32> to vector<8xf32>
    %c7_303 = arith.constant 7 : index
    %c0_304 = arith.constant 0 : index
    %343 = vector.load %arg16[%c7_303, %c0_304] : memref<64x8xf32, #tpu.memory_space<vmem>>, vector<1x8xf32>
    %344 = vector.shape_cast %343 : vector<1x8xf32> to vector<8xf32>
    %345 = vector.shape_cast %342 : vector<8xf32> to vector<1x8xf32>
    tpu.vector_store %arg16[%c7_303, %c0_304], %345 {strides = array<i32>} : memref<64x8xf32, #tpu.memory_space<vmem>>, vector<1x8xf32>,
    %346 = vector.extract_strided_slice %305 {offsets = [0, 64], sizes = [1, 8], strides = [1, 1]} : vector<1x512xf32> to vector<1x8xf32>
    %347 = vector.shape_cast %346 : vector<1x8xf32> to vector<8xf32>
    %c8_305 = arith.constant 8 : index
    %c0_306 = arith.constant 0 : index
    %348 = vector.load %arg16[%c8_305, %c0_306] : memref<64x8xf32, #tpu.memory_space<vmem>>, vector<1x8xf32>
    %349 = vector.shape_cast %348 : vector<1x8xf32> to vector<8xf32>
    %350 = vector.shape_cast %347 : vector<8xf32> to vector<1x8xf32>
    tpu.vector_store %arg16[%c8_305, %c0_306], %350 {strides = array<i32>} : memref<64x8xf32, #tpu.memory_space<vmem>>, vector<1x8xf32>,
    %351 = vector.extract_strided_slice %305 {offsets = [0, 72], sizes = [1, 8], strides = [1, 1]} : vector<1x512xf32> to vector<1x8xf32>
    %352 = vector.shape_cast %351 : vector<1x8xf32> to vector<8xf32>
    %c9_307 = arith.constant 9 : index
    %c0_308 = arith.constant 0 : index
    %353 = vector.load %arg16[%c9_307, %c0_308] : memref<64x8xf32, #tpu.memory_space<vmem>>, vector<1x8xf32>
    %354 = vector.shape_cast %353 : vector<1x8xf32> to vector<8xf32>
    %355 = vector.shape_cast %352 : vector<8xf32> to vector<1x8xf32>
    tpu.vector_store %arg16[%c9_307, %c0_308], %355 {strides = array<i32>} : memref<64x8xf32, #tpu.memory_space<vmem>>, vector<1x8xf32>,
    %356 = vector.extract_strided_slice %305 {offsets = [0, 80], sizes = [1, 8], strides = [1, 1]} : vector<1x512xf32> to vector<1x8xf32>
    %357 = vector.shape_cast %356 : vector<1x8xf32> to vector<8xf32>
    %c10_309 = arith.constant 10 : index
    %c0_310 = arith.constant 0 : index
    %358 = vector.load %arg16[%c10_309, %c0_310] : memref<64x8xf32, #tpu.memory_space<vmem>>, vector<1x8xf32>
    %359 = vector.shape_cast %358 : vector<1x8xf32> to vector<8xf32>
    %360 = vector.shape_cast %357 : vector<8xf32> to vector<1x8xf32>
    tpu.vector_store %arg16[%c10_309, %c0_310], %360 {strides = array<i32>} : memref<64x8xf32, #tpu.memory_space<vmem>>, vector<1x8xf32>,
    %361 = vector.extract_strided_slice %305 {offsets = [0, 88], sizes = [1, 8], strides = [1, 1]} : vector<1x512xf32> to vector<1x8xf32>
    %362 = vector.shape_cast %361 : vector<1x8xf32> to vector<8xf32>
    %c11_311 = arith.constant 11 : index
    %c0_312 = arith.constant 0 : index
    %363 = vector.load %arg16[%c11_311, %c0_312] : memref<64x8xf32, #tpu.memory_space<vmem>>, vector<1x8xf32>
    %364 = vector.shape_cast %363 : vector<1x8xf32> to vector<8xf32>
    %365 = vector.shape_cast %362 : vector<8xf32> to vector<1x8xf32>
    tpu.vector_store %arg16[%c11_311, %c0_312], %365 {strides = array<i32>} : memref<64x8xf32, #tpu.memory_space<vmem>>, vector<1x8xf32>,
    %366 = vector.extract_strided_slice %305 {offsets = [0, 96], sizes = [1, 8], strides = [1, 1]} : vector<1x512xf32> to vector<1x8xf32>
    %367 = vector.shape_cast %366 : vector<1x8xf32> to vector<8xf32>
    %c12_313 = arith.constant 12 : index
    %c0_314 = arith.constant 0 : index
    %368 = vector.load %arg16[%c12_313, %c0_314] : memref<64x8xf32, #tpu.memory_space<vmem>>, vector<1x8xf32>
    %369 = vector.shape_cast %368 : vector<1x8xf32> to vector<8xf32>
    %370 = vector.shape_cast %367 : vector<8xf32> to vector<1x8xf32>
    tpu.vector_store %arg16[%c12_313, %c0_314], %370 {strides = array<i32>} : memref<64x8xf32, #tpu.memory_space<vmem>>, vector<1x8xf32>,
    %371 = vector.extract_strided_slice %305 {offsets = [0, 104], sizes = [1, 8], strides = [1, 1]} : vector<1x512xf32> to vector<1x8xf32>
    %372 = vector.shape_cast %371 : vector<1x8xf32> to vector<8xf32>
    %c13_315 = arith.constant 13 : index
    %c0_316 = arith.constant 0 : index
    %373 = vector.load %arg16[%c13_315, %c0_316] : memref<64x8xf32, #tpu.memory_space<vmem>>, vector<1x8xf32>
    %374 = vector.shape_cast %373 : vector<1x8xf32> to vector<8xf32>
    %375 = vector.shape_cast %372 : vector<8xf32> to vector<1x8xf32>
    tpu.vector_store %arg16[%c13_315, %c0_316], %375 {strides = array<i32>} : memref<64x8xf32, #tpu.memory_space<vmem>>, vector<1x8xf32>,
    %376 = vector.extract_strided_slice %305 {offsets = [0, 112], sizes = [1, 8], strides = [1, 1]} : vector<1x512xf32> to vector<1x8xf32>
    %377 = vector.shape_cast %376 : vector<1x8xf32> to vector<8xf32>
    %c14_317 = arith.constant 14 : index
    %c0_318 = arith.constant 0 : index
    %378 = vector.load %arg16[%c14_317, %c0_318] : memref<64x8xf32, #tpu.memory_space<vmem>>, vector<1x8xf32>
    %379 = vector.shape_cast %378 : vector<1x8xf32> to vector<8xf32>
    %380 = vector.shape_cast %377 : vector<8xf32> to vector<1x8xf32>
    tpu.vector_store %arg16[%c14_317, %c0_318], %380 {strides = array<i32>} : memref<64x8xf32, #tpu.memory_space<vmem>>, vector<1x8xf32>,
    %381 = vector.extract_strided_slice %305 {offsets = [0, 120], sizes = [1, 8], strides = [1, 1]} : vector<1x512xf32> to vector<1x8xf32>
    %382 = vector.shape_cast %381 : vector<1x8xf32> to vector<8xf32>
    %c15_319 = arith.constant 15 : index
    %c0_320 = arith.constant 0 : index
    %383 = vector.load %arg16[%c15_319, %c0_320] : memref<64x8xf32, #tpu.memory_space<vmem>>, vector<1x8xf32>
    %384 = vector.shape_cast %383 : vector<1x8xf32> to vector<8xf32>
    %385 = vector.shape_cast %382 : vector<8xf32> to vector<1x8xf32>
    tpu.vector_store %arg16[%c15_319, %c0_320], %385 {strides = array<i32>} : memref<64x8xf32, #tpu.memory_space<vmem>>, vector<1x8xf32>,
    %386 = vector.extract_strided_slice %305 {offsets = [0, 128], sizes = [1, 8], strides = [1, 1]} : vector<1x512xf32> to vector<1x8xf32>
    %387 = vector.shape_cast %386 : vector<1x8xf32> to vector<8xf32>
    %c16_321 = arith.constant 16 : index
    %c0_322 = arith.constant 0 : index
    %388 = vector.load %arg16[%c16_321, %c0_322] : memref<64x8xf32, #tpu.memory_space<vmem>>, vector<1x8xf32>
    %389 = vector.shape_cast %388 : vector<1x8xf32> to vector<8xf32>
    %390 = vector.shape_cast %387 : vector<8xf32> to vector<1x8xf32>
    tpu.vector_store %arg16[%c16_321, %c0_322], %390 {strides = array<i32>} : memref<64x8xf32, #tpu.memory_space<vmem>>, vector<1x8xf32>,
    %391 = vector.extract_strided_slice %305 {offsets = [0, 136], sizes = [1, 8], strides = [1, 1]} : vector<1x512xf32> to vector<1x8xf32>
    %392 = vector.shape_cast %391 : vector<1x8xf32> to vector<8xf32>
    %c17_323 = arith.constant 17 : index
    %c0_324 = arith.constant 0 : index
    %393 = vector.load %arg16[%c17_323, %c0_324] : memref<64x8xf32, #tpu.memory_space<vmem>>, vector<1x8xf32>
    %394 = vector.shape_cast %393 : vector<1x8xf32> to vector<8xf32>
    %395 = vector.shape_cast %392 : vector<8xf32> to vector<1x8xf32>
    tpu.vector_store %arg16[%c17_323, %c0_324], %395 {strides = array<i32>} : memref<64x8xf32, #tpu.memory_space<vmem>>, vector<1x8xf32>,
    %396 = vector.extract_strided_slice %305 {offsets = [0, 144], sizes = [1, 8], strides = [1, 1]} : vector<1x512xf32> to vector<1x8xf32>
    %397 = vector.shape_cast %396 : vector<1x8xf32> to vector<8xf32>
    %c18_325 = arith.constant 18 : index
    %c0_326 = arith.constant 0 : index
    %398 = vector.load %arg16[%c18_325, %c0_326] : memref<64x8xf32, #tpu.memory_space<vmem>>, vector<1x8xf32>
    %399 = vector.shape_cast %398 : vector<1x8xf32> to vector<8xf32>
    %400 = vector.shape_cast %397 : vector<8xf32> to vector<1x8xf32>
    tpu.vector_store %arg16[%c18_325, %c0_326], %400 {strides = array<i32>} : memref<64x8xf32, #tpu.memory_space<vmem>>, vector<1x8xf32>,
    %401 = vector.extract_strided_slice %305 {offsets = [0, 152], sizes = [1, 8], strides = [1, 1]} : vector<1x512xf32> to vector<1x8xf32>
    %402 = vector.shape_cast %401 : vector<1x8xf32> to vector<8xf32>
    %c19_327 = arith.constant 19 : index
    %c0_328 = arith.constant 0 : index
    %403 = vector.load %arg16[%c19_327, %c0_328] : memref<64x8xf32, #tpu.memory_space<vmem>>, vector<1x8xf32>
    %404 = vector.shape_cast %403 : vector<1x8xf32> to vector<8xf32>
    %405 = vector.shape_cast %402 : vector<8xf32> to vector<1x8xf32>
    tpu.vector_store %arg16[%c19_327, %c0_328], %405 {strides = array<i32>} : memref<64x8xf32, #tpu.memory_space<vmem>>, vector<1x8xf32>,
    %406 = vector.extract_strided_slice %305 {offsets = [0, 160], sizes = [1, 8], strides = [1, 1]} : vector<1x512xf32> to vector<1x8xf32>
    %407 = vector.shape_cast %406 : vector<1x8xf32> to vector<8xf32>
    %c20_329 = arith.constant 20 : index
    %c0_330 = arith.constant 0 : index
    %408 = vector.load %arg16[%c20_329, %c0_330] : memref<64x8xf32, #tpu.memory_space<vmem>>, vector<1x8xf32>
    %409 = vector.shape_cast %408 : vector<1x8xf32> to vector<8xf32>
    %410 = vector.shape_cast %407 : vector<8xf32> to vector<1x8xf32>
    tpu.vector_store %arg16[%c20_329, %c0_330], %410 {strides = array<i32>} : memref<64x8xf32, #tpu.memory_space<vmem>>, vector<1x8xf32>,
    %411 = vector.extract_strided_slice %305 {offsets = [0, 168], sizes = [1, 8], strides = [1, 1]} : vector<1x512xf32> to vector<1x8xf32>
    %412 = vector.shape_cast %411 : vector<1x8xf32> to vector<8xf32>
    %c21_331 = arith.constant 21 : index
    %c0_332 = arith.constant 0 : index
    %413 = vector.load %arg16[%c21_331, %c0_332] : memref<64x8xf32, #tpu.memory_space<vmem>>, vector<1x8xf32>
    %414 = vector.shape_cast %413 : vector<1x8xf32> to vector<8xf32>
    %415 = vector.shape_cast %412 : vector<8xf32> to vector<1x8xf32>
    tpu.vector_store %arg16[%c21_331, %c0_332], %415 {strides = array<i32>} : memref<64x8xf32, #tpu.memory_space<vmem>>, vector<1x8xf32>,
    %416 = vector.extract_strided_slice %305 {offsets = [0, 176], sizes = [1, 8], strides = [1, 1]} : vector<1x512xf32> to vector<1x8xf32>
    %417 = vector.shape_cast %416 : vector<1x8xf32> to vector<8xf32>
    %c22_333 = arith.constant 22 : index
    %c0_334 = arith.constant 0 : index
    %418 = vector.load %arg16[%c22_333, %c0_334] : memref<64x8xf32, #tpu.memory_space<vmem>>, vector<1x8xf32>
    %419 = vector.shape_cast %418 : vector<1x8xf32> to vector<8xf32>
    %420 = vector.shape_cast %417 : vector<8xf32> to vector<1x8xf32>
    tpu.vector_store %arg16[%c22_333, %c0_334], %420 {strides = array<i32>} : memref<64x8xf32, #tpu.memory_space<vmem>>, vector<1x8xf32>,
    %421 = vector.extract_strided_slice %305 {offsets = [0, 184], sizes = [1, 8], strides = [1, 1]} : vector<1x512xf32> to vector<1x8xf32>
    %422 = vector.shape_cast %421 : vector<1x8xf32> to vector<8xf32>
    %c23_335 = arith.constant 23 : index
    %c0_336 = arith.constant 0 : index
    %423 = vector.load %arg16[%c23_335, %c0_336] : memref<64x8xf32, #tpu.memory_space<vmem>>, vector<1x8xf32>
    %424 = vector.shape_cast %423 : vector<1x8xf32> to vector<8xf32>
    %425 = vector.shape_cast %422 : vector<8xf32> to vector<1x8xf32>
    tpu.vector_store %arg16[%c23_335, %c0_336], %425 {strides = array<i32>} : memref<64x8xf32, #tpu.memory_space<vmem>>, vector<1x8xf32>,
    %426 = vector.extract_strided_slice %305 {offsets = [0, 192], sizes = [1, 8], strides = [1, 1]} : vector<1x512xf32> to vector<1x8xf32>
    %427 = vector.shape_cast %426 : vector<1x8xf32> to vector<8xf32>
    %c24_337 = arith.constant 24 : index
    %c0_338 = arith.constant 0 : index
    %428 = vector.load %arg16[%c24_337, %c0_338] : memref<64x8xf32, #tpu.memory_space<vmem>>, vector<1x8xf32>
    %429 = vector.shape_cast %428 : vector<1x8xf32> to vector<8xf32>
    %430 = vector.shape_cast %427 : vector<8xf32> to vector<1x8xf32>
    tpu.vector_store %arg16[%c24_337, %c0_338], %430 {strides = array<i32>} : memref<64x8xf32, #tpu.memory_space<vmem>>, vector<1x8xf32>,
    %431 = vector.extract_strided_slice %305 {offsets = [0, 200], sizes = [1, 8], strides = [1, 1]} : vector<1x512xf32> to vector<1x8xf32>
    %432 = vector.shape_cast %431 : vector<1x8xf32> to vector<8xf32>
    %c25_339 = arith.constant 25 : index
    %c0_340 = arith.constant 0 : index
    %433 = vector.load %arg16[%c25_339, %c0_340] : memref<64x8xf32, #tpu.memory_space<vmem>>, vector<1x8xf32>
    %434 = vector.shape_cast %433 : vector<1x8xf32> to vector<8xf32>
    %435 = vector.shape_cast %432 : vector<8xf32> to vector<1x8xf32>
    tpu.vector_store %arg16[%c25_339, %c0_340], %435 {strides = array<i32>} : memref<64x8xf32, #tpu.memory_space<vmem>>, vector<1x8xf32>,
    %436 = vector.extract_strided_slice %305 {offsets = [0, 208], sizes = [1, 8], strides = [1, 1]} : vector<1x512xf32> to vector<1x8xf32>
    %437 = vector.shape_cast %436 : vector<1x8xf32> to vector<8xf32>
    %c26_341 = arith.constant 26 : index
    %c0_342 = arith.constant 0 : index
    %438 = vector.load %arg16[%c26_341, %c0_342] : memref<64x8xf32, #tpu.memory_space<vmem>>, vector<1x8xf32>
    %439 = vector.shape_cast %438 : vector<1x8xf32> to vector<8xf32>
    %440 = vector.shape_cast %437 : vector<8xf32> to vector<1x8xf32>
    tpu.vector_store %arg16[%c26_341, %c0_342], %440 {strides = array<i32>} : memref<64x8xf32, #tpu.memory_space<vmem>>, vector<1x8xf32>,
    %441 = vector.extract_strided_slice %305 {offsets = [0, 216], sizes = [1, 8], strides = [1, 1]} : vector<1x512xf32> to vector<1x8xf32>
    %442 = vector.shape_cast %441 : vector<1x8xf32> to vector<8xf32>
    %c27 = arith.constant 27 : index
    %c0_343 = arith.constant 0 : index
    %443 = vector.load %arg16[%c27, %c0_343] : memref<64x8xf32, #tpu.memory_space<vmem>>, vector<1x8xf32>
    %444 = vector.shape_cast %443 : vector<1x8xf32> to vector<8xf32>
    %445 = vector.shape_cast %442 : vector<8xf32> to vector<1x8xf32>
    tpu.vector_store %arg16[%c27, %c0_343], %445 {strides = array<i32>} : memref<64x8xf32, #tpu.memory_space<vmem>>, vector<1x8xf32>,
    %446 = vector.extract_strided_slice %305 {offsets = [0, 224], sizes = [1, 8], strides = [1, 1]} : vector<1x512xf32> to vector<1x8xf32>
    %447 = vector.shape_cast %446 : vector<1x8xf32> to vector<8xf32>
    %c28_344 = arith.constant 28 : index
    %c0_345 = arith.constant 0 : index
    %448 = vector.load %arg16[%c28_344, %c0_345] : memref<64x8xf32, #tpu.memory_space<vmem>>, vector<1x8xf32>
    %449 = vector.shape_cast %448 : vector<1x8xf32> to vector<8xf32>
    %450 = vector.shape_cast %447 : vector<8xf32> to vector<1x8xf32>
    tpu.vector_store %arg16[%c28_344, %c0_345], %450 {strides = array<i32>} : memref<64x8xf32, #tpu.memory_space<vmem>>, vector<1x8xf32>,
    %451 = vector.extract_strided_slice %305 {offsets = [0, 232], sizes = [1, 8], strides = [1, 1]} : vector<1x512xf32> to vector<1x8xf32>
    %452 = vector.shape_cast %451 : vector<1x8xf32> to vector<8xf32>
    %c29 = arith.constant 29 : index
    %c0_346 = arith.constant 0 : index
    %453 = vector.load %arg16[%c29, %c0_346] : memref<64x8xf32, #tpu.memory_space<vmem>>, vector<1x8xf32>
    %454 = vector.shape_cast %453 : vector<1x8xf32> to vector<8xf32>
    %455 = vector.shape_cast %452 : vector<8xf32> to vector<1x8xf32>
    tpu.vector_store %arg16[%c29, %c0_346], %455 {strides = array<i32>} : memref<64x8xf32, #tpu.memory_space<vmem>>, vector<1x8xf32>,
    %456 = vector.extract_strided_slice %305 {offsets = [0, 240], sizes = [1, 8], strides = [1, 1]} : vector<1x512xf32> to vector<1x8xf32>
    %457 = vector.shape_cast %456 : vector<1x8xf32> to vector<8xf32>
    %c30 = arith.constant 30 : index
    %c0_347 = arith.constant 0 : index
    %458 = vector.load %arg16[%c30, %c0_347] : memref<64x8xf32, #tpu.memory_space<vmem>>, vector<1x8xf32>
    %459 = vector.shape_cast %458 : vector<1x8xf32> to vector<8xf32>
    %460 = vector.shape_cast %457 : vector<8xf32> to vector<1x8xf32>
    tpu.vector_store %arg16[%c30, %c0_347], %460 {strides = array<i32>} : memref<64x8xf32, #tpu.memory_space<vmem>>, vector<1x8xf32>,
    %461 = vector.extract_strided_slice %305 {offsets = [0, 248], sizes = [1, 8], strides = [1, 1]} : vector<1x512xf32> to vector<1x8xf32>
    %462 = vector.shape_cast %461 : vector<1x8xf32> to vector<8xf32>
    %c31 = arith.constant 31 : index
    %c0_348 = arith.constant 0 : index
    %463 = vector.load %arg16[%c31, %c0_348] : memref<64x8xf32, #tpu.memory_space<vmem>>, vector<1x8xf32>
    %464 = vector.shape_cast %463 : vector<1x8xf32> to vector<8xf32>
    %465 = vector.shape_cast %462 : vector<8xf32> to vector<1x8xf32>
    tpu.vector_store %arg16[%c31, %c0_348], %465 {strides = array<i32>} : memref<64x8xf32, #tpu.memory_space<vmem>>, vector<1x8xf32>,
    %466 = vector.extract_strided_slice %305 {offsets = [0, 256], sizes = [1, 8], strides = [1, 1]} : vector<1x512xf32> to vector<1x8xf32>
    %467 = vector.shape_cast %466 : vector<1x8xf32> to vector<8xf32>
    %c32_349 = arith.constant 32 : index
    %c0_350 = arith.constant 0 : index
    %468 = vector.load %arg16[%c32_349, %c0_350] : memref<64x8xf32, #tpu.memory_space<vmem>>, vector<1x8xf32>
    %469 = vector.shape_cast %468 : vector<1x8xf32> to vector<8xf32>
    %470 = vector.shape_cast %467 : vector<8xf32> to vector<1x8xf32>
    tpu.vector_store %arg16[%c32_349, %c0_350], %470 {strides = array<i32>} : memref<64x8xf32, #tpu.memory_space<vmem>>, vector<1x8xf32>,
    %471 = vector.extract_strided_slice %305 {offsets = [0, 264], sizes = [1, 8], strides = [1, 1]} : vector<1x512xf32> to vector<1x8xf32>
    %472 = vector.shape_cast %471 : vector<1x8xf32> to vector<8xf32>
    %c33 = arith.constant 33 : index
    %c0_351 = arith.constant 0 : index
    %473 = vector.load %arg16[%c33, %c0_351] : memref<64x8xf32, #tpu.memory_space<vmem>>, vector<1x8xf32>
    %474 = vector.shape_cast %473 : vector<1x8xf32> to vector<8xf32>
    %475 = vector.shape_cast %472 : vector<8xf32> to vector<1x8xf32>
    tpu.vector_store %arg16[%c33, %c0_351], %475 {strides = array<i32>} : memref<64x8xf32, #tpu.memory_space<vmem>>, vector<1x8xf32>,
    %476 = vector.extract_strided_slice %305 {offsets = [0, 272], sizes = [1, 8], strides = [1, 1]} : vector<1x512xf32> to vector<1x8xf32>
    %477 = vector.shape_cast %476 : vector<1x8xf32> to vector<8xf32>
    %c34 = arith.constant 34 : index
    %c0_352 = arith.constant 0 : index
    %478 = vector.load %arg16[%c34, %c0_352] : memref<64x8xf32, #tpu.memory_space<vmem>>, vector<1x8xf32>
    %479 = vector.shape_cast %478 : vector<1x8xf32> to vector<8xf32>
    %480 = vector.shape_cast %477 : vector<8xf32> to vector<1x8xf32>
    tpu.vector_store %arg16[%c34, %c0_352], %480 {strides = array<i32>} : memref<64x8xf32, #tpu.memory_space<vmem>>, vector<1x8xf32>,
    %481 = vector.extract_strided_slice %305 {offsets = [0, 280], sizes = [1, 8], strides = [1, 1]} : vector<1x512xf32> to vector<1x8xf32>
    %482 = vector.shape_cast %481 : vector<1x8xf32> to vector<8xf32>
    %c35 = arith.constant 35 : index
    %c0_353 = arith.constant 0 : index
    %483 = vector.load %arg16[%c35, %c0_353] : memref<64x8xf32, #tpu.memory_space<vmem>>, vector<1x8xf32>
    %484 = vector.shape_cast %483 : vector<1x8xf32> to vector<8xf32>
    %485 = vector.shape_cast %482 : vector<8xf32> to vector<1x8xf32>
    tpu.vector_store %arg16[%c35, %c0_353], %485 {strides = array<i32>} : memref<64x8xf32, #tpu.memory_space<vmem>>, vector<1x8xf32>,
    %486 = vector.extract_strided_slice %305 {offsets = [0, 288], sizes = [1, 8], strides = [1, 1]} : vector<1x512xf32> to vector<1x8xf32>
    %487 = vector.shape_cast %486 : vector<1x8xf32> to vector<8xf32>
    %c36_354 = arith.constant 36 : index
    %c0_355 = arith.constant 0 : index
    %488 = vector.load %arg16[%c36_354, %c0_355] : memref<64x8xf32, #tpu.memory_space<vmem>>, vector<1x8xf32>
    %489 = vector.shape_cast %488 : vector<1x8xf32> to vector<8xf32>
    %490 = vector.shape_cast %487 : vector<8xf32> to vector<1x8xf32>
    tpu.vector_store %arg16[%c36_354, %c0_355], %490 {strides = array<i32>} : memref<64x8xf32, #tpu.memory_space<vmem>>, vector<1x8xf32>,
    %491 = vector.extract_strided_slice %305 {offsets = [0, 296], sizes = [1, 8], strides = [1, 1]} : vector<1x512xf32> to vector<1x8xf32>
    %492 = vector.shape_cast %491 : vector<1x8xf32> to vector<8xf32>
    %c37 = arith.constant 37 : index
    %c0_356 = arith.constant 0 : index
    %493 = vector.load %arg16[%c37, %c0_356] : memref<64x8xf32, #tpu.memory_space<vmem>>, vector<1x8xf32>
    %494 = vector.shape_cast %493 : vector<1x8xf32> to vector<8xf32>
    %495 = vector.shape_cast %492 : vector<8xf32> to vector<1x8xf32>
    tpu.vector_store %arg16[%c37, %c0_356], %495 {strides = array<i32>} : memref<64x8xf32, #tpu.memory_space<vmem>>, vector<1x8xf32>,
    %496 = vector.extract_strided_slice %305 {offsets = [0, 304], sizes = [1, 8], strides = [1, 1]} : vector<1x512xf32> to vector<1x8xf32>
    %497 = vector.shape_cast %496 : vector<1x8xf32> to vector<8xf32>
    %c38 = arith.constant 38 : index
    %c0_357 = arith.constant 0 : index
    %498 = vector.load %arg16[%c38, %c0_357] : memref<64x8xf32, #tpu.memory_space<vmem>>, vector<1x8xf32>
    %499 = vector.shape_cast %498 : vector<1x8xf32> to vector<8xf32>
    %500 = vector.shape_cast %497 : vector<8xf32> to vector<1x8xf32>
    tpu.vector_store %arg16[%c38, %c0_357], %500 {strides = array<i32>} : memref<64x8xf32, #tpu.memory_space<vmem>>, vector<1x8xf32>,
    %501 = vector.extract_strided_slice %305 {offsets = [0, 312], sizes = [1, 8], strides = [1, 1]} : vector<1x512xf32> to vector<1x8xf32>
    %502 = vector.shape_cast %501 : vector<1x8xf32> to vector<8xf32>
    %c39 = arith.constant 39 : index
    %c0_358 = arith.constant 0 : index
    %503 = vector.load %arg16[%c39, %c0_358] : memref<64x8xf32, #tpu.memory_space<vmem>>, vector<1x8xf32>
    %504 = vector.shape_cast %503 : vector<1x8xf32> to vector<8xf32>
    %505 = vector.shape_cast %502 : vector<8xf32> to vector<1x8xf32>
    tpu.vector_store %arg16[%c39, %c0_358], %505 {strides = array<i32>} : memref<64x8xf32, #tpu.memory_space<vmem>>, vector<1x8xf32>,
    %506 = vector.extract_strided_slice %305 {offsets = [0, 320], sizes = [1, 8], strides = [1, 1]} : vector<1x512xf32> to vector<1x8xf32>
    %507 = vector.shape_cast %506 : vector<1x8xf32> to vector<8xf32>
    %c40_359 = arith.constant 40 : index
    %c0_360 = arith.constant 0 : index
    %508 = vector.load %arg16[%c40_359, %c0_360] : memref<64x8xf32, #tpu.memory_space<vmem>>, vector<1x8xf32>
    %509 = vector.shape_cast %508 : vector<1x8xf32> to vector<8xf32>
    %510 = vector.shape_cast %507 : vector<8xf32> to vector<1x8xf32>
    tpu.vector_store %arg16[%c40_359, %c0_360], %510 {strides = array<i32>} : memref<64x8xf32, #tpu.memory_space<vmem>>, vector<1x8xf32>,
    %511 = vector.extract_strided_slice %305 {offsets = [0, 328], sizes = [1, 8], strides = [1, 1]} : vector<1x512xf32> to vector<1x8xf32>
    %512 = vector.shape_cast %511 : vector<1x8xf32> to vector<8xf32>
    %c41 = arith.constant 41 : index
    %c0_361 = arith.constant 0 : index
    %513 = vector.load %arg16[%c41, %c0_361] : memref<64x8xf32, #tpu.memory_space<vmem>>, vector<1x8xf32>
    %514 = vector.shape_cast %513 : vector<1x8xf32> to vector<8xf32>
    %515 = vector.shape_cast %512 : vector<8xf32> to vector<1x8xf32>
    tpu.vector_store %arg16[%c41, %c0_361], %515 {strides = array<i32>} : memref<64x8xf32, #tpu.memory_space<vmem>>, vector<1x8xf32>,
    %516 = vector.extract_strided_slice %305 {offsets = [0, 336], sizes = [1, 8], strides = [1, 1]} : vector<1x512xf32> to vector<1x8xf32>
    %517 = vector.shape_cast %516 : vector<1x8xf32> to vector<8xf32>
    %c42 = arith.constant 42 : index
    %c0_362 = arith.constant 0 : index
    %518 = vector.load %arg16[%c42, %c0_362] : memref<64x8xf32, #tpu.memory_space<vmem>>, vector<1x8xf32>
    %519 = vector.shape_cast %518 : vector<1x8xf32> to vector<8xf32>
    %520 = vector.shape_cast %517 : vector<8xf32> to vector<1x8xf32>
    tpu.vector_store %arg16[%c42, %c0_362], %520 {strides = array<i32>} : memref<64x8xf32, #tpu.memory_space<vmem>>, vector<1x8xf32>,
    %521 = vector.extract_strided_slice %305 {offsets = [0, 344], sizes = [1, 8], strides = [1, 1]} : vector<1x512xf32> to vector<1x8xf32>
    %522 = vector.shape_cast %521 : vector<1x8xf32> to vector<8xf32>
    %c43 = arith.constant 43 : index
    %c0_363 = arith.constant 0 : index
    %523 = vector.load %arg16[%c43, %c0_363] : memref<64x8xf32, #tpu.memory_space<vmem>>, vector<1x8xf32>
    %524 = vector.shape_cast %523 : vector<1x8xf32> to vector<8xf32>
    %525 = vector.shape_cast %522 : vector<8xf32> to vector<1x8xf32>
    tpu.vector_store %arg16[%c43, %c0_363], %525 {strides = array<i32>} : memref<64x8xf32, #tpu.memory_space<vmem>>, vector<1x8xf32>,
    %526 = vector.extract_strided_slice %305 {offsets = [0, 352], sizes = [1, 8], strides = [1, 1]} : vector<1x512xf32> to vector<1x8xf32>
    %527 = vector.shape_cast %526 : vector<1x8xf32> to vector<8xf32>
    %c44_364 = arith.constant 44 : index
    %c0_365 = arith.constant 0 : index
    %528 = vector.load %arg16[%c44_364, %c0_365] : memref<64x8xf32, #tpu.memory_space<vmem>>, vector<1x8xf32>
    %529 = vector.shape_cast %528 : vector<1x8xf32> to vector<8xf32>
    %530 = vector.shape_cast %527 : vector<8xf32> to vector<1x8xf32>
    tpu.vector_store %arg16[%c44_364, %c0_365], %530 {strides = array<i32>} : memref<64x8xf32, #tpu.memory_space<vmem>>, vector<1x8xf32>,
    %531 = vector.extract_strided_slice %305 {offsets = [0, 360], sizes = [1, 8], strides = [1, 1]} : vector<1x512xf32> to vector<1x8xf32>
    %532 = vector.shape_cast %531 : vector<1x8xf32> to vector<8xf32>
    %c45 = arith.constant 45 : index
    %c0_366 = arith.constant 0 : index
    %533 = vector.load %arg16[%c45, %c0_366] : memref<64x8xf32, #tpu.memory_space<vmem>>, vector<1x8xf32>
    %534 = vector.shape_cast %533 : vector<1x8xf32> to vector<8xf32>
    %535 = vector.shape_cast %532 : vector<8xf32> to vector<1x8xf32>
    tpu.vector_store %arg16[%c45, %c0_366], %535 {strides = array<i32>} : memref<64x8xf32, #tpu.memory_space<vmem>>, vector<1x8xf32>,
    %536 = vector.extract_strided_slice %305 {offsets = [0, 368], sizes = [1, 8], strides = [1, 1]} : vector<1x512xf32> to vector<1x8xf32>
    %537 = vector.shape_cast %536 : vector<1x8xf32> to vector<8xf32>
    %c46 = arith.constant 46 : index
    %c0_367 = arith.constant 0 : index
    %538 = vector.load %arg16[%c46, %c0_367] : memref<64x8xf32, #tpu.memory_space<vmem>>, vector<1x8xf32>
    %539 = vector.shape_cast %538 : vector<1x8xf32> to vector<8xf32>
    %540 = vector.shape_cast %537 : vector<8xf32> to vector<1x8xf32>
    tpu.vector_store %arg16[%c46, %c0_367], %540 {strides = array<i32>} : memref<64x8xf32, #tpu.memory_space<vmem>>, vector<1x8xf32>,
    %541 = vector.extract_strided_slice %305 {offsets = [0, 376], sizes = [1, 8], strides = [1, 1]} : vector<1x512xf32> to vector<1x8xf32>
    %542 = vector.shape_cast %541 : vector<1x8xf32> to vector<8xf32>
    %c47 = arith.constant 47 : index
    %c0_368 = arith.constant 0 : index
    %543 = vector.load %arg16[%c47, %c0_368] : memref<64x8xf32, #tpu.memory_space<vmem>>, vector<1x8xf32>
    %544 = vector.shape_cast %543 : vector<1x8xf32> to vector<8xf32>
    %545 = vector.shape_cast %542 : vector<8xf32> to vector<1x8xf32>
    tpu.vector_store %arg16[%c47, %c0_368], %545 {strides = array<i32>} : memref<64x8xf32, #tpu.memory_space<vmem>>, vector<1x8xf32>,
    %546 = vector.extract_strided_slice %305 {offsets = [0, 384], sizes = [1, 8], strides = [1, 1]} : vector<1x512xf32> to vector<1x8xf32>
    %547 = vector.shape_cast %546 : vector<1x8xf32> to vector<8xf32>
    %c48_369 = arith.constant 48 : index
    %c0_370 = arith.constant 0 : index
    %548 = vector.load %arg16[%c48_369, %c0_370] : memref<64x8xf32, #tpu.memory_space<vmem>>, vector<1x8xf32>
    %549 = vector.shape_cast %548 : vector<1x8xf32> to vector<8xf32>
    %550 = vector.shape_cast %547 : vector<8xf32> to vector<1x8xf32>
    tpu.vector_store %arg16[%c48_369, %c0_370], %550 {strides = array<i32>} : memref<64x8xf32, #tpu.memory_space<vmem>>, vector<1x8xf32>,
    %551 = vector.extract_strided_slice %305 {offsets = [0, 392], sizes = [1, 8], strides = [1, 1]} : vector<1x512xf32> to vector<1x8xf32>
    %552 = vector.shape_cast %551 : vector<1x8xf32> to vector<8xf32>
    %c49 = arith.constant 49 : index
    %c0_371 = arith.constant 0 : index
    %553 = vector.load %arg16[%c49, %c0_371] : memref<64x8xf32, #tpu.memory_space<vmem>>, vector<1x8xf32>
    %554 = vector.shape_cast %553 : vector<1x8xf32> to vector<8xf32>
    %555 = vector.shape_cast %552 : vector<8xf32> to vector<1x8xf32>
    tpu.vector_store %arg16[%c49, %c0_371], %555 {strides = array<i32>} : memref<64x8xf32, #tpu.memory_space<vmem>>, vector<1x8xf32>,
    %556 = vector.extract_strided_slice %305 {offsets = [0, 400], sizes = [1, 8], strides = [1, 1]} : vector<1x512xf32> to vector<1x8xf32>
    %557 = vector.shape_cast %556 : vector<1x8xf32> to vector<8xf32>
    %c50 = arith.constant 50 : index
    %c0_372 = arith.constant 0 : index
    %558 = vector.load %arg16[%c50, %c0_372] : memref<64x8xf32, #tpu.memory_space<vmem>>, vector<1x8xf32>
    %559 = vector.shape_cast %558 : vector<1x8xf32> to vector<8xf32>
    %560 = vector.shape_cast %557 : vector<8xf32> to vector<1x8xf32>
    tpu.vector_store %arg16[%c50, %c0_372], %560 {strides = array<i32>} : memref<64x8xf32, #tpu.memory_space<vmem>>, vector<1x8xf32>,
    %561 = vector.extract_strided_slice %305 {offsets = [0, 408], sizes = [1, 8], strides = [1, 1]} : vector<1x512xf32> to vector<1x8xf32>
    %562 = vector.shape_cast %561 : vector<1x8xf32> to vector<8xf32>
    %c51 = arith.constant 51 : index
    %c0_373 = arith.constant 0 : index
    %563 = vector.load %arg16[%c51, %c0_373] : memref<64x8xf32, #tpu.memory_space<vmem>>, vector<1x8xf32>
    %564 = vector.shape_cast %563 : vector<1x8xf32> to vector<8xf32>
    %565 = vector.shape_cast %562 : vector<8xf32> to vector<1x8xf32>
    tpu.vector_store %arg16[%c51, %c0_373], %565 {strides = array<i32>} : memref<64x8xf32, #tpu.memory_space<vmem>>, vector<1x8xf32>,
    %566 = vector.extract_strided_slice %305 {offsets = [0, 416], sizes = [1, 8], strides = [1, 1]} : vector<1x512xf32> to vector<1x8xf32>
    %567 = vector.shape_cast %566 : vector<1x8xf32> to vector<8xf32>
    %c52_374 = arith.constant 52 : index
    %c0_375 = arith.constant 0 : index
    %568 = vector.load %arg16[%c52_374, %c0_375] : memref<64x8xf32, #tpu.memory_space<vmem>>, vector<1x8xf32>
    %569 = vector.shape_cast %568 : vector<1x8xf32> to vector<8xf32>
    %570 = vector.shape_cast %567 : vector<8xf32> to vector<1x8xf32>
    tpu.vector_store %arg16[%c52_374, %c0_375], %570 {strides = array<i32>} : memref<64x8xf32, #tpu.memory_space<vmem>>, vector<1x8xf32>,
    %571 = vector.extract_strided_slice %305 {offsets = [0, 424], sizes = [1, 8], strides = [1, 1]} : vector<1x512xf32> to vector<1x8xf32>
    %572 = vector.shape_cast %571 : vector<1x8xf32> to vector<8xf32>
    %c53 = arith.constant 53 : index
    %c0_376 = arith.constant 0 : index
    %573 = vector.load %arg16[%c53, %c0_376] : memref<64x8xf32, #tpu.memory_space<vmem>>, vector<1x8xf32>
    %574 = vector.shape_cast %573 : vector<1x8xf32> to vector<8xf32>
    %575 = vector.shape_cast %572 : vector<8xf32> to vector<1x8xf32>
    tpu.vector_store %arg16[%c53, %c0_376], %575 {strides = array<i32>} : memref<64x8xf32, #tpu.memory_space<vmem>>, vector<1x8xf32>,
    %576 = vector.extract_strided_slice %305 {offsets = [0, 432], sizes = [1, 8], strides = [1, 1]} : vector<1x512xf32> to vector<1x8xf32>
    %577 = vector.shape_cast %576 : vector<1x8xf32> to vector<8xf32>
    %c54 = arith.constant 54 : index
    %c0_377 = arith.constant 0 : index
    %578 = vector.load %arg16[%c54, %c0_377] : memref<64x8xf32, #tpu.memory_space<vmem>>, vector<1x8xf32>
    %579 = vector.shape_cast %578 : vector<1x8xf32> to vector<8xf32>
    %580 = vector.shape_cast %577 : vector<8xf32> to vector<1x8xf32>
    tpu.vector_store %arg16[%c54, %c0_377], %580 {strides = array<i32>} : memref<64x8xf32, #tpu.memory_space<vmem>>, vector<1x8xf32>,
    %581 = vector.extract_strided_slice %305 {offsets = [0, 440], sizes = [1, 8], strides = [1, 1]} : vector<1x512xf32> to vector<1x8xf32>
    %582 = vector.shape_cast %581 : vector<1x8xf32> to vector<8xf32>
    %c55_378 = arith.constant 55 : index
    %c0_379 = arith.constant 0 : index
    %583 = vector.load %arg16[%c55_378, %c0_379] : memref<64x8xf32, #tpu.memory_space<vmem>>, vector<1x8xf32>
    %584 = vector.shape_cast %583 : vector<1x8xf32> to vector<8xf32>
    %585 = vector.shape_cast %582 : vector<8xf32> to vector<1x8xf32>
    tpu.vector_store %arg16[%c55_378, %c0_379], %585 {strides = array<i32>} : memref<64x8xf32, #tpu.memory_space<vmem>>, vector<1x8xf32>,
    %586 = vector.extract_strided_slice %305 {offsets = [0, 448], sizes = [1, 8], strides = [1, 1]} : vector<1x512xf32> to vector<1x8xf32>
    %587 = vector.shape_cast %586 : vector<1x8xf32> to vector<8xf32>
    %c56_380 = arith.constant 56 : index
    %c0_381 = arith.constant 0 : index
    %588 = vector.load %arg16[%c56_380, %c0_381] : memref<64x8xf32, #tpu.memory_space<vmem>>, vector<1x8xf32>
    %589 = vector.shape_cast %588 : vector<1x8xf32> to vector<8xf32>
    %590 = vector.shape_cast %587 : vector<8xf32> to vector<1x8xf32>
    tpu.vector_store %arg16[%c56_380, %c0_381], %590 {strides = array<i32>} : memref<64x8xf32, #tpu.memory_space<vmem>>, vector<1x8xf32>,
    %591 = vector.extract_strided_slice %305 {offsets = [0, 456], sizes = [1, 8], strides = [1, 1]} : vector<1x512xf32> to vector<1x8xf32>
    %592 = vector.shape_cast %591 : vector<1x8xf32> to vector<8xf32>
    %c57_382 = arith.constant 57 : index
    %c0_383 = arith.constant 0 : index
    %593 = vector.load %arg16[%c57_382, %c0_383] : memref<64x8xf32, #tpu.memory_space<vmem>>, vector<1x8xf32>
    %594 = vector.shape_cast %593 : vector<1x8xf32> to vector<8xf32>
    %595 = vector.shape_cast %592 : vector<8xf32> to vector<1x8xf32>
    tpu.vector_store %arg16[%c57_382, %c0_383], %595 {strides = array<i32>} : memref<64x8xf32, #tpu.memory_space<vmem>>, vector<1x8xf32>,
    %596 = vector.extract_strided_slice %305 {offsets = [0, 464], sizes = [1, 8], strides = [1, 1]} : vector<1x512xf32> to vector<1x8xf32>
    %597 = vector.shape_cast %596 : vector<1x8xf32> to vector<8xf32>
    %c58 = arith.constant 58 : index
    %c0_384 = arith.constant 0 : index
    %598 = vector.load %arg16[%c58, %c0_384] : memref<64x8xf32, #tpu.memory_space<vmem>>, vector<1x8xf32>
    %599 = vector.shape_cast %598 : vector<1x8xf32> to vector<8xf32>
    %600 = vector.shape_cast %597 : vector<8xf32> to vector<1x8xf32>
    tpu.vector_store %arg16[%c58, %c0_384], %600 {strides = array<i32>} : memref<64x8xf32, #tpu.memory_space<vmem>>, vector<1x8xf32>,
    %601 = vector.extract_strided_slice %305 {offsets = [0, 472], sizes = [1, 8], strides = [1, 1]} : vector<1x512xf32> to vector<1x8xf32>
    %602 = vector.shape_cast %601 : vector<1x8xf32> to vector<8xf32>
    %c59 = arith.constant 59 : index
    %c0_385 = arith.constant 0 : index
    %603 = vector.load %arg16[%c59, %c0_385] : memref<64x8xf32, #tpu.memory_space<vmem>>, vector<1x8xf32>
    %604 = vector.shape_cast %603 : vector<1x8xf32> to vector<8xf32>
    %605 = vector.shape_cast %602 : vector<8xf32> to vector<1x8xf32>
    tpu.vector_store %arg16[%c59, %c0_385], %605 {strides = array<i32>} : memref<64x8xf32, #tpu.memory_space<vmem>>, vector<1x8xf32>,
    %606 = vector.extract_strided_slice %305 {offsets = [0, 480], sizes = [1, 8], strides = [1, 1]} : vector<1x512xf32> to vector<1x8xf32>
    %607 = vector.shape_cast %606 : vector<1x8xf32> to vector<8xf32>
    %c60_386 = arith.constant 60 : index
    %c0_387 = arith.constant 0 : index
    %608 = vector.load %arg16[%c60_386, %c0_387] : memref<64x8xf32, #tpu.memory_space<vmem>>, vector<1x8xf32>
    %609 = vector.shape_cast %608 : vector<1x8xf32> to vector<8xf32>
    %610 = vector.shape_cast %607 : vector<8xf32> to vector<1x8xf32>
    tpu.vector_store %arg16[%c60_386, %c0_387], %610 {strides = array<i32>} : memref<64x8xf32, #tpu.memory_space<vmem>>, vector<1x8xf32>,
    %611 = vector.extract_strided_slice %305 {offsets = [0, 488], sizes = [1, 8], strides = [1, 1]} : vector<1x512xf32> to vector<1x8xf32>
    %612 = vector.shape_cast %611 : vector<1x8xf32> to vector<8xf32>
    %c61 = arith.constant 61 : index
    %c0_388 = arith.constant 0 : index
    %613 = vector.load %arg16[%c61, %c0_388] : memref<64x8xf32, #tpu.memory_space<vmem>>, vector<1x8xf32>
    %614 = vector.shape_cast %613 : vector<1x8xf32> to vector<8xf32>
    %615 = vector.shape_cast %612 : vector<8xf32> to vector<1x8xf32>
    tpu.vector_store %arg16[%c61, %c0_388], %615 {strides = array<i32>} : memref<64x8xf32, #tpu.memory_space<vmem>>, vector<1x8xf32>,
    %616 = vector.extract_strided_slice %305 {offsets = [0, 496], sizes = [1, 8], strides = [1, 1]} : vector<1x512xf32> to vector<1x8xf32>
    %617 = vector.shape_cast %616 : vector<1x8xf32> to vector<8xf32>
    %c62 = arith.constant 62 : index
    %c0_389 = arith.constant 0 : index
    %618 = vector.load %arg16[%c62, %c0_389] : memref<64x8xf32, #tpu.memory_space<vmem>>, vector<1x8xf32>
    %619 = vector.shape_cast %618 : vector<1x8xf32> to vector<8xf32>
    %620 = vector.shape_cast %617 : vector<8xf32> to vector<1x8xf32>
    tpu.vector_store %arg16[%c62, %c0_389], %620 {strides = array<i32>} : memref<64x8xf32, #tpu.memory_space<vmem>>, vector<1x8xf32>,
    %621 = vector.extract_strided_slice %305 {offsets = [0, 504], sizes = [1, 8], strides = [1, 1]} : vector<1x512xf32> to vector<1x8xf32>
    %622 = vector.shape_cast %621 : vector<1x8xf32> to vector<8xf32>
    %c63_390 = arith.constant 63 : index
    %c0_391 = arith.constant 0 : index
    %623 = vector.load %arg16[%c63_390, %c0_391] : memref<64x8xf32, #tpu.memory_space<vmem>>, vector<1x8xf32>
    %624 = vector.shape_cast %623 : vector<1x8xf32> to vector<8xf32>
    %625 = vector.shape_cast %622 : vector<8xf32> to vector<1x8xf32>
    tpu.vector_store %arg16[%c63_390, %c0_391], %625 {strides = array<i32>} : memref<64x8xf32, #tpu.memory_space<vmem>>, vector<1x8xf32>,
    %c0_392 = arith.constant 0 : index
    %c0_393 = arith.constant 0 : index
    %626 = vector.load %arg16[%c0_392, %c0_393] : memref<64x8xf32, #tpu.memory_space<vmem>>, vector<64x8xf32>
    %c0_394 = arith.constant 0 : index
    %c0_395 = arith.constant 0 : index
    %627 = vector.load %arg12[%c0_394, %c0_395] : memref<8x16xf32, #tpu.memory_space<vmem>>, vector<8x16xf32>
    %cst_396 = arith.constant dense<0.000000e+00> : vector<64x16xf32>
    %628 = tpu.matmul %626, %627, %cst_396 {dimension_numbers = #tpu.dot_dimension_numbers<[1], [0], [0], [1], [0, 0, 1, 1], [], []>} : vector<64x8xf32>, vector<8x16xf32>, vector<64x16xf32> -> vector<64x16xf32>
    %629 = vector.shape_cast %628 : vector<64x16xf32> to vector<8x8x16xf32>
    %c0_397 = arith.constant 0 : index
    %c0_398 = arith.constant 0 : index
    %630 = vector.load %arg11[%c0_397, %c0_398] : memref<16x8xf32, #tpu.memory_space<vmem>>, vector<16x8xf32>
    %631 = vector.shape_cast %630 : vector<16x8xf32> to vector<1x16x8xf32>
    %632 = vector.broadcast %631 : vector<1x16x8xf32> to vector<8x16x8xf32>
    "tpu.trace_start"() <{level = 10 : i32, message = "doh,dhw->dow"}> : () -> ()
    %cst_399 = arith.constant dense<0.000000e+00> : vector<8x16x16xf32>
    %633 = tpu.matmul %632, %629, %cst_399 {dimension_numbers = #tpu.dot_dimension_numbers<[2], [1], [1], [2], [0, 0, 0, 1, 1, 2], [0], [0]>} : vector<8x16x8xf32>, vector<8x8x16xf32>, vector<8x16x16xf32> -> vector<8x16x16xf32>
    "tpu.trace_stop"() : () -> ()
    %c0_400 = arith.constant 0 : index
    %c0_401 = arith.constant 0 : index
    %c0_402 = arith.constant 0 : index
    %c0_403 = arith.constant 0 : index
    %634 = vector.load %arg13[%c0_400, %c0_401, %c0_402, %c0_403] : memref<1x8x16x16xf32, #tpu.memory_space<vmem>>, vector<1x8x16x16xf32>
    %635 = vector.shape_cast %634 : vector<1x8x16x16xf32> to vector<8x16x16xf32>
    %636 = vector.shape_cast %633 : vector<8x16x16xf32> to vector<1x8x16x16xf32>
    tpu.vector_store %arg13[%c0_400, %c0_401, %c0_402, %c0_403], %636 {strides = array<i32>} : memref<1x8x16x16xf32, #tpu.memory_space<vmem>>, vector<1x8x16x16xf32>,
    return
  }
  func.func @transform_0(%arg0: i32) -> (i32, i32, i32) {
    %c0_i32 = arith.constant 0 : i32
    %c0_i32_0 = arith.constant 0 : i32
    %c0_i32_1 = arith.constant 0 : i32
    return %arg0, %c0_i32, %c0_i32_0 : i32, i32, i32
  }
  func.func @transform_1(%arg0: i32) -> (i32, i32) {
    %c0_i32 = arith.constant 0 : i32
    %c0_i32_0 = arith.constant 0 : i32
    %c0_i32_1 = arith.constant 0 : i32
    return %c0_i32, %c0_i32_0 : i32, i32
  }
  func.func @transform_2(%arg0: i32) -> (i32, i32) {
    %c0_i32 = arith.constant 0 : i32
    %c0_i32_0 = arith.constant 0 : i32
    %c0_i32_1 = arith.constant 0 : i32
    return %c0_i32, %c0_i32_0 : i32, i32
  }
  func.func @transform_3(%arg0: i32) -> (i32, i32) {
    %c0_i32 = arith.constant 0 : i32
    %c0_i32_0 = arith.constant 0 : i32
    %c0_i32_1 = arith.constant 0 : i32
    return %c0_i32, %c0_i32_0 : i32, i32
  }
  func.func @transform_4(%arg0: i32) -> (i32, i32) {
    %c0_i32 = arith.constant 0 : i32
    %c0_i32_0 = arith.constant 0 : i32
    %c0_i32_1 = arith.constant 0 : i32
    return %c0_i32, %c0_i32_0 : i32, i32
  }
  func.func @transform_5(%arg0: i32) -> (i32, i32) {
    %c0_i32 = arith.constant 0 : i32
    %c0_i32_0 = arith.constant 0 : i32
    %c0_i32_1 = arith.constant 0 : i32
    return %c0_i32, %c0_i32_0 : i32, i32
  }
  func.func @transform_6(%arg0: i32) -> (i32, i32) {
    %c0_i32 = arith.constant 0 : i32
    %c0_i32_0 = arith.constant 0 : i32
    %c0_i32_1 = arith.constant 0 : i32
    return %c0_i32, %c0_i32_0 : i32, i32
  }
  func.func @transform_7(%arg0: i32) -> (i32, i32) {
    %c0_i32 = arith.constant 0 : i32
    %c0_i32_0 = arith.constant 0 : i32
    %c0_i32_1 = arith.constant 0 : i32
    return %c0_i32, %c0_i32_0 : i32, i32
  }
  func.func @transform_8(%arg0: i32) -> (i32, i32) {
    %c0_i32 = arith.constant 0 : i32
    %c0_i32_0 = arith.constant 0 : i32
    %c0_i32_1 = arith.constant 0 : i32
    return %c0_i32, %c0_i32_0 : i32, i32
  }
  func.func @transform_9(%arg0: i32) -> (i32, i32) {
    %c0_i32 = arith.constant 0 : i32
    %c0_i32_0 = arith.constant 0 : i32
    %c0_i32_1 = arith.constant 0 : i32
    return %c0_i32, %c0_i32_0 : i32, i32
  }
  func.func @transform_10(%arg0: i32) -> (i32, i32) {
    %c0_i32 = arith.constant 0 : i32
    %c0_i32_0 = arith.constant 0 : i32
    %c0_i32_1 = arith.constant 0 : i32
    return %c0_i32, %c0_i32_0 : i32, i32
  }
  func.func @transform_11(%arg0: i32) -> (i32, i32) {
    %c0_i32 = arith.constant 0 : i32
    %c0_i32_0 = arith.constant 0 : i32
    %c0_i32_1 = arith.constant 0 : i32
    return %c0_i32, %c0_i32_0 : i32, i32
  }
  func.func @transform_12(%arg0: i32) -> (i32, i32, i32, i32) {
    %c0_i32 = arith.constant 0 : i32
    %c0_i32_0 = arith.constant 0 : i32
    %c0_i32_1 = arith.constant 0 : i32
    %c0_i32_2 = arith.constant 0 : i32
    return %arg0, %c0_i32, %c0_i32_0, %c0_i32_1 : i32, i32, i32, i32
  }
}

</mosaic_0001>

<llo_original>
// kernel: tpu_custom_call.1
$region0: #{tpu_custom_call.1}
  #allocation0 [shape = 'u32[]', space=smem, size = 0x4, offset = 0x4, fixed_abs, tag = 'smem constant byte address 0x4 - core index']
  #allocation1 [shape = 'u32[144,128]{1,0:T(1,128)}', space=vmem, size = 0x12000, scoped, tag = 'internal scratch']
  #allocation2 [shape = 'f32[4,768]{1,0:T(4,128)}', space=vmem, size = 0x3000, scoped, tag = 'scratch operand']
  #allocation3 [shape = 'f32[108,512]{1,0:T(8,128)}', space=vmem, size = 0x38000, scoped, tag = 'scratch operand']
  #allocation4 [shape = 'f32[64,8]{1,0:T(8,128)}', space=vmem, size = 0x8000, scoped, tag = 'scratch operand']
  #allocation5 [shape = 'f32[1,1]{1,0:T(1,128)S(1)}', space=vmem, size = 0x200, scoped, tag = 'scoped memory for tpu_custom_call.1']
  %s0 = inlined_call_operand.vmem [shape: f32[2,4,512], index: 0, kind: input, shape index: {}]
  %s1 = inlined_call_operand.vmem [shape: f32[4,1], index: 1, kind: input, shape index: {}]
  %s2 = inlined_call_operand.vmem [shape: f32[4,1], index: 2, kind: input, shape index: {}]
  %s3 = inlined_call_operand.hbm [shape: f32[4,108], index: 3, kind: input, shape index: {}]
  %s4 = inlined_call_operand.vmem [shape: f32[4,1], index: 4, kind: input, shape index: {}]
  %s5 = inlined_call_operand.vmem [shape: f32[4,108], index: 5, kind: input, shape index: {}]
  %s6 = inlined_call_operand.vmem [shape: f32[4,1], index: 6, kind: input, shape index: {}]
  %s7 = inlined_call_operand.vmem [shape: f32[1,4], index: 7, kind: input, shape index: {}]
  %s8 = inlined_call_operand.<no memory space> [shape: f32[1,1], index: 8, kind: input, shape index: {}]
  %s9 = inlined_call_operand.hbm [shape: f32[27,512], index: 9, kind: input, shape index: {}]
  %s10 = inlined_call_operand.vmem [shape: f32[16,8], index: 10, kind: input, shape index: {}]
  %s11 = inlined_call_operand.vmem [shape: f32[8,16], index: 11, kind: input, shape index: {}]
  %s12 = inlined_call_operand.hbm [shape: f32[2,8,16,16], index: 12, kind: output, shape index: {}]
  %s13 = sld [smem:[#allocation0]]
  $region89: #{tpu_custom_call.1} parent=0
    _
  %s15 = ssub.s32 1, %s13
  %s16 = scalar_select 0, %s15, %s13
  %v17 = vstv %s8
  %18 = vst [vmem:[#allocation5] sm:$0x1] %v17
  $region1: #{tpu_custom_call.1} parent=0
    #allocation6 [shape = 'u8[2048]{0}', space=vmem, size = 0x800, scoped, tag = 'input window, operand 3, single buffered']
    #allocation7 [shape = 's32[2]{0}', space=sflag, size = 0x8, scoped, tag = 'scoped memory for tpu_custom_call.1']
    #allocation8 [shape = 's32[2]{0}', space=sflag, size = 0x8, scoped, tag = 'scoped memory for tpu_custom_call.1']
    #allocation9 [shape = 'u8[65536]{0}', space=vmem, size = 0x10000, scoped, tag = 'input window, operand 9, single buffered']
    #allocation10 [shape = 's32[1]{0}', space=sflag, size = 0x4, scoped, tag = 'scoped memory for tpu_custom_call.1']
    #allocation11 [shape = 'u8[131072]{0}', space=vmem, size = 0x20000, scoped, tag = 'output window, operand 0']
    %19 = vsyncpa [#allocation7], 0
    %20 = vsyncpa [#allocation10], 0
    %21 = vsyncpa [#allocation8], 0
    %s22 = scalar_lea.sflag [#allocation8], 1
    %23 = vsyncpa %s22, 0
    loop: start=0, step=1, limit=4
    $region2: #{tpu_custom_call.1} parent=1 // loop_pre_header
      _
    $region3: #{tpu_custom_call.1} parent=1 // loop_header
      %s25 = sphi 0, %s29
      %p26 = scmp.ge.s32.totalorder %s25, 4
      %s35 = sphi 0, %s37
      %s38 = sphi 0, %s35
      %s39 = sphi 0, %s38
      %s55 = sphi 0, %s39
      %s59 = sphi 0, %s59
      %s61 = sphi 0, %s59
      %s62 = sphi 0, %s61
      %s76 = sphi 0, %s62
      %s80 = sphi 0, %s80
      %s82 = sphi 0, %s80
      %s83 = sphi 0, %s82
      %s97 = sphi 0, %s83
      %s101 = sphi 0, %s101
      %s103 = sphi 0, %s101
      %s104 = sphi 0, %s103
      %s118 = sphi 0, %s104
      %s122 = sphi 0, %s122
      %s124 = sphi 0, %s122
      %s125 = sphi 0, %s124
      %s139 = sphi 0, %s125
      %s143 = sphi 0, %s143
      %s145 = sphi 0, %s143
      %s146 = sphi 0, %s145
      %s160 = sphi 0, %s146
      %s164 = sphi 0, %s164
      %s166 = sphi 0, %s164
      %s167 = sphi 0, %s166
      %s181 = sphi 0, %s167
      %s185 = sphi 0, %s185
      %s187 = sphi 0, %s185
      %s188 = sphi 0, %s187
      %s202 = sphi 0, %s188
      %s206 = sphi 0, %s206
      %s208 = sphi 0, %s206
      %s209 = sphi 0, %s208
      %s223 = sphi 0, %s209
      %s227 = sphi 0, %s227
      %s229 = sphi 0, %s227
      %s230 = sphi 0, %s229
      %s244 = sphi 0, %s230
      %s248 = sphi 0, %s248
      %s250 = sphi 0, %s248
      %s251 = sphi 0, %s250
      %s265 = sphi 0, %s251
      %s269 = sphi 0, %s269
      %s271 = sphi 0, %s269
      %s272 = sphi 0, %s271
      %s286 = sphi 0, %s272
      %s292 = sphi 0, %s294
      %s295 = sphi 0, %s292
      %s296 = sphi 0, %s295
      %s312 = sphi 0, %s296
    $region4: #{tpu_custom_call.1} parent=1 // loop_header_branch
      %28 = sbr.rel (%p26) target = $region8
    $region5: #{tpu_custom_call.1} parent=1 // loop_body
      %s30 = ssub.s32 %s25, 1
      %s31 = ssub.s32 %s25, 2
      %s32 = sadd.s32 %s25, 1
      %s33 = ssub.s32 %s25, %s32
      %p34 = scmp.eq.s32.totalorder %s33, 0
      %s36 = sadd.s32 %s35, 1
      %s37 = scalar_select %p34, %s35, %s36
      %p40 = pneg %p34
      %p41 = scmp.eq.s32.totalorder %s25, 1
      %p42 = por %p40, %p41
      %p43 = scmp.ne.s32.totalorder %s35, %s38
      %p44 = scmp.eq.s32.totalorder %s25, 0
      %p45 = por %p43, %p44
      %p46 = scmp.ne.s32.totalorder %s35, %s38
      %p47 = scmp.eq.s32.totalorder %s30, 1
      %p48 = por %p46, %p47
      %p49 = scmp.ne.s32.totalorder %s38, %s39
      %p50 = scmp.eq.s32.totalorder %s30, 0
      %p51 = por %p49, %p50
      %p52 = scmp.ne.s32.totalorder %s38, %s39
      %p53 = scmp.eq.s32.totalorder %s31, 1
      %p54 = por %p52, %p53
      %p56 = scmp.ne.s32.totalorder %s39, %s55
      %p57 = scmp.eq.s32.totalorder %s31, 0
      %p58 = por %p56, %p57
      %s60 = sadd.s32 %s59, 1
      %p63 = scmp.eq.s32.totalorder %s25, 1
      %p64 = scmp.ne.s32.totalorder %s59, %s61
      %p65 = scmp.eq.s32.totalorder %s25, 0
      %p66 = por %p64, %p65
      %p67 = scmp.ne.s32.totalorder %s59, %s61
      %p68 = scmp.eq.s32.totalorder %s30, 1
      %p69 = por %p67, %p68
      %p70 = scmp.ne.s32.totalorder %s61, %s62
      %p71 = scmp.eq.s32.totalorder %s30, 0
      %p72 = por %p70, %p71
      %p73 = scmp.ne.s32.totalorder %s61, %s62
      %p74 = scmp.eq.s32.totalorder %s31, 1
      %p75 = por %p73, %p74
      %p77 = scmp.ne.s32.totalorder %s62, %s76
      %p78 = scmp.eq.s32.totalorder %s31, 0
      %p79 = por %p77, %p78
      %s81 = sadd.s32 %s80, 1
      %p84 = scmp.eq.s32.totalorder %s25, 1
      %p85 = scmp.ne.s32.totalorder %s80, %s82
      %p86 = scmp.eq.s32.totalorder %s25, 0
      %p87 = por %p85, %p86
      %p88 = scmp.ne.s32.totalorder %s80, %s82
      %p89 = scmp.eq.s32.totalorder %s30, 1
      %p90 = por %p88, %p89
      %p91 = scmp.ne.s32.totalorder %s82, %s83
      %p92 = scmp.eq.s32.totalorder %s30, 0
      %p93 = por %p91, %p92
      %p94 = scmp.ne.s32.totalorder %s82, %s83
      %p95 = scmp.eq.s32.totalorder %s31, 1
      %p96 = por %p94, %p95
      %p98 = scmp.ne.s32.totalorder %s83, %s97
      %p99 = scmp.eq.s32.totalorder %s31, 0
      %p100 = por %p98, %p99
      %s102 = sadd.s32 %s101, 1
      %p105 = scmp.eq.s32.totalorder %s25, 1
      %p106 = scmp.ne.s32.totalorder %s101, %s103
      %p107 = scmp.eq.s32.totalorder %s25, 0
      %p108 = por %p106, %p107
      %p109 = scmp.ne.s32.totalorder %s101, %s103
      %p110 = scmp.eq.s32.totalorder %s30, 1
      %p111 = por %p109, %p110
      %p112 = scmp.ne.s32.totalorder %s103, %s104
      %p113 = scmp.eq.s32.totalorder %s30, 0
      %p114 = por %p112, %p113
      %p115 = scmp.ne.s32.totalorder %s103, %s104
      %p116 = scmp.eq.s32.totalorder %s31, 1
      %p117 = por %p115, %p116
      %p119 = scmp.ne.s32.totalorder %s104, %s118
      %p120 = scmp.eq.s32.totalorder %s31, 0
      %p121 = por %p119, %p120
      %s123 = sadd.s32 %s122, 1
      %p126 = scmp.eq.s32.totalorder %s25, 1
      %p127 = scmp.ne.s32.totalorder %s122, %s124
      %p128 = scmp.eq.s32.totalorder %s25, 0
      %p129 = por %p127, %p128
      %p130 = scmp.ne.s32.totalorder %s122, %s124
      %p131 = scmp.eq.s32.totalorder %s30, 1
      %p132 = por %p130, %p131
      %p133 = scmp.ne.s32.totalorder %s124, %s125
      %p134 = scmp.eq.s32.totalorder %s30, 0
      %p135 = por %p133, %p134
      %p136 = scmp.ne.s32.totalorder %s124, %s125
      %p137 = scmp.eq.s32.totalorder %s31, 1
      %p138 = por %p136, %p137
      %p140 = scmp.ne.s32.totalorder %s125, %s139
      %p141 = scmp.eq.s32.totalorder %s31, 0
      %p142 = por %p140, %p141
      %s144 = sadd.s32 %s143, 1
      %p147 = scmp.eq.s32.totalorder %s25, 1
      %p148 = scmp.ne.s32.totalorder %s143, %s145
      %p149 = scmp.eq.s32.totalorder %s25, 0
      %p150 = por %p148, %p149
      %p151 = scmp.ne.s32.totalorder %s143, %s145
      %p152 = scmp.eq.s32.totalorder %s30, 1
      %p153 = por %p151, %p152
      %p154 = scmp.ne.s32.totalorder %s145, %s146
      %p155 = scmp.eq.s32.totalorder %s30, 0
      %p156 = por %p154, %p155
      %p157 = scmp.ne.s32.totalorder %s145, %s146
      %p158 = scmp.eq.s32.totalorder %s31, 1
      %p159 = por %p157, %p158
      %p161 = scmp.ne.s32.totalorder %s146, %s160
      %p162 = scmp.eq.s32.totalorder %s31, 0
      %p163 = por %p161, %p162
      %s165 = sadd.s32 %s164, 1
      %p168 = scmp.eq.s32.totalorder %s25, 1
      %p169 = scmp.ne.s32.totalorder %s164, %s166
      %p170 = scmp.eq.s32.totalorder %s25, 0
      %p171 = por %p169, %p170
      %p172 = scmp.ne.s32.totalorder %s164, %s166
      %p173 = scmp.eq.s32.totalorder %s30, 1
      %p174 = por %p172, %p173
      %p175 = scmp.ne.s32.totalorder %s166, %s167
      %p176 = scmp.eq.s32.totalorder %s30, 0
      %p177 = por %p175, %p176
      %p178 = scmp.ne.s32.totalorder %s166, %s167
      %p179 = scmp.eq.s32.totalorder %s31, 1
      %p180 = por %p178, %p179
      %p182 = scmp.ne.s32.totalorder %s167, %s181
      %p183 = scmp.eq.s32.totalorder %s31, 0
      %p184 = por %p182, %p183
      %s186 = sadd.s32 %s185, 1
      %p189 = scmp.eq.s32.totalorder %s25, 1
      %p190 = scmp.ne.s32.totalorder %s185, %s187
      %p191 = scmp.eq.s32.totalorder %s25, 0
      %p192 = por %p190, %p191
      %p193 = scmp.ne.s32.totalorder %s185, %s187
      %p194 = scmp.eq.s32.totalorder %s30, 1
      %p195 = por %p193, %p194
      %p196 = scmp.ne.s32.totalorder %s187, %s188
      %p197 = scmp.eq.s32.totalorder %s30, 0
      %p198 = por %p196, %p197
      %p199 = scmp.ne.s32.totalorder %s187, %s188
      %p200 = scmp.eq.s32.totalorder %s31, 1
      %p201 = por %p199, %p200
      %p203 = scmp.ne.s32.totalorder %s188, %s202
      %p204 = scmp.eq.s32.totalorder %s31, 0
      %p205 = por %p203, %p204
      %s207 = sadd.s32 %s206, 1
      %p210 = scmp.eq.s32.totalorder %s25, 1
      %p211 = scmp.ne.s32.totalorder %s206, %s208
      %p212 = scmp.eq.s32.totalorder %s25, 0
      %p213 = por %p211, %p212
      %p214 = scmp.ne.s32.totalorder %s206, %s208
      %p215 = scmp.eq.s32.totalorder %s30, 1
      %p216 = por %p214, %p215
      %p217 = scmp.ne.s32.totalorder %s208, %s209
      %p218 = scmp.eq.s32.totalorder %s30, 0
      %p219 = por %p217, %p218
      %p220 = scmp.ne.s32.totalorder %s208, %s209
      %p221 = scmp.eq.s32.totalorder %s31, 1
      %p222 = por %p220, %p221
      %p224 = scmp.ne.s32.totalorder %s209, %s223
      %p225 = scmp.eq.s32.totalorder %s31, 0
      %p226 = por %p224, %p225
      %s228 = sadd.s32 %s227, 1
      %p231 = scmp.eq.s32.totalorder %s25, 1
      %p232 = scmp.ne.s32.totalorder %s227, %s229
      %p233 = scmp.eq.s32.totalorder %s25, 0
      %p234 = por %p232, %p233
      %p235 = scmp.ne.s32.totalorder %s227, %s229
      %p236 = scmp.eq.s32.totalorder %s30, 1
      %p237 = por %p235, %p236
      %p238 = scmp.ne.s32.totalorder %s229, %s230
      %p239 = scmp.eq.s32.totalorder %s30, 0
      %p240 = por %p238, %p239
      %p241 = scmp.ne.s32.totalorder %s229, %s230
      %p242 = scmp.eq.s32.totalorder %s31, 1
      %p243 = por %p241, %p242
      %p245 = scmp.ne.s32.totalorder %s230, %s244
      %p246 = scmp.eq.s32.totalorder %s31, 0
      %p247 = por %p245, %p246
      %s249 = sadd.s32 %s248, 1
      %p252 = scmp.eq.s32.totalorder %s25, 1
      %p253 = scmp.ne.s32.totalorder %s248, %s250
      %p254 = scmp.eq.s32.totalorder %s25, 0
      %p255 = por %p253, %p254
      %p256 = scmp.ne.s32.totalorder %s248, %s250
      %p257 = scmp.eq.s32.totalorder %s30, 1
      %p258 = por %p256, %p257
      %p259 = scmp.ne.s32.totalorder %s250, %s251
      %p260 = scmp.eq.s32.totalorder %s30, 0
      %p261 = por %p259, %p260
      %p262 = scmp.ne.s32.totalorder %s250, %s251
      %p263 = scmp.eq.s32.totalorder %s31, 1
      %p264 = por %p262, %p263
      %p266 = scmp.ne.s32.totalorder %s251, %s265
      %p267 = scmp.eq.s32.totalorder %s31, 0
      %p268 = por %p266, %p267
      %s270 = sadd.s32 %s269, 1
      %p273 = scmp.eq.s32.totalorder %s25, 1
      %p274 = scmp.ne.s32.totalorder %s269, %s271
      %p275 = scmp.eq.s32.totalorder %s25, 0
      %p276 = por %p274, %p275
      %p277 = scmp.ne.s32.totalorder %s269, %s271
      %p278 = scmp.eq.s32.totalorder %s30, 1
      %p279 = por %p277, %p278
      %p280 = scmp.ne.s32.totalorder %s271, %s272
      %p281 = scmp.eq.s32.totalorder %s30, 0
      %p282 = por %p280, %p281
      %p283 = scmp.ne.s32.totalorder %s271, %s272
      %p284 = scmp.eq.s32.totalorder %s31, 1
      %p285 = por %p283, %p284
      %p287 = scmp.ne.s32.totalorder %s272, %s286
      %p288 = scmp.eq.s32.totalorder %s31, 0
      %p289 = por %p287, %p288
      %s290 = ssub.s32 %s25, %s32
      %p291 = scmp.eq.s32.totalorder %s290, 0
      %s293 = sadd.s32 %s292, 1
      %s294 = scalar_select %p291, %s292, %s293
      %p297 = pneg %p291
      %p298 = scmp.eq.s32.totalorder %s25, 1
      %p299 = por %p297, %p298
      %p300 = scmp.ne.s32.totalorder %s292, %s295
      %p301 = scmp.eq.s32.totalorder %s25, 0
      %p302 = por %p300, %p301
      %p303 = scmp.ne.s32.totalorder %s292, %s295
      %p304 = scmp.eq.s32.totalorder %s30, 1
      %p305 = por %p303, %p304
      %p306 = scmp.ne.s32.totalorder %s295, %s296
      %p307 = scmp.eq.s32.totalorder %s30, 0
      %p308 = por %p306, %p307
      %p309 = scmp.ne.s32.totalorder %s295, %s296
      %p310 = scmp.eq.s32.totalorder %s31, 1
      %p311 = por %p309, %p310
      %p313 = scmp.ne.s32.totalorder %s296, %s312
      %p314 = scmp.eq.s32.totalorder %s31, 0
      %p315 = por %p313, %p314
      %p316 = scmp.le.s32.totalorder 1, %s25
      %p317 = scmp.lt.s32.totalorder %s25, 3
      %p318 = pnand %p316, %p317
      %p319 = pneg %p318
      // Predicated region
      $region9: #{tpu_custom_call.1} parent=5 // pred_check
        _
      $region10: #{tpu_custom_call.1} parent=5 // pred_check_branch
        %321 = sbr.rel (%p318) target = $region12
      $region11: #{tpu_custom_call.1} parent=5 // pred_region
        %s322 = ssub.s32 %s25, 1
        // Predicated region
        $region13: #{tpu_custom_call.1} parent=11 // pred_check
          %p323 = pneg %p72
        $region14: #{tpu_custom_call.1} parent=11 // pred_check_branch
          %325 = sbr.rel (%p323) target = $region16
        $region15: #{tpu_custom_call.1} parent=11 // pred_region
          _
        $region16: #{tpu_custom_call.1} parent=11 // pred_fallthru
          _
        // Predicated region
        $region17: #{tpu_custom_call.1} parent=11 // pred_check
          %p326 = pneg %p93
        $region18: #{tpu_custom_call.1} parent=11 // pred_check_branch
          %328 = sbr.rel (%p326) target = $region20
        $region19: #{tpu_custom_call.1} parent=11 // pred_region
          _
        $region20: #{tpu_custom_call.1} parent=11 // pred_fallthru
          _
        // Predicated region
        $region21: #{tpu_custom_call.1} parent=11 // pred_check
          %p329 = pneg %p114
        $region22: #{tpu_custom_call.1} parent=11 // pred_check_branch
          %331 = sbr.rel (%p329) target = $region24
        $region23: #{tpu_custom_call.1} parent=11 // pred_region
          %s333 = ssub.s32 64, 64
          %334 = vsyncadd [#allocation7], %s333
          %s336 = sshll.u32 [#allocation6], 4
          %s337 = int_to_ptr.vmem [resolvable:$true] %s336
          %339 = dma.hbm_to_vmem [thread:$0]  %s3, 64, %s337, [#allocation7]
        $region24: #{tpu_custom_call.1} parent=11 // pred_fallthru
          _
        // Predicated region
        $region25: #{tpu_custom_call.1} parent=11 // pred_check
          %p340 = pneg %p135
        $region26: #{tpu_custom_call.1} parent=11 // pred_check_branch
          %342 = sbr.rel (%p340) target = $region28
        $region27: #{tpu_custom_call.1} parent=11 // pred_region
          _
        $region28: #{tpu_custom_call.1} parent=11 // pred_fallthru
          _
        // Predicated region
        $region29: #{tpu_custom_call.1} parent=11 // pred_check
          %p343 = pneg %p156
        $region30: #{tpu_custom_call.1} parent=11 // pred_check_branch
          %345 = sbr.rel (%p343) target = $region32
        $region31: #{tpu_custom_call.1} parent=11 // pred_region
          _
        $region32: #{tpu_custom_call.1} parent=11 // pred_fallthru
          _
        // Predicated region
        $region33: #{tpu_custom_call.1} parent=11 // pred_check
          %p346 = pneg %p177
        $region34: #{tpu_custom_call.1} parent=11 // pred_check_branch
          %348 = sbr.rel (%p346) target = $region36
        $region35: #{tpu_custom_call.1} parent=11 // pred_region
          _
        $region36: #{tpu_custom_call.1} parent=11 // pred_fallthru
          _
        // Predicated region
        $region37: #{tpu_custom_call.1} parent=11 // pred_check
          %p349 = pneg %p198
        $region38: #{tpu_custom_call.1} parent=11 // pred_check_branch
          %351 = sbr.rel (%p349) target = $region40
        $region39: #{tpu_custom_call.1} parent=11 // pred_region
          _
        $region40: #{tpu_custom_call.1} parent=11 // pred_fallthru
          _
        // Predicated region
        $region41: #{tpu_custom_call.1} parent=11 // pred_check
          %p352 = pneg %p219
        $region42: #{tpu_custom_call.1} parent=11 // pred_check_branch
          %354 = sbr.rel (%p352) target = $region44
        $region43: #{tpu_custom_call.1} parent=11 // pred_region
          _
        $region44: #{tpu_custom_call.1} parent=11 // pred_fallthru
          _
        // Predicated region
        $region45: #{tpu_custom_call.1} parent=11 // pred_check
          %p355 = pneg %p240
        $region46: #{tpu_custom_call.1} parent=11 // pred_check_branch
          %357 = sbr.rel (%p355) target = $region48
        $region47: #{tpu_custom_call.1} parent=11 // pred_region
          %s359 = ssub.s32 2048, 2048
          %360 = vsyncadd [#allocation10], %s359
          %s361 = sshll.u32 [#allocation9], 4
          %s362 = int_to_ptr.vmem [resolvable:$true] %s361
          %367 = dma.hbm_to_vmem [thread:$0]  %s9, 2048, %s362, [#allocation10], 512, 512, 32
        $region48: #{tpu_custom_call.1} parent=11 // pred_fallthru
          _
        // Predicated region
        $region49: #{tpu_custom_call.1} parent=11 // pred_check
          %p368 = pneg %p261
        $region50: #{tpu_custom_call.1} parent=11 // pred_check_branch
          %370 = sbr.rel (%p368) target = $region52
        $region51: #{tpu_custom_call.1} parent=11 // pred_region
          _
        $region52: #{tpu_custom_call.1} parent=11 // pred_fallthru
          _
        // Predicated region
        $region53: #{tpu_custom_call.1} parent=11 // pred_check
          %p371 = pneg %p282
        $region54: #{tpu_custom_call.1} parent=11 // pred_check_branch
          %373 = sbr.rel (%p371) target = $region56
        $region55: #{tpu_custom_call.1} parent=11 // pred_region
          _
        $region56: #{tpu_custom_call.1} parent=11 // pred_fallthru
          _
      $region12: #{tpu_custom_call.1} parent=5 // pred_fallthru
        _
      %p374 = scmp.lt.s32.totalorder %s25, 2
      // Predicated region
      $region57: #{tpu_custom_call.1} parent=5 // pred_check
        %p375 = pneg %p374
      $region58: #{tpu_custom_call.1} parent=5 // pred_check_branch
        %377 = sbr.rel (%p375) target = $region60
      $region59: #{tpu_custom_call.1} parent=5 // pred_region
        // Predicated region
        $region61: #{tpu_custom_call.1} parent=59 // pred_check
          %p378 = pneg %p45
        $region62: #{tpu_custom_call.1} parent=59 // pred_check_branch
          %380 = sbr.rel (%p378) target = $region64
        $region63: #{tpu_custom_call.1} parent=59 // pred_region
          %p381 = scmp.lt.s32.totalorder %s25, 1
          %s382 = scalar_select %p381, %s25, 1
          %s383 = smul.addr %s382, 4
          %s384 = smul.addr %s383, 4
          %s385 = scalar_lea.vmem %s0, %s384
        $region64: #{tpu_custom_call.1} parent=59 // pred_fallthru
          _
      $region60: #{tpu_custom_call.1} parent=5 // pred_fallthru
        _
      %p386 = scmp.le.s32.totalorder 1, %s25
      %p387 = scmp.lt.s32.totalorder %s25, 3
      %p388 = pnand %p386, %p387
      %p389 = pneg %p388
      // Predicated region
      $region65: #{tpu_custom_call.1} parent=5 // pred_check
        _
      $region66: #{tpu_custom_call.1} parent=5 // pred_check_branch
        %391 = sbr.rel (%p388) target = $region68
      $region67: #{tpu_custom_call.1} parent=5 // pred_region
        %s392 = ssub.s32 %s25, 1
        // Predicated region
        $region69: #{tpu_custom_call.1} parent=67 // pred_check
          %p393 = pneg %p114
        $region70: #{tpu_custom_call.1} parent=67 // pred_check_branch
          %395 = sbr.rel (%p393) target = $region72
        $region71: #{tpu_custom_call.1} parent=67 // pred_region
          %396 = dma.done [#allocation7], 64
        $region72: #{tpu_custom_call.1} parent=67 // pred_fallthru
          _
        // Predicated region
        $region73: #{tpu_custom_call.1} parent=67 // pred_check
          %p397 = pneg %p240
        $region74: #{tpu_custom_call.1} parent=67 // pred_check_branch
          %399 = sbr.rel (%p397) target = $region76
        $region75: #{tpu_custom_call.1} parent=67 // pred_region
          %400 = dma.done [#allocation10], 2048
        $region76: #{tpu_custom_call.1} parent=67 // pred_fallthru
          _
        %p401 = scmp.lt.s32.totalorder %s30, 1
        %s402 = scalar_select %p401, %s30, 1
        %s403 = smul.addr %s402, 4
        %s404 = smul.addr %s403, 4
        %s405 = scalar_lea.vmem %s0, %s404
        %p406 = pneg %p51
        %p407 = pneg %p48
        %p408 = pneg %p72
        %p409 = pneg %p69
        %p410 = pneg %p93
        %p411 = pneg %p90
        %p412 = pneg %p114
        %p413 = pneg %p111
        %p414 = pneg %p135
        %p415 = pneg %p132
        %p416 = pneg %p156
        %p417 = pneg %p153
        %p418 = pneg %p177
        %p419 = pneg %p174
        %p420 = pneg %p198
        %p421 = pneg %p195
        %p422 = pneg %p219
        %p423 = pneg %p216
        %p424 = pneg %p240
        %p425 = pneg %p237
        %p426 = pneg %p261
        %p427 = pneg %p258
        %p428 = pneg %p282
        %p429 = pneg %p279
        %p430 = pneg %p308
        %p431 = pneg %p305
        %s432 = sand.u32 %s295, 1
        %s433 = scalar_lea.sflag [#allocation8], %s432
        %s434 = sand.u32 %s295, 1
        %s435 = smul.addr %s434, 128
        %s436 = scalar_lea.vmem [#allocation11], %s435
        %p437 = scmp.lt.s32.totalorder %s30, 1
        %s438 = scalar_select %p437, %s30, 1
        %s439 = smul.addr %s438, 4
        %s440 = smul.addr %s439, 4
        %s441 = scalar_lea.vmem %s0, %s440
        %442 = vst [vmem:[#allocation2] sm:$0xf] 0.0
        %443 = vst [vmem:[#allocation2 + $0x14] sm:$0xf] 0.0
        %v444 = vld [vmem:[%s441] sm:$0xff]
        %v445 = vld [vmem:[%s441 + $0x8] sm:$0xff]
        %v446 = vld [vmem:[%s1] sm:$0xf]
        %448 = vset.pattern.permute.xlu0 0
        %449 = vperm.xlu0 %448, %v446
        %v450 = vpop.permute.xlu0 %449
        %v452 = vunpack.c.l.s4 839922192
        %v453 = vunpack.c.0.s8 %v452
        %v454 = vlaneseq
        %v455 = vshrl.u32 %v454, 7
        %v456 = vsub.s32 %v453, %v455
        %v457 = vrot.slane %v450, %v456
        %v459 = vmul.f32 %v444, %v457
        %v460 = vmul.f32 %v445, %v457
        %v461 = vld [vmem:[%s2] sm:$0xf]
        %463 = vset.pattern.permute.xlu0 0
        %464 = vperm.xlu0 %463, %v461
        %v465 = vpop.permute.xlu0 %464
        %v467 = vunpack.c.l.s4 839922192
        %v468 = vunpack.c.0.s8 %v467
        %v469 = vlaneseq
        %v470 = vshrl.u32 %v469, 7
        %v471 = vsub.s32 %v468, %v470
        %v472 = vrot.slane %v465, %v471
        %v474 = vadd.f32 %v459, %v472
        %v475 = vadd.f32 %v460, %v472
        %v476 = vmax.f32 %v474, 0.0
        %v477 = vmax.f32 %v475, 0.0
        %478 = vst [vmem:[#allocation2 + $0x4] sm:$0xff] %v476
        %479 = vst [vmem:[#allocation2 + $0xc] sm:$0xff] %v477
        %v480 = vld [vmem:[#allocation2] sm:$0xff]
        %v481 = vld [vmem:[#allocation2 + $0x8] sm:$0xff]
        %v482 = vld [vmem:[#allocation2 + $0x10] sm:$0xf]
        %v483 = vld [vmem:[#allocation9] ss:$8 sm:$0xf]
        %v485 = vlaneseq
        %v486 = vshrl.u32 %v485, 7
        %v487 = vsub.s32 0, %v486
        %v488 = vrot.slane %v483, %v487
        %v489 = vlaneseq
        %v490 = vshrl.u32 %v489, 7
        %v491 = vsub.s32 1, %v490
        %v492 = vrot.slane %v483, %v491
        %v493 = vlaneseq
        %v494 = vshrl.u32 %v493, 7
        %v495 = vsub.s32 2, %v494
        %v496 = vrot.slane %v483, %v495
        %v497 = vlaneseq
        %v498 = vshrl.u32 %v497, 7
        %v499 = vsub.s32 3, %v498
        %v500 = vrot.slane %v483, %v499
        %v501 = vcombine.low %v488, %v492
        %v502 = vcombine.low %v496, %v500
        %503 = vrot.lane.b32.xlu0 %v501, 55
        %v504 = vpop.permute.xlu0 %503
        %505 = vrot.lane.b32.xlu0 %v502, 55
        %v506 = vpop.permute.xlu0 %505
        %v507 = vrot.slane %v504, 4
        %v508 = vrot.slane %v506, 4
        %vm509 = vcmask 449536
        %v510 = vsel %vm509, %v507, %v504
        %vm511 = vcmask 1043456
        %v512 = vsel %vm511, %v507, %v508
        %v513 = vsel %vm509, %v512, %v506
        %v517 = vmul.f32 %v480, %v510
        %v518 = vmul.f32 %v481, %v513
        %v519 = vmul.f32 %v482, %v508
        %v523 = vcombine.high %v517, %v517
        %v524 = vcombine.high %v518, %v518
        %525 = vrot.lane.b32.xlu0 %v517, 73
        %v526 = vpop.permute.xlu0 %525
        %527 = vrot.lane.b32.xlu0 %v523, 73
        %v528 = vpop.permute.xlu0 %527
        %529 = vrot.lane.b32.xlu0 %v518, 73
        %v530 = vpop.permute.xlu0 %529
        %531 = vrot.lane.b32.xlu0 %v524, 73
        %v532 = vpop.permute.xlu0 %531
        %533 = vrot.lane.b32.xlu0 %v519, 73
        %v534 = vpop.permute.xlu0 %533
        %vm535 = vcmask 596992
        %v536 = vsel %vm535, %v526, %v528
        %v537 = vsel %vm535, %v528, %v530
        %v538 = vsel %vm535, %v530, %v532
        %v539 = vsel %vm535, %v532, %v534
        %544 = vst [vmem:[#allocation3] sm:$0xf] %v536
        %545 = vst [vmem:[#allocation3 + $0x8] sm:$0xf] %v537
        %546 = vst [vmem:[#allocation3 + $0x10] sm:$0xf] %v538
        %547 = vst [vmem:[#allocation3 + $0x18] sm:$0xf] %v539
        %v548 = vld [vmem:[#allocation2] sm:$0xff]
        %v549 = vld [vmem:[#allocation2 + $0x8] sm:$0xff]
        %v550 = vld [vmem:[#allocation2 + $0x10] sm:$0xf]
        %s551 = scalar_lea.vmem [#allocation9], 1
        %v552 = vld [vmem:[%s551] ss:$8 sm:$0xf]
        %v554 = vlaneseq
        %v555 = vshrl.u32 %v554, 7
        %v556 = vsub.s32 0, %v555
        %v557 = vrot.slane %v552, %v556
        %v558 = vlaneseq
        %v559 = vshrl.u32 %v558, 7
        %v560 = vsub.s32 1, %v559
        %v561 = vrot.slane %v552, %v560
        %v562 = vlaneseq
        %v563 = vshrl.u32 %v562, 7
        %v564 = vsub.s32 2, %v563
        %v565 = vrot.slane %v552, %v564
        %v566 = vlaneseq
        %v567 = vshrl.u32 %v566, 7
        %v568 = vsub.s32 3, %v567
        %v569 = vrot.slane %v552, %v568
        %v570 = vcombine.low %v557, %v561
        %v571 = vcombine.low %v565, %v569
        %572 = vrot.lane.b32.xlu0 %v570, 56
        %v573 = vpop.permute.xlu0 %572
        %574 = vrot.lane.b32.xlu0 %v571, 56
        %v575 = vpop.permute.xlu0 %574
        %v576 = vrot.slane %v573, 4
        %v577 = vrot.slane %v575, 4
        %vm578 = vcmask 457728
        %v579 = vsel %vm578, %v576, %v573
        %v580 = vsel %vm511, %v576, %v577
        %v581 = vsel %vm578, %v580, %v575
        %v585 = vmul.f32 %v548, %v579
        %v586 = vmul.f32 %v549, %v581
        %v587 = vmul.f32 %v550, %v577
        %v591 = vcombine.low %v585, %v585
        %v592 = vcombine.low %v586, %v586
        %v593 = vcombine.low %v587, %v587
        %594 = vrot.lane.b32.xlu0 %v591, 72
        %v595 = vpop.permute.xlu0 %594
        %596 = vrot.lane.b32.xlu0 %v585, 72
        %v597 = vpop.permute.xlu0 %596
        %598 = vrot.lane.b32.xlu0 %v592, 72
        %v599 = vpop.permute.xlu0 %598
        %600 = vrot.lane.b32.xlu0 %v586, 72
        %v601 = vpop.permute.xlu0 %600
        %602 = vrot.lane.b32.xlu0 %v593, 72
        %v603 = vpop.permute.xlu0 %602
        %vm604 = vcmask 588800
        %v605 = vsel %vm604, %v595, %v597
        %v606 = vsel %vm604, %v597, %v599
        %v607 = vsel %vm604, %v599, %v601
        %v608 = vsel %vm604, %v601, %v603
        %613 = vst [vmem:[#allocation3] sm:$0xf0] %v605
        %614 = vst [vmem:[#allocation3 + $0x8] sm:$0xf0] %v606
        %615 = vst [vmem:[#allocation3 + $0x10] sm:$0xf0] %v607
        %616 = vst [vmem:[#allocation3 + $0x18] sm:$0xf0] %v608
        %v617 = vld [vmem:[#allocation2] sm:$0xff]
        %v618 = vld [vmem:[#allocation2 + $0x8] sm:$0xff]
        %v619 = vld [vmem:[#allocation2 + $0x10] sm:$0xf]
        %s620 = scalar_lea.vmem [#allocation9], 2
        %v621 = vld [vmem:[%s620] ss:$8 sm:$0xf]
        %v623 = vlaneseq
        %v624 = vshrl.u32 %v623, 7
        %v625 = vsub.s32 0, %v624
        %v626 = vrot.slane %v621, %v625
        %v627 = vlaneseq
        %v628 = vshrl.u32 %v627, 7
        %v629 = vsub.s32 1, %v628
        %v630 = vrot.slane %v621, %v629
        %v631 = vlaneseq
        %v632 = vshrl.u32 %v631, 7
        %v633 = vsub.s32 2, %v632
        %v634 = vrot.slane %v621, %v633
        %v635 = vlaneseq
        %v636 = vshrl.u32 %v635, 7
        %v637 = vsub.s32 3, %v636
        %v638 = vrot.slane %v621, %v637
        %v639 = vcombine.low %v626, %v630
        %v640 = vcombine.low %v634, %v638
        %641 = vrot.lane.b32.xlu0 %v639, 57
        %v642 = vpop.permute.xlu0 %641
        %643 = vrot.lane.b32.xlu0 %v640, 57
        %v644 = vpop.permute.xlu0 %643
        %v645 = vrot.slane %v642, 4
        %v646 = vrot.slane %v644, 4
        %vm647 = vcmask 465920
        %v648 = vsel %vm647, %v645, %v642
        %v649 = vsel %vm511, %v645, %v646
        %v650 = vsel %vm647, %v649, %v644
        %v654 = vmul.f32 %v617, %v648
        %v655 = vmul.f32 %v618, %v650
        %v656 = vmul.f32 %v619, %v646
        %v660 = vcombine.high %v654, %v654
        %v661 = vcombine.high %v655, %v655
        %662 = vrot.lane.b32.xlu0 %v654, 71
        %v663 = vpop.permute.xlu0 %662
        %664 = vrot.lane.b32.xlu0 %v660, 71
        %v665 = vpop.permute.xlu0 %664
        %666 = vrot.lane.b32.xlu0 %v655, 71
        %v667 = vpop.permute.xlu0 %666
        %668 = vrot.lane.b32.xlu0 %v661, 71
        %v669 = vpop.permute.xlu0 %668
        %670 = vrot.lane.b32.xlu0 %v656, 71
        %v671 = vpop.permute.xlu0 %670
        %vm672 = vcmask 580608
        %v673 = vsel %vm672, %v663, %v665
        %v674 = vsel %vm672, %v665, %v667
        %v675 = vsel %vm672, %v667, %v669
        %v676 = vsel %vm672, %v669, %v671
        %681 = vst [vmem:[#allocation3 + $0x20] sm:$0xf] %v673
        %682 = vst [vmem:[#allocation3 + $0x28] sm:$0xf] %v674
        %683 = vst [vmem:[#allocation3 + $0x30] sm:$0xf] %v675
        %684 = vst [vmem:[#allocation3 + $0x38] sm:$0xf] %v676
        %v685 = vld [vmem:[#allocation2] sm:$0xff]
        %v686 = vld [vmem:[#allocation2 + $0x8] sm:$0xff]
        %v687 = vld [vmem:[#allocation2 + $0x10] sm:$0xf]
        %s688 = scalar_lea.vmem [#allocation9], 3
        %v689 = vld [vmem:[%s688] ss:$8 sm:$0xf]
        %v691 = vlaneseq
        %v692 = vshrl.u32 %v691, 7
        %v693 = vsub.s32 0, %v692
        %v694 = vrot.slane %v689, %v693
        %v695 = vlaneseq
        %v696 = vshrl.u32 %v695, 7
        %v697 = vsub.s32 1, %v696
        %v698 = vrot.slane %v689, %v697
        %v699 = vlaneseq
        %v700 = vshrl.u32 %v699, 7
        %v701 = vsub.s32 2, %v700
        %v702 = vrot.slane %v689, %v701
        %v703 = vlaneseq
        %v704 = vshrl.u32 %v703, 7
        %v705 = vsub.s32 3, %v704
        %v706 = vrot.slane %v689, %v705
        %v707 = vcombine.low %v694, %v698
        %v708 = vcombine.low %v702, %v706
        %709 = vrot.lane.b32.xlu0 %v707, 63
        %v710 = vpop.permute.xlu0 %709
        %711 = vrot.lane.b32.xlu0 %v708, 63
        %v712 = vpop.permute.xlu0 %711
        %v713 = vrot.slane %v710, 4
        %v714 = vrot.slane %v712, 4
        %vm715 = vcmask 515072
        %v716 = vsel %vm715, %v713, %v710
        %v717 = vsel %vm511, %v713, %v714
        %v718 = vsel %vm715, %v717, %v712
        %v722 = vmul.f32 %v685, %v716
        %v723 = vmul.f32 %v686, %v718
        %v724 = vmul.f32 %v687, %v714
        %v728 = vcombine.low %v722, %v722
        %v729 = vcombine.low %v723, %v723
        %v730 = vcombine.low %v724, %v724
        %731 = vrot.lane.b32.xlu0 %v728, 65
        %v732 = vpop.permute.xlu0 %731
        %733 = vrot.lane.b32.xlu0 %v722, 65
        %v734 = vpop.permute.xlu0 %733
        %735 = vrot.lane.b32.xlu0 %v729, 65
        %v736 = vpop.permute.xlu0 %735
        %737 = vrot.lane.b32.xlu0 %v723, 65
        %v738 = vpop.permute.xlu0 %737
        %739 = vrot.lane.b32.xlu0 %v730, 65
        %v740 = vpop.permute.xlu0 %739
        %vm741 = vcmask 531456
        %v742 = vsel %vm741, %v732, %v734
        %v743 = vsel %vm741, %v734, %v736
        %v744 = vsel %vm741, %v736, %v738
        %v745 = vsel %vm741, %v738, %v740
        %750 = vst [vmem:[#allocation3 + $0x20] sm:$0xf0] %v742
        %751 = vst [vmem:[#allocation3 + $0x28] sm:$0xf0] %v743
        %752 = vst [vmem:[#allocation3 + $0x30] sm:$0xf0] %v744
        %753 = vst [vmem:[#allocation3 + $0x38] sm:$0xf0] %v745
        %v754 = vld [vmem:[#allocation2] sm:$0xff]
        %v755 = vld [vmem:[#allocation2 + $0x8] sm:$0xff]
        %v756 = vld [vmem:[#allocation2 + $0x10] sm:$0xf]
        %s757 = scalar_lea.vmem [#allocation9], 4
        %v758 = vld [vmem:[%s757] ss:$8 sm:$0xf]
        %v760 = vlaneseq
        %v761 = vshrl.u32 %v760, 7
        %v762 = vsub.s32 0, %v761
        %v763 = vrot.slane %v758, %v762
        %v764 = vlaneseq
        %v765 = vshrl.u32 %v764, 7
        %v766 = vsub.s32 1, %v765
        %v767 = vrot.slane %v758, %v766
        %v768 = vlaneseq
        %v769 = vshrl.u32 %v768, 7
        %v770 = vsub.s32 2, %v769
        %v771 = vrot.slane %v758, %v770
        %v772 = vlaneseq
        %v773 = vshrl.u32 %v772, 7
        %v774 = vsub.s32 3, %v773
        %v775 = vrot.slane %v758, %v774
        %v776 = vcombine.low %v763, %v767
        %v777 = vcombine.low %v771, %v775
        %778 = vrot.lane.b32.xlu0 %v776, 64
        %v779 = vpop.permute.xlu0 %778
        %780 = vrot.lane.b32.xlu0 %v777, 64
        %v781 = vpop.permute.xlu0 %780
        %v782 = vrot.slane %v779, 4
        %v783 = vrot.slane %v781, 4
        %vm784 = vcmask 523264
        %v785 = vsel %vm784, %v782, %v779
        %v786 = vsel %vm511, %v782, %v783
        %v787 = vsel %vm784, %v786, %v781
        %v791 = vmul.f32 %v754, %v785
        %v792 = vmul.f32 %v755, %v787
        %v793 = vmul.f32 %v756, %v783
        %v797 = vcombine.high %v791, %v791
        %v798 = vcombine.high %v792, %v792
        %799 = vrot.lane.b32.xlu0 %v791, 64
        %v800 = vpop.permute.xlu0 %799
        %801 = vrot.lane.b32.xlu0 %v797, 64
        %v802 = vpop.permute.xlu0 %801
        %803 = vrot.lane.b32.xlu0 %v792, 64
        %v804 = vpop.permute.xlu0 %803
        %805 = vrot.lane.b32.xlu0 %v798, 64
        %v806 = vpop.permute.xlu0 %805
        %807 = vrot.lane.b32.xlu0 %v793, 64
        %v808 = vpop.permute.xlu0 %807
        %v809 = vsel %vm784, %v800, %v802
        %v810 = vsel %vm784, %v802, %v804
        %v811 = vsel %vm784, %v804, %v806
        %v812 = vsel %vm784, %v806, %v808
        %817 = vst [vmem:[#allocation3 + $0x40] sm:$0xf] %v809
        %818 = vst [vmem:[#allocation3 + $0x48] sm:$0xf] %v810
        %819 = vst [vmem:[#allocation3 + $0x50] sm:$0xf] %v811
        %820 = vst [vmem:[#allocation3 + $0x58] sm:$0xf] %v812
        %v821 = vld [vmem:[#allocation2] sm:$0xff]
        %v822 = vld [vmem:[#allocation2 + $0x8] sm:$0xff]
        %v823 = vld [vmem:[#allocation2 + $0x10] sm:$0xf]
        %s824 = scalar_lea.vmem [#allocation9], 5
        %v825 = vld [vmem:[%s824] ss:$8 sm:$0xf]
        %v827 = vlaneseq
        %v828 = vshrl.u32 %v827, 7
        %v829 = vsub.s32 0, %v828
        %v830 = vrot.slane %v825, %v829
        %v831 = vlaneseq
        %v832 = vshrl.u32 %v831, 7
        %v833 = vsub.s32 1, %v832
        %v834 = vrot.slane %v825, %v833
        %v835 = vlaneseq
        %v836 = vshrl.u32 %v835, 7
        %v837 = vsub.s32 2, %v836
        %v838 = vrot.slane %v825, %v837
        %v839 = vlaneseq
        %v840 = vshrl.u32 %v839, 7
        %v841 = vsub.s32 3, %v840
        %v842 = vrot.slane %v825, %v841
        %v843 = vcombine.low %v830, %v834
        %v844 = vcombine.low %v838, %v842
        %845 = vrot.lane.b32.xlu0 %v843, 65
        %v846 = vpop.permute.xlu0 %845
        %847 = vrot.lane.b32.xlu0 %v844, 65
        %v848 = vpop.permute.xlu0 %847
        %v849 = vrot.slane %v846, 4
        %v850 = vrot.slane %v848, 4
        %v851 = vsel %vm741, %v849, %v846
        %v852 = vsel %vm511, %v849, %v850
        %v853 = vsel %vm741, %v852, %v848
        %v857 = vmul.f32 %v821, %v851
        %v858 = vmul.f32 %v822, %v853
        %v859 = vmul.f32 %v823, %v850
        %v863 = vcombine.low %v857, %v857
        %v864 = vcombine.low %v858, %v858
        %v865 = vcombine.low %v859, %v859
        %866 = vrot.lane.b32.xlu0 %v863, 63
        %v867 = vpop.permute.xlu0 %866
        %868 = vrot.lane.b32.xlu0 %v857, 63
        %v869 = vpop.permute.xlu0 %868
        %870 = vrot.lane.b32.xlu0 %v864, 63
        %v871 = vpop.permute.xlu0 %870
        %872 = vrot.lane.b32.xlu0 %v858, 63
        %v873 = vpop.permute.xlu0 %872
        %874 = vrot.lane.b32.xlu0 %v865, 63
        %v875 = vpop.permute.xlu0 %874
        %v876 = vsel %vm715, %v867, %v869
        %v877 = vsel %vm715, %v869, %v871
        %v878 = vsel %vm715, %v871, %v873
        %v879 = vsel %vm715, %v873, %v875
        %884 = vst [vmem:[#allocation3 + $0x40] sm:$0xf0] %v876
        %885 = vst [vmem:[#allocation3 + $0x48] sm:$0xf0] %v877
        %886 = vst [vmem:[#allocation3 + $0x50] sm:$0xf0] %v878
        %887 = vst [vmem:[#allocation3 + $0x58] sm:$0xf0] %v879
        %v888 = vld [vmem:[#allocation2] sm:$0xff]
        %v889 = vld [vmem:[#allocation2 + $0x8] sm:$0xff]
        %v890 = vld [vmem:[#allocation2 + $0x10] sm:$0xf]
        %s891 = scalar_lea.vmem [#allocation9], 6
        %v892 = vld [vmem:[%s891] ss:$8 sm:$0xf]
        %v894 = vlaneseq
        %v895 = vshrl.u32 %v894, 7
        %v896 = vsub.s32 0, %v895
        %v897 = vrot.slane %v892, %v896
        %v898 = vlaneseq
        %v899 = vshrl.u32 %v898, 7
        %v900 = vsub.s32 1, %v899
        %v901 = vrot.slane %v892, %v900
        %v902 = vlaneseq
        %v903 = vshrl.u32 %v902, 7
        %v904 = vsub.s32 2, %v903
        %v905 = vrot.slane %v892, %v904
        %v906 = vlaneseq
        %v907 = vshrl.u32 %v906, 7
        %v908 = vsub.s32 3, %v907
        %v909 = vrot.slane %v892, %v908
        %v910 = vcombine.low %v897, %v901
        %v911 = vcombine.low %v905, %v909
        %912 = vrot.lane.b32.xlu0 %v910, 71
        %v913 = vpop.permute.xlu0 %912
        %914 = vrot.lane.b32.xlu0 %v911, 71
        %v915 = vpop.permute.xlu0 %914
        %v916 = vrot.slane %v913, 4
        %v917 = vrot.slane %v915, 4
        %v918 = vsel %vm672, %v916, %v913
        %v919 = vsel %vm511, %v916, %v917
        %v920 = vsel %vm672, %v919, %v915
        %v924 = vmul.f32 %v888, %v918
        %v925 = vmul.f32 %v889, %v920
        %v926 = vmul.f32 %v890, %v917
        %v930 = vcombine.high %v924, %v924
        %v931 = vcombine.high %v925, %v925
        %932 = vrot.lane.b32.xlu0 %v924, 57
        %v933 = vpop.permute.xlu0 %932
        %934 = vrot.lane.b32.xlu0 %v930, 57
        %v935 = vpop.permute.xlu0 %934
        %936 = vrot.lane.b32.xlu0 %v925, 57
        %v937 = vpop.permute.xlu0 %936
        %938 = vrot.lane.b32.xlu0 %v931, 57
        %v939 = vpop.permute.xlu0 %938
        %940 = vrot.lane.b32.xlu0 %v926, 57
        %v941 = vpop.permute.xlu0 %940
        %v942 = vsel %vm647, %v933, %v935
        %v943 = vsel %vm647, %v935, %v937
        %v944 = vsel %vm647, %v937, %v939
        %v945 = vsel %vm647, %v939, %v941
        %950 = vst [vmem:[#allocation3 + $0x60] sm:$0xf] %v942
        %951 = vst [vmem:[#allocation3 + $0x68] sm:$0xf] %v943
        %952 = vst [vmem:[#allocation3 + $0x70] sm:$0xf] %v944
        %953 = vst [vmem:[#allocation3 + $0x78] sm:$0xf] %v945
        %v954 = vld [vmem:[#allocation2] sm:$0xff]
        %v955 = vld [vmem:[#allocation2 + $0x8] sm:$0xff]
        %v956 = vld [vmem:[#allocation2 + $0x10] sm:$0xf]
        %s957 = scalar_lea.vmem [#allocation9], 7
        %v958 = vld [vmem:[%s957] ss:$8 sm:$0xf]
        %v960 = vlaneseq
        %v961 = vshrl.u32 %v960, 7
        %v962 = vsub.s32 0, %v961
        %v963 = vrot.slane %v958, %v962
        %v964 = vlaneseq
        %v965 = vshrl.u32 %v964, 7
        %v966 = vsub.s32 1, %v965
        %v967 = vrot.slane %v958, %v966
        %v968 = vlaneseq
        %v969 = vshrl.u32 %v968, 7
        %v970 = vsub.s32 2, %v969
        %v971 = vrot.slane %v958, %v970
        %v972 = vlaneseq
        %v973 = vshrl.u32 %v972, 7
        %v974 = vsub.s32 3, %v973
        %v975 = vrot.slane %v958, %v974
        %v976 = vcombine.low %v963, %v967
        %v977 = vcombine.low %v971, %v975
        %978 = vrot.lane.b32.xlu0 %v976, 72
        %v979 = vpop.permute.xlu0 %978
        %980 = vrot.lane.b32.xlu0 %v977, 72
        %v981 = vpop.permute.xlu0 %980
        %v982 = vrot.slane %v979, 4
        %v983 = vrot.slane %v981, 4
        %v984 = vsel %vm604, %v982, %v979
        %v985 = vsel %vm511, %v982, %v983
        %v986 = vsel %vm604, %v985, %v981
        %v990 = vmul.f32 %v954, %v984
        %v991 = vmul.f32 %v955, %v986
        %v992 = vmul.f32 %v956, %v983
        %v996 = vcombine.low %v990, %v990
        %v997 = vcombine.low %v991, %v991
        %v998 = vcombine.low %v992, %v992
        %999 = vrot.lane.b32.xlu0 %v996, 56
        %v1000 = vpop.permute.xlu0 %999
        %1001 = vrot.lane.b32.xlu0 %v990, 56
        %v1002 = vpop.permute.xlu0 %1001
        %1003 = vrot.lane.b32.xlu0 %v997, 56
        %v1004 = vpop.permute.xlu0 %1003
        %1005 = vrot.lane.b32.xlu0 %v991, 56
        %v1006 = vpop.permute.xlu0 %1005
        %1007 = vrot.lane.b32.xlu0 %v998, 56
        %v1008 = vpop.permute.xlu0 %1007
        %v1009 = vsel %vm578, %v1000, %v1002
        %v1010 = vsel %vm578, %v1002, %v1004
        %v1011 = vsel %vm578, %v1004, %v1006
        %v1012 = vsel %vm578, %v1006, %v1008
        %1017 = vst [vmem:[#allocation3 + $0x60] sm:$0xf0] %v1009
        %1018 = vst [vmem:[#allocation3 + $0x68] sm:$0xf0] %v1010
        %1019 = vst [vmem:[#allocation3 + $0x70] sm:$0xf0] %v1011
        %1020 = vst [vmem:[#allocation3 + $0x78] sm:$0xf0] %v1012
        %v1021 = vld [vmem:[#allocation2] sm:$0xff]
        %v1022 = vld [vmem:[#allocation2 + $0x8] sm:$0xff]
        %v1023 = vld [vmem:[#allocation2 + $0x10] sm:$0xf]
        %s1024 = scalar_lea.vmem [#allocation9], 32
        %v1025 = vld [vmem:[%s1024] ss:$8 sm:$0xf]
        %v1027 = vlaneseq
        %v1028 = vshrl.u32 %v1027, 7
        %v1029 = vsub.s32 0, %v1028
        %v1030 = vrot.slane %v1025, %v1029
        %v1031 = vlaneseq
        %v1032 = vshrl.u32 %v1031, 7
        %v1033 = vsub.s32 1, %v1032
        %v1034 = vrot.slane %v1025, %v1033
        %v1035 = vlaneseq
        %v1036 = vshrl.u32 %v1035, 7
        %v1037 = vsub.s32 2, %v1036
        %v1038 = vrot.slane %v1025, %v1037
        %v1039 = vlaneseq
        %v1040 = vshrl.u32 %v1039, 7
        %v1041 = vsub.s32 3, %v1040
        %v1042 = vrot.slane %v1025, %v1041
        %v1043 = vcombine.low %v1030, %v1034
        %v1044 = vcombine.low %v1038, %v1042
        %1045 = vrot.lane.b32.xlu0 %v1043, 73
        %v1046 = vpop.permute.xlu0 %1045
        %1047 = vrot.lane.b32.xlu0 %v1044, 73
        %v1048 = vpop.permute.xlu0 %1047
        %v1049 = vrot.slane %v1046, 4
        %v1050 = vrot.slane %v1048, 4
        %v1051 = vsel %vm535, %v1049, %v1046
        %v1052 = vsel %vm511, %v1049, %v1050
        %v1053 = vsel %vm535, %v1052, %v1048
        %v1057 = vmul.f32 %v1021, %v1051
        %v1058 = vmul.f32 %v1022, %v1053
        %v1059 = vmul.f32 %v1023, %v1050
        %v1063 = vcombine.high %v1057, %v1057
        %v1064 = vcombine.high %v1058, %v1058
        %1065 = vrot.lane.b32.xlu0 %v1057, 55
        %v1066 = vpop.permute.xlu0 %1065
        %1067 = vrot.lane.b32.xlu0 %v1063, 55
        %v1068 = vpop.permute.xlu0 %1067
        %1069 = vrot.lane.b32.xlu0 %v1058, 55
        %v1070 = vpop.permute.xlu0 %1069
        %1071 = vrot.lane.b32.xlu0 %v1064, 55
        %v1072 = vpop.permute.xlu0 %1071
        %1073 = vrot.lane.b32.xlu0 %v1059, 55
        %v1074 = vpop.permute.xlu0 %1073
        %v1075 = vsel %vm509, %v1066, %v1068
        %v1076 = vsel %vm509, %v1068, %v1070
        %v1077 = vsel %vm509, %v1070, %v1072
        %v1078 = vsel %vm509, %v1072, %v1074
        %1083 = vst [vmem:[#allocation3 + $0x80] sm:$0xf] %v1075
        %1084 = vst [vmem:[#allocation3 + $0x88] sm:$0xf] %v1076
        %1085 = vst [vmem:[#allocation3 + $0x90] sm:$0xf] %v1077
        %1086 = vst [vmem:[#allocation3 + $0x98] sm:$0xf] %v1078
        %v1087 = vld [vmem:[#allocation2] sm:$0xff]
        %v1088 = vld [vmem:[#allocation2 + $0x8] sm:$0xff]
        %v1089 = vld [vmem:[#allocation2 + $0x10] sm:$0xf]
        %s1090 = scalar_lea.vmem [#allocation9], 33
        %v1091 = vld [vmem:[%s1090] ss:$8 sm:$0xf]
        %v1093 = vlaneseq
        %v1094 = vshrl.u32 %v1093, 7
        %v1095 = vsub.s32 0, %v1094
        %v1096 = vrot.slane %v1091, %v1095
        %v1097 = vlaneseq
        %v1098 = vshrl.u32 %v1097, 7
        %v1099 = vsub.s32 1, %v1098
        %v1100 = vrot.slane %v1091, %v1099
        %v1101 = vlaneseq
        %v1102 = vshrl.u32 %v1101, 7
        %v1103 = vsub.s32 2, %v1102
        %v1104 = vrot.slane %v1091, %v1103
        %v1105 = vlaneseq
        %v1106 = vshrl.u32 %v1105, 7
        %v1107 = vsub.s32 3, %v1106
        %v1108 = vrot.slane %v1091, %v1107
        %v1109 = vcombine.low %v1096, %v1100
        %v1110 = vcombine.low %v1104, %v1108
        %1111 = vrot.lane.b32.xlu0 %v1109, 119
        %v1112 = vpop.permute.xlu0 %1111
        %1113 = vrot.lane.b32.xlu0 %v1110, 119
        %v1114 = vpop.permute.xlu0 %1113
        %v1115 = vrot.slane %v1112, 4
        %v1116 = vrot.slane %v1114, 4
        %vm1117 = vcmask 973824
        %v1118 = vsel %vm1117, %v1115, %v1112
        %v1119 = vsel %vm511, %v1115, %v1116
        %v1120 = vsel %vm1117, %v1119, %v1114
        %v1124 = vmul.f32 %v1087, %v1118
        %v1125 = vmul.f32 %v1088, %v1120
        %v1126 = vmul.f32 %v1089, %v1116
        %v1130 = vcombine.low %v1124, %v1124
        %v1131 = vcombine.low %v1125, %v1125
        %v1132 = vcombine.low %v1126, %v1126
        %1133 = vrot.lane.b32.xlu0 %v1130, 9
        %v1134 = vpop.permute.xlu0 %1133
        %1135 = vrot.lane.b32.xlu0 %v1124, 9
        %v1136 = vpop.permute.xlu0 %1135
        %1137 = vrot.lane.b32.xlu0 %v1131, 9
        %v1138 = vpop.permute.xlu0 %1137
        %1139 = vrot.lane.b32.xlu0 %v1125, 9
        %v1140 = vpop.permute.xlu0 %1139
        %1141 = vrot.lane.b32.xlu0 %v1132, 9
        %v1142 = vpop.permute.xlu0 %1141
        %vm1143 = vcmask 72704
        %v1144 = vsel %vm1143, %v1134, %v1136
        %v1145 = vsel %vm1143, %v1136, %v1138
        %v1146 = vsel %vm1143, %v1138, %v1140
        %v1147 = vsel %vm1143, %v1140, %v1142
        %1152 = vst [vmem:[#allocation3 + $0x80] sm:$0xf0] %v1144
        %1153 = vst [vmem:[#allocation3 + $0x88] sm:$0xf0] %v1145
        %1154 = vst [vmem:[#allocation3 + $0x90] sm:$0xf0] %v1146
        %1155 = vst [vmem:[#allocation3 + $0x98] sm:$0xf0] %v1147
        %v1156 = vld [vmem:[#allocation2] sm:$0xff]
        %v1157 = vld [vmem:[#allocation2 + $0x8] sm:$0xff]
        %v1158 = vld [vmem:[#allocation2 + $0x10] sm:$0xf]
        %s1159 = scalar_lea.vmem [#allocation9], 34
        %v1160 = vld [vmem:[%s1159] ss:$8 sm:$0xf]
        %v1162 = vlaneseq
        %v1163 = vshrl.u32 %v1162, 7
        %v1164 = vsub.s32 0, %v1163
        %v1165 = vrot.slane %v1160, %v1164
        %v1166 = vlaneseq
        %v1167 = vshrl.u32 %v1166, 7
        %v1168 = vsub.s32 1, %v1167
        %v1169 = vrot.slane %v1160, %v1168
        %v1170 = vlaneseq
        %v1171 = vshrl.u32 %v1170, 7
        %v1172 = vsub.s32 2, %v1171
        %v1173 = vrot.slane %v1160, %v1172
        %v1174 = vlaneseq
        %v1175 = vshrl.u32 %v1174, 7
        %v1176 = vsub.s32 3, %v1175
        %v1177 = vrot.slane %v1160, %v1176
        %v1178 = vcombine.low %v1165, %v1169
        %v1179 = vcombine.low %v1173, %v1177
        %1180 = vrot.lane.b32.xlu0 %v1178, 120
        %v1181 = vpop.permute.xlu0 %1180
        %1182 = vrot.lane.b32.xlu0 %v1179, 120
        %v1183 = vpop.permute.xlu0 %1182
        %v1184 = vrot.slane %v1181, 4
        %v1185 = vrot.slane %v1183, 4
        %vm1186 = vcmask 982016
        %v1187 = vsel %vm1186, %v1184, %v1181
        %v1188 = vsel %vm511, %v1184, %v1185
        %v1189 = vsel %vm1186, %v1188, %v1183
        %v1193 = vmul.f32 %v1156, %v1187
        %v1194 = vmul.f32 %v1157, %v1189
        %v1195 = vmul.f32 %v1158, %v1185
        %v1199 = vcombine.high %v1193, %v1193
        %v1200 = vcombine.high %v1194, %v1194
        %1201 = vrot.lane.b32.xlu0 %v1193, 8
        %v1202 = vpop.permute.xlu0 %1201
        %1203 = vrot.lane.b32.xlu0 %v1199, 8
        %v1204 = vpop.permute.xlu0 %1203
        %1205 = vrot.lane.b32.xlu0 %v1194, 8
        %v1206 = vpop.permute.xlu0 %1205
        %1207 = vrot.lane.b32.xlu0 %v1200, 8
        %v1208 = vpop.permute.xlu0 %1207
        %1209 = vrot.lane.b32.xlu0 %v1195, 8
        %v1210 = vpop.permute.xlu0 %1209
        %vm1211 = vcmask 64512
        %v1212 = vsel %vm1211, %v1202, %v1204
        %v1213 = vsel %vm1211, %v1204, %v1206
        %v1214 = vsel %vm1211, %v1206, %v1208
        %v1215 = vsel %vm1211, %v1208, %v1210
        %1220 = vst [vmem:[#allocation3 + $0xa0] sm:$0xf] %v1212
        %1221 = vst [vmem:[#allocation3 + $0xa8] sm:$0xf] %v1213
        %1222 = vst [vmem:[#allocation3 + $0xb0] sm:$0xf] %v1214
        %1223 = vst [vmem:[#allocation3 + $0xb8] sm:$0xf] %v1215
        %v1224 = vld [vmem:[#allocation2] sm:$0xff]
        %v1225 = vld [vmem:[#allocation2 + $0x8] sm:$0xff]
        %v1226 = vld [vmem:[#allocation2 + $0x10] sm:$0xf]
        %s1227 = scalar_lea.vmem [#allocation9], 35
        %v1228 = vld [vmem:[%s1227] ss:$8 sm:$0xf]
        %v1230 = vlaneseq
        %v1231 = vshrl.u32 %v1230, 7
        %v1232 = vsub.s32 0, %v1231
        %v1233 = vrot.slane %v1228, %v1232
        %v1234 = vlaneseq
        %v1235 = vshrl.u32 %v1234, 7
        %v1236 = vsub.s32 1, %v1235
        %v1237 = vrot.slane %v1228, %v1236
        %v1238 = vlaneseq
        %v1239 = vshrl.u32 %v1238, 7
        %v1240 = vsub.s32 2, %v1239
        %v1241 = vrot.slane %v1228, %v1240
        %v1242 = vlaneseq
        %v1243 = vshrl.u32 %v1242, 7
        %v1244 = vsub.s32 3, %v1243
        %v1245 = vrot.slane %v1228, %v1244
        %v1246 = vcombine.low %v1233, %v1237
        %v1247 = vcombine.low %v1241, %v1245
        %1248 = vrot.lane.b32.xlu0 %v1246, 121
        %v1249 = vpop.permute.xlu0 %1248
        %1250 = vrot.lane.b32.xlu0 %v1247, 121
        %v1251 = vpop.permute.xlu0 %1250
        %v1252 = vrot.slane %v1249, 4
        %v1253 = vrot.slane %v1251, 4
        %vm1254 = vcmask 990208
        %v1255 = vsel %vm1254, %v1252, %v1249
        %v1256 = vsel %vm511, %v1252, %v1253
        %v1257 = vsel %vm1254, %v1256, %v1251
        %v1261 = vmul.f32 %v1224, %v1255
        %v1262 = vmul.f32 %v1225, %v1257
        %v1263 = vmul.f32 %v1226, %v1253
        %v1267 = vcombine.low %v1261, %v1261
        %v1268 = vcombine.low %v1262, %v1262
        %v1269 = vcombine.low %v1263, %v1263
        %1270 = vrot.lane.b32.xlu0 %v1267, 7
        %v1271 = vpop.permute.xlu0 %1270
        %1272 = vrot.lane.b32.xlu0 %v1261, 7
        %v1273 = vpop.permute.xlu0 %1272
        %1274 = vrot.lane.b32.xlu0 %v1268, 7
        %v1275 = vpop.permute.xlu0 %1274
        %1276 = vrot.lane.b32.xlu0 %v1262, 7
        %v1277 = vpop.permute.xlu0 %1276
        %1278 = vrot.lane.b32.xlu0 %v1269, 7
        %v1279 = vpop.permute.xlu0 %1278
        %vm1280 = vcmask 56320
        %v1281 = vsel %vm1280, %v1271, %v1273
        %v1282 = vsel %vm1280, %v1273, %v1275
        %v1283 = vsel %vm1280, %v1275, %v1277
        %v1284 = vsel %vm1280, %v1277, %v1279
        %1289 = vst [vmem:[#allocation3 + $0xa0] sm:$0xf0] %v1281
        %1290 = vst [vmem:[#allocation3 + $0xa8] sm:$0xf0] %v1282
        %1291 = vst [vmem:[#allocation3 + $0xb0] sm:$0xf0] %v1283
        %1292 = vst [vmem:[#allocation3 + $0xb8] sm:$0xf0] %v1284
        %v1293 = vld [vmem:[#allocation2] sm:$0xff]
        %v1294 = vld [vmem:[#allocation2 + $0x8] sm:$0xff]
        %v1295 = vld [vmem:[#allocation2 + $0x10] sm:$0xf]
        %s1296 = scalar_lea.vmem [#allocation9], 36
        %v1297 = vld [vmem:[%s1296] ss:$8 sm:$0xf]
        %v1299 = vlaneseq
        %v1300 = vshrl.u32 %v1299, 7
        %v1301 = vsub.s32 0, %v1300
        %v1302 = vrot.slane %v1297, %v1301
        %v1303 = vlaneseq
        %v1304 = vshrl.u32 %v1303, 7
        %v1305 = vsub.s32 1, %v1304
        %v1306 = vrot.slane %v1297, %v1305
        %v1307 = vlaneseq
        %v1308 = vshrl.u32 %v1307, 7
        %v1309 = vsub.s32 2, %v1308
        %v1310 = vrot.slane %v1297, %v1309
        %v1311 = vlaneseq
        %v1312 = vshrl.u32 %v1311, 7
        %v1313 = vsub.s32 3, %v1312
        %v1314 = vrot.slane %v1297, %v1313
        %v1315 = vcombine.low %v1302, %v1306
        %v1316 = vcombine.low %v1310, %v1314
        %1317 = vrot.lane.b32.xlu0 %v1315, 127
        %v1318 = vpop.permute.xlu0 %1317
        %1319 = vrot.lane.b32.xlu0 %v1316, 127
        %v1320 = vpop.permute.xlu0 %1319
        %v1321 = vrot.slane %v1318, 4
        %v1322 = vrot.slane %v1320, 4
        %vm1323 = vcmask 1039360
        %v1324 = vsel %vm1323, %v1321, %v1318
        %v1325 = vsel %vm511, %v1321, %v1322
        %v1326 = vsel %vm1323, %v1325, %v1320
        %v1330 = vmul.f32 %v1293, %v1324
        %v1331 = vmul.f32 %v1294, %v1326
        %v1332 = vmul.f32 %v1295, %v1322
        %v1336 = vcombine.high %v1330, %v1330
        %v1337 = vcombine.high %v1331, %v1331
        %1338 = vrot.lane.b32.xlu0 %v1330, 1
        %v1339 = vpop.permute.xlu0 %1338
        %1340 = vrot.lane.b32.xlu0 %v1336, 1
        %v1341 = vpop.permute.xlu0 %1340
        %1342 = vrot.lane.b32.xlu0 %v1331, 1
        %v1343 = vpop.permute.xlu0 %1342
        %1344 = vrot.lane.b32.xlu0 %v1337, 1
        %v1345 = vpop.permute.xlu0 %1344
        %1346 = vrot.lane.b32.xlu0 %v1332, 1
        %v1347 = vpop.permute.xlu0 %1346
        %vm1348 = vcmask 7168
        %v1349 = vsel %vm1348, %v1339, %v1341
        %v1350 = vsel %vm1348, %v1341, %v1343
        %v1351 = vsel %vm1348, %v1343, %v1345
        %v1352 = vsel %vm1348, %v1345, %v1347
        %1357 = vst [vmem:[#allocation3 + $0xc0] sm:$0xf] %v1349
        %1358 = vst [vmem:[#allocation3 + $0xc8] sm:$0xf] %v1350
        %1359 = vst [vmem:[#allocation3 + $0xd0] sm:$0xf] %v1351
        %1360 = vst [vmem:[#allocation3 + $0xd8] sm:$0xf] %v1352
        %v1361 = vld [vmem:[#allocation2 + $0x4] sm:$0xff]
        %v1362 = vld [vmem:[#allocation2 + $0xc] sm:$0xff]
        %s1363 = scalar_lea.vmem [#allocation9], 37
        %v1364 = vld [vmem:[%s1363] ss:$8 sm:$0xf]
        %v1366 = vlaneseq
        %v1367 = vshrl.u32 %v1366, 7
        %v1368 = vsub.s32 0, %v1367
        %v1369 = vrot.slane %v1364, %v1368
        %v1370 = vlaneseq
        %v1371 = vshrl.u32 %v1370, 7
        %v1372 = vsub.s32 1, %v1371
        %v1373 = vrot.slane %v1364, %v1372
        %v1374 = vlaneseq
        %v1375 = vshrl.u32 %v1374, 7
        %v1376 = vsub.s32 2, %v1375
        %v1377 = vrot.slane %v1364, %v1376
        %v1378 = vlaneseq
        %v1379 = vshrl.u32 %v1378, 7
        %v1380 = vsub.s32 3, %v1379
        %v1381 = vrot.slane %v1364, %v1380
        %v1382 = vcombine.low %v1369, %v1373
        %v1383 = vcombine.low %v1377, %v1381
        %v1386 = vmul.f32 %v1361, %v1382
        %v1387 = vmul.f32 %v1362, %v1383
        %v1390 = vcombine.low %v1386, %v1386
        %v1391 = vcombine.low %v1387, %v1387
        %1394 = vst [vmem:[#allocation3 + $0xc0] sm:$0xf0] %v1390
        %1395 = vst [vmem:[#allocation3 + $0xc8] sm:$0xf0] %v1386
        %1396 = vst [vmem:[#allocation3 + $0xd0] sm:$0xf0] %v1391
        %1397 = vst [vmem:[#allocation3 + $0xd8] sm:$0xf0] %v1387
        %v1398 = vld [vmem:[#allocation2 + $0x4] sm:$0xff]
        %v1399 = vld [vmem:[#allocation2 + $0xc] sm:$0xff]
        %v1400 = vld [vmem:[#allocation2 + $0x14] sm:$0xf]
        %s1401 = scalar_lea.vmem [#allocation9], 38
        %v1402 = vld [vmem:[%s1401] ss:$8 sm:$0xf]
        %v1404 = vlaneseq
        %v1405 = vshrl.u32 %v1404, 7
        %v1406 = vsub.s32 0, %v1405
        %v1407 = vrot.slane %v1402, %v1406
        %v1408 = vlaneseq
        %v1409 = vshrl.u32 %v1408, 7
        %v1410 = vsub.s32 1, %v1409
        %v1411 = vrot.slane %v1402, %v1410
        %v1412 = vlaneseq
        %v1413 = vshrl.u32 %v1412, 7
        %v1414 = vsub.s32 2, %v1413
        %v1415 = vrot.slane %v1402, %v1414
        %v1416 = vlaneseq
        %v1417 = vshrl.u32 %v1416, 7
        %v1418 = vsub.s32 3, %v1417
        %v1419 = vrot.slane %v1402, %v1418
        %v1420 = vcombine.low %v1407, %v1411
        %v1421 = vcombine.low %v1415, %v1419
        %1422 = vrot.lane.b32.xlu0 %v1420, 1
        %v1423 = vpop.permute.xlu0 %1422
        %1424 = vrot.lane.b32.xlu0 %v1421, 1
        %v1425 = vpop.permute.xlu0 %1424
        %v1426 = vrot.slane %v1423, 4
        %v1427 = vrot.slane %v1425, 4
        %v1428 = vsel %vm1348, %v1426, %v1423
        %v1429 = vsel %vm511, %v1426, %v1427
        %v1430 = vsel %vm1348, %v1429, %v1425
        %v1434 = vmul.f32 %v1398, %v1428
        %v1435 = vmul.f32 %v1399, %v1430
        %v1436 = vmul.f32 %v1400, %v1427
        %v1440 = vcombine.high %v1434, %v1434
        %v1441 = vcombine.high %v1435, %v1435
        %1442 = vrot.lane.b32.xlu0 %v1434, 127
        %v1443 = vpop.permute.xlu0 %1442
        %1444 = vrot.lane.b32.xlu0 %v1440, 127
        %v1445 = vpop.permute.xlu0 %1444
        %1446 = vrot.lane.b32.xlu0 %v1435, 127
        %v1447 = vpop.permute.xlu0 %1446
        %1448 = vrot.lane.b32.xlu0 %v1441, 127
        %v1449 = vpop.permute.xlu0 %1448
        %1450 = vrot.lane.b32.xlu0 %v1436, 127
        %v1451 = vpop.permute.xlu0 %1450
        %v1452 = vsel %vm1323, %v1443, %v1445
        %v1453 = vsel %vm1323, %v1445, %v1447
        %v1454 = vsel %vm1323, %v1447, %v1449
        %v1455 = vsel %vm1323, %v1449, %v1451
        %1460 = vst [vmem:[#allocation3 + $0xe0] sm:$0xf] %v1452
        %1461 = vst [vmem:[#allocation3 + $0xe8] sm:$0xf] %v1453
        %1462 = vst [vmem:[#allocation3 + $0xf0] sm:$0xf] %v1454
        %1463 = vst [vmem:[#allocation3 + $0xf8] sm:$0xf] %v1455
        %v1464 = vld [vmem:[#allocation2 + $0x4] sm:$0xff]
        %v1465 = vld [vmem:[#allocation2 + $0xc] sm:$0xff]
        %v1466 = vld [vmem:[#allocation2 + $0x14] sm:$0xf]
        %s1467 = scalar_lea.vmem [#allocation9], 39
        %v1468 = vld [vmem:[%s1467] ss:$8 sm:$0xf]
        %v1470 = vlaneseq
        %v1471 = vshrl.u32 %v1470, 7
        %v1472 = vsub.s32 0, %v1471
        %v1473 = vrot.slane %v1468, %v1472
        %v1474 = vlaneseq
        %v1475 = vshrl.u32 %v1474, 7
        %v1476 = vsub.s32 1, %v1475
        %v1477 = vrot.slane %v1468, %v1476
        %v1478 = vlaneseq
        %v1479 = vshrl.u32 %v1478, 7
        %v1480 = vsub.s32 2, %v1479
        %v1481 = vrot.slane %v1468, %v1480
        %v1482 = vlaneseq
        %v1483 = vshrl.u32 %v1482, 7
        %v1484 = vsub.s32 3, %v1483
        %v1485 = vrot.slane %v1468, %v1484
        %v1486 = vcombine.low %v1473, %v1477
        %v1487 = vcombine.low %v1481, %v1485
        %1488 = vrot.lane.b32.xlu0 %v1486, 7
        %v1489 = vpop.permute.xlu0 %1488
        %1490 = vrot.lane.b32.xlu0 %v1487, 7
        %v1491 = vpop.permute.xlu0 %1490
        %v1492 = vrot.slane %v1489, 4
        %v1493 = vrot.slane %v1491, 4
        %v1494 = vsel %vm1280, %v1492, %v1489
        %v1495 = vsel %vm511, %v1492, %v1493
        %v1496 = vsel %vm1280, %v1495, %v1491
        %v1500 = vmul.f32 %v1464, %v1494
        %v1501 = vmul.f32 %v1465, %v1496
        %v1502 = vmul.f32 %v1466, %v1493
        %v1506 = vcombine.low %v1500, %v1500
        %v1507 = vcombine.low %v1501, %v1501
        %v1508 = vcombine.low %v1502, %v1502
        %1509 = vrot.lane.b32.xlu0 %v1506, 121
        %v1510 = vpop.permute.xlu0 %1509
        %1511 = vrot.lane.b32.xlu0 %v1500, 121
        %v1512 = vpop.permute.xlu0 %1511
        %1513 = vrot.lane.b32.xlu0 %v1507, 121
        %v1514 = vpop.permute.xlu0 %1513
        %1515 = vrot.lane.b32.xlu0 %v1501, 121
        %v1516 = vpop.permute.xlu0 %1515
        %1517 = vrot.lane.b32.xlu0 %v1508, 121
        %v1518 = vpop.permute.xlu0 %1517
        %v1519 = vsel %vm1254, %v1510, %v1512
        %v1520 = vsel %vm1254, %v1512, %v1514
        %v1521 = vsel %vm1254, %v1514, %v1516
        %v1522 = vsel %vm1254, %v1516, %v1518
        %1527 = vst [vmem:[#allocation3 + $0xe0] sm:$0xf0] %v1519
        %1528 = vst [vmem:[#allocation3 + $0xe8] sm:$0xf0] %v1520
        %1529 = vst [vmem:[#allocation3 + $0xf0] sm:$0xf0] %v1521
        %1530 = vst [vmem:[#allocation3 + $0xf8] sm:$0xf0] %v1522
        %v1531 = vld [vmem:[#allocation2 + $0x4] sm:$0xff]
        %v1532 = vld [vmem:[#allocation2 + $0xc] sm:$0xff]
        %v1533 = vld [vmem:[#allocation2 + $0x14] sm:$0xf]
        %s1534 = scalar_lea.vmem [#allocation9], 64
        %v1535 = vld [vmem:[%s1534] ss:$8 sm:$0xf]
        %v1537 = vlaneseq
        %v1538 = vshrl.u32 %v1537, 7
        %v1539 = vsub.s32 0, %v1538
        %v1540 = vrot.slane %v1535, %v1539
        %v1541 = vlaneseq
        %v1542 = vshrl.u32 %v1541, 7
        %v1543 = vsub.s32 1, %v1542
        %v1544 = vrot.slane %v1535, %v1543
        %v1545 = vlaneseq
        %v1546 = vshrl.u32 %v1545, 7
        %v1547 = vsub.s32 2, %v1546
        %v1548 = vrot.slane %v1535, %v1547
        %v1549 = vlaneseq
        %v1550 = vshrl.u32 %v1549, 7
        %v1551 = vsub.s32 3, %v1550
        %v1552 = vrot.slane %v1535, %v1551
        %v1553 = vcombine.low %v1540, %v1544
        %v1554 = vcombine.low %v1548, %v1552
        %1555 = vrot.lane.b32.xlu0 %v1553, 8
        %v1556 = vpop.permute.xlu0 %1555
        %1557 = vrot.lane.b32.xlu0 %v1554, 8
        %v1558 = vpop.permute.xlu0 %1557
        %v1559 = vrot.slane %v1556, 4
        %v1560 = vrot.slane %v1558, 4
        %v1561 = vsel %vm1211, %v1559, %v1556
        %v1562 = vsel %vm511, %v1559, %v1560
        %v1563 = vsel %vm1211, %v1562, %v1558
        %v1567 = vmul.f32 %v1531, %v1561
        %v1568 = vmul.f32 %v1532, %v1563
        %v1569 = vmul.f32 %v1533, %v1560
        %v1573 = vcombine.high %v1567, %v1567
        %v1574 = vcombine.high %v1568, %v1568
        %1575 = vrot.lane.b32.xlu0 %v1567, 120
        %v1576 = vpop.permute.xlu0 %1575
        %1577 = vrot.lane.b32.xlu0 %v1573, 120
        %v1578 = vpop.permute.xlu0 %1577
        %1579 = vrot.lane.b32.xlu0 %v1568, 120
        %v1580 = vpop.permute.xlu0 %1579
        %1581 = vrot.lane.b32.xlu0 %v1574, 120
        %v1582 = vpop.permute.xlu0 %1581
        %1583 = vrot.lane.b32.xlu0 %v1569, 120
        %v1584 = vpop.permute.xlu0 %1583
        %v1585 = vsel %vm1186, %v1576, %v1578
        %v1586 = vsel %vm1186, %v1578, %v1580
        %v1587 = vsel %vm1186, %v1580, %v1582
        %v1588 = vsel %vm1186, %v1582, %v1584
        %1593 = vst [vmem:[#allocation3 + $0x100] sm:$0xf] %v1585
        %1594 = vst [vmem:[#allocation3 + $0x108] sm:$0xf] %v1586
        %1595 = vst [vmem:[#allocation3 + $0x110] sm:$0xf] %v1587
        %1596 = vst [vmem:[#allocation3 + $0x118] sm:$0xf] %v1588
        %v1597 = vld [vmem:[#allocation2 + $0x4] sm:$0xff]
        %v1598 = vld [vmem:[#allocation2 + $0xc] sm:$0xff]
        %v1599 = vld [vmem:[#allocation2 + $0x14] sm:$0xf]
        %s1600 = scalar_lea.vmem [#allocation9], 65
        %v1601 = vld [vmem:[%s1600] ss:$8 sm:$0xf]
        %v1603 = vlaneseq
        %v1604 = vshrl.u32 %v1603, 7
        %v1605 = vsub.s32 0, %v1604
        %v1606 = vrot.slane %v1601, %v1605
        %v1607 = vlaneseq
        %v1608 = vshrl.u32 %v1607, 7
        %v1609 = vsub.s32 1, %v1608
        %v1610 = vrot.slane %v1601, %v1609
        %v1611 = vlaneseq
        %v1612 = vshrl.u32 %v1611, 7
        %v1613 = vsub.s32 2, %v1612
        %v1614 = vrot.slane %v1601, %v1613
        %v1615 = vlaneseq
        %v1616 = vshrl.u32 %v1615, 7
        %v1617 = vsub.s32 3, %v1616
        %v1618 = vrot.slane %v1601, %v1617
        %v1619 = vcombine.low %v1606, %v1610
        %v1620 = vcombine.low %v1614, %v1618
        %1621 = vrot.lane.b32.xlu0 %v1619, 9
        %v1622 = vpop.permute.xlu0 %1621
        %1623 = vrot.lane.b32.xlu0 %v1620, 9
        %v1624 = vpop.permute.xlu0 %1623
        %v1625 = vrot.slane %v1622, 4
        %v1626 = vrot.slane %v1624, 4
        %v1627 = vsel %vm1143, %v1625, %v1622
        %v1628 = vsel %vm511, %v1625, %v1626
        %v1629 = vsel %vm1143, %v1628, %v1624
        %v1633 = vmul.f32 %v1597, %v1627
        %v1634 = vmul.f32 %v1598, %v1629
        %v1635 = vmul.f32 %v1599, %v1626
        %v1639 = vcombine.low %v1633, %v1633
        %v1640 = vcombine.low %v1634, %v1634
        %v1641 = vcombine.low %v1635, %v1635
        %1642 = vrot.lane.b32.xlu0 %v1639, 119
        %v1643 = vpop.permute.xlu0 %1642
        %1644 = vrot.lane.b32.xlu0 %v1633, 119
        %v1645 = vpop.permute.xlu0 %1644
        %1646 = vrot.lane.b32.xlu0 %v1640, 119
        %v1647 = vpop.permute.xlu0 %1646
        %1648 = vrot.lane.b32.xlu0 %v1634, 119
        %v1649 = vpop.permute.xlu0 %1648
        %1650 = vrot.lane.b32.xlu0 %v1641, 119
        %v1651 = vpop.permute.xlu0 %1650
        %v1652 = vsel %vm1117, %v1643, %v1645
        %v1653 = vsel %vm1117, %v1645, %v1647
        %v1654 = vsel %vm1117, %v1647, %v1649
        %v1655 = vsel %vm1117, %v1649, %v1651
        %1660 = vst [vmem:[#allocation3 + $0x100] sm:$0xf0] %v1652
        %1661 = vst [vmem:[#allocation3 + $0x108] sm:$0xf0] %v1653
        %1662 = vst [vmem:[#allocation3 + $0x110] sm:$0xf0] %v1654
        %1663 = vst [vmem:[#allocation3 + $0x118] sm:$0xf0] %v1655
        %v1664 = vld [vmem:[#allocation2 + $0x4] sm:$0xff]
        %v1665 = vld [vmem:[#allocation2 + $0xc] sm:$0xff]
        %v1666 = vld [vmem:[#allocation2 + $0x14] sm:$0xf]
        %s1667 = scalar_lea.vmem [#allocation9], 66
        %v1668 = vld [vmem:[%s1667] ss:$8 sm:$0xf]
        %v1670 = vlaneseq
        %v1671 = vshrl.u32 %v1670, 7
        %v1672 = vsub.s32 0, %v1671
        %v1673 = vrot.slane %v1668, %v1672
        %v1674 = vlaneseq
        %v1675 = vshrl.u32 %v1674, 7
        %v1676 = vsub.s32 1, %v1675
        %v1677 = vrot.slane %v1668, %v1676
        %v1678 = vlaneseq
        %v1679 = vshrl.u32 %v1678, 7
        %v1680 = vsub.s32 2, %v1679
        %v1681 = vrot.slane %v1668, %v1680
        %v1682 = vlaneseq
        %v1683 = vshrl.u32 %v1682, 7
        %v1684 = vsub.s32 3, %v1683
        %v1685 = vrot.slane %v1668, %v1684
        %v1686 = vcombine.low %v1673, %v1677
        %v1687 = vcombine.low %v1681, %v1685
        %1688 = vrot.lane.b32.xlu0 %v1686, 55
        %v1689 = vpop.permute.xlu0 %1688
        %1690 = vrot.lane.b32.xlu0 %v1687, 55
        %v1691 = vpop.permute.xlu0 %1690
        %v1692 = vrot.slane %v1689, 4
        %v1693 = vrot.slane %v1691, 4
        %v1694 = vsel %vm509, %v1692, %v1689
        %v1695 = vsel %vm511, %v1692, %v1693
        %v1696 = vsel %vm509, %v1695, %v1691
        %v1700 = vmul.f32 %v1664, %v1694
        %v1701 = vmul.f32 %v1665, %v1696
        %v1702 = vmul.f32 %v1666, %v1693
        %v1706 = vcombine.high %v1700, %v1700
        %v1707 = vcombine.high %v1701, %v1701
        %1708 = vrot.lane.b32.xlu0 %v1700, 73
        %v1709 = vpop.permute.xlu0 %1708
        %1710 = vrot.lane.b32.xlu0 %v1706, 73
        %v1711 = vpop.permute.xlu0 %1710
        %1712 = vrot.lane.b32.xlu0 %v1701, 73
        %v1713 = vpop.permute.xlu0 %1712
        %1714 = vrot.lane.b32.xlu0 %v1707, 73
        %v1715 = vpop.permute.xlu0 %1714
        %1716 = vrot.lane.b32.xlu0 %v1702, 73
        %v1717 = vpop.permute.xlu0 %1716
        %v1718 = vsel %vm535, %v1709, %v1711
        %v1719 = vsel %vm535, %v1711, %v1713
        %v1720 = vsel %vm535, %v1713, %v1715
        %v1721 = vsel %vm535, %v1715, %v1717
        %1726 = vst [vmem:[#allocation3 + $0x120] sm:$0xf] %v1718
        %1727 = vst [vmem:[#allocation3 + $0x128] sm:$0xf] %v1719
        %1728 = vst [vmem:[#allocation3 + $0x130] sm:$0xf] %v1720
        %1729 = vst [vmem:[#allocation3 + $0x138] sm:$0xf] %v1721
        %v1730 = vld [vmem:[#allocation2 + $0x4] sm:$0xff]
        %v1731 = vld [vmem:[#allocation2 + $0xc] sm:$0xff]
        %v1732 = vld [vmem:[#allocation2 + $0x14] sm:$0xf]
        %s1733 = scalar_lea.vmem [#allocation9], 67
        %v1734 = vld [vmem:[%s1733] ss:$8 sm:$0xf]
        %v1736 = vlaneseq
        %v1737 = vshrl.u32 %v1736, 7
        %v1738 = vsub.s32 0, %v1737
        %v1739 = vrot.slane %v1734, %v1738
        %v1740 = vlaneseq
        %v1741 = vshrl.u32 %v1740, 7
        %v1742 = vsub.s32 1, %v1741
        %v1743 = vrot.slane %v1734, %v1742
        %v1744 = vlaneseq
        %v1745 = vshrl.u32 %v1744, 7
        %v1746 = vsub.s32 2, %v1745
        %v1747 = vrot.slane %v1734, %v1746
        %v1748 = vlaneseq
        %v1749 = vshrl.u32 %v1748, 7
        %v1750 = vsub.s32 3, %v1749
        %v1751 = vrot.slane %v1734, %v1750
        %v1752 = vcombine.low %v1739, %v1743
        %v1753 = vcombine.low %v1747, %v1751
        %1754 = vrot.lane.b32.xlu0 %v1752, 56
        %v1755 = vpop.permute.xlu0 %1754
        %1756 = vrot.lane.b32.xlu0 %v1753, 56
        %v1757 = vpop.permute.xlu0 %1756
        %v1758 = vrot.slane %v1755, 4
        %v1759 = vrot.slane %v1757, 4
        %v1760 = vsel %vm578, %v1758, %v1755
        %v1761 = vsel %vm511, %v1758, %v1759
        %v1762 = vsel %vm578, %v1761, %v1757
        %v1766 = vmul.f32 %v1730, %v1760
        %v1767 = vmul.f32 %v1731, %v1762
        %v1768 = vmul.f32 %v1732, %v1759
        %v1772 = vcombine.low %v1766, %v1766
        %v1773 = vcombine.low %v1767, %v1767
        %v1774 = vcombine.low %v1768, %v1768
        %1775 = vrot.lane.b32.xlu0 %v1772, 72
        %v1776 = vpop.permute.xlu0 %1775
        %1777 = vrot.lane.b32.xlu0 %v1766, 72
        %v1778 = vpop.permute.xlu0 %1777
        %1779 = vrot.lane.b32.xlu0 %v1773, 72
        %v1780 = vpop.permute.xlu0 %1779
        %1781 = vrot.lane.b32.xlu0 %v1767, 72
        %v1782 = vpop.permute.xlu0 %1781
        %1783 = vrot.lane.b32.xlu0 %v1774, 72
        %v1784 = vpop.permute.xlu0 %1783
        %v1785 = vsel %vm604, %v1776, %v1778
        %v1786 = vsel %vm604, %v1778, %v1780
        %v1787 = vsel %vm604, %v1780, %v1782
        %v1788 = vsel %vm604, %v1782, %v1784
        %1793 = vst [vmem:[#allocation3 + $0x120] sm:$0xf0] %v1785
        %1794 = vst [vmem:[#allocation3 + $0x128] sm:$0xf0] %v1786
        %1795 = vst [vmem:[#allocation3 + $0x130] sm:$0xf0] %v1787
        %1796 = vst [vmem:[#allocation3 + $0x138] sm:$0xf0] %v1788
        %v1797 = vld [vmem:[#allocation2 + $0x4] sm:$0xff]
        %v1798 = vld [vmem:[#allocation2 + $0xc] sm:$0xff]
        %v1799 = vld [vmem:[#allocation2 + $0x14] sm:$0xf]
        %s1800 = scalar_lea.vmem [#allocation9], 68
        %v1801 = vld [vmem:[%s1800] ss:$8 sm:$0xf]
        %v1803 = vlaneseq
        %v1804 = vshrl.u32 %v1803, 7
        %v1805 = vsub.s32 0, %v1804
        %v1806 = vrot.slane %v1801, %v1805
        %v1807 = vlaneseq
        %v1808 = vshrl.u32 %v1807, 7
        %v1809 = vsub.s32 1, %v1808
        %v1810 = vrot.slane %v1801, %v1809
        %v1811 = vlaneseq
        %v1812 = vshrl.u32 %v1811, 7
        %v1813 = vsub.s32 2, %v1812
        %v1814 = vrot.slane %v1801, %v1813
        %v1815 = vlaneseq
        %v1816 = vshrl.u32 %v1815, 7
        %v1817 = vsub.s32 3, %v1816
        %v1818 = vrot.slane %v1801, %v1817
        %v1819 = vcombine.low %v1806, %v1810
        %v1820 = vcombine.low %v1814, %v1818
        %1821 = vrot.lane.b32.xlu0 %v1819, 57
        %v1822 = vpop.permute.xlu0 %1821
        %1823 = vrot.lane.b32.xlu0 %v1820, 57
        %v1824 = vpop.permute.xlu0 %1823
        %v1825 = vrot.slane %v1822, 4
        %v1826 = vrot.slane %v1824, 4
        %v1827 = vsel %vm647, %v1825, %v1822
        %v1828 = vsel %vm511, %v1825, %v1826
        %v1829 = vsel %vm647, %v1828, %v1824
        %v1833 = vmul.f32 %v1797, %v1827
        %v1834 = vmul.f32 %v1798, %v1829
        %v1835 = vmul.f32 %v1799, %v1826
        %v1839 = vcombine.high %v1833, %v1833
        %v1840 = vcombine.high %v1834, %v1834
        %1841 = vrot.lane.b32.xlu0 %v1833, 71
        %v1842 = vpop.permute.xlu0 %1841
        %1843 = vrot.lane.b32.xlu0 %v1839, 71
        %v1844 = vpop.permute.xlu0 %1843
        %1845 = vrot.lane.b32.xlu0 %v1834, 71
        %v1846 = vpop.permute.xlu0 %1845
        %1847 = vrot.lane.b32.xlu0 %v1840, 71
        %v1848 = vpop.permute.xlu0 %1847
        %1849 = vrot.lane.b32.xlu0 %v1835, 71
        %v1850 = vpop.permute.xlu0 %1849
        %v1851 = vsel %vm672, %v1842, %v1844
        %v1852 = vsel %vm672, %v1844, %v1846
        %v1853 = vsel %vm672, %v1846, %v1848
        %v1854 = vsel %vm672, %v1848, %v1850
        %1859 = vst [vmem:[#allocation3 + $0x140] sm:$0xf] %v1851
        %1860 = vst [vmem:[#allocation3 + $0x148] sm:$0xf] %v1852
        %1861 = vst [vmem:[#allocation3 + $0x150] sm:$0xf] %v1853
        %1862 = vst [vmem:[#allocation3 + $0x158] sm:$0xf] %v1854
        %v1863 = vld [vmem:[#allocation2 + $0x4] sm:$0xff]
        %v1864 = vld [vmem:[#allocation2 + $0xc] sm:$0xff]
        %v1865 = vld [vmem:[#allocation2 + $0x14] sm:$0xf]
        %s1866 = scalar_lea.vmem [#allocation9], 69
        %v1867 = vld [vmem:[%s1866] ss:$8 sm:$0xf]
        %v1869 = vlaneseq
        %v1870 = vshrl.u32 %v1869, 7
        %v1871 = vsub.s32 0, %v1870
        %v1872 = vrot.slane %v1867, %v1871
        %v1873 = vlaneseq
        %v1874 = vshrl.u32 %v1873, 7
        %v1875 = vsub.s32 1, %v1874
        %v1876 = vrot.slane %v1867, %v1875
        %v1877 = vlaneseq
        %v1878 = vshrl.u32 %v1877, 7
        %v1879 = vsub.s32 2, %v1878
        %v1880 = vrot.slane %v1867, %v1879
        %v1881 = vlaneseq
        %v1882 = vshrl.u32 %v1881, 7
        %v1883 = vsub.s32 3, %v1882
        %v1884 = vrot.slane %v1867, %v1883
        %v1885 = vcombine.low %v1872, %v1876
        %v1886 = vcombine.low %v1880, %v1884
        %1887 = vrot.lane.b32.xlu0 %v1885, 63
        %v1888 = vpop.permute.xlu0 %1887
        %1889 = vrot.lane.b32.xlu0 %v1886, 63
        %v1890 = vpop.permute.xlu0 %1889
        %v1891 = vrot.slane %v1888, 4
        %v1892 = vrot.slane %v1890, 4
        %v1893 = vsel %vm715, %v1891, %v1888
        %v1894 = vsel %vm511, %v1891, %v1892
        %v1895 = vsel %vm715, %v1894, %v1890
        %v1899 = vmul.f32 %v1863, %v1893
        %v1900 = vmul.f32 %v1864, %v1895
        %v1901 = vmul.f32 %v1865, %v1892
        %v1905 = vcombine.low %v1899, %v1899
        %v1906 = vcombine.low %v1900, %v1900
        %v1907 = vcombine.low %v1901, %v1901
        %1908 = vrot.lane.b32.xlu0 %v1905, 65
        %v1909 = vpop.permute.xlu0 %1908
        %1910 = vrot.lane.b32.xlu0 %v1899, 65
        %v1911 = vpop.permute.xlu0 %1910
        %1912 = vrot.lane.b32.xlu0 %v1906, 65
        %v1913 = vpop.permute.xlu0 %1912
        %1914 = vrot.lane.b32.xlu0 %v1900, 65
        %v1915 = vpop.permute.xlu0 %1914
        %1916 = vrot.lane.b32.xlu0 %v1907, 65
        %v1917 = vpop.permute.xlu0 %1916
        %v1918 = vsel %vm741, %v1909, %v1911
        %v1919 = vsel %vm741, %v1911, %v1913
        %v1920 = vsel %vm741, %v1913, %v1915
        %v1921 = vsel %vm741, %v1915, %v1917
        %1926 = vst [vmem:[#allocation3 + $0x140] sm:$0xf0] %v1918
        %1927 = vst [vmem:[#allocation3 + $0x148] sm:$0xf0] %v1919
        %1928 = vst [vmem:[#allocation3 + $0x150] sm:$0xf0] %v1920
        %1929 = vst [vmem:[#allocation3 + $0x158] sm:$0xf0] %v1921
        %v1930 = vld [vmem:[#allocation2 + $0x4] sm:$0xff]
        %v1931 = vld [vmem:[#allocation2 + $0xc] sm:$0xff]
        %v1932 = vld [vmem:[#allocation2 + $0x14] sm:$0xf]
        %s1933 = scalar_lea.vmem [#allocation9], 70
        %v1934 = vld [vmem:[%s1933] ss:$8 sm:$0xf]
        %v1936 = vlaneseq
        %v1937 = vshrl.u32 %v1936, 7
        %v1938 = vsub.s32 0, %v1937
        %v1939 = vrot.slane %v1934, %v1938
        %v1940 = vlaneseq
        %v1941 = vshrl.u32 %v1940, 7
        %v1942 = vsub.s32 1, %v1941
        %v1943 = vrot.slane %v1934, %v1942
        %v1944 = vlaneseq
        %v1945 = vshrl.u32 %v1944, 7
        %v1946 = vsub.s32 2, %v1945
        %v1947 = vrot.slane %v1934, %v1946
        %v1948 = vlaneseq
        %v1949 = vshrl.u32 %v1948, 7
        %v1950 = vsub.s32 3, %v1949
        %v1951 = vrot.slane %v1934, %v1950
        %v1952 = vcombine.low %v1939, %v1943
        %v1953 = vcombine.low %v1947, %v1951
        %1954 = vrot.lane.b32.xlu0 %v1952, 64
        %v1955 = vpop.permute.xlu0 %1954
        %1956 = vrot.lane.b32.xlu0 %v1953, 64
        %v1957 = vpop.permute.xlu0 %1956
        %v1958 = vrot.slane %v1955, 4
        %v1959 = vrot.slane %v1957, 4
        %v1960 = vsel %vm784, %v1958, %v1955
        %v1961 = vsel %vm511, %v1958, %v1959
        %v1962 = vsel %vm784, %v1961, %v1957
        %v1966 = vmul.f32 %v1930, %v1960
        %v1967 = vmul.f32 %v1931, %v1962
        %v1968 = vmul.f32 %v1932, %v1959
        %v1972 = vcombine.high %v1966, %v1966
        %v1973 = vcombine.high %v1967, %v1967
        %1974 = vrot.lane.b32.xlu0 %v1966, 64
        %v1975 = vpop.permute.xlu0 %1974
        %1976 = vrot.lane.b32.xlu0 %v1972, 64
        %v1977 = vpop.permute.xlu0 %1976
        %1978 = vrot.lane.b32.xlu0 %v1967, 64
        %v1979 = vpop.permute.xlu0 %1978
        %1980 = vrot.lane.b32.xlu0 %v1973, 64
        %v1981 = vpop.permute.xlu0 %1980
        %1982 = vrot.lane.b32.xlu0 %v1968, 64
        %v1983 = vpop.permute.xlu0 %1982
        %v1984 = vsel %vm784, %v1975, %v1977
        %v1985 = vsel %vm784, %v1977, %v1979
        %v1986 = vsel %vm784, %v1979, %v1981
        %v1987 = vsel %vm784, %v1981, %v1983
        %1992 = vst [vmem:[#allocation3 + $0x160] sm:$0xf] %v1984
        %1993 = vst [vmem:[#allocation3 + $0x168] sm:$0xf] %v1985
        %1994 = vst [vmem:[#allocation3 + $0x170] sm:$0xf] %v1986
        %1995 = vst [vmem:[#allocation3 + $0x178] sm:$0xf] %v1987
        %v1996 = vld [vmem:[#allocation2 + $0x4] sm:$0xff]
        %v1997 = vld [vmem:[#allocation2 + $0xc] sm:$0xff]
        %v1998 = vld [vmem:[#allocation2 + $0x14] sm:$0xf]
        %s1999 = scalar_lea.vmem [#allocation9], 71
        %v2000 = vld [vmem:[%s1999] ss:$8 sm:$0xf]
        %v2002 = vlaneseq
        %v2003 = vshrl.u32 %v2002, 7
        %v2004 = vsub.s32 0, %v2003
        %v2005 = vrot.slane %v2000, %v2004
        %v2006 = vlaneseq
        %v2007 = vshrl.u32 %v2006, 7
        %v2008 = vsub.s32 1, %v2007
        %v2009 = vrot.slane %v2000, %v2008
        %v2010 = vlaneseq
        %v2011 = vshrl.u32 %v2010, 7
        %v2012 = vsub.s32 2, %v2011
        %v2013 = vrot.slane %v2000, %v2012
        %v2014 = vlaneseq
        %v2015 = vshrl.u32 %v2014, 7
        %v2016 = vsub.s32 3, %v2015
        %v2017 = vrot.slane %v2000, %v2016
        %v2018 = vcombine.low %v2005, %v2009
        %v2019 = vcombine.low %v2013, %v2017
        %2020 = vrot.lane.b32.xlu0 %v2018, 65
        %v2021 = vpop.permute.xlu0 %2020
        %2022 = vrot.lane.b32.xlu0 %v2019, 65
        %v2023 = vpop.permute.xlu0 %2022
        %v2024 = vrot.slane %v2021, 4
        %v2025 = vrot.slane %v2023, 4
        %v2026 = vsel %vm741, %v2024, %v2021
        %v2027 = vsel %vm511, %v2024, %v2025
        %v2028 = vsel %vm741, %v2027, %v2023
        %v2032 = vmul.f32 %v1996, %v2026
        %v2033 = vmul.f32 %v1997, %v2028
        %v2034 = vmul.f32 %v1998, %v2025
        %v2038 = vcombine.low %v2032, %v2032
        %v2039 = vcombine.low %v2033, %v2033
        %v2040 = vcombine.low %v2034, %v2034
        %2041 = vrot.lane.b32.xlu0 %v2038, 63
        %v2042 = vpop.permute.xlu0 %2041
        %2043 = vrot.lane.b32.xlu0 %v2032, 63
        %v2044 = vpop.permute.xlu0 %2043
        %2045 = vrot.lane.b32.xlu0 %v2039, 63
        %v2046 = vpop.permute.xlu0 %2045
        %2047 = vrot.lane.b32.xlu0 %v2033, 63
        %v2048 = vpop.permute.xlu0 %2047
        %2049 = vrot.lane.b32.xlu0 %v2040, 63
        %v2050 = vpop.permute.xlu0 %2049
        %v2051 = vsel %vm715, %v2042, %v2044
        %v2052 = vsel %vm715, %v2044, %v2046
        %v2053 = vsel %vm715, %v2046, %v2048
        %v2054 = vsel %vm715, %v2048, %v2050
        %2059 = vst [vmem:[#allocation3 + $0x160] sm:$0xf0] %v2051
        %2060 = vst [vmem:[#allocation3 + $0x168] sm:$0xf0] %v2052
        %2061 = vst [vmem:[#allocation3 + $0x170] sm:$0xf0] %v2053
        %2062 = vst [vmem:[#allocation3 + $0x178] sm:$0xf0] %v2054
        %v2063 = vld [vmem:[#allocation2 + $0x4] sm:$0xff]
        %v2064 = vld [vmem:[#allocation2 + $0xc] sm:$0xff]
        %v2065 = vld [vmem:[#allocation2 + $0x14] sm:$0xf]
        %s2066 = scalar_lea.vmem [#allocation9], 96
        %v2067 = vld [vmem:[%s2066] ss:$8 sm:$0xf]
        %v2069 = vlaneseq
        %v2070 = vshrl.u32 %v2069, 7
        %v2071 = vsub.s32 0, %v2070
        %v2072 = vrot.slane %v2067, %v2071
        %v2073 = vlaneseq
        %v2074 = vshrl.u32 %v2073, 7
        %v2075 = vsub.s32 1, %v2074
        %v2076 = vrot.slane %v2067, %v2075
        %v2077 = vlaneseq
        %v2078 = vshrl.u32 %v2077, 7
        %v2079 = vsub.s32 2, %v2078
        %v2080 = vrot.slane %v2067, %v2079
        %v2081 = vlaneseq
        %v2082 = vshrl.u32 %v2081, 7
        %v2083 = vsub.s32 3, %v2082
        %v2084 = vrot.slane %v2067, %v2083
        %v2085 = vcombine.low %v2072, %v2076
        %v2086 = vcombine.low %v2080, %v2084
        %2087 = vrot.lane.b32.xlu0 %v2085, 71
        %v2088 = vpop.permute.xlu0 %2087
        %2089 = vrot.lane.b32.xlu0 %v2086, 71
        %v2090 = vpop.permute.xlu0 %2089
        %v2091 = vrot.slane %v2088, 4
        %v2092 = vrot.slane %v2090, 4
        %v2093 = vsel %vm672, %v2091, %v2088
        %v2094 = vsel %vm511, %v2091, %v2092
        %v2095 = vsel %vm672, %v2094, %v2090
        %v2099 = vmul.f32 %v2063, %v2093
        %v2100 = vmul.f32 %v2064, %v2095
        %v2101 = vmul.f32 %v2065, %v2092
        %v2105 = vcombine.high %v2099, %v2099
        %v2106 = vcombine.high %v2100, %v2100
        %2107 = vrot.lane.b32.xlu0 %v2099, 57
        %v2108 = vpop.permute.xlu0 %2107
        %2109 = vrot.lane.b32.xlu0 %v2105, 57
        %v2110 = vpop.permute.xlu0 %2109
        %2111 = vrot.lane.b32.xlu0 %v2100, 57
        %v2112 = vpop.permute.xlu0 %2111
        %2113 = vrot.lane.b32.xlu0 %v2106, 57
        %v2114 = vpop.permute.xlu0 %2113
        %2115 = vrot.lane.b32.xlu0 %v2101, 57
        %v2116 = vpop.permute.xlu0 %2115
        %v2117 = vsel %vm647, %v2108, %v2110
        %v2118 = vsel %vm647, %v2110, %v2112
        %v2119 = vsel %vm647, %v2112, %v2114
        %v2120 = vsel %vm647, %v2114, %v2116
        %2125 = vst [vmem:[#allocation3 + $0x180] sm:$0xf] %v2117
        %2126 = vst [vmem:[#allocation3 + $0x188] sm:$0xf] %v2118
        %2127 = vst [vmem:[#allocation3 + $0x190] sm:$0xf] %v2119
        %2128 = vst [vmem:[#allocation3 + $0x198] sm:$0xf] %v2120
        %v2129 = vld [vmem:[#allocation2 + $0x4] sm:$0xff]
        %v2130 = vld [vmem:[#allocation2 + $0xc] sm:$0xff]
        %v2131 = vld [vmem:[#allocation2 + $0x14] sm:$0xf]
        %s2132 = scalar_lea.vmem [#allocation9], 97
        %v2133 = vld [vmem:[%s2132] ss:$8 sm:$0xf]
        %v2135 = vlaneseq
        %v2136 = vshrl.u32 %v2135, 7
        %v2137 = vsub.s32 0, %v2136
        %v2138 = vrot.slane %v2133, %v2137
        %v2139 = vlaneseq
        %v2140 = vshrl.u32 %v2139, 7
        %v2141 = vsub.s32 1, %v2140
        %v2142 = vrot.slane %v2133, %v2141
        %v2143 = vlaneseq
        %v2144 = vshrl.u32 %v2143, 7
        %v2145 = vsub.s32 2, %v2144
        %v2146 = vrot.slane %v2133, %v2145
        %v2147 = vlaneseq
        %v2148 = vshrl.u32 %v2147, 7
        %v2149 = vsub.s32 3, %v2148
        %v2150 = vrot.slane %v2133, %v2149
        %v2151 = vcombine.low %v2138, %v2142
        %v2152 = vcombine.low %v2146, %v2150
        %2153 = vrot.lane.b32.xlu0 %v2151, 72
        %v2154 = vpop.permute.xlu0 %2153
        %2155 = vrot.lane.b32.xlu0 %v2152, 72
        %v2156 = vpop.permute.xlu0 %2155
        %v2157 = vrot.slane %v2154, 4
        %v2158 = vrot.slane %v2156, 4
        %v2159 = vsel %vm604, %v2157, %v2154
        %v2160 = vsel %vm511, %v2157, %v2158
        %v2161 = vsel %vm604, %v2160, %v2156
        %v2165 = vmul.f32 %v2129, %v2159
        %v2166 = vmul.f32 %v2130, %v2161
        %v2167 = vmul.f32 %v2131, %v2158
        %v2171 = vcombine.low %v2165, %v2165
        %v2172 = vcombine.low %v2166, %v2166
        %v2173 = vcombine.low %v2167, %v2167
        %2174 = vrot.lane.b32.xlu0 %v2171, 56
        %v2175 = vpop.permute.xlu0 %2174
        %2176 = vrot.lane.b32.xlu0 %v2165, 56
        %v2177 = vpop.permute.xlu0 %2176
        %2178 = vrot.lane.b32.xlu0 %v2172, 56
        %v2179 = vpop.permute.xlu0 %2178
        %2180 = vrot.lane.b32.xlu0 %v2166, 56
        %v2181 = vpop.permute.xlu0 %2180
        %2182 = vrot.lane.b32.xlu0 %v2173, 56
        %v2183 = vpop.permute.xlu0 %2182
        %v2184 = vsel %vm578, %v2175, %v2177
        %v2185 = vsel %vm578, %v2177, %v2179
        %v2186 = vsel %vm578, %v2179, %v2181
        %v2187 = vsel %vm578, %v2181, %v2183
        %2192 = vst [vmem:[#allocation3 + $0x180] sm:$0xf0] %v2184
        %2193 = vst [vmem:[#allocation3 + $0x188] sm:$0xf0] %v2185
        %2194 = vst [vmem:[#allocation3 + $0x190] sm:$0xf0] %v2186
        %2195 = vst [vmem:[#allocation3 + $0x198] sm:$0xf0] %v2187
        %v2196 = vld [vmem:[#allocation2 + $0x4] sm:$0xff]
        %v2197 = vld [vmem:[#allocation2 + $0xc] sm:$0xff]
        %v2198 = vld [vmem:[#allocation2 + $0x14] sm:$0xf]
        %s2199 = scalar_lea.vmem [#allocation9], 98
        %v2200 = vld [vmem:[%s2199] ss:$8 sm:$0xf]
        %v2202 = vlaneseq
        %v2203 = vshrl.u32 %v2202, 7
        %v2204 = vsub.s32 0, %v2203
        %v2205 = vrot.slane %v2200, %v2204
        %v2206 = vlaneseq
        %v2207 = vshrl.u32 %v2206, 7
        %v2208 = vsub.s32 1, %v2207
        %v2209 = vrot.slane %v2200, %v2208
        %v2210 = vlaneseq
        %v2211 = vshrl.u32 %v2210, 7
        %v2212 = vsub.s32 2, %v2211
        %v2213 = vrot.slane %v2200, %v2212
        %v2214 = vlaneseq
        %v2215 = vshrl.u32 %v2214, 7
        %v2216 = vsub.s32 3, %v2215
        %v2217 = vrot.slane %v2200, %v2216
        %v2218 = vcombine.low %v2205, %v2209
        %v2219 = vcombine.low %v2213, %v2217
        %2220 = vrot.lane.b32.xlu0 %v2218, 73
        %v2221 = vpop.permute.xlu0 %2220
        %2222 = vrot.lane.b32.xlu0 %v2219, 73
        %v2223 = vpop.permute.xlu0 %2222
        %v2224 = vrot.slane %v2221, 4
        %v2225 = vrot.slane %v2223, 4
        %v2226 = vsel %vm535, %v2224, %v2221
        %v2227 = vsel %vm511, %v2224, %v2225
        %v2228 = vsel %vm535, %v2227, %v2223
        %v2232 = vmul.f32 %v2196, %v2226
        %v2233 = vmul.f32 %v2197, %v2228
        %v2234 = vmul.f32 %v2198, %v2225
        %v2238 = vcombine.high %v2232, %v2232
        %v2239 = vcombine.high %v2233, %v2233
        %2240 = vrot.lane.b32.xlu0 %v2232, 55
        %v2241 = vpop.permute.xlu0 %2240
        %2242 = vrot.lane.b32.xlu0 %v2238, 55
        %v2243 = vpop.permute.xlu0 %2242
        %2244 = vrot.lane.b32.xlu0 %v2233, 55
        %v2245 = vpop.permute.xlu0 %2244
        %2246 = vrot.lane.b32.xlu0 %v2239, 55
        %v2247 = vpop.permute.xlu0 %2246
        %2248 = vrot.lane.b32.xlu0 %v2234, 55
        %v2249 = vpop.permute.xlu0 %2248
        %v2250 = vsel %vm509, %v2241, %v2243
        %v2251 = vsel %vm509, %v2243, %v2245
        %v2252 = vsel %vm509, %v2245, %v2247
        %v2253 = vsel %vm509, %v2247, %v2249
        %2258 = vst [vmem:[#allocation3 + $0x1a0] sm:$0xf] %v2250
        %2259 = vst [vmem:[#allocation3 + $0x1a8] sm:$0xf] %v2251
        %2260 = vst [vmem:[#allocation3 + $0x1b0] sm:$0xf] %v2252
        %2261 = vst [vmem:[#allocation3 + $0x1b8] sm:$0xf] %v2253
        %v2262 = vld [vmem:[#allocation6] sm:$0xf]
        %v2263 = vld [vmem:[#allocation3] sm:$0xff]
        %v2264 = vld [vmem:[#allocation3 + $0x8] sm:$0xff]
        %v2265 = vld [vmem:[#allocation3 + $0x10] sm:$0xff]
        %v2266 = vld [vmem:[#allocation3 + $0x18] sm:$0xff]
        %v2267 = vld [vmem:[#allocation3 + $0x20] sm:$0xff]
        %v2268 = vld [vmem:[#allocation3 + $0x28] sm:$0xff]
        %v2269 = vld [vmem:[#allocation3 + $0x30] sm:$0xff]
        %v2270 = vld [vmem:[#allocation3 + $0x38] sm:$0xff]
        %v2271 = vld [vmem:[#allocation3 + $0x40] sm:$0xff]
        %v2272 = vld [vmem:[#allocation3 + $0x48] sm:$0xff]
        %v2273 = vld [vmem:[#allocation3 + $0x50] sm:$0xff]
        %v2274 = vld [vmem:[#allocation3 + $0x58] sm:$0xff]
        %v2275 = vld [vmem:[#allocation3 + $0x60] sm:$0xff]
        %v2276 = vld [vmem:[#allocation3 + $0x68] sm:$0xff]
        %v2277 = vld [vmem:[#allocation3 + $0x70] sm:$0xff]
        %v2278 = vld [vmem:[#allocation3 + $0x78] sm:$0xff]
        %v2279 = vld [vmem:[#allocation3 + $0x80] sm:$0xff]
        %v2280 = vld [vmem:[#allocation3 + $0x88] sm:$0xff]
        %v2281 = vld [vmem:[#allocation3 + $0x90] sm:$0xff]
        %v2282 = vld [vmem:[#allocation3 + $0x98] sm:$0xff]
        %v2283 = vld [vmem:[#allocation3 + $0xa0] sm:$0xff]
        %v2284 = vld [vmem:[#allocation3 + $0xa8] sm:$0xff]
        %v2285 = vld [vmem:[#allocation3 + $0xb0] sm:$0xff]
        %v2286 = vld [vmem:[#allocation3 + $0xb8] sm:$0xff]
        %v2287 = vld [vmem:[#allocation3 + $0xc0] sm:$0xff]
        %v2288 = vld [vmem:[#allocation3 + $0xc8] sm:$0xff]
        %v2289 = vld [vmem:[#allocation3 + $0xd0] sm:$0xff]
        %v2290 = vld [vmem:[#allocation3 + $0xd8] sm:$0xff]
        %v2291 = vld [vmem:[#allocation3 + $0xe0] sm:$0xff]
        %v2292 = vld [vmem:[#allocation3 + $0xe8] sm:$0xff]
        %v2293 = vld [vmem:[#allocation3 + $0xf0] sm:$0xff]
        %v2294 = vld [vmem:[#allocation3 + $0xf8] sm:$0xff]
        %v2295 = vld [vmem:[#allocation3 + $0x100] sm:$0xff]
        %v2296 = vld [vmem:[#allocation3 + $0x108] sm:$0xff]
        %v2297 = vld [vmem:[#allocation3 + $0x110] sm:$0xff]
        %v2298 = vld [vmem:[#allocation3 + $0x118] sm:$0xff]
        %v2299 = vld [vmem:[#allocation3 + $0x120] sm:$0xff]
        %v2300 = vld [vmem:[#allocation3 + $0x128] sm:$0xff]
        %v2301 = vld [vmem:[#allocation3 + $0x130] sm:$0xff]
        %v2302 = vld [vmem:[#allocation3 + $0x138] sm:$0xff]
        %v2303 = vld [vmem:[#allocation3 + $0x140] sm:$0xff]
        %v2304 = vld [vmem:[#allocation3 + $0x148] sm:$0xff]
        %v2305 = vld [vmem:[#allocation3 + $0x150] sm:$0xff]
        %v2306 = vld [vmem:[#allocation3 + $0x158] sm:$0xff]
        %v2307 = vld [vmem:[#allocation3 + $0x160] sm:$0xff]
        %v2308 = vld [vmem:[#allocation3 + $0x168] sm:$0xff]
        %v2309 = vld [vmem:[#allocation3 + $0x170] sm:$0xff]
        %v2310 = vld [vmem:[#allocation3 + $0x178] sm:$0xff]
        %v2311 = vld [vmem:[#allocation3 + $0x180] sm:$0xff]
        %v2312 = vld [vmem:[#allocation3 + $0x188] sm:$0xff]
        %v2313 = vld [vmem:[#allocation3 + $0x190] sm:$0xff]
        %v2314 = vld [vmem:[#allocation3 + $0x198] sm:$0xff]
        %v2315 = vld [vmem:[#allocation3 + $0x1a0] sm:$0xf]
        %v2316 = vld [vmem:[#allocation3 + $0x1a8] sm:$0xf]
        %v2317 = vld [vmem:[#allocation3 + $0x1b0] sm:$0xf]
        %v2318 = vld [vmem:[#allocation3 + $0x1b8] sm:$0xf]
        %v2319 = vld [vmem:[%s4] sm:$0xf]
        %2321 = vset.pattern.permute.xlu0 0
        %2322 = vperm.xlu0 %2321, %v2319
        %v2323 = vpop.permute.xlu0 %2322
        %vm2325 = vcmask 883712
        %v2327 = vsel %vm2325, %v2262, 0
        %v2330 = vsel %vm511, %v2315, 0
        %v2333 = vsel %vm511, %v2316, 0
        %v2336 = vsel %vm511, %v2317, 0
        %v2339 = vsel %vm511, %v2318, 0
        %2341 = vmatprep.subr.mxu0 0.0
        %2342 = vmatpush1.msra.mxu0 0.0
        %2343 = vmatprep.subr.mxu0 0.0
        %2344 = vmatpush1.msra.mxu0 0.0
        %2345 = vmatprep.subr.mxu0 %v2333
        %2346 = vmatpush1.msra.mxu0 %v2330
        %2347 = vmatprep.subr.mxu0 %v2312
        %2348 = vmatpush1.msra.mxu0 %v2311
        %2349 = vmatprep.subr.mxu0 %v2308
        %2350 = vmatpush1.msra.mxu0 %v2307
        %2351 = vmatprep.subr.mxu0 %v2304
        %2352 = vmatpush1.msra.mxu0 %v2303
        %2353 = vmatprep.subr.mxu0 %v2300
        %2354 = vmatpush1.msra.mxu0 %v2299
        %2355 = vmatprep.subr.mxu0 %v2296
        %2356 = vmatpush1.msra.mxu0 %v2295
        %2357 = vmatprep.subr.mxu0 %v2292
        %2358 = vmatpush1.msra.mxu0 %v2291
        %2359 = vmatprep.subr.mxu0 %v2288
        %2360 = vmatpush1.msra.mxu0 %v2287
        %2361 = vmatprep.subr.mxu0 %v2284
        %2362 = vmatpush1.msra.mxu0 %v2283
        %2363 = vmatprep.subr.mxu0 %v2280
        %2364 = vmatpush1.msra.mxu0 %v2279
        %2365 = vmatprep.subr.mxu0 %v2276
        %2366 = vmatpush1.msra.mxu0 %v2275
        %2367 = vmatprep.subr.mxu0 %v2272
        %2368 = vmatpush1.msra.mxu0 %v2271
        %2369 = vmatprep.subr.mxu0 %v2268
        %2370 = vmatpush1.msra.mxu0 %v2267
        %2371 = vmatprep.subr.mxu0 %v2264
        %2372 = vmatpush1.msra.mxu0 %v2263
        %2373 = vmatprep.subr.mxu0 0.0
        %2374 = vmatpush2.msra.mxu0 0.0
        %2375 = vmatprep.subr.mxu0 0.0
        %2376 = vmatpush2.msra.mxu0 0.0
        %2377 = vmatprep.subr.mxu0 0.0
        %2378 = vmatpush2.msra.mxu0 0.0
        %2379 = vmatprep.subr.mxu0 0.0
        %2380 = vmatpush2.msra.mxu0 0.0
        %2381 = vmatprep.subr.mxu0 0.0
        %2382 = vmatpush2.msra.mxu0 0.0
        %2383 = vmatprep.subr.mxu0 0.0
        %2384 = vmatpush2.msra.mxu0 0.0
        %2385 = vmatprep.subr.mxu0 0.0
        %2386 = vmatpush2.msra.mxu0 0.0
        %2387 = vmatprep.subr.mxu0 0.0
        %2388 = vmatpush2.msra.mxu0 0.0
        %2389 = vmatprep.subr.mxu0 0.0
        %2390 = vmatpush2.msra.mxu0 0.0
        %2391 = vmatprep.subr.mxu0 0.0
        %2392 = vmatpush2.msra.mxu0 0.0
        %2393 = vmatprep.subr.mxu0 0.0
        %2394 = vmatpush2.msra.mxu0 0.0
        %2395 = vmatprep.subr.mxu0 0.0
        %2396 = vmatpush2.msra.mxu0 0.0
        %2397 = vmatprep.subr.mxu0 0.0
        %2398 = vmatpush2.msra.mxu0 0.0
        %2399 = vmatprep.subr.mxu0 0.0
        %2400 = vmatpush2.msra.mxu0 0.0
        %2401 = vmatprep.subr.mxu0 0.0
        %2402 = vmatpush2.msra.mxu0 0.0
        %2403 = vmatprep.subr.mxu0 0.0
        %2404 = vmatpush2.msra.mxu0 0.0
        %2405 = vmatprep.mubr.f32.mxu0 0.0
        %2406 = vmatmul.mubr.f32.gmra.mxu0 %v2327
        %v2407 = vpop.f32.mrf.mxu0
        %v2408 = vadd.f32 %v2323, %v2407
        %v2409 = vpop.f32.mrf.mxu0
        %v2410 = vadd.f32 %v2323, %v2409
        %2411 = vdwg.mxu0
        %2412 = vmatprep.subr.mxu0 0.0
        %2413 = vmatpush1.msra.mxu0 0.0
        %2414 = vmatprep.subr.mxu0 0.0
        %2415 = vmatpush1.msra.mxu0 0.0
        %2416 = vmatprep.subr.mxu0 %v2339
        %2417 = vmatpush1.msra.mxu0 %v2336
        %2418 = vmatprep.subr.mxu0 %v2314
        %2419 = vmatpush1.msra.mxu0 %v2313
        %2420 = vmatprep.subr.mxu0 %v2310
        %2421 = vmatpush1.msra.mxu0 %v2309
        %2422 = vmatprep.subr.mxu0 %v2306
        %2423 = vmatpush1.msra.mxu0 %v2305
        %2424 = vmatprep.subr.mxu0 %v2302
        %2425 = vmatpush1.msra.mxu0 %v2301
        %2426 = vmatprep.subr.mxu0 %v2298
        %2427 = vmatpush1.msra.mxu0 %v2297
        %2428 = vmatprep.subr.mxu0 %v2294
        %2429 = vmatpush1.msra.mxu0 %v2293
        %2430 = vmatprep.subr.mxu0 %v2290
        %2431 = vmatpush1.msra.mxu0 %v2289
        %2432 = vmatprep.subr.mxu0 %v2286
        %2433 = vmatpush1.msra.mxu0 %v2285
        %2434 = vmatprep.subr.mxu0 %v2282
        %2435 = vmatpush1.msra.mxu0 %v2281
        %2436 = vmatprep.subr.mxu0 %v2278
        %2437 = vmatpush1.msra.mxu0 %v2277
        %2438 = vmatprep.subr.mxu0 %v2274
        %2439 = vmatpush1.msra.mxu0 %v2273
        %2440 = vmatprep.subr.mxu0 %v2270
        %2441 = vmatpush1.msra.mxu0 %v2269
        %2442 = vmatprep.subr.mxu0 %v2266
        %2443 = vmatpush1.msra.mxu0 %v2265
        %2444 = vmatprep.subr.mxu0 0.0
        %2445 = vmatpush2.msra.mxu0 0.0
        %2446 = vmatprep.subr.mxu0 0.0
        %2447 = vmatpush2.msra.mxu0 0.0
        %2448 = vmatprep.subr.mxu0 0.0
        %2449 = vmatpush2.msra.mxu0 0.0
        %2450 = vmatprep.subr.mxu0 0.0
        %2451 = vmatpush2.msra.mxu0 0.0
        %2452 = vmatprep.subr.mxu0 0.0
        %2453 = vmatpush2.msra.mxu0 0.0
        %2454 = vmatprep.subr.mxu0 0.0
        %2455 = vmatpush2.msra.mxu0 0.0
        %2456 = vmatprep.subr.mxu0 0.0
        %2457 = vmatpush2.msra.mxu0 0.0
        %2458 = vmatprep.subr.mxu0 0.0
        %2459 = vmatpush2.msra.mxu0 0.0
        %2460 = vmatprep.subr.mxu0 0.0
        %2461 = vmatpush2.msra.mxu0 0.0
        %2462 = vmatprep.subr.mxu0 0.0
        %2463 = vmatpush2.msra.mxu0 0.0
        %2464 = vmatprep.subr.mxu0 0.0
        %2465 = vmatpush2.msra.mxu0 0.0
        %2466 = vmatprep.subr.mxu0 0.0
        %2467 = vmatpush2.msra.mxu0 0.0
        %2468 = vmatprep.subr.mxu0 0.0
        %2469 = vmatpush2.msra.mxu0 0.0
        %2470 = vmatprep.subr.mxu0 0.0
        %2471 = vmatpush2.msra.mxu0 0.0
        %2472 = vmatprep.subr.mxu0 0.0
        %2473 = vmatpush2.msra.mxu0 0.0
        %2474 = vmatprep.subr.mxu0 0.0
        %2475 = vmatpush2.msra.mxu0 0.0
        %2476 = vmatprep.mubr.f32.mxu0 0.0
        %2477 = vmatmul.mubr.f32.gmra.mxu0 %v2327
        %v2478 = vpop.f32.mrf.mxu0
        %v2479 = vadd.f32 %v2323, %v2478
        %v2480 = vpop.f32.mrf.mxu0
        %v2481 = vadd.f32 %v2323, %v2480
        %2482 = vdwg.mxu0
        %v2483 = vmax.f32 %v2408, 0.0
        %v2484 = vmax.f32 %v2410, 0.0
        %v2485 = vmax.f32 %v2479, 0.0
        %v2486 = vmax.f32 %v2481, 0.0
        %v2491 = vcombine.low %v2483, %v2484
        %v2492 = vcombine.low %v2485, %v2486
        %2495 = vst [vmem:[#allocation2 + $0x4] sm:$0xff] %v2491
        %2496 = vst [vmem:[#allocation2 + $0xc] sm:$0xff] %v2492
        %v2497 = vld [vmem:[#allocation2] sm:$0xff]
        %v2498 = vld [vmem:[#allocation2 + $0x8] sm:$0xff]
        %v2499 = vld [vmem:[#allocation2 + $0x10] sm:$0xf]
        %v2500 = vld [vmem:[#allocation9] ss:$8 sm:$0xf]
        %v2502 = vlaneseq
        %v2503 = vshrl.u32 %v2502, 7
        %v2504 = vsub.s32 0, %v2503
        %v2505 = vrot.slane %v2500, %v2504
        %v2506 = vlaneseq
        %v2507 = vshrl.u32 %v2506, 7
        %v2508 = vsub.s32 1, %v2507
        %v2509 = vrot.slane %v2500, %v2508
        %v2510 = vlaneseq
        %v2511 = vshrl.u32 %v2510, 7
        %v2512 = vsub.s32 2, %v2511
        %v2513 = vrot.slane %v2500, %v2512
        %v2514 = vlaneseq
        %v2515 = vshrl.u32 %v2514, 7
        %v2516 = vsub.s32 3, %v2515
        %v2517 = vrot.slane %v2500, %v2516
        %v2518 = vcombine.low %v2505, %v2509
        %v2519 = vcombine.low %v2513, %v2517
        %2520 = vrot.lane.b32.xlu0 %v2518, 55
        %v2521 = vpop.permute.xlu0 %2520
        %2522 = vrot.lane.b32.xlu0 %v2519, 55
        %v2523 = vpop.permute.xlu0 %2522
        %v2524 = vrot.slane %v2521, 4
        %v2525 = vrot.slane %v2523, 4
        %v2526 = vsel %vm509, %v2524, %v2521
        %v2527 = vsel %vm511, %v2524, %v2525
        %v2528 = vsel %vm509, %v2527, %v2523
        %v2532 = vmul.f32 %v2497, %v2526
        %v2533 = vmul.f32 %v2498, %v2528
        %v2534 = vmul.f32 %v2499, %v2525
        %v2538 = vcombine.high %v2532, %v2532
        %v2539 = vcombine.high %v2533, %v2533
        %2540 = vrot.lane.b32.xlu0 %v2532, 73
        %v2541 = vpop.permute.xlu0 %2540
        %2542 = vrot.lane.b32.xlu0 %v2538, 73
        %v2543 = vpop.permute.xlu0 %2542
        %2544 = vrot.lane.b32.xlu0 %v2533, 73
        %v2545 = vpop.permute.xlu0 %2544
        %2546 = vrot.lane.b32.xlu0 %v2539, 73
        %v2547 = vpop.permute.xlu0 %2546
        %2548 = vrot.lane.b32.xlu0 %v2534, 73
        %v2549 = vpop.permute.xlu0 %2548
        %v2550 = vsel %vm535, %v2541, %v2543
        %v2551 = vsel %vm535, %v2543, %v2545
        %v2552 = vsel %vm535, %v2545, %v2547
        %v2553 = vsel %vm535, %v2547, %v2549
        %2558 = vst [vmem:[#allocation3] sm:$0xf] %v2550
        %2559 = vst [vmem:[#allocation3 + $0x8] sm:$0xf] %v2551
        %2560 = vst [vmem:[#allocation3 + $0x10] sm:$0xf] %v2552
        %2561 = vst [vmem:[#allocation3 + $0x18] sm:$0xf] %v2553
        %v2562 = vld [vmem:[#allocation2] sm:$0xff]
        %v2563 = vld [vmem:[#allocation2 + $0x8] sm:$0xff]
        %v2564 = vld [vmem:[#allocation2 + $0x10] sm:$0xf]
        %v2565 = vld [vmem:[%s551] ss:$8 sm:$0xf]
        %v2567 = vlaneseq
        %v2568 = vshrl.u32 %v2567, 7
        %v2569 = vsub.s32 0, %v2568
        %v2570 = vrot.slane %v2565, %v2569
        %v2571 = vlaneseq
        %v2572 = vshrl.u32 %v2571, 7
        %v2573 = vsub.s32 1, %v2572
        %v2574 = vrot.slane %v2565, %v2573
        %v2575 = vlaneseq
        %v2576 = vshrl.u32 %v2575, 7
        %v2577 = vsub.s32 2, %v2576
        %v2578 = vrot.slane %v2565, %v2577
        %v2579 = vlaneseq
        %v2580 = vshrl.u32 %v2579, 7
        %v2581 = vsub.s32 3, %v2580
        %v2582 = vrot.slane %v2565, %v2581
        %v2583 = vcombine.low %v2570, %v2574
        %v2584 = vcombine.low %v2578, %v2582
        %2585 = vrot.lane.b32.xlu0 %v2583, 56
        %v2586 = vpop.permute.xlu0 %2585
        %2587 = vrot.lane.b32.xlu0 %v2584, 56
        %v2588 = vpop.permute.xlu0 %2587
        %v2589 = vrot.slane %v2586, 4
        %v2590 = vrot.slane %v2588, 4
        %v2591 = vsel %vm578, %v2589, %v2586
        %v2592 = vsel %vm511, %v2589, %v2590
        %v2593 = vsel %vm578, %v2592, %v2588
        %v2597 = vmul.f32 %v2562, %v2591
        %v2598 = vmul.f32 %v2563, %v2593
        %v2599 = vmul.f32 %v2564, %v2590
        %v2603 = vcombine.low %v2597, %v2597
        %v2604 = vcombine.low %v2598, %v2598
        %v2605 = vcombine.low %v2599, %v2599
        %2606 = vrot.lane.b32.xlu0 %v2603, 72
        %v2607 = vpop.permute.xlu0 %2606
        %2608 = vrot.lane.b32.xlu0 %v2597, 72
        %v2609 = vpop.permute.xlu0 %2608
        %2610 = vrot.lane.b32.xlu0 %v2604, 72
        %v2611 = vpop.permute.xlu0 %2610
        %2612 = vrot.lane.b32.xlu0 %v2598, 72
        %v2613 = vpop.permute.xlu0 %2612
        %2614 = vrot.lane.b32.xlu0 %v2605, 72
        %v2615 = vpop.permute.xlu0 %2614
        %v2616 = vsel %vm604, %v2607, %v2609
        %v2617 = vsel %vm604, %v2609, %v2611
        %v2618 = vsel %vm604, %v2611, %v2613
        %v2619 = vsel %vm604, %v2613, %v2615
        %2624 = vst [vmem:[#allocation3] sm:$0xf0] %v2616
        %2625 = vst [vmem:[#allocation3 + $0x8] sm:$0xf0] %v2617
        %2626 = vst [vmem:[#allocation3 + $0x10] sm:$0xf0] %v2618
        %2627 = vst [vmem:[#allocation3 + $0x18] sm:$0xf0] %v2619
        %v2628 = vld [vmem:[#allocation2] sm:$0xff]
        %v2629 = vld [vmem:[#allocation2 + $0x8] sm:$0xff]
        %v2630 = vld [vmem:[#allocation2 + $0x10] sm:$0xf]
        %v2631 = vld [vmem:[%s620] ss:$8 sm:$0xf]
        %v2633 = vlaneseq
        %v2634 = vshrl.u32 %v2633, 7
        %v2635 = vsub.s32 0, %v2634
        %v2636 = vrot.slane %v2631, %v2635
        %v2637 = vlaneseq
        %v2638 = vshrl.u32 %v2637, 7
        %v2639 = vsub.s32 1, %v2638
        %v2640 = vrot.slane %v2631, %v2639
        %v2641 = vlaneseq
        %v2642 = vshrl.u32 %v2641, 7
        %v2643 = vsub.s32 2, %v2642
        %v2644 = vrot.slane %v2631, %v2643
        %v2645 = vlaneseq
        %v2646 = vshrl.u32 %v2645, 7
        %v2647 = vsub.s32 3, %v2646
        %v2648 = vrot.slane %v2631, %v2647
        %v2649 = vcombine.low %v2636, %v2640
        %v2650 = vcombine.low %v2644, %v2648
        %2651 = vrot.lane.b32.xlu0 %v2649, 57
        %v2652 = vpop.permute.xlu0 %2651
        %2653 = vrot.lane.b32.xlu0 %v2650, 57
        %v2654 = vpop.permute.xlu0 %2653
        %v2655 = vrot.slane %v2652, 4
        %v2656 = vrot.slane %v2654, 4
        %v2657 = vsel %vm647, %v2655, %v2652
        %v2658 = vsel %vm511, %v2655, %v2656
        %v2659 = vsel %vm647, %v2658, %v2654
        %v2663 = vmul.f32 %v2628, %v2657
        %v2664 = vmul.f32 %v2629, %v2659
        %v2665 = vmul.f32 %v2630, %v2656
        %v2669 = vcombine.high %v2663, %v2663
        %v2670 = vcombine.high %v2664, %v2664
        %2671 = vrot.lane.b32.xlu0 %v2663, 71
        %v2672 = vpop.permute.xlu0 %2671
        %2673 = vrot.lane.b32.xlu0 %v2669, 71
        %v2674 = vpop.permute.xlu0 %2673
        %2675 = vrot.lane.b32.xlu0 %v2664, 71
        %v2676 = vpop.permute.xlu0 %2675
        %2677 = vrot.lane.b32.xlu0 %v2670, 71
        %v2678 = vpop.permute.xlu0 %2677
        %2679 = vrot.lane.b32.xlu0 %v2665, 71
        %v2680 = vpop.permute.xlu0 %2679
        %v2681 = vsel %vm672, %v2672, %v2674
        %v2682 = vsel %vm672, %v2674, %v2676
        %v2683 = vsel %vm672, %v2676, %v2678
        %v2684 = vsel %vm672, %v2678, %v2680
        %2689 = vst [vmem:[#allocation3 + $0x20] sm:$0xf] %v2681
        %2690 = vst [vmem:[#allocation3 + $0x28] sm:$0xf] %v2682
        %2691 = vst [vmem:[#allocation3 + $0x30] sm:$0xf] %v2683
        %2692 = vst [vmem:[#allocation3 + $0x38] sm:$0xf] %v2684
        %v2693 = vld [vmem:[#allocation2] sm:$0xff]
        %v2694 = vld [vmem:[#allocation2 + $0x8] sm:$0xff]
        %v2695 = vld [vmem:[#allocation2 + $0x10] sm:$0xf]
        %v2696 = vld [vmem:[%s688] ss:$8 sm:$0xf]
        %v2698 = vlaneseq
        %v2699 = vshrl.u32 %v2698, 7
        %v2700 = vsub.s32 0, %v2699
        %v2701 = vrot.slane %v2696, %v2700
        %v2702 = vlaneseq
        %v2703 = vshrl.u32 %v2702, 7
        %v2704 = vsub.s32 1, %v2703
        %v2705 = vrot.slane %v2696, %v2704
        %v2706 = vlaneseq
        %v2707 = vshrl.u32 %v2706, 7
        %v2708 = vsub.s32 2, %v2707
        %v2709 = vrot.slane %v2696, %v2708
        %v2710 = vlaneseq
        %v2711 = vshrl.u32 %v2710, 7
        %v2712 = vsub.s32 3, %v2711
        %v2713 = vrot.slane %v2696, %v2712
        %v2714 = vcombine.low %v2701, %v2705
        %v2715 = vcombine.low %v2709, %v2713
        %2716 = vrot.lane.b32.xlu0 %v2714, 63
        %v2717 = vpop.permute.xlu0 %2716
        %2718 = vrot.lane.b32.xlu0 %v2715, 63
        %v2719 = vpop.permute.xlu0 %2718
        %v2720 = vrot.slane %v2717, 4
        %v2721 = vrot.slane %v2719, 4
        %v2722 = vsel %vm715, %v2720, %v2717
        %v2723 = vsel %vm511, %v2720, %v2721
        %v2724 = vsel %vm715, %v2723, %v2719
        %v2728 = vmul.f32 %v2693, %v2722
        %v2729 = vmul.f32 %v2694, %v2724
        %v2730 = vmul.f32 %v2695, %v2721
        %v2734 = vcombine.low %v2728, %v2728
        %v2735 = vcombine.low %v2729, %v2729
        %v2736 = vcombine.low %v2730, %v2730
        %2737 = vrot.lane.b32.xlu0 %v2734, 65
        %v2738 = vpop.permute.xlu0 %2737
        %2739 = vrot.lane.b32.xlu0 %v2728, 65
        %v2740 = vpop.permute.xlu0 %2739
        %2741 = vrot.lane.b32.xlu0 %v2735, 65
        %v2742 = vpop.permute.xlu0 %2741
        %2743 = vrot.lane.b32.xlu0 %v2729, 65
        %v2744 = vpop.permute.xlu0 %2743
        %2745 = vrot.lane.b32.xlu0 %v2736, 65
        %v2746 = vpop.permute.xlu0 %2745
        %v2747 = vsel %vm741, %v2738, %v2740
        %v2748 = vsel %vm741, %v2740, %v2742
        %v2749 = vsel %vm741, %v2742, %v2744
        %v2750 = vsel %vm741, %v2744, %v2746
        %2755 = vst [vmem:[#allocation3 + $0x20] sm:$0xf0] %v2747
        %2756 = vst [vmem:[#allocation3 + $0x28] sm:$0xf0] %v2748
        %2757 = vst [vmem:[#allocation3 + $0x30] sm:$0xf0] %v2749
        %2758 = vst [vmem:[#allocation3 + $0x38] sm:$0xf0] %v2750
        %v2759 = vld [vmem:[#allocation2] sm:$0xff]
        %v2760 = vld [vmem:[#allocation2 + $0x8] sm:$0xff]
        %v2761 = vld [vmem:[#allocation2 + $0x10] sm:$0xf]
        %v2762 = vld [vmem:[%s757] ss:$8 sm:$0xf]
        %v2764 = vlaneseq
        %v2765 = vshrl.u32 %v2764, 7
        %v2766 = vsub.s32 0, %v2765
        %v2767 = vrot.slane %v2762, %v2766
        %v2768 = vlaneseq
        %v2769 = vshrl.u32 %v2768, 7
        %v2770 = vsub.s32 1, %v2769
        %v2771 = vrot.slane %v2762, %v2770
        %v2772 = vlaneseq
        %v2773 = vshrl.u32 %v2772, 7
        %v2774 = vsub.s32 2, %v2773
        %v2775 = vrot.slane %v2762, %v2774
        %v2776 = vlaneseq
        %v2777 = vshrl.u32 %v2776, 7
        %v2778 = vsub.s32 3, %v2777
        %v2779 = vrot.slane %v2762, %v2778
        %v2780 = vcombine.low %v2767, %v2771
        %v2781 = vcombine.low %v2775, %v2779
        %2782 = vrot.lane.b32.xlu0 %v2780, 64
        %v2783 = vpop.permute.xlu0 %2782
        %2784 = vrot.lane.b32.xlu0 %v2781, 64
        %v2785 = vpop.permute.xlu0 %2784
        %v2786 = vrot.slane %v2783, 4
        %v2787 = vrot.slane %v2785, 4
        %v2788 = vsel %vm784, %v2786, %v2783
        %v2789 = vsel %vm511, %v2786, %v2787
        %v2790 = vsel %vm784, %v2789, %v2785
        %v2794 = vmul.f32 %v2759, %v2788
        %v2795 = vmul.f32 %v2760, %v2790
        %v2796 = vmul.f32 %v2761, %v2787
        %v2800 = vcombine.high %v2794, %v2794
        %v2801 = vcombine.high %v2795, %v2795
        %2802 = vrot.lane.b32.xlu0 %v2794, 64
        %v2803 = vpop.permute.xlu0 %2802
        %2804 = vrot.lane.b32.xlu0 %v2800, 64
        %v2805 = vpop.permute.xlu0 %2804
        %2806 = vrot.lane.b32.xlu0 %v2795, 64
        %v2807 = vpop.permute.xlu0 %2806
        %2808 = vrot.lane.b32.xlu0 %v2801, 64
        %v2809 = vpop.permute.xlu0 %2808
        %2810 = vrot.lane.b32.xlu0 %v2796, 64
        %v2811 = vpop.permute.xlu0 %2810
        %v2812 = vsel %vm784, %v2803, %v2805
        %v2813 = vsel %vm784, %v2805, %v2807
        %v2814 = vsel %vm784, %v2807, %v2809
        %v2815 = vsel %vm784, %v2809, %v2811
        %2820 = vst [vmem:[#allocation3 + $0x40] sm:$0xf] %v2812
        %2821 = vst [vmem:[#allocation3 + $0x48] sm:$0xf] %v2813
        %2822 = vst [vmem:[#allocation3 + $0x50] sm:$0xf] %v2814
        %2823 = vst [vmem:[#allocation3 + $0x58] sm:$0xf] %v2815
        %v2824 = vld [vmem:[#allocation2] sm:$0xff]
        %v2825 = vld [vmem:[#allocation2 + $0x8] sm:$0xff]
        %v2826 = vld [vmem:[#allocation2 + $0x10] sm:$0xf]
        %v2827 = vld [vmem:[%s824] ss:$8 sm:$0xf]
        %v2829 = vlaneseq
        %v2830 = vshrl.u32 %v2829, 7
        %v2831 = vsub.s32 0, %v2830
        %v2832 = vrot.slane %v2827, %v2831
        %v2833 = vlaneseq
        %v2834 = vshrl.u32 %v2833, 7
        %v2835 = vsub.s32 1, %v2834
        %v2836 = vrot.slane %v2827, %v2835
        %v2837 = vlaneseq
        %v2838 = vshrl.u32 %v2837, 7
        %v2839 = vsub.s32 2, %v2838
        %v2840 = vrot.slane %v2827, %v2839
        %v2841 = vlaneseq
        %v2842 = vshrl.u32 %v2841, 7
        %v2843 = vsub.s32 3, %v2842
        %v2844 = vrot.slane %v2827, %v2843
        %v2845 = vcombine.low %v2832, %v2836
        %v2846 = vcombine.low %v2840, %v2844
        %2847 = vrot.lane.b32.xlu0 %v2845, 65
        %v2848 = vpop.permute.xlu0 %2847
        %2849 = vrot.lane.b32.xlu0 %v2846, 65
        %v2850 = vpop.permute.xlu0 %2849
        %v2851 = vrot.slane %v2848, 4
        %v2852 = vrot.slane %v2850, 4
        %v2853 = vsel %vm741, %v2851, %v2848
        %v2854 = vsel %vm511, %v2851, %v2852
        %v2855 = vsel %vm741, %v2854, %v2850
        %v2859 = vmul.f32 %v2824, %v2853
        %v2860 = vmul.f32 %v2825, %v2855
        %v2861 = vmul.f32 %v2826, %v2852
        %v2865 = vcombine.low %v2859, %v2859
        %v2866 = vcombine.low %v2860, %v2860
        %v2867 = vcombine.low %v2861, %v2861
        %2868 = vrot.lane.b32.xlu0 %v2865, 63
        %v2869 = vpop.permute.xlu0 %2868
        %2870 = vrot.lane.b32.xlu0 %v2859, 63
        %v2871 = vpop.permute.xlu0 %2870
        %2872 = vrot.lane.b32.xlu0 %v2866, 63
        %v2873 = vpop.permute.xlu0 %2872
        %2874 = vrot.lane.b32.xlu0 %v2860, 63
        %v2875 = vpop.permute.xlu0 %2874
        %2876 = vrot.lane.b32.xlu0 %v2867, 63
        %v2877 = vpop.permute.xlu0 %2876
        %v2878 = vsel %vm715, %v2869, %v2871
        %v2879 = vsel %vm715, %v2871, %v2873
        %v2880 = vsel %vm715, %v2873, %v2875
        %v2881 = vsel %vm715, %v2875, %v2877
        %2886 = vst [vmem:[#allocation3 + $0x40] sm:$0xf0] %v2878
        %2887 = vst [vmem:[#allocation3 + $0x48] sm:$0xf0] %v2879
        %2888 = vst [vmem:[#allocation3 + $0x50] sm:$0xf0] %v2880
        %2889 = vst [vmem:[#allocation3 + $0x58] sm:$0xf0] %v2881
        %v2890 = vld [vmem:[#allocation2] sm:$0xff]
        %v2891 = vld [vmem:[#allocation2 + $0x8] sm:$0xff]
        %v2892 = vld [vmem:[#allocation2 + $0x10] sm:$0xf]
        %v2893 = vld [vmem:[%s891] ss:$8 sm:$0xf]
        %v2895 = vlaneseq
        %v2896 = vshrl.u32 %v2895, 7
        %v2897 = vsub.s32 0, %v2896
        %v2898 = vrot.slane %v2893, %v2897
        %v2899 = vlaneseq
        %v2900 = vshrl.u32 %v2899, 7
        %v2901 = vsub.s32 1, %v2900
        %v2902 = vrot.slane %v2893, %v2901
        %v2903 = vlaneseq
        %v2904 = vshrl.u32 %v2903, 7
        %v2905 = vsub.s32 2, %v2904
        %v2906 = vrot.slane %v2893, %v2905
        %v2907 = vlaneseq
        %v2908 = vshrl.u32 %v2907, 7
        %v2909 = vsub.s32 3, %v2908
        %v2910 = vrot.slane %v2893, %v2909
        %v2911 = vcombine.low %v2898, %v2902
        %v2912 = vcombine.low %v2906, %v2910
        %2913 = vrot.lane.b32.xlu0 %v2911, 71
        %v2914 = vpop.permute.xlu0 %2913
        %2915 = vrot.lane.b32.xlu0 %v2912, 71
        %v2916 = vpop.permute.xlu0 %2915
        %v2917 = vrot.slane %v2914, 4
        %v2918 = vrot.slane %v2916, 4
        %v2919 = vsel %vm672, %v2917, %v2914
        %v2920 = vsel %vm511, %v2917, %v2918
        %v2921 = vsel %vm672, %v2920, %v2916
        %v2925 = vmul.f32 %v2890, %v2919
        %v2926 = vmul.f32 %v2891, %v2921
        %v2927 = vmul.f32 %v2892, %v2918
        %v2931 = vcombine.high %v2925, %v2925
        %v2932 = vcombine.high %v2926, %v2926
        %2933 = vrot.lane.b32.xlu0 %v2925, 57
        %v2934 = vpop.permute.xlu0 %2933
        %2935 = vrot.lane.b32.xlu0 %v2931, 57
        %v2936 = vpop.permute.xlu0 %2935
        %2937 = vrot.lane.b32.xlu0 %v2926, 57
        %v2938 = vpop.permute.xlu0 %2937
        %2939 = vrot.lane.b32.xlu0 %v2932, 57
        %v2940 = vpop.permute.xlu0 %2939
        %2941 = vrot.lane.b32.xlu0 %v2927, 57
        %v2942 = vpop.permute.xlu0 %2941
        %v2943 = vsel %vm647, %v2934, %v2936
        %v2944 = vsel %vm647, %v2936, %v2938
        %v2945 = vsel %vm647, %v2938, %v2940
        %v2946 = vsel %vm647, %v2940, %v2942
        %2951 = vst [vmem:[#allocation3 + $0x60] sm:$0xf] %v2943
        %2952 = vst [vmem:[#allocation3 + $0x68] sm:$0xf] %v2944
        %2953 = vst [vmem:[#allocation3 + $0x70] sm:$0xf] %v2945
        %2954 = vst [vmem:[#allocation3 + $0x78] sm:$0xf] %v2946
        %v2955 = vld [vmem:[#allocation2] sm:$0xff]
        %v2956 = vld [vmem:[#allocation2 + $0x8] sm:$0xff]
        %v2957 = vld [vmem:[#allocation2 + $0x10] sm:$0xf]
        %v2958 = vld [vmem:[%s957] ss:$8 sm:$0xf]
        %v2960 = vlaneseq
        %v2961 = vshrl.u32 %v2960, 7
        %v2962 = vsub.s32 0, %v2961
        %v2963 = vrot.slane %v2958, %v2962
        %v2964 = vlaneseq
        %v2965 = vshrl.u32 %v2964, 7
        %v2966 = vsub.s32 1, %v2965
        %v2967 = vrot.slane %v2958, %v2966
        %v2968 = vlaneseq
        %v2969 = vshrl.u32 %v2968, 7
        %v2970 = vsub.s32 2, %v2969
        %v2971 = vrot.slane %v2958, %v2970
        %v2972 = vlaneseq
        %v2973 = vshrl.u32 %v2972, 7
        %v2974 = vsub.s32 3, %v2973
        %v2975 = vrot.slane %v2958, %v2974
        %v2976 = vcombine.low %v2963, %v2967
        %v2977 = vcombine.low %v2971, %v2975
        %2978 = vrot.lane.b32.xlu0 %v2976, 72
        %v2979 = vpop.permute.xlu0 %2978
        %2980 = vrot.lane.b32.xlu0 %v2977, 72
        %v2981 = vpop.permute.xlu0 %2980
        %v2982 = vrot.slane %v2979, 4
        %v2983 = vrot.slane %v2981, 4
        %v2984 = vsel %vm604, %v2982, %v2979
        %v2985 = vsel %vm511, %v2982, %v2983
        %v2986 = vsel %vm604, %v2985, %v2981
        %v2990 = vmul.f32 %v2955, %v2984
        %v2991 = vmul.f32 %v2956, %v2986
        %v2992 = vmul.f32 %v2957, %v2983
        %v2996 = vcombine.low %v2990, %v2990
        %v2997 = vcombine.low %v2991, %v2991
        %v2998 = vcombine.low %v2992, %v2992
        %2999 = vrot.lane.b32.xlu0 %v2996, 56
        %v3000 = vpop.permute.xlu0 %2999
        %3001 = vrot.lane.b32.xlu0 %v2990, 56
        %v3002 = vpop.permute.xlu0 %3001
        %3003 = vrot.lane.b32.xlu0 %v2997, 56
        %v3004 = vpop.permute.xlu0 %3003
        %3005 = vrot.lane.b32.xlu0 %v2991, 56
        %v3006 = vpop.permute.xlu0 %3005
        %3007 = vrot.lane.b32.xlu0 %v2998, 56
        %v3008 = vpop.permute.xlu0 %3007
        %v3009 = vsel %vm578, %v3000, %v3002
        %v3010 = vsel %vm578, %v3002, %v3004
        %v3011 = vsel %vm578, %v3004, %v3006
        %v3012 = vsel %vm578, %v3006, %v3008
        %3017 = vst [vmem:[#allocation3 + $0x60] sm:$0xf0] %v3009
        %3018 = vst [vmem:[#allocation3 + $0x68] sm:$0xf0] %v3010
        %3019 = vst [vmem:[#allocation3 + $0x70] sm:$0xf0] %v3011
        %3020 = vst [vmem:[#allocation3 + $0x78] sm:$0xf0] %v3012
        %v3021 = vld [vmem:[#allocation2] sm:$0xff]
        %v3022 = vld [vmem:[#allocation2 + $0x8] sm:$0xff]
        %v3023 = vld [vmem:[#allocation2 + $0x10] sm:$0xf]
        %v3024 = vld [vmem:[%s1024] ss:$8 sm:$0xf]
        %v3026 = vlaneseq
        %v3027 = vshrl.u32 %v3026, 7
        %v3028 = vsub.s32 0, %v3027
        %v3029 = vrot.slane %v3024, %v3028
        %v3030 = vlaneseq
        %v3031 = vshrl.u32 %v3030, 7
        %v3032 = vsub.s32 1, %v3031
        %v3033 = vrot.slane %v3024, %v3032
        %v3034 = vlaneseq
        %v3035 = vshrl.u32 %v3034, 7
        %v3036 = vsub.s32 2, %v3035
        %v3037 = vrot.slane %v3024, %v3036
        %v3038 = vlaneseq
        %v3039 = vshrl.u32 %v3038, 7
        %v3040 = vsub.s32 3, %v3039
        %v3041 = vrot.slane %v3024, %v3040
        %v3042 = vcombine.low %v3029, %v3033
        %v3043 = vcombine.low %v3037, %v3041
        %3044 = vrot.lane.b32.xlu0 %v3042, 73
        %v3045 = vpop.permute.xlu0 %3044
        %3046 = vrot.lane.b32.xlu0 %v3043, 73
        %v3047 = vpop.permute.xlu0 %3046
        %v3048 = vrot.slane %v3045, 4
        %v3049 = vrot.slane %v3047, 4
        %v3050 = vsel %vm535, %v3048, %v3045
        %v3051 = vsel %vm511, %v3048, %v3049
        %v3052 = vsel %vm535, %v3051, %v3047
        %v3056 = vmul.f32 %v3021, %v3050
        %v3057 = vmul.f32 %v3022, %v3052
        %v3058 = vmul.f32 %v3023, %v3049
        %v3062 = vcombine.high %v3056, %v3056
        %v3063 = vcombine.high %v3057, %v3057
        %3064 = vrot.lane.b32.xlu0 %v3056, 55
        %v3065 = vpop.permute.xlu0 %3064
        %3066 = vrot.lane.b32.xlu0 %v3062, 55
        %v3067 = vpop.permute.xlu0 %3066
        %3068 = vrot.lane.b32.xlu0 %v3057, 55
        %v3069 = vpop.permute.xlu0 %3068
        %3070 = vrot.lane.b32.xlu0 %v3063, 55
        %v3071 = vpop.permute.xlu0 %3070
        %3072 = vrot.lane.b32.xlu0 %v3058, 55
        %v3073 = vpop.permute.xlu0 %3072
        %v3074 = vsel %vm509, %v3065, %v3067
        %v3075 = vsel %vm509, %v3067, %v3069
        %v3076 = vsel %vm509, %v3069, %v3071
        %v3077 = vsel %vm509, %v3071, %v3073
        %3082 = vst [vmem:[#allocation3 + $0x80] sm:$0xf] %v3074
        %3083 = vst [vmem:[#allocation3 + $0x88] sm:$0xf] %v3075
        %3084 = vst [vmem:[#allocation3 + $0x90] sm:$0xf] %v3076
        %3085 = vst [vmem:[#allocation3 + $0x98] sm:$0xf] %v3077
        %v3086 = vld [vmem:[#allocation2] sm:$0xff]
        %v3087 = vld [vmem:[#allocation2 + $0x8] sm:$0xff]
        %v3088 = vld [vmem:[#allocation2 + $0x10] sm:$0xf]
        %v3089 = vld [vmem:[%s1090] ss:$8 sm:$0xf]
        %v3091 = vlaneseq
        %v3092 = vshrl.u32 %v3091, 7
        %v3093 = vsub.s32 0, %v3092
        %v3094 = vrot.slane %v3089, %v3093
        %v3095 = vlaneseq
        %v3096 = vshrl.u32 %v3095, 7
        %v3097 = vsub.s32 1, %v3096
        %v3098 = vrot.slane %v3089, %v3097
        %v3099 = vlaneseq
        %v3100 = vshrl.u32 %v3099, 7
        %v3101 = vsub.s32 2, %v3100
        %v3102 = vrot.slane %v3089, %v3101
        %v3103 = vlaneseq
        %v3104 = vshrl.u32 %v3103, 7
        %v3105 = vsub.s32 3, %v3104
        %v3106 = vrot.slane %v3089, %v3105
        %v3107 = vcombine.low %v3094, %v3098
        %v3108 = vcombine.low %v3102, %v3106
        %3109 = vrot.lane.b32.xlu0 %v3107, 119
        %v3110 = vpop.permute.xlu0 %3109
        %3111 = vrot.lane.b32.xlu0 %v3108, 119
        %v3112 = vpop.permute.xlu0 %3111
        %v3113 = vrot.slane %v3110, 4
        %v3114 = vrot.slane %v3112, 4
        %v3115 = vsel %vm1117, %v3113, %v3110
        %v3116 = vsel %vm511, %v3113, %v3114
        %v3117 = vsel %vm1117, %v3116, %v3112
        %v3121 = vmul.f32 %v3086, %v3115
        %v3122 = vmul.f32 %v3087, %v3117
        %v3123 = vmul.f32 %v3088, %v3114
        %v3127 = vcombine.low %v3121, %v3121
        %v3128 = vcombine.low %v3122, %v3122
        %v3129 = vcombine.low %v3123, %v3123
        %3130 = vrot.lane.b32.xlu0 %v3127, 9
        %v3131 = vpop.permute.xlu0 %3130
        %3132 = vrot.lane.b32.xlu0 %v3121, 9
        %v3133 = vpop.permute.xlu0 %3132
        %3134 = vrot.lane.b32.xlu0 %v3128, 9
        %v3135 = vpop.permute.xlu0 %3134
        %3136 = vrot.lane.b32.xlu0 %v3122, 9
        %v3137 = vpop.permute.xlu0 %3136
        %3138 = vrot.lane.b32.xlu0 %v3129, 9
        %v3139 = vpop.permute.xlu0 %3138
        %v3140 = vsel %vm1143, %v3131, %v3133
        %v3141 = vsel %vm1143, %v3133, %v3135
        %v3142 = vsel %vm1143, %v3135, %v3137
        %v3143 = vsel %vm1143, %v3137, %v3139
        %3148 = vst [vmem:[#allocation3 + $0x80] sm:$0xf0] %v3140
        %3149 = vst [vmem:[#allocation3 + $0x88] sm:$0xf0] %v3141
        %3150 = vst [vmem:[#allocation3 + $0x90] sm:$0xf0] %v3142
        %3151 = vst [vmem:[#allocation3 + $0x98] sm:$0xf0] %v3143
        %v3152 = vld [vmem:[#allocation2] sm:$0xff]
        %v3153 = vld [vmem:[#allocation2 + $0x8] sm:$0xff]
        %v3154 = vld [vmem:[#allocation2 + $0x10] sm:$0xf]
        %v3155 = vld [vmem:[%s1159] ss:$8 sm:$0xf]
        %v3157 = vlaneseq
        %v3158 = vshrl.u32 %v3157, 7
        %v3159 = vsub.s32 0, %v3158
        %v3160 = vrot.slane %v3155, %v3159
        %v3161 = vlaneseq
        %v3162 = vshrl.u32 %v3161, 7
        %v3163 = vsub.s32 1, %v3162
        %v3164 = vrot.slane %v3155, %v3163
        %v3165 = vlaneseq
        %v3166 = vshrl.u32 %v3165, 7
        %v3167 = vsub.s32 2, %v3166
        %v3168 = vrot.slane %v3155, %v3167
        %v3169 = vlaneseq
        %v3170 = vshrl.u32 %v3169, 7
        %v3171 = vsub.s32 3, %v3170
        %v3172 = vrot.slane %v3155, %v3171
        %v3173 = vcombine.low %v3160, %v3164
        %v3174 = vcombine.low %v3168, %v3172
        %3175 = vrot.lane.b32.xlu0 %v3173, 120
        %v3176 = vpop.permute.xlu0 %3175
        %3177 = vrot.lane.b32.xlu0 %v3174, 120
        %v3178 = vpop.permute.xlu0 %3177
        %v3179 = vrot.slane %v3176, 4
        %v3180 = vrot.slane %v3178, 4
        %v3181 = vsel %vm1186, %v3179, %v3176
        %v3182 = vsel %vm511, %v3179, %v3180
        %v3183 = vsel %vm1186, %v3182, %v3178
        %v3187 = vmul.f32 %v3152, %v3181
        %v3188 = vmul.f32 %v3153, %v3183
        %v3189 = vmul.f32 %v3154, %v3180
        %v3193 = vcombine.high %v3187, %v3187
        %v3194 = vcombine.high %v3188, %v3188
        %3195 = vrot.lane.b32.xlu0 %v3187, 8
        %v3196 = vpop.permute.xlu0 %3195
        %3197 = vrot.lane.b32.xlu0 %v3193, 8
        %v3198 = vpop.permute.xlu0 %3197
        %3199 = vrot.lane.b32.xlu0 %v3188, 8
        %v3200 = vpop.permute.xlu0 %3199
        %3201 = vrot.lane.b32.xlu0 %v3194, 8
        %v3202 = vpop.permute.xlu0 %3201
        %3203 = vrot.lane.b32.xlu0 %v3189, 8
        %v3204 = vpop.permute.xlu0 %3203
        %v3205 = vsel %vm1211, %v3196, %v3198
        %v3206 = vsel %vm1211, %v3198, %v3200
        %v3207 = vsel %vm1211, %v3200, %v3202
        %v3208 = vsel %vm1211, %v3202, %v3204
        %3213 = vst [vmem:[#allocation3 + $0xa0] sm:$0xf] %v3205
        %3214 = vst [vmem:[#allocation3 + $0xa8] sm:$0xf] %v3206
        %3215 = vst [vmem:[#allocation3 + $0xb0] sm:$0xf] %v3207
        %3216 = vst [vmem:[#allocation3 + $0xb8] sm:$0xf] %v3208
        %v3217 = vld [vmem:[#allocation2] sm:$0xff]
        %v3218 = vld [vmem:[#allocation2 + $0x8] sm:$0xff]
        %v3219 = vld [vmem:[#allocation2 + $0x10] sm:$0xf]
        %v3220 = vld [vmem:[%s1227] ss:$8 sm:$0xf]
        %v3222 = vlaneseq
        %v3223 = vshrl.u32 %v3222, 7
        %v3224 = vsub.s32 0, %v3223
        %v3225 = vrot.slane %v3220, %v3224
        %v3226 = vlaneseq
        %v3227 = vshrl.u32 %v3226, 7
        %v3228 = vsub.s32 1, %v3227
        %v3229 = vrot.slane %v3220, %v3228
        %v3230 = vlaneseq
        %v3231 = vshrl.u32 %v3230, 7
        %v3232 = vsub.s32 2, %v3231
        %v3233 = vrot.slane %v3220, %v3232
        %v3234 = vlaneseq
        %v3235 = vshrl.u32 %v3234, 7
        %v3236 = vsub.s32 3, %v3235
        %v3237 = vrot.slane %v3220, %v3236
        %v3238 = vcombine.low %v3225, %v3229
        %v3239 = vcombine.low %v3233, %v3237
        %3240 = vrot.lane.b32.xlu0 %v3238, 121
        %v3241 = vpop.permute.xlu0 %3240
        %3242 = vrot.lane.b32.xlu0 %v3239, 121
        %v3243 = vpop.permute.xlu0 %3242
        %v3244 = vrot.slane %v3241, 4
        %v3245 = vrot.slane %v3243, 4
        %v3246 = vsel %vm1254, %v3244, %v3241
        %v3247 = vsel %vm511, %v3244, %v3245
        %v3248 = vsel %vm1254, %v3247, %v3243
        %v3252 = vmul.f32 %v3217, %v3246
        %v3253 = vmul.f32 %v3218, %v3248
        %v3254 = vmul.f32 %v3219, %v3245
        %v3258 = vcombine.low %v3252, %v3252
        %v3259 = vcombine.low %v3253, %v3253
        %v3260 = vcombine.low %v3254, %v3254
        %3261 = vrot.lane.b32.xlu0 %v3258, 7
        %v3262 = vpop.permute.xlu0 %3261
        %3263 = vrot.lane.b32.xlu0 %v3252, 7
        %v3264 = vpop.permute.xlu0 %3263
        %3265 = vrot.lane.b32.xlu0 %v3259, 7
        %v3266 = vpop.permute.xlu0 %3265
        %3267 = vrot.lane.b32.xlu0 %v3253, 7
        %v3268 = vpop.permute.xlu0 %3267
        %3269 = vrot.lane.b32.xlu0 %v3260, 7
        %v3270 = vpop.permute.xlu0 %3269
        %v3271 = vsel %vm1280, %v3262, %v3264
        %v3272 = vsel %vm1280, %v3264, %v3266
        %v3273 = vsel %vm1280, %v3266, %v3268
        %v3274 = vsel %vm1280, %v3268, %v3270
        %3279 = vst [vmem:[#allocation3 + $0xa0] sm:$0xf0] %v3271
        %3280 = vst [vmem:[#allocation3 + $0xa8] sm:$0xf0] %v3272
        %3281 = vst [vmem:[#allocation3 + $0xb0] sm:$0xf0] %v3273
        %3282 = vst [vmem:[#allocation3 + $0xb8] sm:$0xf0] %v3274
        %v3283 = vld [vmem:[#allocation2] sm:$0xff]
        %v3284 = vld [vmem:[#allocation2 + $0x8] sm:$0xff]
        %v3285 = vld [vmem:[#allocation2 + $0x10] sm:$0xf]
        %v3286 = vld [vmem:[%s1296] ss:$8 sm:$0xf]
        %v3288 = vlaneseq
        %v3289 = vshrl.u32 %v3288, 7
        %v3290 = vsub.s32 0, %v3289
        %v3291 = vrot.slane %v3286, %v3290
        %v3292 = vlaneseq
        %v3293 = vshrl.u32 %v3292, 7
        %v3294 = vsub.s32 1, %v3293
        %v3295 = vrot.slane %v3286, %v3294
        %v3296 = vlaneseq
        %v3297 = vshrl.u32 %v3296, 7
        %v3298 = vsub.s32 2, %v3297
        %v3299 = vrot.slane %v3286, %v3298
        %v3300 = vlaneseq
        %v3301 = vshrl.u32 %v3300, 7
        %v3302 = vsub.s32 3, %v3301
        %v3303 = vrot.slane %v3286, %v3302
        %v3304 = vcombine.low %v3291, %v3295
        %v3305 = vcombine.low %v3299, %v3303
        %3306 = vrot.lane.b32.xlu0 %v3304, 127
        %v3307 = vpop.permute.xlu0 %3306
        %3308 = vrot.lane.b32.xlu0 %v3305, 127
        %v3309 = vpop.permute.xlu0 %3308
        %v3310 = vrot.slane %v3307, 4
        %v3311 = vrot.slane %v3309, 4
        %v3312 = vsel %vm1323, %v3310, %v3307
        %v3313 = vsel %vm511, %v3310, %v3311
        %v3314 = vsel %vm1323, %v3313, %v3309
        %v3318 = vmul.f32 %v3283, %v3312
        %v3319 = vmul.f32 %v3284, %v3314
        %v3320 = vmul.f32 %v3285, %v3311
        %v3324 = vcombine.high %v3318, %v3318
        %v3325 = vcombine.high %v3319, %v3319
        %3326 = vrot.lane.b32.xlu0 %v3318, 1
        %v3327 = vpop.permute.xlu0 %3326
        %3328 = vrot.lane.b32.xlu0 %v3324, 1
        %v3329 = vpop.permute.xlu0 %3328
        %3330 = vrot.lane.b32.xlu0 %v3319, 1
        %v3331 = vpop.permute.xlu0 %3330
        %3332 = vrot.lane.b32.xlu0 %v3325, 1
        %v3333 = vpop.permute.xlu0 %3332
        %3334 = vrot.lane.b32.xlu0 %v3320, 1
        %v3335 = vpop.permute.xlu0 %3334
        %v3336 = vsel %vm1348, %v3327, %v3329
        %v3337 = vsel %vm1348, %v3329, %v3331
        %v3338 = vsel %vm1348, %v3331, %v3333
        %v3339 = vsel %vm1348, %v3333, %v3335
        %3344 = vst [vmem:[#allocation3 + $0xc0] sm:$0xf] %v3336
        %3345 = vst [vmem:[#allocation3 + $0xc8] sm:$0xf] %v3337
        %3346 = vst [vmem:[#allocation3 + $0xd0] sm:$0xf] %v3338
        %3347 = vst [vmem:[#allocation3 + $0xd8] sm:$0xf] %v3339
        %v3348 = vld [vmem:[#allocation2 + $0x4] sm:$0xff]
        %v3349 = vld [vmem:[#allocation2 + $0xc] sm:$0xff]
        %v3350 = vld [vmem:[%s1363] ss:$8 sm:$0xf]
        %v3352 = vlaneseq
        %v3353 = vshrl.u32 %v3352, 7
        %v3354 = vsub.s32 0, %v3353
        %v3355 = vrot.slane %v3350, %v3354
        %v3356 = vlaneseq
        %v3357 = vshrl.u32 %v3356, 7
        %v3358 = vsub.s32 1, %v3357
        %v3359 = vrot.slane %v3350, %v3358
        %v3360 = vlaneseq
        %v3361 = vshrl.u32 %v3360, 7
        %v3362 = vsub.s32 2, %v3361
        %v3363 = vrot.slane %v3350, %v3362
        %v3364 = vlaneseq
        %v3365 = vshrl.u32 %v3364, 7
        %v3366 = vsub.s32 3, %v3365
        %v3367 = vrot.slane %v3350, %v3366
        %v3368 = vcombine.low %v3355, %v3359
        %v3369 = vcombine.low %v3363, %v3367
        %v3372 = vmul.f32 %v3348, %v3368
        %v3373 = vmul.f32 %v3349, %v3369
        %v3376 = vcombine.low %v3372, %v3372
        %v3377 = vcombine.low %v3373, %v3373
        %3380 = vst [vmem:[#allocation3 + $0xc0] sm:$0xf0] %v3376
        %3381 = vst [vmem:[#allocation3 + $0xc8] sm:$0xf0] %v3372
        %3382 = vst [vmem:[#allocation3 + $0xd0] sm:$0xf0] %v3377
        %3383 = vst [vmem:[#allocation3 + $0xd8] sm:$0xf0] %v3373
        %v3384 = vld [vmem:[#allocation2 + $0x4] sm:$0xff]
        %v3385 = vld [vmem:[#allocation2 + $0xc] sm:$0xff]
        %v3386 = vld [vmem:[#allocation2 + $0x14] sm:$0xf]
        %v3387 = vld [vmem:[%s1401] ss:$8 sm:$0xf]
        %v3389 = vlaneseq
        %v3390 = vshrl.u32 %v3389, 7
        %v3391 = vsub.s32 0, %v3390
        %v3392 = vrot.slane %v3387, %v3391
        %v3393 = vlaneseq
        %v3394 = vshrl.u32 %v3393, 7
        %v3395 = vsub.s32 1, %v3394
        %v3396 = vrot.slane %v3387, %v3395
        %v3397 = vlaneseq
        %v3398 = vshrl.u32 %v3397, 7
        %v3399 = vsub.s32 2, %v3398
        %v3400 = vrot.slane %v3387, %v3399
        %v3401 = vlaneseq
        %v3402 = vshrl.u32 %v3401, 7
        %v3403 = vsub.s32 3, %v3402
        %v3404 = vrot.slane %v3387, %v3403
        %v3405 = vcombine.low %v3392, %v3396
        %v3406 = vcombine.low %v3400, %v3404
        %3407 = vrot.lane.b32.xlu0 %v3405, 1
        %v3408 = vpop.permute.xlu0 %3407
        %3409 = vrot.lane.b32.xlu0 %v3406, 1
        %v3410 = vpop.permute.xlu0 %3409
        %v3411 = vrot.slane %v3408, 4
        %v3412 = vrot.slane %v3410, 4
        %v3413 = vsel %vm1348, %v3411, %v3408
        %v3414 = vsel %vm511, %v3411, %v3412
        %v3415 = vsel %vm1348, %v3414, %v3410
        %v3419 = vmul.f32 %v3384, %v3413
        %v3420 = vmul.f32 %v3385, %v3415
        %v3421 = vmul.f32 %v3386, %v3412
        %v3425 = vcombine.high %v3419, %v3419
        %v3426 = vcombine.high %v3420, %v3420
        %3427 = vrot.lane.b32.xlu0 %v3419, 127
        %v3428 = vpop.permute.xlu0 %3427
        %3429 = vrot.lane.b32.xlu0 %v3425, 127
        %v3430 = vpop.permute.xlu0 %3429
        %3431 = vrot.lane.b32.xlu0 %v3420, 127
        %v3432 = vpop.permute.xlu0 %3431
        %3433 = vrot.lane.b32.xlu0 %v3426, 127
        %v3434 = vpop.permute.xlu0 %3433
        %3435 = vrot.lane.b32.xlu0 %v3421, 127
        %v3436 = vpop.permute.xlu0 %3435
        %v3437 = vsel %vm1323, %v3428, %v3430
        %v3438 = vsel %vm1323, %v3430, %v3432
        %v3439 = vsel %vm1323, %v3432, %v3434
        %v3440 = vsel %vm1323, %v3434, %v3436
        %3445 = vst [vmem:[#allocation3 + $0xe0] sm:$0xf] %v3437
        %3446 = vst [vmem:[#allocation3 + $0xe8] sm:$0xf] %v3438
        %3447 = vst [vmem:[#allocation3 + $0xf0] sm:$0xf] %v3439
        %3448 = vst [vmem:[#allocation3 + $0xf8] sm:$0xf] %v3440
        %v3449 = vld [vmem:[#allocation2 + $0x4] sm:$0xff]
        %v3450 = vld [vmem:[#allocation2 + $0xc] sm:$0xff]
        %v3451 = vld [vmem:[#allocation2 + $0x14] sm:$0xf]
        %v3452 = vld [vmem:[%s1467] ss:$8 sm:$0xf]
        %v3454 = vlaneseq
        %v3455 = vshrl.u32 %v3454, 7
        %v3456 = vsub.s32 0, %v3455
        %v3457 = vrot.slane %v3452, %v3456
        %v3458 = vlaneseq
        %v3459 = vshrl.u32 %v3458, 7
        %v3460 = vsub.s32 1, %v3459
        %v3461 = vrot.slane %v3452, %v3460
        %v3462 = vlaneseq
        %v3463 = vshrl.u32 %v3462, 7
        %v3464 = vsub.s32 2, %v3463
        %v3465 = vrot.slane %v3452, %v3464
        %v3466 = vlaneseq
        %v3467 = vshrl.u32 %v3466, 7
        %v3468 = vsub.s32 3, %v3467
        %v3469 = vrot.slane %v3452, %v3468
        %v3470 = vcombine.low %v3457, %v3461
        %v3471 = vcombine.low %v3465, %v3469
        %3472 = vrot.lane.b32.xlu0 %v3470, 7
        %v3473 = vpop.permute.xlu0 %3472
        %3474 = vrot.lane.b32.xlu0 %v3471, 7
        %v3475 = vpop.permute.xlu0 %3474
        %v3476 = vrot.slane %v3473, 4
        %v3477 = vrot.slane %v3475, 4
        %v3478 = vsel %vm1280, %v3476, %v3473
        %v3479 = vsel %vm511, %v3476, %v3477
        %v3480 = vsel %vm1280, %v3479, %v3475
        %v3484 = vmul.f32 %v3449, %v3478
        %v3485 = vmul.f32 %v3450, %v3480
        %v3486 = vmul.f32 %v3451, %v3477
        %v3490 = vcombine.low %v3484, %v3484
        %v3491 = vcombine.low %v3485, %v3485
        %v3492 = vcombine.low %v3486, %v3486
        %3493 = vrot.lane.b32.xlu0 %v3490, 121
        %v3494 = vpop.permute.xlu0 %3493
        %3495 = vrot.lane.b32.xlu0 %v3484, 121
        %v3496 = vpop.permute.xlu0 %3495
        %3497 = vrot.lane.b32.xlu0 %v3491, 121
        %v3498 = vpop.permute.xlu0 %3497
        %3499 = vrot.lane.b32.xlu0 %v3485, 121
        %v3500 = vpop.permute.xlu0 %3499
        %3501 = vrot.lane.b32.xlu0 %v3492, 121
        %v3502 = vpop.permute.xlu0 %3501
        %v3503 = vsel %vm1254, %v3494, %v3496
        %v3504 = vsel %vm1254, %v3496, %v3498
        %v3505 = vsel %vm1254, %v3498, %v3500
        %v3506 = vsel %vm1254, %v3500, %v3502
        %3511 = vst [vmem:[#allocation3 + $0xe0] sm:$0xf0] %v3503
        %3512 = vst [vmem:[#allocation3 + $0xe8] sm:$0xf0] %v3504
        %3513 = vst [vmem:[#allocation3 + $0xf0] sm:$0xf0] %v3505
        %3514 = vst [vmem:[#allocation3 + $0xf8] sm:$0xf0] %v3506
        %v3515 = vld [vmem:[#allocation2 + $0x4] sm:$0xff]
        %v3516 = vld [vmem:[#allocation2 + $0xc] sm:$0xff]
        %v3517 = vld [vmem:[#allocation2 + $0x14] sm:$0xf]
        %v3518 = vld [vmem:[%s1534] ss:$8 sm:$0xf]
        %v3520 = vlaneseq
        %v3521 = vshrl.u32 %v3520, 7
        %v3522 = vsub.s32 0, %v3521
        %v3523 = vrot.slane %v3518, %v3522
        %v3524 = vlaneseq
        %v3525 = vshrl.u32 %v3524, 7
        %v3526 = vsub.s32 1, %v3525
        %v3527 = vrot.slane %v3518, %v3526
        %v3528 = vlaneseq
        %v3529 = vshrl.u32 %v3528, 7
        %v3530 = vsub.s32 2, %v3529
        %v3531 = vrot.slane %v3518, %v3530
        %v3532 = vlaneseq
        %v3533 = vshrl.u32 %v3532, 7
        %v3534 = vsub.s32 3, %v3533
        %v3535 = vrot.slane %v3518, %v3534
        %v3536 = vcombine.low %v3523, %v3527
        %v3537 = vcombine.low %v3531, %v3535
        %3538 = vrot.lane.b32.xlu0 %v3536, 8
        %v3539 = vpop.permute.xlu0 %3538
        %3540 = vrot.lane.b32.xlu0 %v3537, 8
        %v3541 = vpop.permute.xlu0 %3540
        %v3542 = vrot.slane %v3539, 4
        %v3543 = vrot.slane %v3541, 4
        %v3544 = vsel %vm1211, %v3542, %v3539
        %v3545 = vsel %vm511, %v3542, %v3543
        %v3546 = vsel %vm1211, %v3545, %v3541
        %v3550 = vmul.f32 %v3515, %v3544
        %v3551 = vmul.f32 %v3516, %v3546
        %v3552 = vmul.f32 %v3517, %v3543
        %v3556 = vcombine.high %v3550, %v3550
        %v3557 = vcombine.high %v3551, %v3551
        %3558 = vrot.lane.b32.xlu0 %v3550, 120
        %v3559 = vpop.permute.xlu0 %3558
        %3560 = vrot.lane.b32.xlu0 %v3556, 120
        %v3561 = vpop.permute.xlu0 %3560
        %3562 = vrot.lane.b32.xlu0 %v3551, 120
        %v3563 = vpop.permute.xlu0 %3562
        %3564 = vrot.lane.b32.xlu0 %v3557, 120
        %v3565 = vpop.permute.xlu0 %3564
        %3566 = vrot.lane.b32.xlu0 %v3552, 120
        %v3567 = vpop.permute.xlu0 %3566
        %v3568 = vsel %vm1186, %v3559, %v3561
        %v3569 = vsel %vm1186, %v3561, %v3563
        %v3570 = vsel %vm1186, %v3563, %v3565
        %v3571 = vsel %vm1186, %v3565, %v3567
        %3576 = vst [vmem:[#allocation3 + $0x100] sm:$0xf] %v3568
        %3577 = vst [vmem:[#allocation3 + $0x108] sm:$0xf] %v3569
        %3578 = vst [vmem:[#allocation3 + $0x110] sm:$0xf] %v3570
        %3579 = vst [vmem:[#allocation3 + $0x118] sm:$0xf] %v3571
        %v3580 = vld [vmem:[#allocation2 + $0x4] sm:$0xff]
        %v3581 = vld [vmem:[#allocation2 + $0xc] sm:$0xff]
        %v3582 = vld [vmem:[#allocation2 + $0x14] sm:$0xf]
        %v3583 = vld [vmem:[%s1600] ss:$8 sm:$0xf]
        %v3585 = vlaneseq
        %v3586 = vshrl.u32 %v3585, 7
        %v3587 = vsub.s32 0, %v3586
        %v3588 = vrot.slane %v3583, %v3587
        %v3589 = vlaneseq
        %v3590 = vshrl.u32 %v3589, 7
        %v3591 = vsub.s32 1, %v3590
        %v3592 = vrot.slane %v3583, %v3591
        %v3593 = vlaneseq
        %v3594 = vshrl.u32 %v3593, 7
        %v3595 = vsub.s32 2, %v3594
        %v3596 = vrot.slane %v3583, %v3595
        %v3597 = vlaneseq
        %v3598 = vshrl.u32 %v3597, 7
        %v3599 = vsub.s32 3, %v3598
        %v3600 = vrot.slane %v3583, %v3599
        %v3601 = vcombine.low %v3588, %v3592
        %v3602 = vcombine.low %v3596, %v3600
        %3603 = vrot.lane.b32.xlu0 %v3601, 9
        %v3604 = vpop.permute.xlu0 %3603
        %3605 = vrot.lane.b32.xlu0 %v3602, 9
        %v3606 = vpop.permute.xlu0 %3605
        %v3607 = vrot.slane %v3604, 4
        %v3608 = vrot.slane %v3606, 4
        %v3609 = vsel %vm1143, %v3607, %v3604
        %v3610 = vsel %vm511, %v3607, %v3608
        %v3611 = vsel %vm1143, %v3610, %v3606
        %v3615 = vmul.f32 %v3580, %v3609
        %v3616 = vmul.f32 %v3581, %v3611
        %v3617 = vmul.f32 %v3582, %v3608
        %v3621 = vcombine.low %v3615, %v3615
        %v3622 = vcombine.low %v3616, %v3616
        %v3623 = vcombine.low %v3617, %v3617
        %3624 = vrot.lane.b32.xlu0 %v3621, 119
        %v3625 = vpop.permute.xlu0 %3624
        %3626 = vrot.lane.b32.xlu0 %v3615, 119
        %v3627 = vpop.permute.xlu0 %3626
        %3628 = vrot.lane.b32.xlu0 %v3622, 119
        %v3629 = vpop.permute.xlu0 %3628
        %3630 = vrot.lane.b32.xlu0 %v3616, 119
        %v3631 = vpop.permute.xlu0 %3630
        %3632 = vrot.lane.b32.xlu0 %v3623, 119
        %v3633 = vpop.permute.xlu0 %3632
        %v3634 = vsel %vm1117, %v3625, %v3627
        %v3635 = vsel %vm1117, %v3627, %v3629
        %v3636 = vsel %vm1117, %v3629, %v3631
        %v3637 = vsel %vm1117, %v3631, %v3633
        %3642 = vst [vmem:[#allocation3 + $0x100] sm:$0xf0] %v3634
        %3643 = vst [vmem:[#allocation3 + $0x108] sm:$0xf0] %v3635
        %3644 = vst [vmem:[#allocation3 + $0x110] sm:$0xf0] %v3636
        %3645 = vst [vmem:[#allocation3 + $0x118] sm:$0xf0] %v3637
        %v3646 = vld [vmem:[#allocation2 + $0x4] sm:$0xff]
        %v3647 = vld [vmem:[#allocation2 + $0xc] sm:$0xff]
        %v3648 = vld [vmem:[#allocation2 + $0x14] sm:$0xf]
        %v3649 = vld [vmem:[%s1667] ss:$8 sm:$0xf]
        %v3651 = vlaneseq
        %v3652 = vshrl.u32 %v3651, 7
        %v3653 = vsub.s32 0, %v3652
        %v3654 = vrot.slane %v3649, %v3653
        %v3655 = vlaneseq
        %v3656 = vshrl.u32 %v3655, 7
        %v3657 = vsub.s32 1, %v3656
        %v3658 = vrot.slane %v3649, %v3657
        %v3659 = vlaneseq
        %v3660 = vshrl.u32 %v3659, 7
        %v3661 = vsub.s32 2, %v3660
        %v3662 = vrot.slane %v3649, %v3661
        %v3663 = vlaneseq
        %v3664 = vshrl.u32 %v3663, 7
        %v3665 = vsub.s32 3, %v3664
        %v3666 = vrot.slane %v3649, %v3665
        %v3667 = vcombine.low %v3654, %v3658
        %v3668 = vcombine.low %v3662, %v3666
        %3669 = vrot.lane.b32.xlu0 %v3667, 55
        %v3670 = vpop.permute.xlu0 %3669
        %3671 = vrot.lane.b32.xlu0 %v3668, 55
        %v3672 = vpop.permute.xlu0 %3671
        %v3673 = vrot.slane %v3670, 4
        %v3674 = vrot.slane %v3672, 4
        %v3675 = vsel %vm509, %v3673, %v3670
        %v3676 = vsel %vm511, %v3673, %v3674
        %v3677 = vsel %vm509, %v3676, %v3672
        %v3681 = vmul.f32 %v3646, %v3675
        %v3682 = vmul.f32 %v3647, %v3677
        %v3683 = vmul.f32 %v3648, %v3674
        %v3687 = vcombine.high %v3681, %v3681
        %v3688 = vcombine.high %v3682, %v3682
        %3689 = vrot.lane.b32.xlu0 %v3681, 73
        %v3690 = vpop.permute.xlu0 %3689
        %3691 = vrot.lane.b32.xlu0 %v3687, 73
        %v3692 = vpop.permute.xlu0 %3691
        %3693 = vrot.lane.b32.xlu0 %v3682, 73
        %v3694 = vpop.permute.xlu0 %3693
        %3695 = vrot.lane.b32.xlu0 %v3688, 73
        %v3696 = vpop.permute.xlu0 %3695
        %3697 = vrot.lane.b32.xlu0 %v3683, 73
        %v3698 = vpop.permute.xlu0 %3697
        %v3699 = vsel %vm535, %v3690, %v3692
        %v3700 = vsel %vm535, %v3692, %v3694
        %v3701 = vsel %vm535, %v3694, %v3696
        %v3702 = vsel %vm535, %v3696, %v3698
        %3707 = vst [vmem:[#allocation3 + $0x120] sm:$0xf] %v3699
        %3708 = vst [vmem:[#allocation3 + $0x128] sm:$0xf] %v3700
        %3709 = vst [vmem:[#allocation3 + $0x130] sm:$0xf] %v3701
        %3710 = vst [vmem:[#allocation3 + $0x138] sm:$0xf] %v3702
        %v3711 = vld [vmem:[#allocation2 + $0x4] sm:$0xff]
        %v3712 = vld [vmem:[#allocation2 + $0xc] sm:$0xff]
        %v3713 = vld [vmem:[#allocation2 + $0x14] sm:$0xf]
        %v3714 = vld [vmem:[%s1733] ss:$8 sm:$0xf]
        %v3716 = vlaneseq
        %v3717 = vshrl.u32 %v3716, 7
        %v3718 = vsub.s32 0, %v3717
        %v3719 = vrot.slane %v3714, %v3718
        %v3720 = vlaneseq
        %v3721 = vshrl.u32 %v3720, 7
        %v3722 = vsub.s32 1, %v3721
        %v3723 = vrot.slane %v3714, %v3722
        %v3724 = vlaneseq
        %v3725 = vshrl.u32 %v3724, 7
        %v3726 = vsub.s32 2, %v3725
        %v3727 = vrot.slane %v3714, %v3726
        %v3728 = vlaneseq
        %v3729 = vshrl.u32 %v3728, 7
        %v3730 = vsub.s32 3, %v3729
        %v3731 = vrot.slane %v3714, %v3730
        %v3732 = vcombine.low %v3719, %v3723
        %v3733 = vcombine.low %v3727, %v3731
        %3734 = vrot.lane.b32.xlu0 %v3732, 56
        %v3735 = vpop.permute.xlu0 %3734
        %3736 = vrot.lane.b32.xlu0 %v3733, 56
        %v3737 = vpop.permute.xlu0 %3736
        %v3738 = vrot.slane %v3735, 4
        %v3739 = vrot.slane %v3737, 4
        %v3740 = vsel %vm578, %v3738, %v3735
        %v3741 = vsel %vm511, %v3738, %v3739
        %v3742 = vsel %vm578, %v3741, %v3737
        %v3746 = vmul.f32 %v3711, %v3740
        %v3747 = vmul.f32 %v3712, %v3742
        %v3748 = vmul.f32 %v3713, %v3739
        %v3752 = vcombine.low %v3746, %v3746
        %v3753 = vcombine.low %v3747, %v3747
        %v3754 = vcombine.low %v3748, %v3748
        %3755 = vrot.lane.b32.xlu0 %v3752, 72
        %v3756 = vpop.permute.xlu0 %3755
        %3757 = vrot.lane.b32.xlu0 %v3746, 72
        %v3758 = vpop.permute.xlu0 %3757
        %3759 = vrot.lane.b32.xlu0 %v3753, 72
        %v3760 = vpop.permute.xlu0 %3759
        %3761 = vrot.lane.b32.xlu0 %v3747, 72
        %v3762 = vpop.permute.xlu0 %3761
        %3763 = vrot.lane.b32.xlu0 %v3754, 72
        %v3764 = vpop.permute.xlu0 %3763
        %v3765 = vsel %vm604, %v3756, %v3758
        %v3766 = vsel %vm604, %v3758, %v3760
        %v3767 = vsel %vm604, %v3760, %v3762
        %v3768 = vsel %vm604, %v3762, %v3764
        %3773 = vst [vmem:[#allocation3 + $0x120] sm:$0xf0] %v3765
        %3774 = vst [vmem:[#allocation3 + $0x128] sm:$0xf0] %v3766
        %3775 = vst [vmem:[#allocation3 + $0x130] sm:$0xf0] %v3767
        %3776 = vst [vmem:[#allocation3 + $0x138] sm:$0xf0] %v3768
        %v3777 = vld [vmem:[#allocation2 + $0x4] sm:$0xff]
        %v3778 = vld [vmem:[#allocation2 + $0xc] sm:$0xff]
        %v3779 = vld [vmem:[#allocation2 + $0x14] sm:$0xf]
        %v3780 = vld [vmem:[%s1800] ss:$8 sm:$0xf]
        %v3782 = vlaneseq
        %v3783 = vshrl.u32 %v3782, 7
        %v3784 = vsub.s32 0, %v3783
        %v3785 = vrot.slane %v3780, %v3784
        %v3786 = vlaneseq
        %v3787 = vshrl.u32 %v3786, 7
        %v3788 = vsub.s32 1, %v3787
        %v3789 = vrot.slane %v3780, %v3788
        %v3790 = vlaneseq
        %v3791 = vshrl.u32 %v3790, 7
        %v3792 = vsub.s32 2, %v3791
        %v3793 = vrot.slane %v3780, %v3792
        %v3794 = vlaneseq
        %v3795 = vshrl.u32 %v3794, 7
        %v3796 = vsub.s32 3, %v3795
        %v3797 = vrot.slane %v3780, %v3796
        %v3798 = vcombine.low %v3785, %v3789
        %v3799 = vcombine.low %v3793, %v3797
        %3800 = vrot.lane.b32.xlu0 %v3798, 57
        %v3801 = vpop.permute.xlu0 %3800
        %3802 = vrot.lane.b32.xlu0 %v3799, 57
        %v3803 = vpop.permute.xlu0 %3802
        %v3804 = vrot.slane %v3801, 4
        %v3805 = vrot.slane %v3803, 4
        %v3806 = vsel %vm647, %v3804, %v3801
        %v3807 = vsel %vm511, %v3804, %v3805
        %v3808 = vsel %vm647, %v3807, %v3803
        %v3812 = vmul.f32 %v3777, %v3806
        %v3813 = vmul.f32 %v3778, %v3808
        %v3814 = vmul.f32 %v3779, %v3805
        %v3818 = vcombine.high %v3812, %v3812
        %v3819 = vcombine.high %v3813, %v3813
        %3820 = vrot.lane.b32.xlu0 %v3812, 71
        %v3821 = vpop.permute.xlu0 %3820
        %3822 = vrot.lane.b32.xlu0 %v3818, 71
        %v3823 = vpop.permute.xlu0 %3822
        %3824 = vrot.lane.b32.xlu0 %v3813, 71
        %v3825 = vpop.permute.xlu0 %3824
        %3826 = vrot.lane.b32.xlu0 %v3819, 71
        %v3827 = vpop.permute.xlu0 %3826
        %3828 = vrot.lane.b32.xlu0 %v3814, 71
        %v3829 = vpop.permute.xlu0 %3828
        %v3830 = vsel %vm672, %v3821, %v3823
        %v3831 = vsel %vm672, %v3823, %v3825
        %v3832 = vsel %vm672, %v3825, %v3827
        %v3833 = vsel %vm672, %v3827, %v3829
        %3838 = vst [vmem:[#allocation3 + $0x140] sm:$0xf] %v3830
        %3839 = vst [vmem:[#allocation3 + $0x148] sm:$0xf] %v3831
        %3840 = vst [vmem:[#allocation3 + $0x150] sm:$0xf] %v3832
        %3841 = vst [vmem:[#allocation3 + $0x158] sm:$0xf] %v3833
        %v3842 = vld [vmem:[#allocation2 + $0x4] sm:$0xff]
        %v3843 = vld [vmem:[#allocation2 + $0xc] sm:$0xff]
        %v3844 = vld [vmem:[#allocation2 + $0x14] sm:$0xf]
        %v3845 = vld [vmem:[%s1866] ss:$8 sm:$0xf]
        %v3847 = vlaneseq
        %v3848 = vshrl.u32 %v3847, 7
        %v3849 = vsub.s32 0, %v3848
        %v3850 = vrot.slane %v3845, %v3849
        %v3851 = vlaneseq
        %v3852 = vshrl.u32 %v3851, 7
        %v3853 = vsub.s32 1, %v3852
        %v3854 = vrot.slane %v3845, %v3853
        %v3855 = vlaneseq
        %v3856 = vshrl.u32 %v3855, 7
        %v3857 = vsub.s32 2, %v3856
        %v3858 = vrot.slane %v3845, %v3857
        %v3859 = vlaneseq
        %v3860 = vshrl.u32 %v3859, 7
        %v3861 = vsub.s32 3, %v3860
        %v3862 = vrot.slane %v3845, %v3861
        %v3863 = vcombine.low %v3850, %v3854
        %v3864 = vcombine.low %v3858, %v3862
        %3865 = vrot.lane.b32.xlu0 %v3863, 63
        %v3866 = vpop.permute.xlu0 %3865
        %3867 = vrot.lane.b32.xlu0 %v3864, 63
        %v3868 = vpop.permute.xlu0 %3867
        %v3869 = vrot.slane %v3866, 4
        %v3870 = vrot.slane %v3868, 4
        %v3871 = vsel %vm715, %v3869, %v3866
        %v3872 = vsel %vm511, %v3869, %v3870
        %v3873 = vsel %vm715, %v3872, %v3868
        %v3877 = vmul.f32 %v3842, %v3871
        %v3878 = vmul.f32 %v3843, %v3873
        %v3879 = vmul.f32 %v3844, %v3870
        %v3883 = vcombine.low %v3877, %v3877
        %v3884 = vcombine.low %v3878, %v3878
        %v3885 = vcombine.low %v3879, %v3879
        %3886 = vrot.lane.b32.xlu0 %v3883, 65
        %v3887 = vpop.permute.xlu0 %3886
        %3888 = vrot.lane.b32.xlu0 %v3877, 65
        %v3889 = vpop.permute.xlu0 %3888
        %3890 = vrot.lane.b32.xlu0 %v3884, 65
        %v3891 = vpop.permute.xlu0 %3890
        %3892 = vrot.lane.b32.xlu0 %v3878, 65
        %v3893 = vpop.permute.xlu0 %3892
        %3894 = vrot.lane.b32.xlu0 %v3885, 65
        %v3895 = vpop.permute.xlu0 %3894
        %v3896 = vsel %vm741, %v3887, %v3889
        %v3897 = vsel %vm741, %v3889, %v3891
        %v3898 = vsel %vm741, %v3891, %v3893
        %v3899 = vsel %vm741, %v3893, %v3895
        %3904 = vst [vmem:[#allocation3 + $0x140] sm:$0xf0] %v3896
        %3905 = vst [vmem:[#allocation3 + $0x148] sm:$0xf0] %v3897
        %3906 = vst [vmem:[#allocation3 + $0x150] sm:$0xf0] %v3898
        %3907 = vst [vmem:[#allocation3 + $0x158] sm:$0xf0] %v3899
        %v3908 = vld [vmem:[#allocation2 + $0x4] sm:$0xff]
        %v3909 = vld [vmem:[#allocation2 + $0xc] sm:$0xff]
        %v3910 = vld [vmem:[#allocation2 + $0x14] sm:$0xf]
        %v3911 = vld [vmem:[%s1933] ss:$8 sm:$0xf]
        %v3913 = vlaneseq
        %v3914 = vshrl.u32 %v3913, 7
        %v3915 = vsub.s32 0, %v3914
        %v3916 = vrot.slane %v3911, %v3915
        %v3917 = vlaneseq
        %v3918 = vshrl.u32 %v3917, 7
        %v3919 = vsub.s32 1, %v3918
        %v3920 = vrot.slane %v3911, %v3919
        %v3921 = vlaneseq
        %v3922 = vshrl.u32 %v3921, 7
        %v3923 = vsub.s32 2, %v3922
        %v3924 = vrot.slane %v3911, %v3923
        %v3925 = vlaneseq
        %v3926 = vshrl.u32 %v3925, 7
        %v3927 = vsub.s32 3, %v3926
        %v3928 = vrot.slane %v3911, %v3927
        %v3929 = vcombine.low %v3916, %v3920
        %v3930 = vcombine.low %v3924, %v3928
        %3931 = vrot.lane.b32.xlu0 %v3929, 64
        %v3932 = vpop.permute.xlu0 %3931
        %3933 = vrot.lane.b32.xlu0 %v3930, 64
        %v3934 = vpop.permute.xlu0 %3933
        %v3935 = vrot.slane %v3932, 4
        %v3936 = vrot.slane %v3934, 4
        %v3937 = vsel %vm784, %v3935, %v3932
        %v3938 = vsel %vm511, %v3935, %v3936
        %v3939 = vsel %vm784, %v3938, %v3934
        %v3943 = vmul.f32 %v3908, %v3937
        %v3944 = vmul.f32 %v3909, %v3939
        %v3945 = vmul.f32 %v3910, %v3936
        %v3949 = vcombine.high %v3943, %v3943
        %v3950 = vcombine.high %v3944, %v3944
        %3951 = vrot.lane.b32.xlu0 %v3943, 64
        %v3952 = vpop.permute.xlu0 %3951
        %3953 = vrot.lane.b32.xlu0 %v3949, 64
        %v3954 = vpop.permute.xlu0 %3953
        %3955 = vrot.lane.b32.xlu0 %v3944, 64
        %v3956 = vpop.permute.xlu0 %3955
        %3957 = vrot.lane.b32.xlu0 %v3950, 64
        %v3958 = vpop.permute.xlu0 %3957
        %3959 = vrot.lane.b32.xlu0 %v3945, 64
        %v3960 = vpop.permute.xlu0 %3959
        %v3961 = vsel %vm784, %v3952, %v3954
        %v3962 = vsel %vm784, %v3954, %v3956
        %v3963 = vsel %vm784, %v3956, %v3958
        %v3964 = vsel %vm784, %v3958, %v3960
        %3969 = vst [vmem:[#allocation3 + $0x160] sm:$0xf] %v3961
        %3970 = vst [vmem:[#allocation3 + $0x168] sm:$0xf] %v3962
        %3971 = vst [vmem:[#allocation3 + $0x170] sm:$0xf] %v3963
        %3972 = vst [vmem:[#allocation3 + $0x178] sm:$0xf] %v3964
        %v3973 = vld [vmem:[#allocation2 + $0x4] sm:$0xff]
        %v3974 = vld [vmem:[#allocation2 + $0xc] sm:$0xff]
        %v3975 = vld [vmem:[#allocation2 + $0x14] sm:$0xf]
        %v3976 = vld [vmem:[%s1999] ss:$8 sm:$0xf]
        %v3978 = vlaneseq
        %v3979 = vshrl.u32 %v3978, 7
        %v3980 = vsub.s32 0, %v3979
        %v3981 = vrot.slane %v3976, %v3980
        %v3982 = vlaneseq
        %v3983 = vshrl.u32 %v3982, 7
        %v3984 = vsub.s32 1, %v3983
        %v3985 = vrot.slane %v3976, %v3984
        %v3986 = vlaneseq
        %v3987 = vshrl.u32 %v3986, 7
        %v3988 = vsub.s32 2, %v3987
        %v3989 = vrot.slane %v3976, %v3988
        %v3990 = vlaneseq
        %v3991 = vshrl.u32 %v3990, 7
        %v3992 = vsub.s32 3, %v3991
        %v3993 = vrot.slane %v3976, %v3992
        %v3994 = vcombine.low %v3981, %v3985
        %v3995 = vcombine.low %v3989, %v3993
        %3996 = vrot.lane.b32.xlu0 %v3994, 65
        %v3997 = vpop.permute.xlu0 %3996
        %3998 = vrot.lane.b32.xlu0 %v3995, 65
        %v3999 = vpop.permute.xlu0 %3998
        %v4000 = vrot.slane %v3997, 4
        %v4001 = vrot.slane %v3999, 4
        %v4002 = vsel %vm741, %v4000, %v3997
        %v4003 = vsel %vm511, %v4000, %v4001
        %v4004 = vsel %vm741, %v4003, %v3999
        %v4008 = vmul.f32 %v3973, %v4002
        %v4009 = vmul.f32 %v3974, %v4004
        %v4010 = vmul.f32 %v3975, %v4001
        %v4014 = vcombine.low %v4008, %v4008
        %v4015 = vcombine.low %v4009, %v4009
        %v4016 = vcombine.low %v4010, %v4010
        %4017 = vrot.lane.b32.xlu0 %v4014, 63
        %v4018 = vpop.permute.xlu0 %4017
        %4019 = vrot.lane.b32.xlu0 %v4008, 63
        %v4020 = vpop.permute.xlu0 %4019
        %4021 = vrot.lane.b32.xlu0 %v4015, 63
        %v4022 = vpop.permute.xlu0 %4021
        %4023 = vrot.lane.b32.xlu0 %v4009, 63
        %v4024 = vpop.permute.xlu0 %4023
        %4025 = vrot.lane.b32.xlu0 %v4016, 63
        %v4026 = vpop.permute.xlu0 %4025
        %v4027 = vsel %vm715, %v4018, %v4020
        %v4028 = vsel %vm715, %v4020, %v4022
        %v4029 = vsel %vm715, %v4022, %v4024
        %v4030 = vsel %vm715, %v4024, %v4026
        %4035 = vst [vmem:[#allocation3 + $0x160] sm:$0xf0] %v4027
        %4036 = vst [vmem:[#allocation3 + $0x168] sm:$0xf0] %v4028
        %4037 = vst [vmem:[#allocation3 + $0x170] sm:$0xf0] %v4029
        %4038 = vst [vmem:[#allocation3 + $0x178] sm:$0xf0] %v4030
        %v4039 = vld [vmem:[#allocation2 + $0x4] sm:$0xff]
        %v4040 = vld [vmem:[#allocation2 + $0xc] sm:$0xff]
        %v4041 = vld [vmem:[#allocation2 + $0x14] sm:$0xf]
        %v4042 = vld [vmem:[%s2066] ss:$8 sm:$0xf]
        %v4044 = vlaneseq
        %v4045 = vshrl.u32 %v4044, 7
        %v4046 = vsub.s32 0, %v4045
        %v4047 = vrot.slane %v4042, %v4046
        %v4048 = vlaneseq
        %v4049 = vshrl.u32 %v4048, 7
        %v4050 = vsub.s32 1, %v4049
        %v4051 = vrot.slane %v4042, %v4050
        %v4052 = vlaneseq
        %v4053 = vshrl.u32 %v4052, 7
        %v4054 = vsub.s32 2, %v4053
        %v4055 = vrot.slane %v4042, %v4054
        %v4056 = vlaneseq
        %v4057 = vshrl.u32 %v4056, 7
        %v4058 = vsub.s32 3, %v4057
        %v4059 = vrot.slane %v4042, %v4058
        %v4060 = vcombine.low %v4047, %v4051
        %v4061 = vcombine.low %v4055, %v4059
        %4062 = vrot.lane.b32.xlu0 %v4060, 71
        %v4063 = vpop.permute.xlu0 %4062
        %4064 = vrot.lane.b32.xlu0 %v4061, 71
        %v4065 = vpop.permute.xlu0 %4064
        %v4066 = vrot.slane %v4063, 4
        %v4067 = vrot.slane %v4065, 4
        %v4068 = vsel %vm672, %v4066, %v4063
        %v4069 = vsel %vm511, %v4066, %v4067
        %v4070 = vsel %vm672, %v4069, %v4065
        %v4074 = vmul.f32 %v4039, %v4068
        %v4075 = vmul.f32 %v4040, %v4070
        %v4076 = vmul.f32 %v4041, %v4067
        %v4080 = vcombine.high %v4074, %v4074
        %v4081 = vcombine.high %v4075, %v4075
        %4082 = vrot.lane.b32.xlu0 %v4074, 57
        %v4083 = vpop.permute.xlu0 %4082
        %4084 = vrot.lane.b32.xlu0 %v4080, 57
        %v4085 = vpop.permute.xlu0 %4084
        %4086 = vrot.lane.b32.xlu0 %v4075, 57
        %v4087 = vpop.permute.xlu0 %4086
        %4088 = vrot.lane.b32.xlu0 %v4081, 57
        %v4089 = vpop.permute.xlu0 %4088
        %4090 = vrot.lane.b32.xlu0 %v4076, 57
        %v4091 = vpop.permute.xlu0 %4090
        %v4092 = vsel %vm647, %v4083, %v4085
        %v4093 = vsel %vm647, %v4085, %v4087
        %v4094 = vsel %vm647, %v4087, %v4089
        %v4095 = vsel %vm647, %v4089, %v4091
        %4100 = vst [vmem:[#allocation3 + $0x180] sm:$0xf] %v4092
        %4101 = vst [vmem:[#allocation3 + $0x188] sm:$0xf] %v4093
        %4102 = vst [vmem:[#allocation3 + $0x190] sm:$0xf] %v4094
        %4103 = vst [vmem:[#allocation3 + $0x198] sm:$0xf] %v4095
        %v4104 = vld [vmem:[#allocation2 + $0x4] sm:$0xff]
        %v4105 = vld [vmem:[#allocation2 + $0xc] sm:$0xff]
        %v4106 = vld [vmem:[#allocation2 + $0x14] sm:$0xf]
        %v4107 = vld [vmem:[%s2132] ss:$8 sm:$0xf]
        %v4109 = vlaneseq
        %v4110 = vshrl.u32 %v4109, 7
        %v4111 = vsub.s32 0, %v4110
        %v4112 = vrot.slane %v4107, %v4111
        %v4113 = vlaneseq
        %v4114 = vshrl.u32 %v4113, 7
        %v4115 = vsub.s32 1, %v4114
        %v4116 = vrot.slane %v4107, %v4115
        %v4117 = vlaneseq
        %v4118 = vshrl.u32 %v4117, 7
        %v4119 = vsub.s32 2, %v4118
        %v4120 = vrot.slane %v4107, %v4119
        %v4121 = vlaneseq
        %v4122 = vshrl.u32 %v4121, 7
        %v4123 = vsub.s32 3, %v4122
        %v4124 = vrot.slane %v4107, %v4123
        %v4125 = vcombine.low %v4112, %v4116
        %v4126 = vcombine.low %v4120, %v4124
        %4127 = vrot.lane.b32.xlu0 %v4125, 72
        %v4128 = vpop.permute.xlu0 %4127
        %4129 = vrot.lane.b32.xlu0 %v4126, 72
        %v4130 = vpop.permute.xlu0 %4129
        %v4131 = vrot.slane %v4128, 4
        %v4132 = vrot.slane %v4130, 4
        %v4133 = vsel %vm604, %v4131, %v4128
        %v4134 = vsel %vm511, %v4131, %v4132
        %v4135 = vsel %vm604, %v4134, %v4130
        %v4139 = vmul.f32 %v4104, %v4133
        %v4140 = vmul.f32 %v4105, %v4135
        %v4141 = vmul.f32 %v4106, %v4132
        %v4145 = vcombine.low %v4139, %v4139
        %v4146 = vcombine.low %v4140, %v4140
        %v4147 = vcombine.low %v4141, %v4141
        %4148 = vrot.lane.b32.xlu0 %v4145, 56
        %v4149 = vpop.permute.xlu0 %4148
        %4150 = vrot.lane.b32.xlu0 %v4139, 56
        %v4151 = vpop.permute.xlu0 %4150
        %4152 = vrot.lane.b32.xlu0 %v4146, 56
        %v4153 = vpop.permute.xlu0 %4152
        %4154 = vrot.lane.b32.xlu0 %v4140, 56
        %v4155 = vpop.permute.xlu0 %4154
        %4156 = vrot.lane.b32.xlu0 %v4147, 56
        %v4157 = vpop.permute.xlu0 %4156
        %v4158 = vsel %vm578, %v4149, %v4151
        %v4159 = vsel %vm578, %v4151, %v4153
        %v4160 = vsel %vm578, %v4153, %v4155
        %v4161 = vsel %vm578, %v4155, %v4157
        %4166 = vst [vmem:[#allocation3 + $0x180] sm:$0xf0] %v4158
        %4167 = vst [vmem:[#allocation3 + $0x188] sm:$0xf0] %v4159
        %4168 = vst [vmem:[#allocation3 + $0x190] sm:$0xf0] %v4160
        %4169 = vst [vmem:[#allocation3 + $0x198] sm:$0xf0] %v4161
        %v4170 = vld [vmem:[#allocation2 + $0x4] sm:$0xff]
        %v4171 = vld [vmem:[#allocation2 + $0xc] sm:$0xff]
        %v4172 = vld [vmem:[#allocation2 + $0x14] sm:$0xf]
        %v4173 = vld [vmem:[%s2199] ss:$8 sm:$0xf]
        %v4175 = vlaneseq
        %v4176 = vshrl.u32 %v4175, 7
        %v4177 = vsub.s32 0, %v4176
        %v4178 = vrot.slane %v4173, %v4177
        %v4179 = vlaneseq
        %v4180 = vshrl.u32 %v4179, 7
        %v4181 = vsub.s32 1, %v4180
        %v4182 = vrot.slane %v4173, %v4181
        %v4183 = vlaneseq
        %v4184 = vshrl.u32 %v4183, 7
        %v4185 = vsub.s32 2, %v4184
        %v4186 = vrot.slane %v4173, %v4185
        %v4187 = vlaneseq
        %v4188 = vshrl.u32 %v4187, 7
        %v4189 = vsub.s32 3, %v4188
        %v4190 = vrot.slane %v4173, %v4189
        %v4191 = vcombine.low %v4178, %v4182
        %v4192 = vcombine.low %v4186, %v4190
        %4193 = vrot.lane.b32.xlu0 %v4191, 73
        %v4194 = vpop.permute.xlu0 %4193
        %4195 = vrot.lane.b32.xlu0 %v4192, 73
        %v4196 = vpop.permute.xlu0 %4195
        %v4197 = vrot.slane %v4194, 4
        %v4198 = vrot.slane %v4196, 4
        %v4199 = vsel %vm535, %v4197, %v4194
        %v4200 = vsel %vm511, %v4197, %v4198
        %v4201 = vsel %vm535, %v4200, %v4196
        %v4205 = vmul.f32 %v4170, %v4199
        %v4206 = vmul.f32 %v4171, %v4201
        %v4207 = vmul.f32 %v4172, %v4198
        %v4211 = vcombine.high %v4205, %v4205
        %v4212 = vcombine.high %v4206, %v4206
        %4213 = vrot.lane.b32.xlu0 %v4205, 55
        %v4214 = vpop.permute.xlu0 %4213
        %4215 = vrot.lane.b32.xlu0 %v4211, 55
        %v4216 = vpop.permute.xlu0 %4215
        %4217 = vrot.lane.b32.xlu0 %v4206, 55
        %v4218 = vpop.permute.xlu0 %4217
        %4219 = vrot.lane.b32.xlu0 %v4212, 55
        %v4220 = vpop.permute.xlu0 %4219
        %4221 = vrot.lane.b32.xlu0 %v4207, 55
        %v4222 = vpop.permute.xlu0 %4221
        %v4223 = vsel %vm509, %v4214, %v4216
        %v4224 = vsel %vm509, %v4216, %v4218
        %v4225 = vsel %vm509, %v4218, %v4220
        %v4226 = vsel %vm509, %v4220, %v4222
        %4231 = vst [vmem:[#allocation3 + $0x1a0] sm:$0xf] %v4223
        %4232 = vst [vmem:[#allocation3 + $0x1a8] sm:$0xf] %v4224
        %4233 = vst [vmem:[#allocation3 + $0x1b0] sm:$0xf] %v4225
        %4234 = vst [vmem:[#allocation3 + $0x1b8] sm:$0xf] %v4226
        %v4235 = vld [vmem:[%s5] sm:$0xf]
        %v4236 = vld [vmem:[#allocation3] sm:$0xff]
        %v4237 = vld [vmem:[#allocation3 + $0x8] sm:$0xff]
        %v4238 = vld [vmem:[#allocation3 + $0x10] sm:$0xff]
        %v4239 = vld [vmem:[#allocation3 + $0x18] sm:$0xff]
        %v4240 = vld [vmem:[#allocation3 + $0x20] sm:$0xff]
        %v4241 = vld [vmem:[#allocation3 + $0x28] sm:$0xff]
        %v4242 = vld [vmem:[#allocation3 + $0x30] sm:$0xff]
        %v4243 = vld [vmem:[#allocation3 + $0x38] sm:$0xff]
        %v4244 = vld [vmem:[#allocation3 + $0x40] sm:$0xff]
        %v4245 = vld [vmem:[#allocation3 + $0x48] sm:$0xff]
        %v4246 = vld [vmem:[#allocation3 + $0x50] sm:$0xff]
        %v4247 = vld [vmem:[#allocation3 + $0x58] sm:$0xff]
        %v4248 = vld [vmem:[#allocation3 + $0x60] sm:$0xff]
        %v4249 = vld [vmem:[#allocation3 + $0x68] sm:$0xff]
        %v4250 = vld [vmem:[#allocation3 + $0x70] sm:$0xff]
        %v4251 = vld [vmem:[#allocation3 + $0x78] sm:$0xff]
        %v4252 = vld [vmem:[#allocation3 + $0x80] sm:$0xff]
        %v4253 = vld [vmem:[#allocation3 + $0x88] sm:$0xff]
        %v4254 = vld [vmem:[#allocation3 + $0x90] sm:$0xff]
        %v4255 = vld [vmem:[#allocation3 + $0x98] sm:$0xff]
        %v4256 = vld [vmem:[#allocation3 + $0xa0] sm:$0xff]
        %v4257 = vld [vmem:[#allocation3 + $0xa8] sm:$0xff]
        %v4258 = vld [vmem:[#allocation3 + $0xb0] sm:$0xff]
        %v4259 = vld [vmem:[#allocation3 + $0xb8] sm:$0xff]
        %v4260 = vld [vmem:[#allocation3 + $0xc0] sm:$0xff]
        %v4261 = vld [vmem:[#allocation3 + $0xc8] sm:$0xff]
        %v4262 = vld [vmem:[#allocation3 + $0xd0] sm:$0xff]
        %v4263 = vld [vmem:[#allocation3 + $0xd8] sm:$0xff]
        %v4264 = vld [vmem:[#allocation3 + $0xe0] sm:$0xff]
        %v4265 = vld [vmem:[#allocation3 + $0xe8] sm:$0xff]
        %v4266 = vld [vmem:[#allocation3 + $0xf0] sm:$0xff]
        %v4267 = vld [vmem:[#allocation3 + $0xf8] sm:$0xff]
        %v4268 = vld [vmem:[#allocation3 + $0x100] sm:$0xff]
        %v4269 = vld [vmem:[#allocation3 + $0x108] sm:$0xff]
        %v4270 = vld [vmem:[#allocation3 + $0x110] sm:$0xff]
        %v4271 = vld [vmem:[#allocation3 + $0x118] sm:$0xff]
        %v4272 = vld [vmem:[#allocation3 + $0x120] sm:$0xff]
        %v4273 = vld [vmem:[#allocation3 + $0x128] sm:$0xff]
        %v4274 = vld [vmem:[#allocation3 + $0x130] sm:$0xff]
        %v4275 = vld [vmem:[#allocation3 + $0x138] sm:$0xff]
        %v4276 = vld [vmem:[#allocation3 + $0x140] sm:$0xff]
        %v4277 = vld [vmem:[#allocation3 + $0x148] sm:$0xff]
        %v4278 = vld [vmem:[#allocation3 + $0x150] sm:$0xff]
        %v4279 = vld [vmem:[#allocation3 + $0x158] sm:$0xff]
        %v4280 = vld [vmem:[#allocation3 + $0x160] sm:$0xff]
        %v4281 = vld [vmem:[#allocation3 + $0x168] sm:$0xff]
        %v4282 = vld [vmem:[#allocation3 + $0x170] sm:$0xff]
        %v4283 = vld [vmem:[#allocation3 + $0x178] sm:$0xff]
        %v4284 = vld [vmem:[#allocation3 + $0x180] sm:$0xff]
        %v4285 = vld [vmem:[#allocation3 + $0x188] sm:$0xff]
        %v4286 = vld [vmem:[#allocation3 + $0x190] sm:$0xff]
        %v4287 = vld [vmem:[#allocation3 + $0x198] sm:$0xff]
        %v4288 = vld [vmem:[#allocation3 + $0x1a0] sm:$0xf]
        %v4289 = vld [vmem:[#allocation3 + $0x1a8] sm:$0xf]
        %v4290 = vld [vmem:[#allocation3 + $0x1b0] sm:$0xf]
        %v4291 = vld [vmem:[#allocation3 + $0x1b8] sm:$0xf]
        %v4292 = vld [vmem:[%s6] sm:$0xf]
        %4294 = vset.pattern.permute.xlu0 0
        %4295 = vperm.xlu0 %4294, %v4292
        %v4296 = vpop.permute.xlu0 %4295
        %v4299 = vsel %vm2325, %v4235, 0
        %v4302 = vsel %vm511, %v4288, 0
        %v4305 = vsel %vm511, %v4289, 0
        %v4308 = vsel %vm511, %v4290, 0
        %v4311 = vsel %vm511, %v4291, 0
        %4313 = vmatprep.subr.mxu0 0.0
        %4314 = vmatpush1.msra.mxu0 0.0
        %4315 = vmatprep.subr.mxu0 0.0
        %4316 = vmatpush1.msra.mxu0 0.0
        %4317 = vmatprep.subr.mxu0 %v4305
        %4318 = vmatpush1.msra.mxu0 %v4302
        %4319 = vmatprep.subr.mxu0 %v4285
        %4320 = vmatpush1.msra.mxu0 %v4284
        %4321 = vmatprep.subr.mxu0 %v4281
        %4322 = vmatpush1.msra.mxu0 %v4280
        %4323 = vmatprep.subr.mxu0 %v4277
        %4324 = vmatpush1.msra.mxu0 %v4276
        %4325 = vmatprep.subr.mxu0 %v4273
        %4326 = vmatpush1.msra.mxu0 %v4272
        %4327 = vmatprep.subr.mxu0 %v4269
        %4328 = vmatpush1.msra.mxu0 %v4268
        %4329 = vmatprep.subr.mxu0 %v4265
        %4330 = vmatpush1.msra.mxu0 %v4264
        %4331 = vmatprep.subr.mxu0 %v4261
        %4332 = vmatpush1.msra.mxu0 %v4260
        %4333 = vmatprep.subr.mxu0 %v4257
        %4334 = vmatpush1.msra.mxu0 %v4256
        %4335 = vmatprep.subr.mxu0 %v4253
        %4336 = vmatpush1.msra.mxu0 %v4252
        %4337 = vmatprep.subr.mxu0 %v4249
        %4338 = vmatpush1.msra.mxu0 %v4248
        %4339 = vmatprep.subr.mxu0 %v4245
        %4340 = vmatpush1.msra.mxu0 %v4244
        %4341 = vmatprep.subr.mxu0 %v4241
        %4342 = vmatpush1.msra.mxu0 %v4240
        %4343 = vmatprep.subr.mxu0 %v4237
        %4344 = vmatpush1.msra.mxu0 %v4236
        %4345 = vmatprep.subr.mxu0 0.0
        %4346 = vmatpush2.msra.mxu0 0.0
        %4347 = vmatprep.subr.mxu0 0.0
        %4348 = vmatpush2.msra.mxu0 0.0
        %4349 = vmatprep.subr.mxu0 0.0
        %4350 = vmatpush2.msra.mxu0 0.0
        %4351 = vmatprep.subr.mxu0 0.0
        %4352 = vmatpush2.msra.mxu0 0.0
        %4353 = vmatprep.subr.mxu0 0.0
        %4354 = vmatpush2.msra.mxu0 0.0
        %4355 = vmatprep.subr.mxu0 0.0
        %4356 = vmatpush2.msra.mxu0 0.0
        %4357 = vmatprep.subr.mxu0 0.0
        %4358 = vmatpush2.msra.mxu0 0.0
        %4359 = vmatprep.subr.mxu0 0.0
        %4360 = vmatpush2.msra.mxu0 0.0
        %4361 = vmatprep.subr.mxu0 0.0
        %4362 = vmatpush2.msra.mxu0 0.0
        %4363 = vmatprep.subr.mxu0 0.0
        %4364 = vmatpush2.msra.mxu0 0.0
        %4365 = vmatprep.subr.mxu0 0.0
        %4366 = vmatpush2.msra.mxu0 0.0
        %4367 = vmatprep.subr.mxu0 0.0
        %4368 = vmatpush2.msra.mxu0 0.0
        %4369 = vmatprep.subr.mxu0 0.0
        %4370 = vmatpush2.msra.mxu0 0.0
        %4371 = vmatprep.subr.mxu0 0.0
        %4372 = vmatpush2.msra.mxu0 0.0
        %4373 = vmatprep.subr.mxu0 0.0
        %4374 = vmatpush2.msra.mxu0 0.0
        %4375 = vmatprep.subr.mxu0 0.0
        %4376 = vmatpush2.msra.mxu0 0.0
        %4377 = vmatprep.mubr.f32.mxu0 0.0
        %4378 = vmatmul.mubr.f32.gmra.mxu0 %v4299
        %v4379 = vpop.f32.mrf.mxu0
        %v4380 = vadd.f32 %v4296, %v4379
        %v4381 = vpop.f32.mrf.mxu0
        %v4382 = vadd.f32 %v4296, %v4381
        %4383 = vdwg.mxu0
        %4384 = vmatprep.subr.mxu0 0.0
        %4385 = vmatpush1.msra.mxu0 0.0
        %4386 = vmatprep.subr.mxu0 0.0
        %4387 = vmatpush1.msra.mxu0 0.0
        %4388 = vmatprep.subr.mxu0 %v4311
        %4389 = vmatpush1.msra.mxu0 %v4308
        %4390 = vmatprep.subr.mxu0 %v4287
        %4391 = vmatpush1.msra.mxu0 %v4286
        %4392 = vmatprep.subr.mxu0 %v4283
        %4393 = vmatpush1.msra.mxu0 %v4282
        %4394 = vmatprep.subr.mxu0 %v4279
        %4395 = vmatpush1.msra.mxu0 %v4278
        %4396 = vmatprep.subr.mxu0 %v4275
        %4397 = vmatpush1.msra.mxu0 %v4274
        %4398 = vmatprep.subr.mxu0 %v4271
        %4399 = vmatpush1.msra.mxu0 %v4270
        %4400 = vmatprep.subr.mxu0 %v4267
        %4401 = vmatpush1.msra.mxu0 %v4266
        %4402 = vmatprep.subr.mxu0 %v4263
        %4403 = vmatpush1.msra.mxu0 %v4262
        %4404 = vmatprep.subr.mxu0 %v4259
        %4405 = vmatpush1.msra.mxu0 %v4258
        %4406 = vmatprep.subr.mxu0 %v4255
        %4407 = vmatpush1.msra.mxu0 %v4254
        %4408 = vmatprep.subr.mxu0 %v4251
        %4409 = vmatpush1.msra.mxu0 %v4250
        %4410 = vmatprep.subr.mxu0 %v4247
        %4411 = vmatpush1.msra.mxu0 %v4246
        %4412 = vmatprep.subr.mxu0 %v4243
        %4413 = vmatpush1.msra.mxu0 %v4242
        %4414 = vmatprep.subr.mxu0 %v4239
        %4415 = vmatpush1.msra.mxu0 %v4238
        %4416 = vmatprep.subr.mxu0 0.0
        %4417 = vmatpush2.msra.mxu0 0.0
        %4418 = vmatprep.subr.mxu0 0.0
        %4419 = vmatpush2.msra.mxu0 0.0
        %4420 = vmatprep.subr.mxu0 0.0
        %4421 = vmatpush2.msra.mxu0 0.0
        %4422 = vmatprep.subr.mxu0 0.0
        %4423 = vmatpush2.msra.mxu0 0.0
        %4424 = vmatprep.subr.mxu0 0.0
        %4425 = vmatpush2.msra.mxu0 0.0
        %4426 = vmatprep.subr.mxu0 0.0
        %4427 = vmatpush2.msra.mxu0 0.0
        %4428 = vmatprep.subr.mxu0 0.0
        %4429 = vmatpush2.msra.mxu0 0.0
        %4430 = vmatprep.subr.mxu0 0.0
        %4431 = vmatpush2.msra.mxu0 0.0
        %4432 = vmatprep.subr.mxu0 0.0
        %4433 = vmatpush2.msra.mxu0 0.0
        %4434 = vmatprep.subr.mxu0 0.0
        %4435 = vmatpush2.msra.mxu0 0.0
        %4436 = vmatprep.subr.mxu0 0.0
        %4437 = vmatpush2.msra.mxu0 0.0
        %4438 = vmatprep.subr.mxu0 0.0
        %4439 = vmatpush2.msra.mxu0 0.0
        %4440 = vmatprep.subr.mxu0 0.0
        %4441 = vmatpush2.msra.mxu0 0.0
        %4442 = vmatprep.subr.mxu0 0.0
        %4443 = vmatpush2.msra.mxu0 0.0
        %4444 = vmatprep.subr.mxu0 0.0
        %4445 = vmatpush2.msra.mxu0 0.0
        %4446 = vmatprep.subr.mxu0 0.0
        %4447 = vmatpush2.msra.mxu0 0.0
        %4448 = vmatprep.mubr.f32.mxu0 0.0
        %4449 = vmatmul.mubr.f32.gmra.mxu0 %v4299
        %v4450 = vpop.f32.mrf.mxu0
        %v4451 = vadd.f32 %v4296, %v4450
        %v4452 = vpop.f32.mrf.mxu0
        %v4453 = vadd.f32 %v4296, %v4452
        %4454 = vdwg.mxu0
        %v4455 = vmax.f32 %v4380, 0.0
        %v4456 = vmax.f32 %v4382, 0.0
        %v4457 = vmax.f32 %v4451, 0.0
        %v4458 = vmax.f32 %v4453, 0.0
        %v4459 = vld [vmem:[%s7] sm:$0x1]
        %v4460 = vld [vmem:[#allocation5] sm:$0x1]
        %4462 = vset.pattern.permute.xlu0 0
        %4463 = vperm.xlu0 %4462, %v4460
        %v4464 = vpop.permute.xlu0 %4463
        %v4466 = vlaneseq
        %v4467 = vshrl.u32 %v4466, 7
        %v4468 = vsub.s32 0, %v4467
        %v4469 = vrot.slane %v4464, %v4468
        %vm4470 = vcmask 31744
        %v4472 = vsel %vm4470, %v4459, 0
        %v4475 = vsel %vm511, %v4455, 0
        %v4478 = vsel %vm511, %v4456, 0
        %v4481 = vsel %vm511, %v4457, 0
        %v4484 = vsel %vm511, %v4458, 0
        %4486 = vmatprep.subr.mxu0 0.0
        %4487 = vmatpush1.msra.mxu0 0.0
        %4488 = vmatprep.subr.mxu0 0.0
        %4489 = vmatpush1.msra.mxu0 0.0
        %4490 = vmatprep.subr.mxu0 0.0
        %4491 = vmatpush1.msra.mxu0 0.0
        %4492 = vmatprep.subr.mxu0 0.0
        %4493 = vmatpush1.msra.mxu0 0.0
        %4494 = vmatprep.subr.mxu0 0.0
        %4495 = vmatpush1.msra.mxu0 0.0
        %4496 = vmatprep.subr.mxu0 0.0
        %4497 = vmatpush1.msra.mxu0 0.0
        %4498 = vmatprep.subr.mxu0 0.0
        %4499 = vmatpush1.msra.mxu0 0.0
        %4500 = vmatprep.subr.mxu0 0.0
        %4501 = vmatpush1.msra.mxu0 0.0
        %4502 = vmatprep.subr.mxu0 0.0
        %4503 = vmatpush1.msra.mxu0 0.0
        %4504 = vmatprep.subr.mxu0 0.0
        %4505 = vmatpush1.msra.mxu0 0.0
        %4506 = vmatprep.subr.mxu0 0.0
        %4507 = vmatpush1.msra.mxu0 0.0
        %4508 = vmatprep.subr.mxu0 0.0
        %4509 = vmatpush1.msra.mxu0 0.0
        %4510 = vmatprep.subr.mxu0 0.0
        %4511 = vmatpush1.msra.mxu0 0.0
        %4512 = vmatprep.subr.mxu0 0.0
        %4513 = vmatpush1.msra.mxu0 0.0
        %4514 = vmatprep.subr.mxu0 0.0
        %4515 = vmatpush1.msra.mxu0 0.0
        %4516 = vmatprep.subr.mxu0 %v4478
        %4517 = vmatpush1.msra.mxu0 %v4475
        %4518 = vmatprep.subr.mxu0 0.0
        %4519 = vmatpush2.msra.mxu0 0.0
        %4520 = vmatprep.subr.mxu0 0.0
        %4521 = vmatpush2.msra.mxu0 0.0
        %4522 = vmatprep.subr.mxu0 0.0
        %4523 = vmatpush2.msra.mxu0 0.0
        %4524 = vmatprep.subr.mxu0 0.0
        %4525 = vmatpush2.msra.mxu0 0.0
        %4526 = vmatprep.subr.mxu0 0.0
        %4527 = vmatpush2.msra.mxu0 0.0
        %4528 = vmatprep.subr.mxu0 0.0
        %4529 = vmatpush2.msra.mxu0 0.0
        %4530 = vmatprep.subr.mxu0 0.0
        %4531 = vmatpush2.msra.mxu0 0.0
        %4532 = vmatprep.subr.mxu0 0.0
        %4533 = vmatpush2.msra.mxu0 0.0
        %4534 = vmatprep.subr.mxu0 0.0
        %4535 = vmatpush2.msra.mxu0 0.0
        %4536 = vmatprep.subr.mxu0 0.0
        %4537 = vmatpush2.msra.mxu0 0.0
        %4538 = vmatprep.subr.mxu0 0.0
        %4539 = vmatpush2.msra.mxu0 0.0
        %4540 = vmatprep.subr.mxu0 0.0
        %4541 = vmatpush2.msra.mxu0 0.0
        %4542 = vmatprep.subr.mxu0 0.0
        %4543 = vmatpush2.msra.mxu0 0.0
        %4544 = vmatprep.subr.mxu0 0.0
        %4545 = vmatpush2.msra.mxu0 0.0
        %4546 = vmatprep.subr.mxu0 0.0
        %4547 = vmatpush2.msra.mxu0 0.0
        %4548 = vmatprep.subr.mxu0 0.0
        %4549 = vmatpush2.msra.mxu0 0.0
        %4550 = vmatprep.mubr.f32.mxu0 0.0
        %4551 = vmatmul.mubr.f32.gmra.mxu0 %v4472
        %v4552 = vpop.f32.mrf.mxu0
        %v4553 = vadd.f32 %v4469, %v4552
        %v4554 = vpop.f32.mrf.mxu0
        %v4555 = vadd.f32 %v4469, %v4554
        %4556 = vdwg.mxu0
        %4557 = vmatprep.subr.mxu0 0.0
        %4558 = vmatpush1.msra.mxu0 0.0
        %4559 = vmatprep.subr.mxu0 0.0
        %4560 = vmatpush1.msra.mxu0 0.0
        %4561 = vmatprep.subr.mxu0 0.0
        %4562 = vmatpush1.msra.mxu0 0.0
        %4563 = vmatprep.subr.mxu0 0.0
        %4564 = vmatpush1.msra.mxu0 0.0
        %4565 = vmatprep.subr.mxu0 0.0
        %4566 = vmatpush1.msra.mxu0 0.0
        %4567 = vmatprep.subr.mxu0 0.0
        %4568 = vmatpush1.msra.mxu0 0.0
        %4569 = vmatprep.subr.mxu0 0.0
        %4570 = vmatpush1.msra.mxu0 0.0
        %4571 = vmatprep.subr.mxu0 0.0
        %4572 = vmatpush1.msra.mxu0 0.0
        %4573 = vmatprep.subr.mxu0 0.0
        %4574 = vmatpush1.msra.mxu0 0.0
        %4575 = vmatprep.subr.mxu0 0.0
        %4576 = vmatpush1.msra.mxu0 0.0
        %4577 = vmatprep.subr.mxu0 0.0
        %4578 = vmatpush1.msra.mxu0 0.0
        %4579 = vmatprep.subr.mxu0 0.0
        %4580 = vmatpush1.msra.mxu0 0.0
        %4581 = vmatprep.subr.mxu0 0.0
        %4582 = vmatpush1.msra.mxu0 0.0
        %4583 = vmatprep.subr.mxu0 0.0
        %4584 = vmatpush1.msra.mxu0 0.0
        %4585 = vmatprep.subr.mxu0 0.0
        %4586 = vmatpush1.msra.mxu0 0.0
        %4587 = vmatprep.subr.mxu0 %v4484
        %4588 = vmatpush1.msra.mxu0 %v4481
        %4589 = vmatprep.subr.mxu0 0.0
        %4590 = vmatpush2.msra.mxu0 0.0
        %4591 = vmatprep.subr.mxu0 0.0
        %4592 = vmatpush2.msra.mxu0 0.0
        %4593 = vmatprep.subr.mxu0 0.0
        %4594 = vmatpush2.msra.mxu0 0.0
        %4595 = vmatprep.subr.mxu0 0.0
        %4596 = vmatpush2.msra.mxu0 0.0
        %4597 = vmatprep.subr.mxu0 0.0
        %4598 = vmatpush2.msra.mxu0 0.0
        %4599 = vmatprep.subr.mxu0 0.0
        %4600 = vmatpush2.msra.mxu0 0.0
        %4601 = vmatprep.subr.mxu0 0.0
        %4602 = vmatpush2.msra.mxu0 0.0
        %4603 = vmatprep.subr.mxu0 0.0
        %4604 = vmatpush2.msra.mxu0 0.0
        %4605 = vmatprep.subr.mxu0 0.0
        %4606 = vmatpush2.msra.mxu0 0.0
        %4607 = vmatprep.subr.mxu0 0.0
        %4608 = vmatpush2.msra.mxu0 0.0
        %4609 = vmatprep.subr.mxu0 0.0
        %4610 = vmatpush2.msra.mxu0 0.0
        %4611 = vmatprep.subr.mxu0 0.0
        %4612 = vmatpush2.msra.mxu0 0.0
        %4613 = vmatprep.subr.mxu0 0.0
        %4614 = vmatpush2.msra.mxu0 0.0
        %4615 = vmatprep.subr.mxu0 0.0
        %4616 = vmatpush2.msra.mxu0 0.0
        %4617 = vmatprep.subr.mxu0 0.0
        %4618 = vmatpush2.msra.mxu0 0.0
        %4619 = vmatprep.subr.mxu0 0.0
        %4620 = vmatpush2.msra.mxu0 0.0
        %4621 = vmatprep.mubr.f32.mxu0 0.0
        %4622 = vmatmul.mubr.f32.gmra.mxu0 %v4472
        %v4623 = vpop.f32.mrf.mxu0
        %v4624 = vadd.f32 %v4469, %v4623
        %v4625 = vpop.f32.mrf.mxu0
        %v4626 = vadd.f32 %v4469, %v4625
        %4627 = vdwg.mxu0
        %vm4628 = vcmask 57344
        %4629 = vst.msk [vmem:[#allocation4] sm:$0x1] %vm4628, %v4553
        %4631 = vrot.lane.b32.xlu0 %v4553, 120
        %v4632 = vpop.permute.xlu0 %4631
        %4634 = vst.msk [vmem:[#allocation4 + $0x1] sm:$0x1] %vm4628, %v4632
        %4635 = vrot.lane.b32.xlu0 %v4553, 112
        %v4636 = vpop.permute.xlu0 %4635
        %4638 = vst.msk [vmem:[#allocation4 + $0x2] sm:$0x1] %vm4628, %v4636
        %4639 = vrot.lane.b32.xlu0 %v4553, 104
        %v4640 = vpop.permute.xlu0 %4639
        %4642 = vst.msk [vmem:[#allocation4 + $0x3] sm:$0x1] %vm4628, %v4640
        %4643 = vrot.lane.b32.xlu0 %v4553, 96
        %v4644 = vpop.permute.xlu0 %4643
        %4646 = vst.msk [vmem:[#allocation4 + $0x4] sm:$0x1] %vm4628, %v4644
        %4647 = vrot.lane.b32.xlu0 %v4553, 88
        %v4648 = vpop.permute.xlu0 %4647
        %4650 = vst.msk [vmem:[#allocation4 + $0x5] sm:$0x1] %vm4628, %v4648
        %4651 = vrot.lane.b32.xlu0 %v4553, 80
        %v4652 = vpop.permute.xlu0 %4651
        %4654 = vst.msk [vmem:[#allocation4 + $0x6] sm:$0x1] %vm4628, %v4652
        %4655 = vrot.lane.b32.xlu0 %v4553, 72
        %v4656 = vpop.permute.xlu0 %4655
        %4658 = vst.msk [vmem:[#allocation4 + $0x7] sm:$0x1] %vm4628, %v4656
        %4659 = vrot.lane.b32.xlu0 %v4553, 64
        %v4660 = vpop.permute.xlu0 %4659
        %4662 = vst.msk [vmem:[#allocation4 + $0x8] sm:$0x1] %vm4628, %v4660
        %4663 = vrot.lane.b32.xlu0 %v4553, 56
        %v4664 = vpop.permute.xlu0 %4663
        %4666 = vst.msk [vmem:[#allocation4 + $0x9] sm:$0x1] %vm4628, %v4664
        %4667 = vrot.lane.b32.xlu0 %v4553, 48
        %v4668 = vpop.permute.xlu0 %4667
        %4670 = vst.msk [vmem:[#allocation4 + $0xa] sm:$0x1] %vm4628, %v4668
        %4671 = vrot.lane.b32.xlu0 %v4553, 40
        %v4672 = vpop.permute.xlu0 %4671
        %4674 = vst.msk [vmem:[#allocation4 + $0xb] sm:$0x1] %vm4628, %v4672
        %4675 = vrot.lane.b32.xlu0 %v4553, 32
        %v4676 = vpop.permute.xlu0 %4675
        %4678 = vst.msk [vmem:[#allocation4 + $0xc] sm:$0x1] %vm4628, %v4676
        %4679 = vrot.lane.b32.xlu0 %v4553, 24
        %v4680 = vpop.permute.xlu0 %4679
        %4682 = vst.msk [vmem:[#allocation4 + $0xd] sm:$0x1] %vm4628, %v4680
        %4683 = vrot.lane.b32.xlu0 %v4553, 16
        %v4684 = vpop.permute.xlu0 %4683
        %4686 = vst.msk [vmem:[#allocation4 + $0xe] sm:$0x1] %vm4628, %v4684
        %4687 = vrot.lane.b32.xlu0 %v4553, 8
        %v4688 = vpop.permute.xlu0 %4687
        %4690 = vst.msk [vmem:[#allocation4 + $0xf] sm:$0x1] %vm4628, %v4688
        %4691 = vst.msk [vmem:[#allocation4 + $0x10] sm:$0x1] %vm4628, %v4555
        %4693 = vrot.lane.b32.xlu0 %v4555, 120
        %v4694 = vpop.permute.xlu0 %4693
        %4696 = vst.msk [vmem:[#allocation4 + $0x11] sm:$0x1] %vm4628, %v4694
        %4697 = vrot.lane.b32.xlu0 %v4555, 112
        %v4698 = vpop.permute.xlu0 %4697
        %4700 = vst.msk [vmem:[#allocation4 + $0x12] sm:$0x1] %vm4628, %v4698
        %4701 = vrot.lane.b32.xlu0 %v4555, 104
        %v4702 = vpop.permute.xlu0 %4701
        %4704 = vst.msk [vmem:[#allocation4 + $0x13] sm:$0x1] %vm4628, %v4702
        %4705 = vrot.lane.b32.xlu0 %v4555, 96
        %v4706 = vpop.permute.xlu0 %4705
        %4708 = vst.msk [vmem:[#allocation4 + $0x14] sm:$0x1] %vm4628, %v4706
        %4709 = vrot.lane.b32.xlu0 %v4555, 88
        %v4710 = vpop.permute.xlu0 %4709
        %4712 = vst.msk [vmem:[#allocation4 + $0x15] sm:$0x1] %vm4628, %v4710
        %4713 = vrot.lane.b32.xlu0 %v4555, 80
        %v4714 = vpop.permute.xlu0 %4713
        %4716 = vst.msk [vmem:[#allocation4 + $0x16] sm:$0x1] %vm4628, %v4714
        %4717 = vrot.lane.b32.xlu0 %v4555, 72
        %v4718 = vpop.permute.xlu0 %4717
        %4720 = vst.msk [vmem:[#allocation4 + $0x17] sm:$0x1] %vm4628, %v4718
        %4721 = vrot.lane.b32.xlu0 %v4555, 64
        %v4722 = vpop.permute.xlu0 %4721
        %4724 = vst.msk [vmem:[#allocation4 + $0x18] sm:$0x1] %vm4628, %v4722
        %4725 = vrot.lane.b32.xlu0 %v4555, 56
        %v4726 = vpop.permute.xlu0 %4725
        %4728 = vst.msk [vmem:[#allocation4 + $0x19] sm:$0x1] %vm4628, %v4726
        %4729 = vrot.lane.b32.xlu0 %v4555, 48
        %v4730 = vpop.permute.xlu0 %4729
        %4732 = vst.msk [vmem:[#allocation4 + $0x1a] sm:$0x1] %vm4628, %v4730
        %4733 = vrot.lane.b32.xlu0 %v4555, 40
        %v4734 = vpop.permute.xlu0 %4733
        %4736 = vst.msk [vmem:[#allocation4 + $0x1b] sm:$0x1] %vm4628, %v4734
        %4737 = vrot.lane.b32.xlu0 %v4555, 32
        %v4738 = vpop.permute.xlu0 %4737
        %4740 = vst.msk [vmem:[#allocation4 + $0x1c] sm:$0x1] %vm4628, %v4738
        %4741 = vrot.lane.b32.xlu0 %v4555, 24
        %v4742 = vpop.permute.xlu0 %4741
        %4744 = vst.msk [vmem:[#allocation4 + $0x1d] sm:$0x1] %vm4628, %v4742
        %4745 = vrot.lane.b32.xlu0 %v4555, 16
        %v4746 = vpop.permute.xlu0 %4745
        %4748 = vst.msk [vmem:[#allocation4 + $0x1e] sm:$0x1] %vm4628, %v4746
        %4749 = vrot.lane.b32.xlu0 %v4555, 8
        %v4750 = vpop.permute.xlu0 %4749
        %4752 = vst.msk [vmem:[#allocation4 + $0x1f] sm:$0x1] %vm4628, %v4750
        %4753 = vst.msk [vmem:[#allocation4 + $0x20] sm:$0x1] %vm4628, %v4624
        %4755 = vrot.lane.b32.xlu0 %v4624, 120
        %v4756 = vpop.permute.xlu0 %4755
        %4758 = vst.msk [vmem:[#allocation4 + $0x21] sm:$0x1] %vm4628, %v4756
        %4759 = vrot.lane.b32.xlu0 %v4624, 112
        %v4760 = vpop.permute.xlu0 %4759
        %4762 = vst.msk [vmem:[#allocation4 + $0x22] sm:$0x1] %vm4628, %v4760
        %4763 = vrot.lane.b32.xlu0 %v4624, 104
        %v4764 = vpop.permute.xlu0 %4763
        %4766 = vst.msk [vmem:[#allocation4 + $0x23] sm:$0x1] %vm4628, %v4764
        %4767 = vrot.lane.b32.xlu0 %v4624, 96
        %v4768 = vpop.permute.xlu0 %4767
        %4770 = vst.msk [vmem:[#allocation4 + $0x24] sm:$0x1] %vm4628, %v4768
        %4771 = vrot.lane.b32.xlu0 %v4624, 88
        %v4772 = vpop.permute.xlu0 %4771
        %4774 = vst.msk [vmem:[#allocation4 + $0x25] sm:$0x1] %vm4628, %v4772
        %4775 = vrot.lane.b32.xlu0 %v4624, 80
        %v4776 = vpop.permute.xlu0 %4775
        %4778 = vst.msk [vmem:[#allocation4 + $0x26] sm:$0x1] %vm4628, %v4776
        %4779 = vrot.lane.b32.xlu0 %v4624, 72
        %v4780 = vpop.permute.xlu0 %4779
        %4782 = vst.msk [vmem:[#allocation4 + $0x27] sm:$0x1] %vm4628, %v4780
        %4783 = vrot.lane.b32.xlu0 %v4624, 64
        %v4784 = vpop.permute.xlu0 %4783
        %4786 = vst.msk [vmem:[#allocation4 + $0x28] sm:$0x1] %vm4628, %v4784
        %4787 = vrot.lane.b32.xlu0 %v4624, 56
        %v4788 = vpop.permute.xlu0 %4787
        %4790 = vst.msk [vmem:[#allocation4 + $0x29] sm:$0x1] %vm4628, %v4788
        %4791 = vrot.lane.b32.xlu0 %v4624, 48
        %v4792 = vpop.permute.xlu0 %4791
        %4794 = vst.msk [vmem:[#allocation4 + $0x2a] sm:$0x1] %vm4628, %v4792
        %4795 = vrot.lane.b32.xlu0 %v4624, 40
        %v4796 = vpop.permute.xlu0 %4795
        %4798 = vst.msk [vmem:[#allocation4 + $0x2b] sm:$0x1] %vm4628, %v4796
        %4799 = vrot.lane.b32.xlu0 %v4624, 32
        %v4800 = vpop.permute.xlu0 %4799
        %4802 = vst.msk [vmem:[#allocation4 + $0x2c] sm:$0x1] %vm4628, %v4800
        %4803 = vrot.lane.b32.xlu0 %v4624, 24
        %v4804 = vpop.permute.xlu0 %4803
        %4806 = vst.msk [vmem:[#allocation4 + $0x2d] sm:$0x1] %vm4628, %v4804
        %4807 = vrot.lane.b32.xlu0 %v4624, 16
        %v4808 = vpop.permute.xlu0 %4807
        %4810 = vst.msk [vmem:[#allocation4 + $0x2e] sm:$0x1] %vm4628, %v4808
        %4811 = vrot.lane.b32.xlu0 %v4624, 8
        %v4812 = vpop.permute.xlu0 %4811
        %4814 = vst.msk [vmem:[#allocation4 + $0x2f] sm:$0x1] %vm4628, %v4812
        %4815 = vst.msk [vmem:[#allocation4 + $0x30] sm:$0x1] %vm4628, %v4626
        %4817 = vrot.lane.b32.xlu0 %v4626, 120
        %v4818 = vpop.permute.xlu0 %4817
        %4820 = vst.msk [vmem:[#allocation4 + $0x31] sm:$0x1] %vm4628, %v4818
        %4821 = vrot.lane.b32.xlu0 %v4626, 112
        %v4822 = vpop.permute.xlu0 %4821
        %4824 = vst.msk [vmem:[#allocation4 + $0x32] sm:$0x1] %vm4628, %v4822
        %4825 = vrot.lane.b32.xlu0 %v4626, 104
        %v4826 = vpop.permute.xlu0 %4825
        %4828 = vst.msk [vmem:[#allocation4 + $0x33] sm:$0x1] %vm4628, %v4826
        %4829 = vrot.lane.b32.xlu0 %v4626, 96
        %v4830 = vpop.permute.xlu0 %4829
        %4832 = vst.msk [vmem:[#allocation4 + $0x34] sm:$0x1] %vm4628, %v4830
        %4833 = vrot.lane.b32.xlu0 %v4626, 88
        %v4834 = vpop.permute.xlu0 %4833
        %4836 = vst.msk [vmem:[#allocation4 + $0x35] sm:$0x1] %vm4628, %v4834
        %4837 = vrot.lane.b32.xlu0 %v4626, 80
        %v4838 = vpop.permute.xlu0 %4837
        %4840 = vst.msk [vmem:[#allocation4 + $0x36] sm:$0x1] %vm4628, %v4838
        %4841 = vrot.lane.b32.xlu0 %v4626, 72
        %v4842 = vpop.permute.xlu0 %4841
        %4844 = vst.msk [vmem:[#allocation4 + $0x37] sm:$0x1] %vm4628, %v4842
        %4845 = vrot.lane.b32.xlu0 %v4626, 64
        %v4846 = vpop.permute.xlu0 %4845
        %4848 = vst.msk [vmem:[#allocation4 + $0x38] sm:$0x1] %vm4628, %v4846
        %4849 = vrot.lane.b32.xlu0 %v4626, 56
        %v4850 = vpop.permute.xlu0 %4849
        %4852 = vst.msk [vmem:[#allocation4 + $0x39] sm:$0x1] %vm4628, %v4850
        %4853 = vrot.lane.b32.xlu0 %v4626, 48
        %v4854 = vpop.permute.xlu0 %4853
        %4856 = vst.msk [vmem:[#allocation4 + $0x3a] sm:$0x1] %vm4628, %v4854
        %4857 = vrot.lane.b32.xlu0 %v4626, 40
        %v4858 = vpop.permute.xlu0 %4857
        %4860 = vst.msk [vmem:[#allocation4 + $0x3b] sm:$0x1] %vm4628, %v4858
        %4861 = vrot.lane.b32.xlu0 %v4626, 32
        %v4862 = vpop.permute.xlu0 %4861
        %4864 = vst.msk [vmem:[#allocation4 + $0x3c] sm:$0x1] %vm4628, %v4862
        %4865 = vrot.lane.b32.xlu0 %v4626, 24
        %v4866 = vpop.permute.xlu0 %4865
        %4868 = vst.msk [vmem:[#allocation4 + $0x3d] sm:$0x1] %vm4628, %v4866
        %4869 = vrot.lane.b32.xlu0 %v4626, 16
        %v4870 = vpop.permute.xlu0 %4869
        %4872 = vst.msk [vmem:[#allocation4 + $0x3e] sm:$0x1] %vm4628, %v4870
        %4873 = vrot.lane.b32.xlu0 %v4626, 8
        %v4874 = vpop.permute.xlu0 %4873
        %4876 = vst.msk [vmem:[#allocation4 + $0x3f] sm:$0x1] %vm4628, %v4874
        %v4877 = vld [vmem:[#allocation4] sm:$0xff]
        %v4878 = vld [vmem:[#allocation4 + $0x8] sm:$0xff]
        %v4879 = vld [vmem:[#allocation4 + $0x10] sm:$0xff]
        %v4880 = vld [vmem:[#allocation4 + $0x18] sm:$0xff]
        %v4881 = vld [vmem:[#allocation4 + $0x20] sm:$0xff]
        %v4882 = vld [vmem:[#allocation4 + $0x28] sm:$0xff]
        %v4883 = vld [vmem:[#allocation4 + $0x30] sm:$0xff]
        %v4884 = vld [vmem:[#allocation4 + $0x38] sm:$0xff]
        %v4885 = vld [vmem:[%s11] sm:$0xff]
        %v4887 = vsel %vm1211, %v4877, 0
        %v4890 = vsel %vm1211, %v4878, 0
        %v4893 = vsel %vm1211, %v4879, 0
        %v4896 = vsel %vm1211, %v4880, 0
        %v4899 = vsel %vm1211, %v4881, 0
        %v4902 = vsel %vm1211, %v4882, 0
        %v4905 = vsel %vm1211, %v4883, 0
        %v4908 = vsel %vm1211, %v4884, 0
        %4910 = vmatprep.subr.mxu0 0.0
        %4911 = vmatpush1.msra.mxu0 0.0
        %4912 = vmatprep.subr.mxu0 0.0
        %4913 = vmatpush1.msra.mxu0 0.0
        %4914 = vmatprep.subr.mxu0 0.0
        %4915 = vmatpush1.msra.mxu0 0.0
        %4916 = vmatprep.subr.mxu0 0.0
        %4917 = vmatpush1.msra.mxu0 0.0
        %4918 = vmatprep.subr.mxu0 0.0
        %4919 = vmatpush1.msra.mxu0 0.0
        %4920 = vmatprep.subr.mxu0 0.0
        %4921 = vmatpush1.msra.mxu0 0.0
        %4922 = vmatprep.subr.mxu0 0.0
        %4923 = vmatpush1.msra.mxu0 0.0
        %4924 = vmatprep.subr.mxu0 0.0
        %4925 = vmatpush1.msra.mxu0 0.0
        %4926 = vmatprep.subr.mxu0 0.0
        %4927 = vmatpush1.msra.mxu0 0.0
        %4928 = vmatprep.subr.mxu0 0.0
        %4929 = vmatpush1.msra.mxu0 0.0
        %4930 = vmatprep.subr.mxu0 0.0
        %4931 = vmatpush1.msra.mxu0 0.0
        %4932 = vmatprep.subr.mxu0 0.0
        %4933 = vmatpush1.msra.mxu0 0.0
        %4934 = vmatprep.subr.mxu0 0.0
        %4935 = vmatpush1.msra.mxu0 0.0
        %4936 = vmatprep.subr.mxu0 0.0
        %4937 = vmatpush1.msra.mxu0 0.0
        %4938 = vmatprep.subr.mxu0 0.0
        %4939 = vmatpush1.msra.mxu0 0.0
        %4940 = vmatprep.subr.mxu0 0.0
        %4941 = vmatpush1.msra.mxu0 %v4885
        %4942 = vmatprep.subr.mxu0 0.0
        %4943 = vmatpush2.msra.mxu0 0.0
        %4944 = vmatprep.subr.mxu0 0.0
        %4945 = vmatpush2.msra.mxu0 0.0
        %4946 = vmatprep.subr.mxu0 0.0
        %4947 = vmatpush2.msra.mxu0 0.0
        %4948 = vmatprep.subr.mxu0 0.0
        %4949 = vmatpush2.msra.mxu0 0.0
        %4950 = vmatprep.subr.mxu0 0.0
        %4951 = vmatpush2.msra.mxu0 0.0
        %4952 = vmatprep.subr.mxu0 0.0
        %4953 = vmatpush2.msra.mxu0 0.0
        %4954 = vmatprep.subr.mxu0 0.0
        %4955 = vmatpush2.msra.mxu0 0.0
        %4956 = vmatprep.subr.mxu0 0.0
        %4957 = vmatpush2.msra.mxu0 0.0
        %4958 = vmatprep.subr.mxu0 0.0
        %4959 = vmatpush2.msra.mxu0 0.0
        %4960 = vmatprep.subr.mxu0 0.0
        %4961 = vmatpush2.msra.mxu0 0.0
        %4962 = vmatprep.subr.mxu0 0.0
        %4963 = vmatpush2.msra.mxu0 0.0
        %4964 = vmatprep.subr.mxu0 0.0
        %4965 = vmatpush2.msra.mxu0 0.0
        %4966 = vmatprep.subr.mxu0 0.0
        %4967 = vmatpush2.msra.mxu0 0.0
        %4968 = vmatprep.subr.mxu0 0.0
        %4969 = vmatpush2.msra.mxu0 0.0
        %4970 = vmatprep.subr.mxu0 0.0
        %4971 = vmatpush2.msra.mxu0 0.0
        %4972 = vmatprep.subr.mxu0 0.0
        %4973 = vmatpush2.msra.mxu0 0.0
        %4974 = vmatprep.mubr.f32.mxu0 0.0
        %4975 = vmatmul.mubr.f32.gmra.mxu0 %v4887
        %v4976 = vpop.f32.mrf.mxu0
        %v4977 = vadd.f32 0.0, %v4976
        %v4978 = vpop.f32.mrf.mxu0
        %4979 = vmatprep.mubr.f32.mxu0 0.0
        %4980 = vmatmul.mubr.f32.gmra.mxu0 %v4890
        %v4981 = vpop.f32.mrf.mxu0
        %v4982 = vadd.f32 0.0, %v4981
        %v4983 = vpop.f32.mrf.mxu0
        %4984 = vmatprep.mubr.f32.mxu0 0.0
        %4985 = vmatmul.mubr.f32.gmra.mxu0 %v4893
        %v4986 = vpop.f32.mrf.mxu0
        %v4987 = vadd.f32 0.0, %v4986
        %v4988 = vpop.f32.mrf.mxu0
        %4989 = vmatprep.mubr.f32.mxu0 0.0
        %4990 = vmatmul.mubr.f32.gmra.mxu0 %v4896
        %v4991 = vpop.f32.mrf.mxu0
        %v4992 = vadd.f32 0.0, %v4991
        %v4993 = vpop.f32.mrf.mxu0
        %4994 = vmatprep.mubr.f32.mxu0 0.0
        %4995 = vmatmul.mubr.f32.gmra.mxu0 %v4899
        %v4996 = vpop.f32.mrf.mxu0
        %v4997 = vadd.f32 0.0, %v4996
        %v4998 = vpop.f32.mrf.mxu0
        %4999 = vmatprep.mubr.f32.mxu0 0.0
        %5000 = vmatmul.mubr.f32.gmra.mxu0 %v4902
        %v5001 = vpop.f32.mrf.mxu0
        %v5002 = vadd.f32 0.0, %v5001
        %v5003 = vpop.f32.mrf.mxu0
        %5004 = vmatprep.mubr.f32.mxu0 0.0
        %5005 = vmatmul.mubr.f32.gmra.mxu0 %v4905
        %v5006 = vpop.f32.mrf.mxu0
        %v5007 = vadd.f32 0.0, %v5006
        %v5008 = vpop.f32.mrf.mxu0
        %5009 = vmatprep.mubr.f32.mxu0 0.0
        %5010 = vmatmul.mubr.f32.gmra.mxu0 %v4908
        %v5011 = vpop.f32.mrf.mxu0
        %v5012 = vadd.f32 0.0, %v5011
        %v5013 = vpop.f32.mrf.mxu0
        %5014 = vdwg.mxu0
        %v5015 = vld [vmem:[%s10] sm:$0xff]
        %v5016 = vld [vmem:[%s10 + $0x8] sm:$0xff]
        %v5018 = vsel %vm1211, %v5015, 0
        %v5021 = vsel %vm1211, %v5016, 0
        %5023 = vmatprep.subr.mxu0 0.0
        %5024 = vmatpush1.msra.mxu0 0.0
        %5025 = vmatprep.subr.mxu0 0.0
        %5026 = vmatpush1.msra.mxu0 0.0
        %5027 = vmatprep.subr.mxu0 0.0
        %5028 = vmatpush1.msra.mxu0 0.0
        %5029 = vmatprep.subr.mxu0 0.0
        %5030 = vmatpush1.msra.mxu0 0.0
        %5031 = vmatprep.subr.mxu0 0.0
        %5032 = vmatpush1.msra.mxu0 0.0
        %5033 = vmatprep.subr.mxu0 0.0
        %5034 = vmatpush1.msra.mxu0 0.0
        %5035 = vmatprep.subr.mxu0 0.0
        %5036 = vmatpush1.msra.mxu0 0.0
        %5037 = vmatprep.subr.mxu0 0.0
        %5038 = vmatpush1.msra.mxu0 0.0
        %5039 = vmatprep.subr.mxu0 0.0
        %5040 = vmatpush1.msra.mxu0 0.0
        %5041 = vmatprep.subr.mxu0 0.0
        %5042 = vmatpush1.msra.mxu0 0.0
        %5043 = vmatprep.subr.mxu0 0.0
        %5044 = vmatpush1.msra.mxu0 0.0
        %5045 = vmatprep.subr.mxu0 0.0
        %5046 = vmatpush1.msra.mxu0 0.0
        %5047 = vmatprep.subr.mxu0 0.0
        %5048 = vmatpush1.msra.mxu0 0.0
        %5049 = vmatprep.subr.mxu0 0.0
        %5050 = vmatpush1.msra.mxu0 0.0
        %5051 = vmatprep.subr.mxu0 0.0
        %5052 = vmatpush1.msra.mxu0 0.0
        %5053 = vmatprep.subr.mxu0 0.0
        %5054 = vmatpush1.msra.mxu0 %v4977
        %5055 = vmatprep.subr.mxu0 0.0
        %5056 = vmatpush2.msra.mxu0 0.0
        %5057 = vmatprep.subr.mxu0 0.0
        %5058 = vmatpush2.msra.mxu0 0.0
        %5059 = vmatprep.subr.mxu0 0.0
        %5060 = vmatpush2.msra.mxu0 0.0
        %5061 = vmatprep.subr.mxu0 0.0
        %5062 = vmatpush2.msra.mxu0 0.0
        %5063 = vmatprep.subr.mxu0 0.0
        %5064 = vmatpush2.msra.mxu0 0.0
        %5065 = vmatprep.subr.mxu0 0.0
        %5066 = vmatpush2.msra.mxu0 0.0
        %5067 = vmatprep.subr.mxu0 0.0
        %5068 = vmatpush2.msra.mxu0 0.0
        %5069 = vmatprep.subr.mxu0 0.0
        %5070 = vmatpush2.msra.mxu0 0.0
        %5071 = vmatprep.subr.mxu0 0.0
        %5072 = vmatpush2.msra.mxu0 0.0
        %5073 = vmatprep.subr.mxu0 0.0
        %5074 = vmatpush2.msra.mxu0 0.0
        %5075 = vmatprep.subr.mxu0 0.0
        %5076 = vmatpush2.msra.mxu0 0.0
        %5077 = vmatprep.subr.mxu0 0.0
        %5078 = vmatpush2.msra.mxu0 0.0
        %5079 = vmatprep.subr.mxu0 0.0
        %5080 = vmatpush2.msra.mxu0 0.0
        %5081 = vmatprep.subr.mxu0 0.0
        %5082 = vmatpush2.msra.mxu0 0.0
        %5083 = vmatprep.subr.mxu0 0.0
        %5084 = vmatpush2.msra.mxu0 0.0
        %5085 = vmatprep.subr.mxu0 0.0
        %5086 = vmatpush2.msra.mxu0 0.0
        %5087 = vmatprep.mubr.f32.mxu0 0.0
        %5088 = vmatmul.mubr.f32.gmra.mxu0 %v5018
        %v5089 = vpop.f32.mrf.mxu0
        %v5090 = vadd.f32 0.0, %v5089
        %v5091 = vpop.f32.mrf.mxu0
        %5092 = vmatprep.mubr.f32.mxu0 0.0
        %5093 = vmatmul.mubr.f32.gmra.mxu0 %v5021
        %v5094 = vpop.f32.mrf.mxu0
        %v5095 = vadd.f32 0.0, %v5094
        %v5096 = vpop.f32.mrf.mxu0
        %5097 = vdwg.mxu0
        %5098 = vmatprep.subr.mxu0 0.0
        %5099 = vmatpush1.msra.mxu0 0.0
        %5100 = vmatprep.subr.mxu0 0.0
        %5101 = vmatpush1.msra.mxu0 0.0
        %5102 = vmatprep.subr.mxu0 0.0
        %5103 = vmatpush1.msra.mxu0 0.0
        %5104 = vmatprep.subr.mxu0 0.0
        %5105 = vmatpush1.msra.mxu0 0.0
        %5106 = vmatprep.subr.mxu0 0.0
        %5107 = vmatpush1.msra.mxu0 0.0
        %5108 = vmatprep.subr.mxu0 0.0
        %5109 = vmatpush1.msra.mxu0 0.0
        %5110 = vmatprep.subr.mxu0 0.0
        %5111 = vmatpush1.msra.mxu0 0.0
        %5112 = vmatprep.subr.mxu0 0.0
        %5113 = vmatpush1.msra.mxu0 0.0
        %5114 = vmatprep.subr.mxu0 0.0
        %5115 = vmatpush1.msra.mxu0 0.0
        %5116 = vmatprep.subr.mxu0 0.0
        %5117 = vmatpush1.msra.mxu0 0.0
        %5118 = vmatprep.subr.mxu0 0.0
        %5119 = vmatpush1.msra.mxu0 0.0
        %5120 = vmatprep.subr.mxu0 0.0
        %5121 = vmatpush1.msra.mxu0 0.0
        %5122 = vmatprep.subr.mxu0 0.0
        %5123 = vmatpush1.msra.mxu0 0.0
        %5124 = vmatprep.subr.mxu0 0.0
        %5125 = vmatpush1.msra.mxu0 0.0
        %5126 = vmatprep.subr.mxu0 0.0
        %5127 = vmatpush1.msra.mxu0 0.0
        %5128 = vmatprep.subr.mxu0 0.0
        %5129 = vmatpush1.msra.mxu0 %v4982
        %5130 = vmatprep.subr.mxu0 0.0
        %5131 = vmatpush2.msra.mxu0 0.0
        %5132 = vmatprep.subr.mxu0 0.0
        %5133 = vmatpush2.msra.mxu0 0.0
        %5134 = vmatprep.subr.mxu0 0.0
        %5135 = vmatpush2.msra.mxu0 0.0
        %5136 = vmatprep.subr.mxu0 0.0
        %5137 = vmatpush2.msra.mxu0 0.0
        %5138 = vmatprep.subr.mxu0 0.0
        %5139 = vmatpush2.msra.mxu0 0.0
        %5140 = vmatprep.subr.mxu0 0.0
        %5141 = vmatpush2.msra.mxu0 0.0
        %5142 = vmatprep.subr.mxu0 0.0
        %5143 = vmatpush2.msra.mxu0 0.0
        %5144 = vmatprep.subr.mxu0 0.0
        %5145 = vmatpush2.msra.mxu0 0.0
        %5146 = vmatprep.subr.mxu0 0.0
        %5147 = vmatpush2.msra.mxu0 0.0
        %5148 = vmatprep.subr.mxu0 0.0
        %5149 = vmatpush2.msra.mxu0 0.0
        %5150 = vmatprep.subr.mxu0 0.0
        %5151 = vmatpush2.msra.mxu0 0.0
        %5152 = vmatprep.subr.mxu0 0.0
        %5153 = vmatpush2.msra.mxu0 0.0
        %5154 = vmatprep.subr.mxu0 0.0
        %5155 = vmatpush2.msra.mxu0 0.0
        %5156 = vmatprep.subr.mxu0 0.0
        %5157 = vmatpush2.msra.mxu0 0.0
        %5158 = vmatprep.subr.mxu0 0.0
        %5159 = vmatpush2.msra.mxu0 0.0
        %5160 = vmatprep.subr.mxu0 0.0
        %5161 = vmatpush2.msra.mxu0 0.0
        %5162 = vmatprep.mubr.f32.mxu0 0.0
        %5163 = vmatmul.mubr.f32.gmra.mxu0 %v5018
        %v5164 = vpop.f32.mrf.mxu0
        %v5165 = vadd.f32 0.0, %v5164
        %v5166 = vpop.f32.mrf.mxu0
        %5167 = vmatprep.mubr.f32.mxu0 0.0
        %5168 = vmatmul.mubr.f32.gmra.mxu0 %v5021
        %v5169 = vpop.f32.mrf.mxu0
        %v5170 = vadd.f32 0.0, %v5169
        %v5171 = vpop.f32.mrf.mxu0
        %5172 = vdwg.mxu0
        %5173 = vmatprep.subr.mxu0 0.0
        %5174 = vmatpush1.msra.mxu0 0.0
        %5175 = vmatprep.subr.mxu0 0.0
        %5176 = vmatpush1.msra.mxu0 0.0
        %5177 = vmatprep.subr.mxu0 0.0
        %5178 = vmatpush1.msra.mxu0 0.0
        %5179 = vmatprep.subr.mxu0 0.0
        %5180 = vmatpush1.msra.mxu0 0.0
        %5181 = vmatprep.subr.mxu0 0.0
        %5182 = vmatpush1.msra.mxu0 0.0
        %5183 = vmatprep.subr.mxu0 0.0
        %5184 = vmatpush1.msra.mxu0 0.0
        %5185 = vmatprep.subr.mxu0 0.0
        %5186 = vmatpush1.msra.mxu0 0.0
        %5187 = vmatprep.subr.mxu0 0.0
        %5188 = vmatpush1.msra.mxu0 0.0
        %5189 = vmatprep.subr.mxu0 0.0
        %5190 = vmatpush1.msra.mxu0 0.0
        %5191 = vmatprep.subr.mxu0 0.0
        %5192 = vmatpush1.msra.mxu0 0.0
        %5193 = vmatprep.subr.mxu0 0.0
        %5194 = vmatpush1.msra.mxu0 0.0
        %5195 = vmatprep.subr.mxu0 0.0
        %5196 = vmatpush1.msra.mxu0 0.0
        %5197 = vmatprep.subr.mxu0 0.0
        %5198 = vmatpush1.msra.mxu0 0.0
        %5199 = vmatprep.subr.mxu0 0.0
        %5200 = vmatpush1.msra.mxu0 0.0
        %5201 = vmatprep.subr.mxu0 0.0
        %5202 = vmatpush1.msra.mxu0 0.0
        %5203 = vmatprep.subr.mxu0 0.0
        %5204 = vmatpush1.msra.mxu0 %v4987
        %5205 = vmatprep.subr.mxu0 0.0
        %5206 = vmatpush2.msra.mxu0 0.0
        %5207 = vmatprep.subr.mxu0 0.0
        %5208 = vmatpush2.msra.mxu0 0.0
        %5209 = vmatprep.subr.mxu0 0.0
        %5210 = vmatpush2.msra.mxu0 0.0
        %5211 = vmatprep.subr.mxu0 0.0
        %5212 = vmatpush2.msra.mxu0 0.0
        %5213 = vmatprep.subr.mxu0 0.0
        %5214 = vmatpush2.msra.mxu0 0.0
        %5215 = vmatprep.subr.mxu0 0.0
        %5216 = vmatpush2.msra.mxu0 0.0
        %5217 = vmatprep.subr.mxu0 0.0
        %5218 = vmatpush2.msra.mxu0 0.0
        %5219 = vmatprep.subr.mxu0 0.0
        %5220 = vmatpush2.msra.mxu0 0.0
        %5221 = vmatprep.subr.mxu0 0.0
        %5222 = vmatpush2.msra.mxu0 0.0
        %5223 = vmatprep.subr.mxu0 0.0
        %5224 = vmatpush2.msra.mxu0 0.0
        %5225 = vmatprep.subr.mxu0 0.0
        %5226 = vmatpush2.msra.mxu0 0.0
        %5227 = vmatprep.subr.mxu0 0.0
        %5228 = vmatpush2.msra.mxu0 0.0
        %5229 = vmatprep.subr.mxu0 0.0
        %5230 = vmatpush2.msra.mxu0 0.0
        %5231 = vmatprep.subr.mxu0 0.0
        %5232 = vmatpush2.msra.mxu0 0.0
        %5233 = vmatprep.subr.mxu0 0.0
        %5234 = vmatpush2.msra.mxu0 0.0
        %5235 = vmatprep.subr.mxu0 0.0
        %5236 = vmatpush2.msra.mxu0 0.0
        %5237 = vmatprep.mubr.f32.mxu0 0.0
        %5238 = vmatmul.mubr.f32.gmra.mxu0 %v5018
        %v5239 = vpop.f32.mrf.mxu0
        %v5240 = vadd.f32 0.0, %v5239
        %v5241 = vpop.f32.mrf.mxu0
        %5242 = vmatprep.mubr.f32.mxu0 0.0
        %5243 = vmatmul.mubr.f32.gmra.mxu0 %v5021
        %v5244 = vpop.f32.mrf.mxu0
        %v5245 = vadd.f32 0.0, %v5244
        %v5246 = vpop.f32.mrf.mxu0
        %5247 = vdwg.mxu0
        %5248 = vmatprep.subr.mxu0 0.0
        %5249 = vmatpush1.msra.mxu0 0.0
        %5250 = vmatprep.subr.mxu0 0.0
        %5251 = vmatpush1.msra.mxu0 0.0
        %5252 = vmatprep.subr.mxu0 0.0
        %5253 = vmatpush1.msra.mxu0 0.0
        %5254 = vmatprep.subr.mxu0 0.0
        %5255 = vmatpush1.msra.mxu0 0.0
        %5256 = vmatprep.subr.mxu0 0.0
        %5257 = vmatpush1.msra.mxu0 0.0
        %5258 = vmatprep.subr.mxu0 0.0
        %5259 = vmatpush1.msra.mxu0 0.0
        %5260 = vmatprep.subr.mxu0 0.0
        %5261 = vmatpush1.msra.mxu0 0.0
        %5262 = vmatprep.subr.mxu0 0.0
        %5263 = vmatpush1.msra.mxu0 0.0
        %5264 = vmatprep.subr.mxu0 0.0
        %5265 = vmatpush1.msra.mxu0 0.0
        %5266 = vmatprep.subr.mxu0 0.0
        %5267 = vmatpush1.msra.mxu0 0.0
        %5268 = vmatprep.subr.mxu0 0.0
        %5269 = vmatpush1.msra.mxu0 0.0
        %5270 = vmatprep.subr.mxu0 0.0
        %5271 = vmatpush1.msra.mxu0 0.0
        %5272 = vmatprep.subr.mxu0 0.0
        %5273 = vmatpush1.msra.mxu0 0.0
        %5274 = vmatprep.subr.mxu0 0.0
        %5275 = vmatpush1.msra.mxu0 0.0
        %5276 = vmatprep.subr.mxu0 0.0
        %5277 = vmatpush1.msra.mxu0 0.0
        %5278 = vmatprep.subr.mxu0 0.0
        %5279 = vmatpush1.msra.mxu0 %v4992
        %5280 = vmatprep.subr.mxu0 0.0
        %5281 = vmatpush2.msra.mxu0 0.0
        %5282 = vmatprep.subr.mxu0 0.0
        %5283 = vmatpush2.msra.mxu0 0.0
        %5284 = vmatprep.subr.mxu0 0.0
        %5285 = vmatpush2.msra.mxu0 0.0
        %5286 = vmatprep.subr.mxu0 0.0
        %5287 = vmatpush2.msra.mxu0 0.0
        %5288 = vmatprep.subr.mxu0 0.0
        %5289 = vmatpush2.msra.mxu0 0.0
        %5290 = vmatprep.subr.mxu0 0.0
        %5291 = vmatpush2.msra.mxu0 0.0
        %5292 = vmatprep.subr.mxu0 0.0
        %5293 = vmatpush2.msra.mxu0 0.0
        %5294 = vmatprep.subr.mxu0 0.0
        %5295 = vmatpush2.msra.mxu0 0.0
        %5296 = vmatprep.subr.mxu0 0.0
        %5297 = vmatpush2.msra.mxu0 0.0
        %5298 = vmatprep.subr.mxu0 0.0
        %5299 = vmatpush2.msra.mxu0 0.0
        %5300 = vmatprep.subr.mxu0 0.0
        %5301 = vmatpush2.msra.mxu0 0.0
        %5302 = vmatprep.subr.mxu0 0.0
        %5303 = vmatpush2.msra.mxu0 0.0
        %5304 = vmatprep.subr.mxu0 0.0
        %5305 = vmatpush2.msra.mxu0 0.0
        %5306 = vmatprep.subr.mxu0 0.0
        %5307 = vmatpush2.msra.mxu0 0.0
        %5308 = vmatprep.subr.mxu0 0.0
        %5309 = vmatpush2.msra.mxu0 0.0
        %5310 = vmatprep.subr.mxu0 0.0
        %5311 = vmatpush2.msra.mxu0 0.0
        %5312 = vmatprep.mubr.f32.mxu0 0.0
        %5313 = vmatmul.mubr.f32.gmra.mxu0 %v5018
        %v5314 = vpop.f32.mrf.mxu0
        %v5315 = vadd.f32 0.0, %v5314
        %v5316 = vpop.f32.mrf.mxu0
        %5317 = vmatprep.mubr.f32.mxu0 0.0
        %5318 = vmatmul.mubr.f32.gmra.mxu0 %v5021
        %v5319 = vpop.f32.mrf.mxu0
        %v5320 = vadd.f32 0.0, %v5319
        %v5321 = vpop.f32.mrf.mxu0
        %5322 = vdwg.mxu0
        %5323 = vmatprep.subr.mxu0 0.0
        %5324 = vmatpush1.msra.mxu0 0.0
        %5325 = vmatprep.subr.mxu0 0.0
        %5326 = vmatpush1.msra.mxu0 0.0
        %5327 = vmatprep.subr.mxu0 0.0
        %5328 = vmatpush1.msra.mxu0 0.0
        %5329 = vmatprep.subr.mxu0 0.0
        %5330 = vmatpush1.msra.mxu0 0.0
        %5331 = vmatprep.subr.mxu0 0.0
        %5332 = vmatpush1.msra.mxu0 0.0
        %5333 = vmatprep.subr.mxu0 0.0
        %5334 = vmatpush1.msra.mxu0 0.0
        %5335 = vmatprep.subr.mxu0 0.0
        %5336 = vmatpush1.msra.mxu0 0.0
        %5337 = vmatprep.subr.mxu0 0.0
        %5338 = vmatpush1.msra.mxu0 0.0
        %5339 = vmatprep.subr.mxu0 0.0
        %5340 = vmatpush1.msra.mxu0 0.0
        %5341 = vmatprep.subr.mxu0 0.0
        %5342 = vmatpush1.msra.mxu0 0.0
        %5343 = vmatprep.subr.mxu0 0.0
        %5344 = vmatpush1.msra.mxu0 0.0
        %5345 = vmatprep.subr.mxu0 0.0
        %5346 = vmatpush1.msra.mxu0 0.0
        %5347 = vmatprep.subr.mxu0 0.0
        %5348 = vmatpush1.msra.mxu0 0.0
        %5349 = vmatprep.subr.mxu0 0.0
        %5350 = vmatpush1.msra.mxu0 0.0
        %5351 = vmatprep.subr.mxu0 0.0
        %5352 = vmatpush1.msra.mxu0 0.0
        %5353 = vmatprep.subr.mxu0 0.0
        %5354 = vmatpush1.msra.mxu0 %v4997
        %5355 = vmatprep.subr.mxu0 0.0
        %5356 = vmatpush2.msra.mxu0 0.0
        %5357 = vmatprep.subr.mxu0 0.0
        %5358 = vmatpush2.msra.mxu0 0.0
        %5359 = vmatprep.subr.mxu0 0.0
        %5360 = vmatpush2.msra.mxu0 0.0
        %5361 = vmatprep.subr.mxu0 0.0
        %5362 = vmatpush2.msra.mxu0 0.0
        %5363 = vmatprep.subr.mxu0 0.0
        %5364 = vmatpush2.msra.mxu0 0.0
        %5365 = vmatprep.subr.mxu0 0.0
        %5366 = vmatpush2.msra.mxu0 0.0
        %5367 = vmatprep.subr.mxu0 0.0
        %5368 = vmatpush2.msra.mxu0 0.0
        %5369 = vmatprep.subr.mxu0 0.0
        %5370 = vmatpush2.msra.mxu0 0.0
        %5371 = vmatprep.subr.mxu0 0.0
        %5372 = vmatpush2.msra.mxu0 0.0
        %5373 = vmatprep.subr.mxu0 0.0
        %5374 = vmatpush2.msra.mxu0 0.0
        %5375 = vmatprep.subr.mxu0 0.0
        %5376 = vmatpush2.msra.mxu0 0.0
        %5377 = vmatprep.subr.mxu0 0.0
        %5378 = vmatpush2.msra.mxu0 0.0
        %5379 = vmatprep.subr.mxu0 0.0
        %5380 = vmatpush2.msra.mxu0 0.0
        %5381 = vmatprep.subr.mxu0 0.0
        %5382 = vmatpush2.msra.mxu0 0.0
        %5383 = vmatprep.subr.mxu0 0.0
        %5384 = vmatpush2.msra.mxu0 0.0
        %5385 = vmatprep.subr.mxu0 0.0
        %5386 = vmatpush2.msra.mxu0 0.0
        %5387 = vmatprep.mubr.f32.mxu0 0.0
        %5388 = vmatmul.mubr.f32.gmra.mxu0 %v5018
        %v5389 = vpop.f32.mrf.mxu0
        %v5390 = vadd.f32 0.0, %v5389
        %v5391 = vpop.f32.mrf.mxu0
        %5392 = vmatprep.mubr.f32.mxu0 0.0
        %5393 = vmatmul.mubr.f32.gmra.mxu0 %v5021
        %v5394 = vpop.f32.mrf.mxu0
        %v5395 = vadd.f32 0.0, %v5394
        %v5396 = vpop.f32.mrf.mxu0
        %5397 = vdwg.mxu0
        %5398 = vmatprep.subr.mxu0 0.0
        %5399 = vmatpush1.msra.mxu0 0.0
        %5400 = vmatprep.subr.mxu0 0.0
        %5401 = vmatpush1.msra.mxu0 0.0
        %5402 = vmatprep.subr.mxu0 0.0
        %5403 = vmatpush1.msra.mxu0 0.0
        %5404 = vmatprep.subr.mxu0 0.0
        %5405 = vmatpush1.msra.mxu0 0.0
        %5406 = vmatprep.subr.mxu0 0.0
        %5407 = vmatpush1.msra.mxu0 0.0
        %5408 = vmatprep.subr.mxu0 0.0
        %5409 = vmatpush1.msra.mxu0 0.0
        %5410 = vmatprep.subr.mxu0 0.0
        %5411 = vmatpush1.msra.mxu0 0.0
        %5412 = vmatprep.subr.mxu0 0.0
        %5413 = vmatpush1.msra.mxu0 0.0
        %5414 = vmatprep.subr.mxu0 0.0
        %5415 = vmatpush1.msra.mxu0 0.0
        %5416 = vmatprep.subr.mxu0 0.0
        %5417 = vmatpush1.msra.mxu0 0.0
        %5418 = vmatprep.subr.mxu0 0.0
        %5419 = vmatpush1.msra.mxu0 0.0
        %5420 = vmatprep.subr.mxu0 0.0
        %5421 = vmatpush1.msra.mxu0 0.0
        %5422 = vmatprep.subr.mxu0 0.0
        %5423 = vmatpush1.msra.mxu0 0.0
        %5424 = vmatprep.subr.mxu0 0.0
        %5425 = vmatpush1.msra.mxu0 0.0
        %5426 = vmatprep.subr.mxu0 0.0
        %5427 = vmatpush1.msra.mxu0 0.0
        %5428 = vmatprep.subr.mxu0 0.0
        %5429 = vmatpush1.msra.mxu0 %v5002
        %5430 = vmatprep.subr.mxu0 0.0
        %5431 = vmatpush2.msra.mxu0 0.0
        %5432 = vmatprep.subr.mxu0 0.0
        %5433 = vmatpush2.msra.mxu0 0.0
        %5434 = vmatprep.subr.mxu0 0.0
        %5435 = vmatpush2.msra.mxu0 0.0
        %5436 = vmatprep.subr.mxu0 0.0
        %5437 = vmatpush2.msra.mxu0 0.0
        %5438 = vmatprep.subr.mxu0 0.0
        %5439 = vmatpush2.msra.mxu0 0.0
        %5440 = vmatprep.subr.mxu0 0.0
        %5441 = vmatpush2.msra.mxu0 0.0
        %5442 = vmatprep.subr.mxu0 0.0
        %5443 = vmatpush2.msra.mxu0 0.0
        %5444 = vmatprep.subr.mxu0 0.0
        %5445 = vmatpush2.msra.mxu0 0.0
        %5446 = vmatprep.subr.mxu0 0.0
        %5447 = vmatpush2.msra.mxu0 0.0
        %5448 = vmatprep.subr.mxu0 0.0
        %5449 = vmatpush2.msra.mxu0 0.0
        %5450 = vmatprep.subr.mxu0 0.0
        %5451 = vmatpush2.msra.mxu0 0.0
        %5452 = vmatprep.subr.mxu0 0.0
        %5453 = vmatpush2.msra.mxu0 0.0
        %5454 = vmatprep.subr.mxu0 0.0
        %5455 = vmatpush2.msra.mxu0 0.0
        %5456 = vmatprep.subr.mxu0 0.0
        %5457 = vmatpush2.msra.mxu0 0.0
        %5458 = vmatprep.subr.mxu0 0.0
        %5459 = vmatpush2.msra.mxu0 0.0
        %5460 = vmatprep.subr.mxu0 0.0
        %5461 = vmatpush2.msra.mxu0 0.0
        %5462 = vmatprep.mubr.f32.mxu0 0.0
        %5463 = vmatmul.mubr.f32.gmra.mxu0 %v5018
        %v5464 = vpop.f32.mrf.mxu0
        %v5465 = vadd.f32 0.0, %v5464
        %v5466 = vpop.f32.mrf.mxu0
        %5467 = vmatprep.mubr.f32.mxu0 0.0
        %5468 = vmatmul.mubr.f32.gmra.mxu0 %v5021
        %v5469 = vpop.f32.mrf.mxu0
        %v5470 = vadd.f32 0.0, %v5469
        %v5471 = vpop.f32.mrf.mxu0
        %5472 = vdwg.mxu0
        %5473 = vmatprep.subr.mxu0 0.0
        %5474 = vmatpush1.msra.mxu0 0.0
        %5475 = vmatprep.subr.mxu0 0.0
        %5476 = vmatpush1.msra.mxu0 0.0
        %5477 = vmatprep.subr.mxu0 0.0
        %5478 = vmatpush1.msra.mxu0 0.0
        %5479 = vmatprep.subr.mxu0 0.0
        %5480 = vmatpush1.msra.mxu0 0.0
        %5481 = vmatprep.subr.mxu0 0.0
        %5482 = vmatpush1.msra.mxu0 0.0
        %5483 = vmatprep.subr.mxu0 0.0
        %5484 = vmatpush1.msra.mxu0 0.0
        %5485 = vmatprep.subr.mxu0 0.0
        %5486 = vmatpush1.msra.mxu0 0.0
        %5487 = vmatprep.subr.mxu0 0.0
        %5488 = vmatpush1.msra.mxu0 0.0
        %5489 = vmatprep.subr.mxu0 0.0
        %5490 = vmatpush1.msra.mxu0 0.0
        %5491 = vmatprep.subr.mxu0 0.0
        %5492 = vmatpush1.msra.mxu0 0.0
        %5493 = vmatprep.subr.mxu0 0.0
        %5494 = vmatpush1.msra.mxu0 0.0
        %5495 = vmatprep.subr.mxu0 0.0
        %5496 = vmatpush1.msra.mxu0 0.0
        %5497 = vmatprep.subr.mxu0 0.0
        %5498 = vmatpush1.msra.mxu0 0.0
        %5499 = vmatprep.subr.mxu0 0.0
        %5500 = vmatpush1.msra.mxu0 0.0
        %5501 = vmatprep.subr.mxu0 0.0
        %5502 = vmatpush1.msra.mxu0 0.0
        %5503 = vmatprep.subr.mxu0 0.0
        %5504 = vmatpush1.msra.mxu0 %v5007
        %5505 = vmatprep.subr.mxu0 0.0
        %5506 = vmatpush2.msra.mxu0 0.0
        %5507 = vmatprep.subr.mxu0 0.0
        %5508 = vmatpush2.msra.mxu0 0.0
        %5509 = vmatprep.subr.mxu0 0.0
        %5510 = vmatpush2.msra.mxu0 0.0
        %5511 = vmatprep.subr.mxu0 0.0
        %5512 = vmatpush2.msra.mxu0 0.0
        %5513 = vmatprep.subr.mxu0 0.0
        %5514 = vmatpush2.msra.mxu0 0.0
        %5515 = vmatprep.subr.mxu0 0.0
        %5516 = vmatpush2.msra.mxu0 0.0
        %5517 = vmatprep.subr.mxu0 0.0
        %5518 = vmatpush2.msra.mxu0 0.0
        %5519 = vmatprep.subr.mxu0 0.0
        %5520 = vmatpush2.msra.mxu0 0.0
        %5521 = vmatprep.subr.mxu0 0.0
        %5522 = vmatpush2.msra.mxu0 0.0
        %5523 = vmatprep.subr.mxu0 0.0
        %5524 = vmatpush2.msra.mxu0 0.0
        %5525 = vmatprep.subr.mxu0 0.0
        %5526 = vmatpush2.msra.mxu0 0.0
        %5527 = vmatprep.subr.mxu0 0.0
        %5528 = vmatpush2.msra.mxu0 0.0
        %5529 = vmatprep.subr.mxu0 0.0
        %5530 = vmatpush2.msra.mxu0 0.0
        %5531 = vmatprep.subr.mxu0 0.0
        %5532 = vmatpush2.msra.mxu0 0.0
        %5533 = vmatprep.subr.mxu0 0.0
        %5534 = vmatpush2.msra.mxu0 0.0
        %5535 = vmatprep.subr.mxu0 0.0
        %5536 = vmatpush2.msra.mxu0 0.0
        %5537 = vmatprep.mubr.f32.mxu0 0.0
        %5538 = vmatmul.mubr.f32.gmra.mxu0 %v5018
        %v5539 = vpop.f32.mrf.mxu0
        %v5540 = vadd.f32 0.0, %v5539
        %v5541 = vpop.f32.mrf.mxu0
        %5542 = vmatprep.mubr.f32.mxu0 0.0
        %5543 = vmatmul.mubr.f32.gmra.mxu0 %v5021
        %v5544 = vpop.f32.mrf.mxu0
        %v5545 = vadd.f32 0.0, %v5544
        %v5546 = vpop.f32.mrf.mxu0
        %5547 = vdwg.mxu0
        %5548 = vmatprep.subr.mxu0 0.0
        %5549 = vmatpush1.msra.mxu0 0.0
        %5550 = vmatprep.subr.mxu0 0.0
        %5551 = vmatpush1.msra.mxu0 0.0
        %5552 = vmatprep.subr.mxu0 0.0
        %5553 = vmatpush1.msra.mxu0 0.0
        %5554 = vmatprep.subr.mxu0 0.0
        %5555 = vmatpush1.msra.mxu0 0.0
        %5556 = vmatprep.subr.mxu0 0.0
        %5557 = vmatpush1.msra.mxu0 0.0
        %5558 = vmatprep.subr.mxu0 0.0
        %5559 = vmatpush1.msra.mxu0 0.0
        %5560 = vmatprep.subr.mxu0 0.0
        %5561 = vmatpush1.msra.mxu0 0.0
        %5562 = vmatprep.subr.mxu0 0.0
        %5563 = vmatpush1.msra.mxu0 0.0
        %5564 = vmatprep.subr.mxu0 0.0
        %5565 = vmatpush1.msra.mxu0 0.0
        %5566 = vmatprep.subr.mxu0 0.0
        %5567 = vmatpush1.msra.mxu0 0.0
        %5568 = vmatprep.subr.mxu0 0.0
        %5569 = vmatpush1.msra.mxu0 0.0
        %5570 = vmatprep.subr.mxu0 0.0
        %5571 = vmatpush1.msra.mxu0 0.0
        %5572 = vmatprep.subr.mxu0 0.0
        %5573 = vmatpush1.msra.mxu0 0.0
        %5574 = vmatprep.subr.mxu0 0.0
        %5575 = vmatpush1.msra.mxu0 0.0
        %5576 = vmatprep.subr.mxu0 0.0
        %5577 = vmatpush1.msra.mxu0 0.0
        %5578 = vmatprep.subr.mxu0 0.0
        %5579 = vmatpush1.msra.mxu0 %v5012
        %5580 = vmatprep.subr.mxu0 0.0
        %5581 = vmatpush2.msra.mxu0 0.0
        %5582 = vmatprep.subr.mxu0 0.0
        %5583 = vmatpush2.msra.mxu0 0.0
        %5584 = vmatprep.subr.mxu0 0.0
        %5585 = vmatpush2.msra.mxu0 0.0
        %5586 = vmatprep.subr.mxu0 0.0
        %5587 = vmatpush2.msra.mxu0 0.0
        %5588 = vmatprep.subr.mxu0 0.0
        %5589 = vmatpush2.msra.mxu0 0.0
        %5590 = vmatprep.subr.mxu0 0.0
        %5591 = vmatpush2.msra.mxu0 0.0
        %5592 = vmatprep.subr.mxu0 0.0
        %5593 = vmatpush2.msra.mxu0 0.0
        %5594 = vmatprep.subr.mxu0 0.0
        %5595 = vmatpush2.msra.mxu0 0.0
        %5596 = vmatprep.subr.mxu0 0.0
        %5597 = vmatpush2.msra.mxu0 0.0
        %5598 = vmatprep.subr.mxu0 0.0
        %5599 = vmatpush2.msra.mxu0 0.0
        %5600 = vmatprep.subr.mxu0 0.0
        %5601 = vmatpush2.msra.mxu0 0.0
        %5602 = vmatprep.subr.mxu0 0.0
        %5603 = vmatpush2.msra.mxu0 0.0
        %5604 = vmatprep.subr.mxu0 0.0
        %5605 = vmatpush2.msra.mxu0 0.0
        %5606 = vmatprep.subr.mxu0 0.0
        %5607 = vmatpush2.msra.mxu0 0.0
        %5608 = vmatprep.subr.mxu0 0.0
        %5609 = vmatpush2.msra.mxu0 0.0
        %5610 = vmatprep.subr.mxu0 0.0
        %5611 = vmatpush2.msra.mxu0 0.0
        %5612 = vmatprep.mubr.f32.mxu0 0.0
        %5613 = vmatmul.mubr.f32.gmra.mxu0 %v5018
        %v5614 = vpop.f32.mrf.mxu0
        %v5615 = vadd.f32 0.0, %v5614
        %v5616 = vpop.f32.mrf.mxu0
        %5617 = vmatprep.mubr.f32.mxu0 0.0
        %5618 = vmatmul.mubr.f32.gmra.mxu0 %v5021
        %v5619 = vpop.f32.mrf.mxu0
        %v5620 = vadd.f32 0.0, %v5619
        %v5621 = vpop.f32.mrf.mxu0
        %5622 = vdwg.mxu0
        %vm5623 = vcmask 130048
        %5624 = vst.msk [vmem:[%s436] sm:$0xff] %vm5623, %v5090
        %5625 = vst.msk [vmem:[%s436 + $0x8] sm:$0xff] %vm5623, %v5095
        %5626 = vst.msk [vmem:[%s436 + $0x10] sm:$0xff] %vm5623, %v5165
        %5627 = vst.msk [vmem:[%s436 + $0x18] sm:$0xff] %vm5623, %v5170
        %5628 = vst.msk [vmem:[%s436 + $0x20] sm:$0xff] %vm5623, %v5240
        %5629 = vst.msk [vmem:[%s436 + $0x28] sm:$0xff] %vm5623, %v5245
        %5630 = vst.msk [vmem:[%s436 + $0x30] sm:$0xff] %vm5623, %v5315
        %5631 = vst.msk [vmem:[%s436 + $0x38] sm:$0xff] %vm5623, %v5320
        %5632 = vst.msk [vmem:[%s436 + $0x40] sm:$0xff] %vm5623, %v5390
        %5633 = vst.msk [vmem:[%s436 + $0x48] sm:$0xff] %vm5623, %v5395
        %5634 = vst.msk [vmem:[%s436 + $0x50] sm:$0xff] %vm5623, %v5465
        %5635 = vst.msk [vmem:[%s436 + $0x58] sm:$0xff] %vm5623, %v5470
        %5636 = vst.msk [vmem:[%s436 + $0x60] sm:$0xff] %vm5623, %v5540
        %5637 = vst.msk [vmem:[%s436 + $0x68] sm:$0xff] %vm5623, %v5545
        %5638 = vst.msk [vmem:[%s436 + $0x70] sm:$0xff] %vm5623, %v5615
        %5639 = vst.msk [vmem:[%s436 + $0x78] sm:$0xff] %vm5623, %v5620
        %s5640 = sand.u32 %s295, 1
        %s5641 = scalar_lea.sflag [#allocation8], %s5640
        %s5642 = sand.u32 %s295, 1
        %s5643 = smul.addr %s5642, 128
        %s5644 = scalar_lea.vmem [#allocation11], %s5643
        // Predicated region
        $region77: #{tpu_custom_call.1} parent=67 // pred_check
          %p5645 = pneg %p305
        $region78: #{tpu_custom_call.1} parent=67 // pred_check_branch
          %5647 = sbr.rel (%p5645) target = $region80
        $region79: #{tpu_custom_call.1} parent=67 // pred_region
          %s5649 = ssub.s32 2048, 2048
          %5650 = vsyncadd %s5641, %s5649
          %s5651 = smul.addr %s30, 16
          %s5652 = smul.addr %s5651, 128
          %s5653 = scalar_lea.hbm %s12, %s5652
          %s5654 = sshll.u32 %s5644, 4
          %s5655 = int_to_ptr.vmem [resolvable:$true] %s5654
          %5660 = dma.vmem_to_hbm [thread:$0]  %s5655, 2048, %s5653, %s5641, 128, 128, 8
        $region80: #{tpu_custom_call.1} parent=67 // pred_fallthru
          _
      $region68: #{tpu_custom_call.1} parent=5 // pred_fallthru
        _
      %p5661 = scmp.le.s32.totalorder 2, %s25
      // Predicated region
      $region81: #{tpu_custom_call.1} parent=5 // pred_check
        %p5662 = pneg %p5661
      $region82: #{tpu_custom_call.1} parent=5 // pred_check_branch
        %5664 = sbr.rel (%p5662) target = $region84
      $region83: #{tpu_custom_call.1} parent=5 // pred_region
        %s5665 = ssub.s32 %s25, 2
        // Predicated region
        $region85: #{tpu_custom_call.1} parent=83 // pred_check
          %p5666 = pneg %p311
        $region86: #{tpu_custom_call.1} parent=83 // pred_check_branch
          %5668 = sbr.rel (%p5666) target = $region88
        $region87: #{tpu_custom_call.1} parent=83 // pred_region
          %s5669 = sand.u32 %s296, 1
          %s5670 = scalar_lea.sflag [#allocation8], %s5669
          %s5671 = sand.u32 %s296, 1
          %s5672 = smul.addr %s5671, 128
          %s5673 = scalar_lea.vmem [#allocation11], %s5672
          %5674 = dma.done %s5670, 2048
        $region88: #{tpu_custom_call.1} parent=83 // pred_fallthru
          _
      $region84: #{tpu_custom_call.1} parent=5 // pred_fallthru
        _
    $region6: #{tpu_custom_call.1} parent=1 // loop_footer
      %s29 = sadd.s32 1, %s25
    $region7: #{tpu_custom_call.1} parent=1 // loop_footer_branch
      %24 = sbr.rel target = $region3
    $region8: #{tpu_custom_call.1} parent=1 // loop_exit
      _
    %5675 = vsyncpa [#allocation7], 1
    %s5676 = scalar_lea.sflag [#allocation7], 1
    %5677 = vsyncpa %s5676, 1
    %5678 = vsyncpa [#allocation10], 1
    %5679 = vsyncpa [#allocation8], 1
    %s5680 = scalar_lea.sflag [#allocation8], 1
    %5681 = vsyncpa %s5680, 1

</llo_original>
